<compile_context>
chip_gen: v7x
topology: tpu7x:2x2x1
jax: 0.10.0
libtpu: 0.0.40
codegen_flags: <defaults>
</compile_context>

<pallas_src>
import numpy as np
import jax
import jax.numpy as jnp
from jax.experimental import pallas as pl
from jax.experimental.pallas import tpu as pltpu

C = 16  # channel count of every conv in the module


# -----------------------------------------------------------------------------
# Kernel
# -----------------------------------------------------------------------------
def _make_resnet2_kernel(B, H, W):
    H2, W2, Hf = H // 2, W // 2, H // 4
    WC, W2C = W * C, W2 * C
    HB, H2B = H * B, H2 * B
    f32 = jnp.float32

    def mm(a, b):
        return jnp.dot(a, b, preferred_element_type=f32)

    def relu(v):
        return jnp.maximum(v, 0.0)

    def kernel(x_ref,
               e1_ref, b1_ref,
               m401_ref, b401_ref, m402_ref, b402_ref, p40_ref,
               m201_ref, b201_ref, m202_ref, b202_ref,
               wtail_ref, btail_ref,
               out_ref):
        # ---- conv1 (1x1, 1->16) + relu: one (H*B, W) @ (W, W*C) matmul --------
        x = x_ref[...].reshape(HB, W)                       # rows ordered (h, image)
        c1 = relu(mm(x, e1_ref[...]) + b1_ref[...])         # (H*B, W*C)
        c1r = c1.reshape(H, B, WC)
        zrow = jnp.zeros((1, B, WC), f32)

        # ---- res_block_40 -----------------------------------------------------
        # conv40_1: 4x4 'same' -> H pad (1 top, 2 bottom) as zero rows; W pad is
        # folded into the banded matrices m401[kh].
        pad40 = jnp.concatenate([zrow, c1r, zrow, zrow], axis=0)     # (H+3, B, WC)
        acc = mm(pad40[0:H].reshape(HB, WC), m401_ref[0])
        for kh in range(1, 4):
            acc = acc + mm(pad40[kh:kh + H].reshape(HB, WC), m401_ref[kh])
        c401 = relu(acc + b401_ref[...])                    # (H*B, W*C)

        # conv40_2: 2x2 'same' -> H pad (0 top, 1 bottom); then residual add.
        pad40b = jnp.concatenate([c401.reshape(H, B, WC), zrow], axis=0)
        acc = mm(pad40b[0:H].reshape(HB, WC), m402_ref[0])
        acc = acc + mm(pad40b[1:1 + H].reshape(HB, WC), m402_ref[1])
        b40 = relu(acc + b402_ref[...]) + c1                # (H*B, W*C)

        # ---- pool40: AvgPool2d(2,2); 1/4 scale lives in p40 ---------------------
        hp = b40.reshape(H2, 2, B, WC).sum(axis=1)          # pairwise row sum
        p40o = mm(hp.reshape(H2B, WC), p40_ref[...])        # (H2*B, W2*C)

        # ---- res_block_20 -------------------------------------------------------
        zrow2 = jnp.zeros((1, B, W2C), f32)
        pad20 = jnp.concatenate([p40o.reshape(H2, B, W2C), zrow2], axis=0)
        acc = mm(pad20[0:H2].reshape(H2B, W2C), m201_ref[0])
        acc = acc + mm(pad20[1:1 + H2].reshape(H2B, W2C), m201_ref[1])
        c201 = relu(acc + b201_ref[...])                    # conv20_1 + relu
        c202 = relu(mm(c201, m202_ref[...]) + b202_ref[...])  # conv20_2 (1x1) + relu
        b20 = c202 + p40o                                   # residual add

        # ---- pool20 + flatten + fcc1 + fcc2 + classifier ------------------------
        # No activation between these layers in the module, so the whole tail is a
        # single (W2*C, 1) affine map precomputed on the host (wtail / btail).
        hp2 = b20.reshape(Hf, 2, B, W2C).sum(axis=1)        # (Hf, B, W2*C), Hf == 1
        y = mm(hp2.reshape(Hf * B, W2C), wtail_ref[...]) + btail_ref[...]   # (B, 1)

        # (B, 1) -> (1, 1, B) lane-dense output row using only broadcast /
        # compare / reduce (avoids a sublane<->lane reshape of a skinny array).
        rows = jax.lax.broadcasted_iota(jnp.int32, (B, B), 0)
        cols = jax.lax.broadcasted_iota(jnp.int32, (B, B), 1)
        eye = (rows == cols).astype(f32)
        out_ref[...] = jnp.sum(y * eye, axis=0, keepdims=True).reshape(1, 1, B)

    return kernel


# -----------------------------------------------------------------------------
# Wrapper: weight re-packing (banded conv matrices, pooling matrices, folded tail)
# -----------------------------------------------------------------------------
def _round_up(v, m):
    return (v + m - 1) // m * m


def _shift_matrix(wdim, offset):
    m = np.zeros((wdim, wdim), np.float32)
    for wo in range(wdim):
        wi = wo + offset
        if 0 <= wi < wdim:
            m[wi, wo] = 1.0
    return m


def _band_matrices(conv_w, pad_left, wdim):
    """(Cout, Cin, KH, KW) conv weight -> (KH, wdim*Cin, wdim*Cout) banded matrices.

    M[kh][wi*C+ci, wo*C+co] = w[co, ci, kh, wi - wo + pad_left] (zero outside the band),
    which reproduces PyTorch padding='same' along W when applied to an unpadded row.
    """
    cout, cin, kh_n, kw_n = conv_w.shape
    mats = []
    for kh in range(kh_n):
        m = jnp.zeros((wdim * cin, wdim * cout), jnp.float32)
        for kw in range(kw_n):
            s = _shift_matrix(wdim, kw - pad_left)
            m = m + jnp.kron(jnp.asarray(s), conv_w[:, :, kh, kw].T)
        mats.append(m)
    return jnp.stack(mats, axis=0)


def _pool_matrix(w_in, scale):
    w_out = w_in // 2
    pw = np.zeros((w_in, w_out), np.float32)
    pw[2 * np.arange(w_out), np.arange(w_out)] = scale
    pw[2 * np.arange(w_out) + 1, np.arange(w_out)] = scale
    return jnp.asarray(np.kron(pw, np.eye(C, dtype=np.float32)))  # (w_in*C, w_out*C)


def _tile_bias(b, w):
    return jnp.tile(b, w).reshape(1, w * C)


def resnet2_forward(x_nchw, params, *, block_n=128):
    N, Ci, H, W = x_nchw.shape
    assert Ci == 1 and H % 4 == 0 and W % 4 == 0
    H2, W2, Hf, Wf = H // 2, W // 2, H // 4, W // 4
    assert Hf == 1 and C * Hf * Wf == 160, "module requires 160 flattened features"

    B = block_n if N >= block_n else _round_up(N, 8)
    n_pad = _round_up(N, B)
    G = n_pad // B

    # (N,1,H,W) -> (H, N_pad, W), zero-padded along the batch axis.
    x = x_nchw.astype(jnp.float32).reshape(N, H, W)
    if n_pad != N:
        x = jnp.pad(x, ((0, n_pad - N), (0, 0), (0, 0)))
    x_hnw = jnp.transpose(x, (1, 0, 2))

    p = params
    # conv1 (1x1, 1->C) as a (W, W*C) expansion matrix.
    e1 = jnp.kron(jnp.asarray(np.eye(W, dtype=np.float32)), p['conv1_w'].reshape(1, C))
    b1 = _tile_bias(p['conv1_b'], W)
    # res_block_40 convs as banded (W*C, W*C) matrices, one per kh tap.
    m401 = _band_matrices(p['conv40_1_w'], pad_left=1, wdim=W)   # k=4: pad (1, 2)
    b401 = _tile_bias(p['conv40_1_b'], W)
    m402 = _band_matrices(p['conv40_2_w'], pad_left=0, wdim=W)   # k=2: pad (0, 1)
    b402 = _tile_bias(p['conv40_2_b'], W)
    p40 = _pool_matrix(W, 0.25)                                  # (W*C, W2*C), 1/4 folded in
    # res_block_20
    m201 = _band_matrices(p['conv20_1_w'], pad_left=0, wdim=W2)
    b201 = _tile_bias(p['conv20_1_b'], W2)
    m202 = jnp.kron(jnp.asarray(np.eye(W2, dtype=np.float32)),
                    p['conv20_2_w'].reshape(C, C).T)             # 1x1 conv
    b202 = _tile_bias(p['conv20_2_b'], W2)

    # Tail: pool20 + flatten + fcc1 + fcc2 + classifier are purely affine (no relu
    # between them), so fold them into a single (W2*C, 1) mat-vec + scalar bias.
    # torch.flatten's (c, hf, wf) order is folded into fcc1's rows via `perm`.
    p20 = _pool_matrix(W2, 0.25)                                 # (W2*C, 160), 1/4 folded in
    perm = (np.arange(C)[None, :] * Wf + np.arange(Wf)[:, None]).reshape(-1)
    wfc1 = p['fcc1_w'].T[perm, :]                                # (160, 280)
    wfc2 = p['fcc2_w'].T                                         # (280, 160)
    wcls = p['cls_w'].T                                          # (160, 1)
    w_fc = wfc1 @ (wfc2 @ wcls)                                  # (160, 1)
    wtail = p20 @ w_fc                                           # (W2*C, 1)
    btail = ((p['fcc1_b'] @ wfc2 + p['fcc2_b']) @ wcls + p['cls_b']).reshape(1, 1)

    weights = [e1, b1, m401, b401, m402, b402, p40,
               m201, b201, m202, b202, wtail, btail]

    def const_spec(a):
        return pl.BlockSpec(a.shape, lambda g, _nd=a.ndim: (0,) * _nd)

    in_specs = [pl.BlockSpec((H, B, W), lambda g: (0, g, 0))]
    in_specs += [const_spec(a) for a in weights]

    kernel = _make_resnet2_kernel(B, H, W)

    out = pl.pallas_call(
        kernel,
        out_shape=jax.ShapeDtypeStruct((G, 1, B), jnp.float32),
        grid_spec=pltpu.PrefetchScalarGridSpec(
            num_scalar_prefetch=0,
            grid=(G,),
            in_specs=in_specs,
            out_specs=pl.BlockSpec((1, 1, B), lambda g: (g, 0, 0)),
        ),
        compiler_params=pltpu.CompilerParams(
            dimension_semantics=("parallel",),
            vmem_limit_bytes=56 * 1024 * 1024),
    )(x_hnw, *weights)

    return out.reshape(n_pad, 1)[:N]


# -----------------------------------------------------------------------------
# Pure-JAX reference (sanity check only)
# -----------------------------------------------------------------------------
def resnet2_reference(x_nchw, p):
    x = x_nchw.astype(jnp.float32)
    dn = ('NCHW', 'OIHW', 'NCHW')
    conv = lambda v, w, pad: jax.lax.conv_general_dilated(
        v, w, (1, 1), pad, dimension_numbers=dn)
    bias = lambda b: b[None, :, None, None]
    pool = lambda v: jax.lax.reduce_window(
        v, 0.0, jax.lax.add, (1, 1, 2, 2), (1, 1, 2, 2), 'VALID') / 4.0

    out = jax.nn.relu(conv(x, p['conv1_w'], [(0, 0), (0, 0)]) + bias(p['conv1_b']))
    res = out
    out = jax.nn.relu(conv(res, p['conv40_1_w'], [(1, 2), (1, 2)]) + bias(p['conv40_1_b']))
    out = jax.nn.relu(conv(out, p['conv40_2_w'], [(0, 1), (0, 1)]) + bias(p['conv40_2_b']))
    out = out + res
    out = pool(out)
    res = out
    out = jax.nn.relu(conv(res, p['conv20_1_w'], [(0, 1), (0, 1)]) + bias(p['conv20_1_b']))
    out = jax.nn.relu(conv(out, p['conv20_2_w'], [(0, 0), (0, 0)]) + bias(p['conv20_2_b']))
    out = out + res
    out = pool(out)
    flat = out.reshape(out.shape[0], -1)
    y = flat @ p['fcc1_w'].T + p['fcc1_b']
    y = y @ p['fcc2_w'].T + p['fcc2_b']
    y = y @ p['cls_w'].T + p['cls_b']
    return y


# -----------------------------------------------------------------------------
# Deterministic parameter init (shapes from Resnet2.__init__)
# -----------------------------------------------------------------------------
def init_params(key):
    ks = jax.random.split(key, 16)

    def convw(k, co, ci, kh, kw):
        return jax.random.normal(k, (co, ci, kh, kw), jnp.float32) / np.sqrt(ci * kh * kw)

    def linw(k, o, i):
        return jax.random.normal(k, (o, i), jnp.float32) / np.sqrt(i)

    def bvec(k, n):
        return 0.5 * jax.random.normal(k, (n,), jnp.float32)

    return {
        'conv1_w': convw(ks[0], C, 1, 1, 1), 'conv1_b': bvec(ks[1], C),
        'conv40_1_w': convw(ks[2], C, C, 4, 4), 'conv40_1_b': bvec(ks[3], C),
        'conv40_2_w': convw(ks[4], C, C, 2, 2), 'conv40_2_b': bvec(ks[5], C),
        'conv20_1_w': convw(ks[6], C, C, 2, 2), 'conv20_1_b': bvec(ks[7], C),
        'conv20_2_w': convw(ks[8], C, C, 1, 1), 'conv20_2_b': bvec(ks[9], C),
        'fcc1_w': linw(ks[10], 280, 160), 'fcc1_b': bvec(ks[11], 280),
        'fcc2_w': linw(ks[12], 160, 280), 'fcc2_b': bvec(ks[13], 160),
        'cls_w': linw(ks[14], 1, 160), 'cls_b': bvec(ks[15], 1),
    }


if __name__ == "__main__":
    key = jax.random.PRNGKey(0)
    kp, kx = jax.random.split(key)
    params = init_params(kp)

    # Input (N, 1, 4, 40): two 2x2 pools -> (1, 10); flatten = 16*1*10 = 160,
    # matching fcc1.in_features = 160 in the PyTorch module.
    x = jax.random.normal(kx, (2, 1, 4, 40), jnp.float32)

    out = jax.jit(resnet2_forward)(x, params)
    out = jax.block_until_ready(out)

    ref = resnet2_reference(x, params)
    np.testing.assert_allclose(np.asarray(out), np.asarray(ref), rtol=5e-2, atol=5e-2)

    print("KERNEL_OK")
</pallas_src>

<mosaic_0001>
module attributes {stable_mosaic.version = 11 : i64} {
  func.func @kernel(%arg0: i32, %arg1: memref<4x8x40xf32, #tpu.memory_space<vmem>>, %arg2: memref<40x640xf32, #tpu.memory_space<vmem>>, %arg3: memref<1x640xf32, #tpu.memory_space<vmem>>, %arg4: memref<4x640x640xf32, #tpu.memory_space<vmem>>, %arg5: memref<1x640xf32, #tpu.memory_space<vmem>>, %arg6: memref<2x640x640xf32, #tpu.memory_space<vmem>>, %arg7: memref<1x640xf32, #tpu.memory_space<vmem>>, %arg8: memref<640x320xf32, #tpu.memory_space<vmem>>, %arg9: memref<2x320x320xf32, #tpu.memory_space<vmem>>, %arg10: memref<1x320xf32, #tpu.memory_space<vmem>>, %arg11: memref<320x320xf32, #tpu.memory_space<vmem>>, %arg12: memref<1x320xf32, #tpu.memory_space<vmem>>, %arg13: memref<320x1xf32, #tpu.memory_space<vmem>>, %arg14: memref<1x1xf32, #tpu.memory_space<vmem>>, %arg15: memref<1x1x8xf32, #tpu.memory_space<vmem>>) attributes {dimension_semantics = [#tpu.dimension_semantics<parallel>], iteration_bounds = array<i64: 1>, scalar_prefetch = 0 : i64, scratch_operands = 0 : i64, tpu.core_type = #tpu.core_type<tc>, window_params = [{transform_indices = @transform_0, window_bounds = array<i64: 4, 8, 40>}, {pipeline_mode = #tpu.pipeline_mode<synchronous>, transform_indices = @transform_1, window_bounds = array<i64: 40, 640>}, {pipeline_mode = #tpu.pipeline_mode<synchronous>, transform_indices = @transform_2, window_bounds = array<i64: 1, 640>}, {pipeline_mode = #tpu.pipeline_mode<synchronous>, transform_indices = @transform_3, window_bounds = array<i64: 4, 640, 640>}, {pipeline_mode = #tpu.pipeline_mode<synchronous>, transform_indices = @transform_4, window_bounds = array<i64: 1, 640>}, {pipeline_mode = #tpu.pipeline_mode<synchronous>, transform_indices = @transform_5, window_bounds = array<i64: 2, 640, 640>}, {pipeline_mode = #tpu.pipeline_mode<synchronous>, transform_indices = @transform_6, window_bounds = array<i64: 1, 640>}, {pipeline_mode = #tpu.pipeline_mode<synchronous>, transform_indices = @transform_7, window_bounds = array<i64: 640, 320>}, {pipeline_mode = #tpu.pipeline_mode<synchronous>, transform_indices = @transform_8, window_bounds = array<i64: 2, 320, 320>}, {pipeline_mode = #tpu.pipeline_mode<synchronous>, transform_indices = @transform_9, window_bounds = array<i64: 1, 320>}, {pipeline_mode = #tpu.pipeline_mode<synchronous>, transform_indices = @transform_10, window_bounds = array<i64: 320, 320>}, {pipeline_mode = #tpu.pipeline_mode<synchronous>, transform_indices = @transform_11, window_bounds = array<i64: 1, 320>}, {pipeline_mode = #tpu.pipeline_mode<synchronous>, transform_indices = @transform_12, window_bounds = array<i64: 320, 1>}, {pipeline_mode = #tpu.pipeline_mode<synchronous>, transform_indices = @transform_13, window_bounds = array<i64: 1, 1>}, {transform_indices = @transform_14, window_bounds = array<i64: 1, 1, 8>}]} {
    %c0 = arith.constant 0 : index
    %c0_0 = arith.constant 0 : index
    %c0_1 = arith.constant 0 : index
    %0 = vector.load %arg1[%c0, %c0_0, %c0_1] : memref<4x8x40xf32, #tpu.memory_space<vmem>>, vector<4x8x40xf32>
    %1 = vector.shape_cast %0 : vector<4x8x40xf32> to vector<32x40xf32>
    %c0_2 = arith.constant 0 : index
    %c0_3 = arith.constant 0 : index
    %2 = vector.load %arg2[%c0_2, %c0_3] : memref<40x640xf32, #tpu.memory_space<vmem>>, vector<40x640xf32>
    %cst = arith.constant dense<0.000000e+00> : vector<32x640xf32>
    %3 = tpu.matmul %1, %2, %cst {dimension_numbers = #tpu.dot_dimension_numbers<[1], [0], [0], [1], [0, 0, 1, 1], [], []>} : vector<32x40xf32>, vector<40x640xf32>, vector<32x640xf32> -> vector<32x640xf32>
    %c0_4 = arith.constant 0 : index
    %c0_5 = arith.constant 0 : index
    %4 = vector.load %arg3[%c0_4, %c0_5] : memref<1x640xf32, #tpu.memory_space<vmem>>, vector<1x640xf32>
    %5 = vector.broadcast %4 : vector<1x640xf32> to vector<32x640xf32>
    %6 = arith.addf %3, %5 : vector<32x640xf32>
    %cst_6 = arith.constant 0.000000e+00 : f32
    %7 = vector.broadcast %cst_6 : f32 to vector<32x640xf32>
    %8 = arith.maximumf %6, %7 : vector<32x640xf32>
    %9 = vector.shape_cast %8 : vector<32x640xf32> to vector<4x8x640xf32>
    %cst_7 = arith.constant 0.000000e+00 : f32
    %10 = vector.broadcast %cst_7 : f32 to vector<1x8x640xf32>
    %11 = tpu.concatenate %10, %9, %10, %10 in 0 : vector<1x8x640xf32>, vector<4x8x640xf32>, vector<1x8x640xf32>, vector<1x8x640xf32> -> vector<7x8x640xf32>
    %12 = vector.extract_strided_slice %11 {offsets = [0, 0, 0], sizes = [4, 8, 640], strides = [1, 1, 1]} : vector<7x8x640xf32> to vector<4x8x640xf32>
    %13 = vector.shape_cast %12 : vector<4x8x640xf32> to vector<32x640xf32>
    %c0_8 = arith.constant 0 : index
    %c0_9 = arith.constant 0 : index
    %c0_10 = arith.constant 0 : index
    %14 = vector.load %arg4[%c0_8, %c0_9, %c0_10] : memref<4x640x640xf32, #tpu.memory_space<vmem>>, vector<1x640x640xf32>
    %15 = vector.shape_cast %14 : vector<1x640x640xf32> to vector<640x640xf32>
    %cst_11 = arith.constant dense<0.000000e+00> : vector<32x640xf32>
    %16 = tpu.matmul %13, %15, %cst_11 {dimension_numbers = #tpu.dot_dimension_numbers<[1], [0], [0], [1], [0, 0, 1, 1], [], []>} : vector<32x640xf32>, vector<640x640xf32>, vector<32x640xf32> -> vector<32x640xf32>
    %17 = vector.extract_strided_slice %11 {offsets = [1, 0, 0], sizes = [4, 8, 640], strides = [1, 1, 1]} : vector<7x8x640xf32> to vector<4x8x640xf32>
    %18 = vector.shape_cast %17 : vector<4x8x640xf32> to vector<32x640xf32>
    %c1 = arith.constant 1 : index
    %c0_12 = arith.constant 0 : index
    %c0_13 = arith.constant 0 : index
    %19 = vector.load %arg4[%c1, %c0_12, %c0_13] : memref<4x640x640xf32, #tpu.memory_space<vmem>>, vector<1x640x640xf32>
    %20 = vector.shape_cast %19 : vector<1x640x640xf32> to vector<640x640xf32>
    %cst_14 = arith.constant dense<0.000000e+00> : vector<32x640xf32>
    %21 = tpu.matmul %18, %20, %cst_14 {dimension_numbers = #tpu.dot_dimension_numbers<[1], [0], [0], [1], [0, 0, 1, 1], [], []>} : vector<32x640xf32>, vector<640x640xf32>, vector<32x640xf32> -> vector<32x640xf32>
    %22 = arith.addf %16, %21 : vector<32x640xf32>
    %23 = vector.extract_strided_slice %11 {offsets = [2, 0, 0], sizes = [4, 8, 640], strides = [1, 1, 1]} : vector<7x8x640xf32> to vector<4x8x640xf32>
    %24 = vector.shape_cast %23 : vector<4x8x640xf32> to vector<32x640xf32>
    %c2 = arith.constant 2 : index
    %c0_15 = arith.constant 0 : index
    %c0_16 = arith.constant 0 : index
    %25 = vector.load %arg4[%c2, %c0_15, %c0_16] : memref<4x640x640xf32, #tpu.memory_space<vmem>>, vector<1x640x640xf32>
    %26 = vector.shape_cast %25 : vector<1x640x640xf32> to vector<640x640xf32>
    %cst_17 = arith.constant dense<0.000000e+00> : vector<32x640xf32>
    %27 = tpu.matmul %24, %26, %cst_17 {dimension_numbers = #tpu.dot_dimension_numbers<[1], [0], [0], [1], [0, 0, 1, 1], [], []>} : vector<32x640xf32>, vector<640x640xf32>, vector<32x640xf32> -> vector<32x640xf32>
    %28 = arith.addf %22, %27 : vector<32x640xf32>
    %29 = vector.extract_strided_slice %11 {offsets = [3, 0, 0], sizes = [4, 8, 640], strides = [1, 1, 1]} : vector<7x8x640xf32> to vector<4x8x640xf32>
    %30 = vector.shape_cast %29 : vector<4x8x640xf32> to vector<32x640xf32>
    %c3 = arith.constant 3 : index
    %c0_18 = arith.constant 0 : index
    %c0_19 = arith.constant 0 : index
    %31 = vector.load %arg4[%c3, %c0_18, %c0_19] : memref<4x640x640xf32, #tpu.memory_space<vmem>>, vector<1x640x640xf32>
    %32 = vector.shape_cast %31 : vector<1x640x640xf32> to vector<640x640xf32>
    %cst_20 = arith.constant dense<0.000000e+00> : vector<32x640xf32>
    %33 = tpu.matmul %30, %32, %cst_20 {dimension_numbers = #tpu.dot_dimension_numbers<[1], [0], [0], [1], [0, 0, 1, 1], [], []>} : vector<32x640xf32>, vector<640x640xf32>, vector<32x640xf32> -> vector<32x640xf32>
    %34 = arith.addf %28, %33 : vector<32x640xf32>
    %c0_21 = arith.constant 0 : index
    %c0_22 = arith.constant 0 : index
    %35 = vector.load %arg5[%c0_21, %c0_22] : memref<1x640xf32, #tpu.memory_space<vmem>>, vector<1x640xf32>
    %36 = vector.broadcast %35 : vector<1x640xf32> to vector<32x640xf32>
    %37 = arith.addf %34, %36 : vector<32x640xf32>
    %cst_23 = arith.constant 0.000000e+00 : f32
    %38 = vector.broadcast %cst_23 : f32 to vector<32x640xf32>
    %39 = arith.maximumf %37, %38 : vector<32x640xf32>
    %40 = vector.shape_cast %39 : vector<32x640xf32> to vector<4x8x640xf32>
    %41 = tpu.concatenate %40, %10 in 0 : vector<4x8x640xf32>, vector<1x8x640xf32> -> vector<5x8x640xf32>
    %42 = vector.extract_strided_slice %41 {offsets = [0, 0, 0], sizes = [4, 8, 640], strides = [1, 1, 1]} : vector<5x8x640xf32> to vector<4x8x640xf32>
    %43 = vector.shape_cast %42 : vector<4x8x640xf32> to vector<32x640xf32>
    %c0_24 = arith.constant 0 : index
    %c0_25 = arith.constant 0 : index
    %c0_26 = arith.constant 0 : index
    %44 = vector.load %arg6[%c0_24, %c0_25, %c0_26] : memref<2x640x640xf32, #tpu.memory_space<vmem>>, vector<1x640x640xf32>
    %45 = vector.shape_cast %44 : vector<1x640x640xf32> to vector<640x640xf32>
    %cst_27 = arith.constant dense<0.000000e+00> : vector<32x640xf32>
    %46 = tpu.matmul %43, %45, %cst_27 {dimension_numbers = #tpu.dot_dimension_numbers<[1], [0], [0], [1], [0, 0, 1, 1], [], []>} : vector<32x640xf32>, vector<640x640xf32>, vector<32x640xf32> -> vector<32x640xf32>
    %47 = vector.extract_strided_slice %41 {offsets = [1, 0, 0], sizes = [4, 8, 640], strides = [1, 1, 1]} : vector<5x8x640xf32> to vector<4x8x640xf32>
    %48 = vector.shape_cast %47 : vector<4x8x640xf32> to vector<32x640xf32>
    %c1_28 = arith.constant 1 : index
    %c0_29 = arith.constant 0 : index
    %c0_30 = arith.constant 0 : index
    %49 = vector.load %arg6[%c1_28, %c0_29, %c0_30] : memref<2x640x640xf32, #tpu.memory_space<vmem>>, vector<1x640x640xf32>
    %50 = vector.shape_cast %49 : vector<1x640x640xf32> to vector<640x640xf32>
    %cst_31 = arith.constant dense<0.000000e+00> : vector<32x640xf32>
    %51 = tpu.matmul %48, %50, %cst_31 {dimension_numbers = #tpu.dot_dimension_numbers<[1], [0], [0], [1], [0, 0, 1, 1], [], []>} : vector<32x640xf32>, vector<640x640xf32>, vector<32x640xf32> -> vector<32x640xf32>
    %52 = arith.addf %46, %51 : vector<32x640xf32>
    %c0_32 = arith.constant 0 : index
    %c0_33 = arith.constant 0 : index
    %53 = vector.load %arg7[%c0_32, %c0_33] : memref<1x640xf32, #tpu.memory_space<vmem>>, vector<1x640xf32>
    %54 = vector.broadcast %53 : vector<1x640xf32> to vector<32x640xf32>
    %55 = arith.addf %52, %54 : vector<32x640xf32>
    %cst_34 = arith.constant 0.000000e+00 : f32
    %56 = vector.broadcast %cst_34 : f32 to vector<32x640xf32>
    %57 = arith.maximumf %55, %56 : vector<32x640xf32>
    %58 = arith.addf %57, %8 : vector<32x640xf32>
    %59 = vector.shape_cast %58 : vector<32x640xf32> to vector<2x2x8x640xf32>
    %cst_35 = arith.constant dense<0.000000e+00> : vector<2x8x640xf32>
    %60 = vector.multi_reduction <add>, %59, %cst_35 [1] : vector<2x2x8x640xf32> to vector<2x8x640xf32>
    %61 = vector.shape_cast %60 : vector<2x8x640xf32> to vector<16x640xf32>
    %c0_36 = arith.constant 0 : index
    %c0_37 = arith.constant 0 : index
    %62 = vector.load %arg8[%c0_36, %c0_37] : memref<640x320xf32, #tpu.memory_space<vmem>>, vector<640x320xf32>
    %cst_38 = arith.constant dense<0.000000e+00> : vector<16x320xf32>
    %63 = tpu.matmul %61, %62, %cst_38 {dimension_numbers = #tpu.dot_dimension_numbers<[1], [0], [0], [1], [0, 0, 1, 1], [], []>} : vector<16x640xf32>, vector<640x320xf32>, vector<16x320xf32> -> vector<16x320xf32>
    %cst_39 = arith.constant 0.000000e+00 : f32
    %64 = vector.broadcast %cst_39 : f32 to vector<1x8x320xf32>
    %65 = vector.shape_cast %63 : vector<16x320xf32> to vector<2x8x320xf32>
    %66 = tpu.concatenate %65, %64 in 0 : vector<2x8x320xf32>, vector<1x8x320xf32> -> vector<3x8x320xf32>
    %67 = vector.extract_strided_slice %66 {offsets = [0, 0, 0], sizes = [2, 8, 320], strides = [1, 1, 1]} : vector<3x8x320xf32> to vector<2x8x320xf32>
    %68 = vector.shape_cast %67 : vector<2x8x320xf32> to vector<16x320xf32>
    %c0_40 = arith.constant 0 : index
    %c0_41 = arith.constant 0 : index
    %c0_42 = arith.constant 0 : index
    %69 = vector.load %arg9[%c0_40, %c0_41, %c0_42] : memref<2x320x320xf32, #tpu.memory_space<vmem>>, vector<1x320x320xf32>
    %70 = vector.shape_cast %69 : vector<1x320x320xf32> to vector<320x320xf32>
    %cst_43 = arith.constant dense<0.000000e+00> : vector<16x320xf32>
    %71 = tpu.matmul %68, %70, %cst_43 {dimension_numbers = #tpu.dot_dimension_numbers<[1], [0], [0], [1], [0, 0, 1, 1], [], []>} : vector<16x320xf32>, vector<320x320xf32>, vector<16x320xf32> -> vector<16x320xf32>
    %72 = vector.extract_strided_slice %66 {offsets = [1, 0, 0], sizes = [2, 8, 320], strides = [1, 1, 1]} : vector<3x8x320xf32> to vector<2x8x320xf32>
    %73 = vector.shape_cast %72 : vector<2x8x320xf32> to vector<16x320xf32>
    %c1_44 = arith.constant 1 : index
    %c0_45 = arith.constant 0 : index
    %c0_46 = arith.constant 0 : index
    %74 = vector.load %arg9[%c1_44, %c0_45, %c0_46] : memref<2x320x320xf32, #tpu.memory_space<vmem>>, vector<1x320x320xf32>
    %75 = vector.shape_cast %74 : vector<1x320x320xf32> to vector<320x320xf32>
    %cst_47 = arith.constant dense<0.000000e+00> : vector<16x320xf32>
    %76 = tpu.matmul %73, %75, %cst_47 {dimension_numbers = #tpu.dot_dimension_numbers<[1], [0], [0], [1], [0, 0, 1, 1], [], []>} : vector<16x320xf32>, vector<320x320xf32>, vector<16x320xf32> -> vector<16x320xf32>
    %77 = arith.addf %71, %76 : vector<16x320xf32>
    %c0_48 = arith.constant 0 : index
    %c0_49 = arith.constant 0 : index
    %78 = vector.load %arg10[%c0_48, %c0_49] : memref<1x320xf32, #tpu.memory_space<vmem>>, vector<1x320xf32>
    %79 = vector.broadcast %78 : vector<1x320xf32> to vector<16x320xf32>
    %80 = arith.addf %77, %79 : vector<16x320xf32>
    %cst_50 = arith.constant 0.000000e+00 : f32
    %81 = vector.broadcast %cst_50 : f32 to vector<16x320xf32>
    %82 = arith.maximumf %80, %81 : vector<16x320xf32>
    %c0_51 = arith.constant 0 : index
    %c0_52 = arith.constant 0 : index
    %83 = vector.load %arg11[%c0_51, %c0_52] : memref<320x320xf32, #tpu.memory_space<vmem>>, vector<320x320xf32>
    %cst_53 = arith.constant dense<0.000000e+00> : vector<16x320xf32>
    %84 = tpu.matmul %82, %83, %cst_53 {dimension_numbers = #tpu.dot_dimension_numbers<[1], [0], [0], [1], [0, 0, 1, 1], [], []>} : vector<16x320xf32>, vector<320x320xf32>, vector<16x320xf32> -> vector<16x320xf32>
    %c0_54 = arith.constant 0 : index
    %c0_55 = arith.constant 0 : index
    %85 = vector.load %arg12[%c0_54, %c0_55] : memref<1x320xf32, #tpu.memory_space<vmem>>, vector<1x320xf32>
    %86 = vector.broadcast %85 : vector<1x320xf32> to vector<16x320xf32>
    %87 = arith.addf %84, %86 : vector<16x320xf32>
    %cst_56 = arith.constant 0.000000e+00 : f32
    %88 = vector.broadcast %cst_56 : f32 to vector<16x320xf32>
    %89 = arith.maximumf %87, %88 : vector<16x320xf32>
    %90 = arith.addf %89, %63 : vector<16x320xf32>
    %91 = vector.shape_cast %90 : vector<16x320xf32> to vector<1x2x8x320xf32>
    %cst_57 = arith.constant dense<0.000000e+00> : vector<1x8x320xf32>
    %92 = vector.multi_reduction <add>, %91, %cst_57 [1] : vector<1x2x8x320xf32> to vector<1x8x320xf32>
    %93 = vector.shape_cast %92 : vector<1x8x320xf32> to vector<8x320xf32>
    %c0_58 = arith.constant 0 : index
    %c0_59 = arith.constant 0 : index
    %94 = vector.load %arg13[%c0_58, %c0_59] : memref<320x1xf32, #tpu.memory_space<vmem>>, vector<320x1xf32>
    %cst_60 = arith.constant dense<0.000000e+00> : vector<8x1xf32>
    %95 = tpu.matmul %93, %94, %cst_60 {dimension_numbers = #tpu.dot_dimension_numbers<[1], [0], [0], [1], [0, 0, 1, 1], [], []>} : vector<8x320xf32>, vector<320x1xf32>, vector<8x1xf32> -> vector<8x1xf32>
    %c0_61 = arith.constant 0 : index
    %c0_62 = arith.constant 0 : index
    %96 = vector.load %arg14[%c0_61, %c0_62] : memref<1x1xf32, #tpu.memory_space<vmem>>, vector<1x1xf32>
    %97 = vector.broadcast %96 : vector<1x1xf32> to vector<8x1xf32>
    %98 = arith.addf %95, %97 : vector<8x1xf32>
    %99 = tpu.iota {dimensions = array<i32: 0>} : vector<8x8xi32>
    %100 = tpu.iota {dimensions = array<i32: 1>} : vector<8x8xi32>
    %101 = arith.cmpi eq, %99, %100 : vector<8x8xi32>
    %102 = arith.extui %101 : vector<8x8xi1> to vector<8x8xi32>
    %103 = arith.sitofp %102 : vector<8x8xi32> to vector<8x8xf32>
    %104 = vector.broadcast %98 : vector<8x1xf32> to vector<8x8xf32>
    %105 = arith.mulf %104, %103 : vector<8x8xf32>
    %cst_63 = arith.constant dense<0.000000e+00> : vector<8xf32>
    %106 = vector.multi_reduction <add>, %105, %cst_63 [0] : vector<8x8xf32> to vector<8xf32>
    %107 = vector.shape_cast %106 : vector<8xf32> to vector<1x8xf32>
    %108 = vector.shape_cast %107 : vector<1x8xf32> to vector<1x1x8xf32>
    %c0_64 = arith.constant 0 : index
    %c0_65 = arith.constant 0 : index
    %c0_66 = arith.constant 0 : index
    %109 = vector.load %arg15[%c0_64, %c0_65, %c0_66] : memref<1x1x8xf32, #tpu.memory_space<vmem>>, vector<1x1x8xf32>
    tpu.vector_store %arg15[%c0_64, %c0_65, %c0_66], %108 {strides = array<i32>} : memref<1x1x8xf32, #tpu.memory_space<vmem>>, vector<1x1x8xf32>,
    return
  }
  func.func @transform_0(%arg0: i32) -> (i32, i32, i32) {
    %c0_i32 = arith.constant 0 : i32
    %c0_i32_0 = arith.constant 0 : i32
    %c0_i32_1 = arith.constant 0 : i32
    return %c0_i32, %arg0, %c0_i32_0 : i32, i32, i32
  }
  func.func @transform_1(%arg0: i32) -> (i32, i32) {
    %c0_i32 = arith.constant 0 : i32
    %c0_i32_0 = arith.constant 0 : i32
    %c0_i32_1 = arith.constant 0 : i32
    return %c0_i32, %c0_i32_0 : i32, i32
  }
  func.func @transform_2(%arg0: i32) -> (i32, i32) {
    %c0_i32 = arith.constant 0 : i32
    %c0_i32_0 = arith.constant 0 : i32
    %c0_i32_1 = arith.constant 0 : i32
    return %c0_i32, %c0_i32_0 : i32, i32
  }
  func.func @transform_3(%arg0: i32) -> (i32, i32, i32) {
    %c0_i32 = arith.constant 0 : i32
    %c0_i32_0 = arith.constant 0 : i32
    %c0_i32_1 = arith.constant 0 : i32
    %c0_i32_2 = arith.constant 0 : i32
    return %c0_i32, %c0_i32_0, %c0_i32_1 : i32, i32, i32
  }
  func.func @transform_4(%arg0: i32) -> (i32, i32) {
    %c0_i32 = arith.constant 0 : i32
    %c0_i32_0 = arith.constant 0 : i32
    %c0_i32_1 = arith.constant 0 : i32
    return %c0_i32, %c0_i32_0 : i32, i32
  }
  func.func @transform_5(%arg0: i32) -> (i32, i32, i32) {
    %c0_i32 = arith.constant 0 : i32
    %c0_i32_0 = arith.constant 0 : i32
    %c0_i32_1 = arith.constant 0 : i32
    %c0_i32_2 = arith.constant 0 : i32
    return %c0_i32, %c0_i32_0, %c0_i32_1 : i32, i32, i32
  }
  func.func @transform_6(%arg0: i32) -> (i32, i32) {
    %c0_i32 = arith.constant 0 : i32
    %c0_i32_0 = arith.constant 0 : i32
    %c0_i32_1 = arith.constant 0 : i32
    return %c0_i32, %c0_i32_0 : i32, i32
  }
  func.func @transform_7(%arg0: i32) -> (i32, i32) {
    %c0_i32 = arith.constant 0 : i32
    %c0_i32_0 = arith.constant 0 : i32
    %c0_i32_1 = arith.constant 0 : i32
    return %c0_i32, %c0_i32_0 : i32, i32
  }
  func.func @transform_8(%arg0: i32) -> (i32, i32, i32) {
    %c0_i32 = arith.constant 0 : i32
    %c0_i32_0 = arith.constant 0 : i32
    %c0_i32_1 = arith.constant 0 : i32
    %c0_i32_2 = arith.constant 0 : i32
    return %c0_i32, %c0_i32_0, %c0_i32_1 : i32, i32, i32
  }
  func.func @transform_9(%arg0: i32) -> (i32, i32) {
    %c0_i32 = arith.constant 0 : i32
    %c0_i32_0 = arith.constant 0 : i32
    %c0_i32_1 = arith.constant 0 : i32
    return %c0_i32, %c0_i32_0 : i32, i32
  }
  func.func @transform_10(%arg0: i32) -> (i32, i32) {
    %c0_i32 = arith.constant 0 : i32
    %c0_i32_0 = arith.constant 0 : i32
    %c0_i32_1 = arith.constant 0 : i32
    return %c0_i32, %c0_i32_0 : i32, i32
  }
  func.func @transform_11(%arg0: i32) -> (i32, i32) {
    %c0_i32 = arith.constant 0 : i32
    %c0_i32_0 = arith.constant 0 : i32
    %c0_i32_1 = arith.constant 0 : i32
    return %c0_i32, %c0_i32_0 : i32, i32
  }
  func.func @transform_12(%arg0: i32) -> (i32, i32) {
    %c0_i32 = arith.constant 0 : i32
    %c0_i32_0 = arith.constant 0 : i32
    %c0_i32_1 = arith.constant 0 : i32
    return %c0_i32, %c0_i32_0 : i32, i32
  }
  func.func @transform_13(%arg0: i32) -> (i32, i32) {
    %c0_i32 = arith.constant 0 : i32
    %c0_i32_0 = arith.constant 0 : i32
    %c0_i32_1 = arith.constant 0 : i32
    return %c0_i32, %c0_i32_0 : i32, i32
  }
  func.func @transform_14(%arg0: i32) -> (i32, i32, i32) {
    %c0_i32 = arith.constant 0 : i32
    %c0_i32_0 = arith.constant 0 : i32
    %c0_i32_1 = arith.constant 0 : i32
    return %arg0, %c0_i32, %c0_i32_0 : i32, i32, i32
  }
}

</mosaic_0001>

<llo_original>
// kernel: tile.29
$region0: #{tile.29}
  %s0 = inlined_call_operand.vmem [shape: f32[40,16], index: 0, kind: input, shape index: {}]
  %s1 = inlined_call_operand.vmem [shape: f32[1,640], index: 1, kind: output, shape index: {}]
  $region1: #{tile.29} parent=0
    #allocation0 [shape = 'u8[20480]{0}', space=vmem, size = 0x5000, scoped, tag = 'scoped mem for output reshape']
    %v2 = vld [vmem:[%s0] ss:$8 sm:$0xf]
    %s3 = scalar_lea.vmem %s0, 28
    %v4 = vld [vmem:[%s3] sm:$0x10]
    %vm5 = vcmask 1044484
    %v6 = vsel %vm5, %v4, %v2
    %vm7 = vcmask 130048
    %8 = vst.msk [vmem:[#allocation0] ss:$8 sm:$0xf] %vm7, %v6
    %s9 = scalar_lea.vmem [#allocation0], 28
    %10 = vst.msk [vmem:[%s9] sm:$0x10] %vm7, %v6
    %s11 = scalar_lea.vmem %s0, 7
    %v12 = vld [vmem:[%s11] ss:$8 sm:$0xf]
    %s13 = scalar_lea.vmem %s0, 35
    %v14 = vld [vmem:[%s13] sm:$0x10]
    %vm15 = vcmask 1044484
    %v16 = vsel %vm15, %v14, %v12
    %17 = vrot.lane.b32.xlu0 %v16, 112
    %v18 = vpop.permute.xlu0 %17
    %vm19 = vcmask 1048448
    %20 = vst.msk [vmem:[#allocation0] ss:$8 sm:$0xf] %vm19, %v18
    %s21 = scalar_lea.vmem [#allocation0], 28
    %22 = vst.msk [vmem:[%s21] sm:$0x10] %vm19, %v18
    %s23 = scalar_lea.vmem %s0, 6
    %v24 = vld [vmem:[%s23] ss:$8 sm:$0xf]
    %s25 = scalar_lea.vmem %s0, 34
    %v26 = vld [vmem:[%s25] sm:$0x10]
    %vm27 = vcmask 1044484
    %v28 = vsel %vm27, %v26, %v24
    %29 = vrot.lane.b32.xlu0 %v28, 96
    %v30 = vpop.permute.xlu0 %29
    %vm31 = vcmask 917248
    %32 = vst.msk [vmem:[#allocation0] ss:$8 sm:$0xf] %vm31, %v30
    %s33 = scalar_lea.vmem [#allocation0], 28
    %34 = vst.msk [vmem:[%s33] sm:$0x10] %vm31, %v30
    %s35 = scalar_lea.vmem %s0, 5
    %v36 = vld [vmem:[%s35] ss:$8 sm:$0xf]
    %s37 = scalar_lea.vmem %s0, 33
    %v38 = vld [vmem:[%s37] sm:$0x10]
    %vm39 = vcmask 1044484
    %v40 = vsel %vm39, %v38, %v36
    %41 = vrot.lane.b32.xlu0 %v40, 80
    %v42 = vpop.permute.xlu0 %41
    %vm43 = vcmask 786048
    %44 = vst.msk [vmem:[#allocation0] ss:$8 sm:$0xf] %vm43, %v42
    %s45 = scalar_lea.vmem [#allocation0], 28
    %46 = vst.msk [vmem:[%s45] sm:$0x10] %vm43, %v42
    %s47 = scalar_lea.vmem %s0, 4
    %v48 = vld [vmem:[%s47] ss:$8 sm:$0xf]
    %s49 = scalar_lea.vmem %s0, 32
    %v50 = vld [vmem:[%s49] sm:$0x10]
    %vm51 = vcmask 1044484
    %v52 = vsel %vm51, %v50, %v48
    %53 = vrot.lane.b32.xlu0 %v52, 64
    %v54 = vpop.permute.xlu0 %53
    %vm55 = vcmask 654848
    %56 = vst.msk [vmem:[#allocation0] ss:$8 sm:$0xf] %vm55, %v54
    %s57 = scalar_lea.vmem [#allocation0], 28
    %58 = vst.msk [vmem:[%s57] sm:$0x10] %vm55, %v54
    %s59 = scalar_lea.vmem %s0, 3
    %v60 = vld [vmem:[%s59] ss:$8 sm:$0xf]
    %s61 = scalar_lea.vmem %s0, 31
    %v62 = vld [vmem:[%s61] sm:$0x10]
    %vm63 = vcmask 1044484
    %v64 = vsel %vm63, %v62, %v60
    %65 = vrot.lane.b32.xlu0 %v64, 48
    %v66 = vpop.permute.xlu0 %65
    %vm67 = vcmask 523648
    %68 = vst.msk [vmem:[#allocation0] ss:$8 sm:$0xf] %vm67, %v66
    %s69 = scalar_lea.vmem [#allocation0], 28
    %70 = vst.msk [vmem:[%s69] sm:$0x10] %vm67, %v66
    %s71 = scalar_lea.vmem %s0, 2
    %v72 = vld [vmem:[%s71] ss:$8 sm:$0xf]
    %s73 = scalar_lea.vmem %s0, 30
    %v74 = vld [vmem:[%s73] sm:$0x10]
    %vm75 = vcmask 1044484
    %v76 = vsel %vm75, %v74, %v72
    %77 = vrot.lane.b32.xlu0 %v76, 32
    %v78 = vpop.permute.xlu0 %77
    %vm79 = vcmask 392448
    %80 = vst.msk [vmem:[#allocation0] ss:$8 sm:$0xf] %vm79, %v78
    %s81 = scalar_lea.vmem [#allocation0], 28
    %82 = vst.msk [vmem:[%s81] sm:$0x10] %vm79, %v78
    %s83 = scalar_lea.vmem %s0, 1
    %v84 = vld [vmem:[%s83] ss:$8 sm:$0xf]
    %s85 = scalar_lea.vmem %s0, 29
    %v86 = vld [vmem:[%s85] sm:$0x10]
    %vm87 = vcmask 1044484
    %v88 = vsel %vm87, %v86, %v84
    %89 = vrot.lane.b32.xlu0 %v88, 16
    %v90 = vpop.permute.xlu0 %89
    %vm91 = vcmask 261248
    %92 = vst.msk [vmem:[#allocation0] ss:$8 sm:$0xf] %vm91, %v90
    %s93 = scalar_lea.vmem [#allocation0], 28
    %94 = vst.msk [vmem:[%s93] sm:$0x10] %vm91, %v90
    %s96 = sshllo.u32 0, 1
    %v98 = vld [vmem:[#allocation0] sm:%s96]
    %s99 = sshllo.u32 0, 1
    %100 = vst [vmem:[%s1] sm:%s99] %v98
    %s101 = scalar_lea.vmem [#allocation0], 8
    %v102 = vld [vmem:[%s101] sm:%s96]
    %s103 = sshllo.u32 0, 1
    %s104 = scalar_lea.vmem %s1, 1
    %105 = vst [vmem:[%s104] sm:%s103] %v102
    %s106 = scalar_lea.vmem [#allocation0], 16
    %v107 = vld [vmem:[%s106] sm:%s96]
    %s108 = sshllo.u32 0, 1
    %s109 = smul.addr 1, 2
    %s110 = scalar_lea.vmem %s1, %s109
    %111 = vst [vmem:[%s110] sm:%s108] %v107
    %s112 = scalar_lea.vmem [#allocation0], 24
    %v113 = vld [vmem:[%s112] sm:%s96]
    %s114 = sshllo.u32 0, 1
    %s115 = smul.addr 1, 3
    %s116 = scalar_lea.vmem %s1, %s115
    %117 = vst [vmem:[%s116] sm:%s114] %v113
    %s118 = scalar_lea.vmem [#allocation0], 32
    %v119 = vld [vmem:[%s118] sm:%s96]
    %s120 = sshllo.u32 0, 1
    %s121 = smul.addr 1, 4
    %s122 = scalar_lea.vmem %s1, %s121
    %123 = vst [vmem:[%s122] sm:%s120] %v119

// kernel: tile.43
$region0: #{tile.43}
  #allocation0 [shape = 's32[1]{0}', space=sflag, size = 0x4, scoped, tag = 'scoped memory for tile.43']
  %s0 = inlined_call_operand.vmem [shape: f32[16], index: 0, kind: input, shape index: {}]
  %s1 = inlined_call_operand.vmem [shape: f32[20,16], index: 1, kind: output, shape index: {}]
  // Predicated region
  $region2: #{tile.43} parent=0 // pred_check
    _
  $region3: #{tile.43} parent=0 // pred_check_branch
    %3 = sbr.rel (0) target = $region5
  $region4: #{tile.43} parent=0 // pred_region
    _
  $region5: #{tile.43} parent=0 // pred_fallthru
    _
  %v4 = vld [vmem:[%s0] ss:$0 sm:$0xff]
  %5 = vst [vmem:[%s1] sm:$0xff] %v4
  %s6 = scalar_lea.vmem %s1, 8
  %7 = vst [vmem:[%s6] sm:$0xff] %v4
  %s8 = scalar_lea.vmem %s1, 16
  %9 = vst [vmem:[%s8] sm:$0xff] %v4

// kernel: tile.44
$region0: #{tile.44}
  %s0 = inlined_call_operand.vmem [shape: f32[20,16], index: 0, kind: input, shape index: {}]
  %s1 = inlined_call_operand.vmem [shape: f32[1,320], index: 1, kind: output, shape index: {}]
  $region1: #{tile.44} parent=0
    #allocation0 [shape = 'u8[12288]{0}', space=vmem, size = 0x3000, scoped, tag = 'scoped mem for output reshape']
    %v2 = vld [vmem:[%s0] ss:$8 sm:$0x7]
    %vm3 = vcmask 130048
    %4 = vst.msk [vmem:[#allocation0] ss:$8 sm:$0x7] %vm3, %v2
    %s5 = scalar_lea.vmem %s0, 7
    %s6 = smov 3
    %v7 = vld [vmem:[%s5] ss:$8 sm:%s6]
    %8 = vrot.lane.b32.xlu0 %v7, 112
    %v9 = vpop.permute.xlu0 %8
    %vm10 = vcmask 1048448
    %11 = vst.msk [vmem:[#allocation0] ss:$8 sm:$0x3] %vm10, %v9
    %s12 = scalar_lea.vmem %s0, 6
    %s13 = smov 3
    %v14 = vld [vmem:[%s12] ss:$8 sm:%s13]
    %15 = vrot.lane.b32.xlu0 %v14, 96
    %v16 = vpop.permute.xlu0 %15
    %vm17 = vcmask 917248
    %18 = vst.msk [vmem:[#allocation0] ss:$8 sm:$0x3] %vm17, %v16
    %s19 = scalar_lea.vmem %s0, 5
    %s20 = smov 3
    %v21 = vld [vmem:[%s19] ss:$8 sm:%s20]
    %22 = vrot.lane.b32.xlu0 %v21, 80
    %v23 = vpop.permute.xlu0 %22
    %vm24 = vcmask 786048
    %25 = vst.msk [vmem:[#allocation0] ss:$8 sm:$0x3] %vm24, %v23
    %s26 = scalar_lea.vmem %s0, 4
    %s27 = smov 3
    %v28 = vld [vmem:[%s26] ss:$8 sm:%s27]
    %29 = vrot.lane.b32.xlu0 %v28, 64
    %v30 = vpop.permute.xlu0 %29
    %vm31 = vcmask 654848
    %32 = vst.msk [vmem:[#allocation0] ss:$8 sm:$0x3] %vm31, %v30
    %s33 = scalar_lea.vmem %s0, 3
    %v34 = vld [vmem:[%s33] ss:$8 sm:$0x7]
    %35 = vrot.lane.b32.xlu0 %v34, 48
    %v36 = vpop.permute.xlu0 %35
    %vm37 = vcmask 523648
    %38 = vst.msk [vmem:[#allocation0] ss:$8 sm:$0x7] %vm37, %v36
    %s39 = scalar_lea.vmem %s0, 2
    %v40 = vld [vmem:[%s39] ss:$8 sm:$0x7]
    %41 = vrot.lane.b32.xlu0 %v40, 32
    %v42 = vpop.permute.xlu0 %41
    %vm43 = vcmask 392448
    %44 = vst.msk [vmem:[#allocation0] ss:$8 sm:$0x7] %vm43, %v42
    %s45 = scalar_lea.vmem %s0, 1
    %v46 = vld [vmem:[%s45] ss:$8 sm:$0x7]
    %47 = vrot.lane.b32.xlu0 %v46, 16
    %v48 = vpop.permute.xlu0 %47
    %vm49 = vcmask 261248
    %50 = vst.msk [vmem:[#allocation0] ss:$8 sm:$0x7] %vm49, %v48
    %s52 = sshllo.u32 0, 1
    %v54 = vld [vmem:[#allocation0] sm:%s52]
    %s55 = sshllo.u32 0, 1
    %56 = vst [vmem:[%s1] sm:%s55] %v54
    %s57 = scalar_lea.vmem [#allocation0], 8
    %v58 = vld [vmem:[%s57] sm:%s52]
    %s59 = sshllo.u32 0, 1
    %s60 = scalar_lea.vmem %s1, 1
    %61 = vst [vmem:[%s60] sm:%s59] %v58
    %s62 = scalar_lea.vmem [#allocation0], 16
    %v63 = vld [vmem:[%s62] sm:%s52]
    %s64 = sshllo.u32 0, 1
    %s65 = smul.addr 1, 2
    %s66 = scalar_lea.vmem %s1, %s65
    %67 = vst [vmem:[%s66] sm:%s64] %v63

// kernel: resnet2_forward.1
$region0: #{resnet2_forward.1}
  #allocation0 [shape = 'u32[]', space=smem, size = 0x4, offset = 0x4, fixed_abs, tag = 'smem constant byte address 0x4 - core index']
  #allocation1 [shape = 'u32[144,128]{1,0:T(1,128)}', space=vmem, size = 0x12000, scoped, tag = 'internal scratch']
  #allocation2 [shape = 'f32[1,1]{1,0:T(1,128)S(1)}', space=vmem, size = 0x200, scoped, tag = 'scoped memory for resnet2_forward.1']
  %s0 = inlined_call_operand.vmem [shape: f32[4,8,40], index: 0, kind: input, shape index: {}]
  %s1 = inlined_call_operand.hbm [shape: f32[40,640], index: 1, kind: input, shape index: {}]
  %s2 = inlined_call_operand.vmem [shape: f32[1,640], index: 2, kind: input, shape index: {}]
  %s3 = inlined_call_operand.vmem [shape: f32[4,640,640], index: 3, kind: input, shape index: {}]
  %s4 = inlined_call_operand.vmem [shape: f32[1,640], index: 4, kind: input, shape index: {}]
  %s5 = inlined_call_operand.hbm [shape: f32[2,640,640], index: 5, kind: input, shape index: {}]
  %s6 = inlined_call_operand.vmem [shape: f32[1,640], index: 6, kind: input, shape index: {}]
  %s7 = inlined_call_operand.hbm [shape: f32[640,320], index: 7, kind: input, shape index: {}]
  %s8 = inlined_call_operand.vmem [shape: f32[2,320,320], index: 8, kind: input, shape index: {}]
  %s9 = inlined_call_operand.vmem [shape: f32[1,320], index: 9, kind: input, shape index: {}]
  %s10 = inlined_call_operand.vmem [shape: f32[320,320], index: 10, kind: input, shape index: {}]
  %s11 = inlined_call_operand.vmem [shape: f32[1,320], index: 11, kind: input, shape index: {}]
  %s12 = inlined_call_operand.hbm [shape: f32[320,1], index: 12, kind: input, shape index: {}]
  %s13 = inlined_call_operand.<no memory space> [shape: f32[1,1], index: 13, kind: input, shape index: {}]
  %s14 = inlined_call_operand.vmem [shape: f32[1,1,8], index: 14, kind: output, shape index: {}]
  %s15 = sld [smem:[#allocation0]]
  $region82: #{resnet2_forward.1} parent=0
    _
  %s17 = ssub.s32 1, %s15
  %s18 = scalar_select 0, %s17, %s15
  %v19 = vstv %s13
  %20 = vst [vmem:[#allocation2] sm:$0x1] %v19
  $region1: #{resnet2_forward.1} parent=0
    #allocation3 [shape = 'u8[102400]{0}', space=vmem, size = 0x19000, scoped, tag = 'input window, operand 1, single buffered']
    #allocation4 [shape = 's32[1]{0}', space=sflag, size = 0x4, scoped, tag = 'scoped memory for resnet2_forward.1']
    #allocation5 [shape = 'u8[3276800]{0}', space=vmem, size = 0x320000, scoped, tag = 'input window, operand 5, single buffered']
    #allocation6 [shape = 's32[1]{0}', space=sflag, size = 0x4, scoped, tag = 'scoped memory for resnet2_forward.1']
    #allocation7 [shape = 'u8[983040]{0}', space=vmem, size = 0xf0000, scoped, tag = 'input window, operand 7, single buffered']
    #allocation8 [shape = 'u8[163840]{0}', space=vmem, size = 0x28000, scoped, tag = 'input window, operand 12, single buffered']
    #allocation9 [shape = 's32[1]{0}', space=sflag, size = 0x4, scoped, tag = 'scoped memory for resnet2_forward.1']
    %21 = vsyncpa [#allocation4], 0
    %22 = vsyncpa [#allocation6], 0
    %23 = vsyncpa [#allocation9], 0
    // Predicated region
    $region2: #{resnet2_forward.1} parent=1 // pred_check
      _
    $region3: #{resnet2_forward.1} parent=1 // pred_check_branch
      %25 = sbr.rel (0) target = $region5
    $region4: #{resnet2_forward.1} parent=1 // pred_region
      _
    $region5: #{resnet2_forward.1} parent=1 // pred_fallthru
      _
    // Predicated region
    $region6: #{resnet2_forward.1} parent=1 // pred_check
      _
    $region7: #{resnet2_forward.1} parent=1 // pred_check_branch
      %27 = sbr.rel (0) target = $region9
    $region8: #{resnet2_forward.1} parent=1 // pred_region
      %s29 = ssub.s32 3200, 3200
      %30 = vsyncadd [#allocation4], %s29
      %s31 = sshll.u32 [#allocation3], 4
      %s32 = int_to_ptr.vmem [resolvable:$true] %s31
      %37 = dma.hbm_to_vmem [thread:$0]  %s1, 3200, %s32, [#allocation4], 640, 640, 40
    $region9: #{resnet2_forward.1} parent=1 // pred_fallthru
      _
    // Predicated region
    $region10: #{resnet2_forward.1} parent=1 // pred_check
      _
    $region11: #{resnet2_forward.1} parent=1 // pred_check_branch
      %39 = sbr.rel (0) target = $region13
    $region12: #{resnet2_forward.1} parent=1 // pred_region
      _
    $region13: #{resnet2_forward.1} parent=1 // pred_fallthru
      _
    // Predicated region
    $region14: #{resnet2_forward.1} parent=1 // pred_check
      _
    $region15: #{resnet2_forward.1} parent=1 // pred_check_branch
      %41 = sbr.rel (0) target = $region17
    $region16: #{resnet2_forward.1} parent=1 // pred_region
      _
    $region17: #{resnet2_forward.1} parent=1 // pred_fallthru
      _
    // Predicated region
    $region18: #{resnet2_forward.1} parent=1 // pred_check
      _
    $region19: #{resnet2_forward.1} parent=1 // pred_check_branch
      %43 = sbr.rel (0) target = $region21
    $region20: #{resnet2_forward.1} parent=1 // pred_region
      _
    $region21: #{resnet2_forward.1} parent=1 // pred_fallthru
      _
    // Predicated region
    $region22: #{resnet2_forward.1} parent=1 // pred_check
      _
    $region23: #{resnet2_forward.1} parent=1 // pred_check_branch
      %45 = sbr.rel (0) target = $region25
    $region24: #{resnet2_forward.1} parent=1 // pred_region
      %s47 = ssub.s32 102400, 102400
      %48 = vsyncadd [#allocation6], %s47
      %s49 = sshll.u32 [#allocation5], 4
      %s50 = int_to_ptr.vmem [resolvable:$true] %s49
      %55 = dma.hbm_to_vmem [thread:$0]  %s5, 102400, %s50, [#allocation6], 640, 640, 40
    $region25: #{resnet2_forward.1} parent=1 // pred_fallthru
      _
    // Predicated region
    $region26: #{resnet2_forward.1} parent=1 // pred_check
      _
    $region27: #{resnet2_forward.1} parent=1 // pred_check_branch
      %57 = sbr.rel (0) target = $region29
    $region28: #{resnet2_forward.1} parent=1 // pred_region
      _
    $region29: #{resnet2_forward.1} parent=1 // pred_fallthru
      _
    // Predicated region
    $region30: #{resnet2_forward.1} parent=1 // pred_check
      _
    $region31: #{resnet2_forward.1} parent=1 // pred_check_branch
      %59 = sbr.rel (0) target = $region33
    $region32: #{resnet2_forward.1} parent=1 // pred_region
      %s61 = ssub.s32 30720, 30720
      %62 = vsyncadd [#allocation6], %s61
      %s63 = sshll.u32 [#allocation7], 4
      %s64 = int_to_ptr.vmem [resolvable:$true] %s63
      %69 = dma.hbm_to_vmem [thread:$0]  %s7, 30720, %s64, [#allocation6], 384, 384, 24
    $region33: #{resnet2_forward.1} parent=1 // pred_fallthru
      _
    // Predicated region
    $region34: #{resnet2_forward.1} parent=1 // pred_check
      _
    $region35: #{resnet2_forward.1} parent=1 // pred_check_branch
      %71 = sbr.rel (0) target = $region37
    $region36: #{resnet2_forward.1} parent=1 // pred_region
      _
    $region37: #{resnet2_forward.1} parent=1 // pred_fallthru
      _
    // Predicated region
    $region38: #{resnet2_forward.1} parent=1 // pred_check
      _
    $region39: #{resnet2_forward.1} parent=1 // pred_check_branch
      %73 = sbr.rel (0) target = $region41
    $region40: #{resnet2_forward.1} parent=1 // pred_region
      _
    $region41: #{resnet2_forward.1} parent=1 // pred_fallthru
      _
    // Predicated region
    $region42: #{resnet2_forward.1} parent=1 // pred_check
      _
    $region43: #{resnet2_forward.1} parent=1 // pred_check_branch
      %75 = sbr.rel (0) target = $region45
    $region44: #{resnet2_forward.1} parent=1 // pred_region
      _
    $region45: #{resnet2_forward.1} parent=1 // pred_fallthru
      _
    // Predicated region
    $region46: #{resnet2_forward.1} parent=1 // pred_check
      _
    $region47: #{resnet2_forward.1} parent=1 // pred_check_branch
      %77 = sbr.rel (0) target = $region49
    $region48: #{resnet2_forward.1} parent=1 // pred_region
      _
    $region49: #{resnet2_forward.1} parent=1 // pred_fallthru
      _
    // Predicated region
    $region50: #{resnet2_forward.1} parent=1 // pred_check
      _
    $region51: #{resnet2_forward.1} parent=1 // pred_check_branch
      %79 = sbr.rel (0) target = $region53
    $region52: #{resnet2_forward.1} parent=1 // pred_region
      %s81 = ssub.s32 5120, 5120
      %82 = vsyncadd [#allocation9], %s81
      %s83 = sshll.u32 [#allocation8], 4
      %s84 = int_to_ptr.vmem [resolvable:$true] %s83
      %89 = dma.hbm_to_vmem [thread:$0]  %s12, 5120, %s84, [#allocation9], 128, 128, 8
    $region53: #{resnet2_forward.1} parent=1 // pred_fallthru
      _
    // Predicated region
    $region54: #{resnet2_forward.1} parent=1 // pred_check
      _
    $region55: #{resnet2_forward.1} parent=1 // pred_check_branch
      %91 = sbr.rel (0) target = $region57
    $region56: #{resnet2_forward.1} parent=1 // pred_region
      _
    $region57: #{resnet2_forward.1} parent=1 // pred_fallthru
      _
    // Predicated region
    $region58: #{resnet2_forward.1} parent=1 // pred_check
      _
    $region59: #{resnet2_forward.1} parent=1 // pred_check_branch
      %93 = sbr.rel (0) target = $region61
    $region60: #{resnet2_forward.1} parent=1 // pred_region
      %94 = dma.done [#allocation4], 3200
    $region61: #{resnet2_forward.1} parent=1 // pred_fallthru
      _
    // Predicated region
    $region62: #{resnet2_forward.1} parent=1 // pred_check
      _
    $region63: #{resnet2_forward.1} parent=1 // pred_check_branch
      %96 = sbr.rel (0) target = $region65
    $region64: #{resnet2_forward.1} parent=1 // pred_region
      %97 = dma.done [#allocation6], 102400
    $region65: #{resnet2_forward.1} parent=1 // pred_fallthru
      _
    // Predicated region
    $region66: #{resnet2_forward.1} parent=1 // pred_check
      _
    $region67: #{resnet2_forward.1} parent=1 // pred_check_branch
      %99 = sbr.rel (0) target = $region69
    $region68: #{resnet2_forward.1} parent=1 // pred_region
      %100 = dma.done [#allocation6], 30720
    $region69: #{resnet2_forward.1} parent=1 // pred_fallthru
      _
    // Predicated region
    $region70: #{resnet2_forward.1} parent=1 // pred_check
      _
    $region71: #{resnet2_forward.1} parent=1 // pred_check_branch
      %102 = sbr.rel (0) target = $region73
    $region72: #{resnet2_forward.1} parent=1 // pred_region
      %103 = dma.done [#allocation9], 5120
    $region73: #{resnet2_forward.1} parent=1 // pred_fallthru
      _
    %v104 = vld [vmem:[%s0] sm:$0xff]
    %v105 = vld [vmem:[%s0 + $0x8] sm:$0xff]
    %v106 = vld [vmem:[%s0 + $0x10] sm:$0xff]
    %v107 = vld [vmem:[%s0 + $0x18] sm:$0xff]
    %v108 = vld [vmem:[#allocation3] sm:$0xff]
    %v109 = vld [vmem:[#allocation3 + $0x8] sm:$0xff]
    %v110 = vld [vmem:[#allocation3 + $0x10] sm:$0xff]
    %v111 = vld [vmem:[#allocation3 + $0x18] sm:$0xff]
    %v112 = vld [vmem:[#allocation3 + $0x20] sm:$0xff]
    %v113 = vld [vmem:[#allocation3 + $0x28] sm:$0xff]
    %v114 = vld [vmem:[#allocation3 + $0x30] sm:$0xff]
    %v115 = vld [vmem:[#allocation3 + $0x38] sm:$0xff]
    %v116 = vld [vmem:[#allocation3 + $0x40] sm:$0xff]
    %v117 = vld [vmem:[#allocation3 + $0x48] sm:$0xff]
    %v118 = vld [vmem:[#allocation3 + $0x50] sm:$0xff]
    %v119 = vld [vmem:[#allocation3 + $0x58] sm:$0xff]
    %v120 = vld [vmem:[#allocation3 + $0x60] sm:$0xff]
    %v121 = vld [vmem:[#allocation3 + $0x68] sm:$0xff]
    %v122 = vld [vmem:[#allocation3 + $0x70] sm:$0xff]
    %v123 = vld [vmem:[#allocation3 + $0x78] sm:$0xff]
    %v124 = vld [vmem:[#allocation3 + $0x80] sm:$0xff]
    %v125 = vld [vmem:[#allocation3 + $0x88] sm:$0xff]
    %v126 = vld [vmem:[#allocation3 + $0x90] sm:$0xff]
    %v127 = vld [vmem:[#allocation3 + $0x98] sm:$0xff]
    %v128 = vld [vmem:[#allocation3 + $0xa0] sm:$0xff]
    %v129 = vld [vmem:[#allocation3 + $0xa8] sm:$0xff]
    %v130 = vld [vmem:[#allocation3 + $0xb0] sm:$0xff]
    %v131 = vld [vmem:[#allocation3 + $0xb8] sm:$0xff]
    %v132 = vld [vmem:[#allocation3 + $0xc0] sm:$0xff]
    %v133 = vld [vmem:[%s2] sm:$0x1f]
    %v135 = vlaneseq
    %v136 = vshrl.u32 %v135, 7
    %v137 = vsub.s32 0, %v136
    %v138 = vrot.slane %v133, %v137
    %v139 = vlaneseq
    %v140 = vshrl.u32 %v139, 7
    %v141 = vsub.s32 1, %v140
    %v142 = vrot.slane %v133, %v141
    %v143 = vlaneseq
    %v144 = vshrl.u32 %v143, 7
    %v145 = vsub.s32 2, %v144
    %v146 = vrot.slane %v133, %v145
    %v147 = vlaneseq
    %v148 = vshrl.u32 %v147, 7
    %v149 = vsub.s32 3, %v148
    %v150 = vrot.slane %v133, %v149
    %v151 = vlaneseq
    %v152 = vshrl.u32 %v151, 7
    %v153 = vsub.s32 4, %v152
    %v154 = vrot.slane %v133, %v153
    %vm160 = vcmask 326656
    %v162 = vsel %vm160, %v104, 0
    %v165 = vsel %vm160, %v105, 0
    %v168 = vsel %vm160, %v106, 0
    %v171 = vsel %vm160, %v107, 0
    %173 = vmatprep.subr.mxu0 %v109
    %174 = vmatpush1.msra.mxu0 %v108
    %175 = vmatprep.subr.mxu0 %v114
    %176 = vmatpush1.msra.mxu0 %v113
    %177 = vmatprep.subr.mxu0 %v119
    %178 = vmatpush1.msra.mxu0 %v118
    %179 = vmatprep.subr.mxu0 %v124
    %180 = vmatpush1.msra.mxu0 %v123
    %181 = vmatprep.subr.mxu0 %v129
    %182 = vmatpush1.msra.mxu0 %v128
    %183 = vmatprep.subr.mxu0 0.0
    %184 = vmatpush1.msra.mxu0 0.0
    %185 = vmatprep.subr.mxu0 0.0
    %186 = vmatpush1.msra.mxu0 0.0
    %187 = vmatprep.subr.mxu0 0.0
    %188 = vmatpush1.msra.mxu0 0.0
    %189 = vmatprep.subr.mxu0 0.0
    %190 = vmatpush1.msra.mxu0 0.0
    %191 = vmatprep.subr.mxu0 0.0
    %192 = vmatpush1.msra.mxu0 0.0
    %193 = vmatprep.subr.mxu0 0.0
    %194 = vmatpush1.msra.mxu0 0.0
    %195 = vmatprep.subr.mxu0 0.0
    %196 = vmatpush1.msra.mxu0 0.0
    %197 = vmatprep.subr.mxu0 0.0
    %198 = vmatpush1.msra.mxu0 0.0
    %199 = vmatprep.subr.mxu0 0.0
    %200 = vmatpush1.msra.mxu0 0.0
    %201 = vmatprep.subr.mxu0 0.0
    %202 = vmatpush1.msra.mxu0 0.0
    %203 = vmatprep.subr.mxu0 0.0
    %204 = vmatpush1.msra.mxu0 0.0
    %205 = vmatprep.subr.mxu0 0.0
    %206 = vmatpush1.msra.mxu0 0.0
    %207 = vmatprep.subr.mxu0 0.0
    %208 = vmatpush1.msra.mxu0 0.0
    %209 = vmatprep.subr.mxu0 0.0
    %210 = vmatpush1.msra.mxu0 0.0
    %211 = vmatprep.subr.mxu0 0.0
    %212 = vmatpush1.msra.mxu0 0.0
    %213 = vmatprep.subr.mxu0 0.0
    %214 = vmatpush1.msra.mxu0 0.0
    %215 = vmatprep.subr.mxu0 0.0
    %216 = vmatpush1.msra.mxu0 0.0
    %217 = vmatprep.subr.mxu0 0.0
    %218 = vmatpush1.msra.mxu0 0.0
    %219 = vmatprep.subr.mxu0 0.0
    %220 = vmatpush1.msra.mxu0 0.0
    %221 = vmatprep.subr.mxu0 0.0
    %222 = vmatpush1.msra.mxu0 0.0
    %223 = vmatprep.subr.mxu0 0.0
    %224 = vmatpush1.msra.mxu0 0.0
    %225 = vmatprep.subr.mxu0 0.0
    %226 = vmatpush1.msra.mxu0 0.0
    %227 = vmatprep.subr.mxu0 0.0
    %228 = vmatpush1.msra.mxu0 0.0
    %229 = vmatprep.subr.mxu0 0.0
    %230 = vmatpush1.msra.mxu0 0.0
    %231 = vmatprep.subr.mxu0 0.0
    %232 = vmatpush1.msra.mxu0 0.0
    %233 = vmatprep.subr.mxu0 0.0
    %234 = vmatpush1.msra.mxu0 0.0
    %235 = vmatprep.subr.mxu0 0.0
    %236 = vmatpush1.msra.mxu0 0.0
    %237 = vmatprep.mubr.f32.mxu0 0.0
    %238 = vmatmul.mubr.f32.gmra.mrb[0].mxu0 %v162
    %v239 = vpop.f32.mrb[0].mxu0
    %v240 = vadd.f32 %v138, %v239
    %v241 = vpop.f32.mrb[0].mxu0
    %v242 = vadd.f32 %v142, %v241
    %243 = vmatprep.mubr.f32.mxu0 0.0
    %244 = vmatmul.mubr.f32.gmra.mrb[0].mxu0 %v165
    %v245 = vpop.f32.mrb[0].mxu0
    %v246 = vadd.f32 %v138, %v245
    %v247 = vpop.f32.mrb[0].mxu0
    %v248 = vadd.f32 %v142, %v247
    %249 = vmatprep.mubr.f32.mxu0 0.0
    %250 = vmatmul.mubr.f32.gmra.mrb[0].mxu0 %v168
    %v251 = vpop.f32.mrb[0].mxu0
    %v252 = vadd.f32 %v138, %v251
    %v253 = vpop.f32.mrb[0].mxu0
    %v254 = vadd.f32 %v142, %v253
    %255 = vmatprep.mubr.f32.mxu0 0.0
    %256 = vmatmul.mubr.f32.gmra.mrb[0].mxu0 %v171
    %v257 = vpop.f32.mrb[0].mxu0
    %v258 = vadd.f32 %v138, %v257
    %v259 = vpop.f32.mrb[0].mxu0
    %v260 = vadd.f32 %v142, %v259
    %261 = vdwg.mxu0
    %262 = vmatprep.subr.mxu0 %v111
    %263 = vmatpush1.msra.mxu0 %v110
    %264 = vmatprep.subr.mxu0 %v116
    %265 = vmatpush1.msra.mxu0 %v115
    %266 = vmatprep.subr.mxu0 %v121
    %267 = vmatpush1.msra.mxu0 %v120
    %268 = vmatprep.subr.mxu0 %v126
    %269 = vmatpush1.msra.mxu0 %v125
    %270 = vmatprep.subr.mxu0 %v131
    %271 = vmatpush1.msra.mxu0 %v130
    %272 = vmatprep.subr.mxu0 0.0
    %273 = vmatpush1.msra.mxu0 0.0
    %274 = vmatprep.subr.mxu0 0.0
    %275 = vmatpush1.msra.mxu0 0.0
    %276 = vmatprep.subr.mxu0 0.0
    %277 = vmatpush1.msra.mxu0 0.0
    %278 = vmatprep.subr.mxu0 0.0
    %279 = vmatpush1.msra.mxu0 0.0
    %280 = vmatprep.subr.mxu0 0.0
    %281 = vmatpush1.msra.mxu0 0.0
    %282 = vmatprep.subr.mxu0 0.0
    %283 = vmatpush1.msra.mxu0 0.0
    %284 = vmatprep.subr.mxu0 0.0
    %285 = vmatpush1.msra.mxu0 0.0
    %286 = vmatprep.subr.mxu0 0.0
    %287 = vmatpush1.msra.mxu0 0.0
    %288 = vmatprep.subr.mxu0 0.0
    %289 = vmatpush1.msra.mxu0 0.0
    %290 = vmatprep.subr.mxu0 0.0
    %291 = vmatpush1.msra.mxu0 0.0
    %292 = vmatprep.subr.mxu0 0.0
    %293 = vmatpush1.msra.mxu0 0.0
    %294 = vmatprep.subr.mxu0 0.0
    %295 = vmatpush1.msra.mxu0 0.0
    %296 = vmatprep.subr.mxu0 0.0
    %297 = vmatpush1.msra.mxu0 0.0
    %298 = vmatprep.subr.mxu0 0.0
    %299 = vmatpush1.msra.mxu0 0.0
    %300 = vmatprep.subr.mxu0 0.0
    %301 = vmatpush1.msra.mxu0 0.0
    %302 = vmatprep.subr.mxu0 0.0
    %303 = vmatpush1.msra.mxu0 0.0
    %304 = vmatprep.subr.mxu0 0.0
    %305 = vmatpush1.msra.mxu0 0.0
    %306 = vmatprep.subr.mxu0 0.0
    %307 = vmatpush1.msra.mxu0 0.0
    %308 = vmatprep.subr.mxu0 0.0
    %309 = vmatpush1.msra.mxu0 0.0
    %310 = vmatprep.subr.mxu0 0.0
    %311 = vmatpush1.msra.mxu0 0.0
    %312 = vmatprep.subr.mxu0 0.0
    %313 = vmatpush1.msra.mxu0 0.0
    %314 = vmatprep.subr.mxu0 0.0
    %315 = vmatpush1.msra.mxu0 0.0
    %316 = vmatprep.subr.mxu0 0.0
    %317 = vmatpush1.msra.mxu0 0.0
    %318 = vmatprep.subr.mxu0 0.0
    %319 = vmatpush1.msra.mxu0 0.0
    %320 = vmatprep.subr.mxu0 0.0
    %321 = vmatpush1.msra.mxu0 0.0
    %322 = vmatprep.subr.mxu0 0.0
    %323 = vmatpush1.msra.mxu0 0.0
    %324 = vmatprep.subr.mxu0 0.0
    %325 = vmatpush1.msra.mxu0 0.0
    %326 = vmatprep.mubr.f32.mxu0 0.0
    %327 = vmatmul.mubr.f32.gmra.mrb[0].mxu0 %v162
    %v328 = vpop.f32.mrb[0].mxu0
    %v329 = vadd.f32 %v146, %v328
    %v330 = vpop.f32.mrb[0].mxu0
    %v331 = vadd.f32 %v150, %v330
    %332 = vmatprep.mubr.f32.mxu0 0.0
    %333 = vmatmul.mubr.f32.gmra.mrb[0].mxu0 %v165
    %v334 = vpop.f32.mrb[0].mxu0
    %v335 = vadd.f32 %v146, %v334
    %v336 = vpop.f32.mrb[0].mxu0
    %v337 = vadd.f32 %v150, %v336
    %338 = vmatprep.mubr.f32.mxu0 0.0
    %339 = vmatmul.mubr.f32.gmra.mrb[0].mxu0 %v168
    %v340 = vpop.f32.mrb[0].mxu0
    %v341 = vadd.f32 %v146, %v340
    %v342 = vpop.f32.mrb[0].mxu0
    %v343 = vadd.f32 %v150, %v342
    %344 = vmatprep.mubr.f32.mxu0 0.0
    %345 = vmatmul.mubr.f32.gmra.mrb[0].mxu0 %v171
    %v346 = vpop.f32.mrb[0].mxu0
    %v347 = vadd.f32 %v146, %v346
    %v348 = vpop.f32.mrb[0].mxu0
    %v349 = vadd.f32 %v150, %v348
    %350 = vdwg.mxu0
    %351 = vmatprep.subr.mxu0 0.0
    %352 = vmatpush1.msra.mxu0 %v112
    %353 = vmatprep.subr.mxu0 0.0
    %354 = vmatpush1.msra.mxu0 %v117
    %355 = vmatprep.subr.mxu0 0.0
    %356 = vmatpush1.msra.mxu0 %v122
    %357 = vmatprep.subr.mxu0 0.0
    %358 = vmatpush1.msra.mxu0 %v127
    %359 = vmatprep.subr.mxu0 0.0
    %360 = vmatpush1.msra.mxu0 %v132
    %361 = vmatprep.subr.mxu0 0.0
    %362 = vmatpush1.msra.mxu0 0.0
    %363 = vmatprep.subr.mxu0 0.0
    %364 = vmatpush1.msra.mxu0 0.0
    %365 = vmatprep.subr.mxu0 0.0
    %366 = vmatpush1.msra.mxu0 0.0
    %367 = vmatprep.subr.mxu0 0.0
    %368 = vmatpush1.msra.mxu0 0.0
    %369 = vmatprep.subr.mxu0 0.0
    %370 = vmatpush1.msra.mxu0 0.0
    %371 = vmatprep.subr.mxu0 0.0
    %372 = vmatpush1.msra.mxu0 0.0
    %373 = vmatprep.subr.mxu0 0.0
    %374 = vmatpush1.msra.mxu0 0.0
    %375 = vmatprep.subr.mxu0 0.0
    %376 = vmatpush1.msra.mxu0 0.0
    %377 = vmatprep.subr.mxu0 0.0
    %378 = vmatpush1.msra.mxu0 0.0
    %379 = vmatprep.subr.mxu0 0.0
    %380 = vmatpush1.msra.mxu0 0.0
    %381 = vmatprep.subr.mxu0 0.0
    %382 = vmatpush1.msra.mxu0 0.0
    %383 = vmatprep.subr.mxu0 0.0
    %384 = vmatpush1.msra.mxu0 0.0
    %385 = vmatprep.subr.mxu0 0.0
    %386 = vmatpush1.msra.mxu0 0.0
    %387 = vmatprep.subr.mxu0 0.0
    %388 = vmatpush1.msra.mxu0 0.0
    %389 = vmatprep.subr.mxu0 0.0
    %390 = vmatpush1.msra.mxu0 0.0
    %391 = vmatprep.subr.mxu0 0.0
    %392 = vmatpush1.msra.mxu0 0.0
    %393 = vmatprep.subr.mxu0 0.0
    %394 = vmatpush1.msra.mxu0 0.0
    %395 = vmatprep.subr.mxu0 0.0
    %396 = vmatpush1.msra.mxu0 0.0
    %397 = vmatprep.subr.mxu0 0.0
    %398 = vmatpush1.msra.mxu0 0.0
    %399 = vmatprep.subr.mxu0 0.0
    %400 = vmatpush1.msra.mxu0 0.0
    %401 = vmatprep.subr.mxu0 0.0
    %402 = vmatpush1.msra.mxu0 0.0
    %403 = vmatprep.subr.mxu0 0.0
    %404 = vmatpush1.msra.mxu0 0.0
    %405 = vmatprep.subr.mxu0 0.0
    %406 = vmatpush1.msra.mxu0 0.0
    %407 = vmatprep.subr.mxu0 0.0
    %408 = vmatpush1.msra.mxu0 0.0
    %409 = vmatprep.subr.mxu0 0.0
    %410 = vmatpush1.msra.mxu0 0.0
    %411 = vmatprep.subr.mxu0 0.0
    %412 = vmatpush1.msra.mxu0 0.0
    %413 = vmatprep.subr.mxu0 0.0
    %414 = vmatpush1.msra.mxu0 0.0
    %415 = vmatprep.mubr.f32.mxu0 0.0
    %416 = vmatmul.mubr.f32.gmra.mrb[0].mxu0 %v162
    %v417 = vpop.f32.mrb[0].mxu0
    %v418 = vadd.f32 %v154, %v417
    %v419 = vpop.f32.mrb[0].mxu0
    %420 = vmatprep.mubr.f32.mxu0 0.0
    %421 = vmatmul.mubr.f32.gmra.mrb[0].mxu0 %v165
    %v422 = vpop.f32.mrb[0].mxu0
    %v423 = vadd.f32 %v154, %v422
    %v424 = vpop.f32.mrb[0].mxu0
    %425 = vmatprep.mubr.f32.mxu0 0.0
    %426 = vmatmul.mubr.f32.gmra.mrb[0].mxu0 %v168
    %v427 = vpop.f32.mrb[0].mxu0
    %v428 = vadd.f32 %v154, %v427
    %v429 = vpop.f32.mrb[0].mxu0
    %430 = vmatprep.mubr.f32.mxu0 0.0
    %431 = vmatmul.mubr.f32.gmra.mrb[0].mxu0 %v171
    %v432 = vpop.f32.mrb[0].mxu0
    %v433 = vadd.f32 %v154, %v432
    %v434 = vpop.f32.mrb[0].mxu0
    %435 = vdwg.mxu0
    %v436 = vmax.f32 %v240, 0.0
    %v437 = vmax.f32 %v242, 0.0
    %v438 = vmax.f32 %v329, 0.0
    %v439 = vmax.f32 %v331, 0.0
    %v440 = vmax.f32 %v418, 0.0
    %v441 = vmax.f32 %v246, 0.0
    %v442 = vmax.f32 %v248, 0.0
    %v443 = vmax.f32 %v335, 0.0
    %v444 = vmax.f32 %v337, 0.0
    %v445 = vmax.f32 %v423, 0.0
    %v446 = vmax.f32 %v252, 0.0
    %v447 = vmax.f32 %v254, 0.0
    %v448 = vmax.f32 %v341, 0.0
    %v449 = vmax.f32 %v343, 0.0
    %v450 = vmax.f32 %v428, 0.0
    %v451 = vmax.f32 %v258, 0.0
    %v452 = vmax.f32 %v260, 0.0
    %v453 = vmax.f32 %v347, 0.0
    %v454 = vmax.f32 %v349, 0.0
    %v455 = vmax.f32 %v433, 0.0
    %v456 = vld [vmem:[%s3] sm:$0xff]
    %v457 = vld [vmem:[%s3 + $0x8] sm:$0xff]
    %v458 = vld [vmem:[%s3 + $0x10] sm:$0xff]
    %v459 = vld [vmem:[%s3 + $0x18] sm:$0xff]
    %v460 = vld [vmem:[%s3 + $0x20] sm:$0xff]
    %v461 = vld [vmem:[%s3 + $0x28] sm:$0xff]
    %v462 = vld [vmem:[%s3 + $0x30] sm:$0xff]
    %v463 = vld [vmem:[%s3 + $0x38] sm:$0xff]
    %v464 = vld [vmem:[%s3 + $0x40] sm:$0xff]
    %v465 = vld [vmem:[%s3 + $0x48] sm:$0xff]
    %v466 = vld [vmem:[%s3 + $0x50] sm:$0xff]
    %v467 = vld [vmem:[%s3 + $0x58] sm:$0xff]
    %v468 = vld [vmem:[%s3 + $0x60] sm:$0xff]
    %v469 = vld [vmem:[%s3 + $0x68] sm:$0xff]
    %v470 = vld [vmem:[%s3 + $0x70] sm:$0xff]
    %v471 = vld [vmem:[%s3 + $0x78] sm:$0xff]
    %v472 = vld [vmem:[%s3 + $0x80] sm:$0xff]
    %v473 = vld [vmem:[%s3 + $0x88] sm:$0xff]
    %v474 = vld [vmem:[%s3 + $0x90] sm:$0xff]
    %v475 = vld [vmem:[%s3 + $0x98] sm:$0xff]
    %v476 = vld [vmem:[%s3 + $0xa0] sm:$0xff]
    %v477 = vld [vmem:[%s3 + $0xa8] sm:$0xff]
    %v478 = vld [vmem:[%s3 + $0xb0] sm:$0xff]
    %v479 = vld [vmem:[%s3 + $0xb8] sm:$0xff]
    %v480 = vld [vmem:[%s3 + $0xc0] sm:$0xff]
    %v481 = vld [vmem:[%s3 + $0xc8] sm:$0xff]
    %v482 = vld [vmem:[%s3 + $0xd0] sm:$0xff]
    %v483 = vld [vmem:[%s3 + $0xd8] sm:$0xff]
    %v484 = vld [vmem:[%s3 + $0xe0] sm:$0xff]
    %v485 = vld [vmem:[%s3 + $0xe8] sm:$0xff]
    %v486 = vld [vmem:[%s3 + $0xf0] sm:$0xff]
    %v487 = vld [vmem:[%s3 + $0xf8] sm:$0xff]
    %v488 = vld [vmem:[%s3 + $0x100] sm:$0xff]
    %v489 = vld [vmem:[%s3 + $0x108] sm:$0xff]
    %v490 = vld [vmem:[%s3 + $0x110] sm:$0xff]
    %v491 = vld [vmem:[%s3 + $0x118] sm:$0xff]
    %v492 = vld [vmem:[%s3 + $0x120] sm:$0xff]
    %v493 = vld [vmem:[%s3 + $0x128] sm:$0xff]
    %v494 = vld [vmem:[%s3 + $0x130] sm:$0xff]
    %v495 = vld [vmem:[%s3 + $0x138] sm:$0xff]
    %v496 = vld [vmem:[%s3 + $0x140] sm:$0xff]
    %v497 = vld [vmem:[%s3 + $0x148] sm:$0xff]
    %v498 = vld [vmem:[%s3 + $0x150] sm:$0xff]
    %v499 = vld [vmem:[%s3 + $0x158] sm:$0xff]
    %v500 = vld [vmem:[%s3 + $0x160] sm:$0xff]
    %v501 = vld [vmem:[%s3 + $0x168] sm:$0xff]
    %v502 = vld [vmem:[%s3 + $0x170] sm:$0xff]
    %v503 = vld [vmem:[%s3 + $0x178] sm:$0xff]
    %v504 = vld [vmem:[%s3 + $0x180] sm:$0xff]
    %v505 = vld [vmem:[%s3 + $0x188] sm:$0xff]
    %v506 = vld [vmem:[%s3 + $0x190] sm:$0xff]
    %v507 = vld [vmem:[%s3 + $0x198] sm:$0xff]
    %v508 = vld [vmem:[%s3 + $0x1a0] sm:$0xff]
    %v509 = vld [vmem:[%s3 + $0x1a8] sm:$0xff]
    %v510 = vld [vmem:[%s3 + $0x1b0] sm:$0xff]
    %v511 = vld [vmem:[%s3 + $0x1b8] sm:$0xff]
    %v512 = vld [vmem:[%s3 + $0x1c0] sm:$0xff]
    %v513 = vld [vmem:[%s3 + $0x1c8] sm:$0xff]
    %v514 = vld [vmem:[%s3 + $0x1d0] sm:$0xff]
    %v515 = vld [vmem:[%s3 + $0x1d8] sm:$0xff]
    %v516 = vld [vmem:[%s3 + $0x1e0] sm:$0xff]
    %v517 = vld [vmem:[%s3 + $0x1e8] sm:$0xff]
    %v518 = vld [vmem:[%s3 + $0x1f0] sm:$0xff]
    %v519 = vld [vmem:[%s3 + $0x1f8] sm:$0xff]
    %v520 = vld [vmem:[%s3 + $0x200] sm:$0xff]
    %v521 = vld [vmem:[%s3 + $0x208] sm:$0xff]
    %v522 = vld [vmem:[%s3 + $0x210] sm:$0xff]
    %v523 = vld [vmem:[%s3 + $0x218] sm:$0xff]
    %v524 = vld [vmem:[%s3 + $0x220] sm:$0xff]
    %v525 = vld [vmem:[%s3 + $0x228] sm:$0xff]
    %v526 = vld [vmem:[%s3 + $0x230] sm:$0xff]
    %v527 = vld [vmem:[%s3 + $0x238] sm:$0xff]
    %v528 = vld [vmem:[%s3 + $0x240] sm:$0xff]
    %v529 = vld [vmem:[%s3 + $0x248] sm:$0xff]
    %v530 = vld [vmem:[%s3 + $0x250] sm:$0xff]
    %v531 = vld [vmem:[%s3 + $0x258] sm:$0xff]
    %v532 = vld [vmem:[%s3 + $0x260] sm:$0xff]
    %v533 = vld [vmem:[%s3 + $0x268] sm:$0xff]
    %v534 = vld [vmem:[%s3 + $0x270] sm:$0xff]
    %v535 = vld [vmem:[%s3 + $0x278] sm:$0xff]
    %v536 = vld [vmem:[%s3 + $0x280] sm:$0xff]
    %v537 = vld [vmem:[%s3 + $0x288] sm:$0xff]
    %v538 = vld [vmem:[%s3 + $0x290] sm:$0xff]
    %v539 = vld [vmem:[%s3 + $0x298] sm:$0xff]
    %v540 = vld [vmem:[%s3 + $0x2a0] sm:$0xff]
    %v541 = vld [vmem:[%s3 + $0x2a8] sm:$0xff]
    %v542 = vld [vmem:[%s3 + $0x2b0] sm:$0xff]
    %v543 = vld [vmem:[%s3 + $0x2b8] sm:$0xff]
    %v544 = vld [vmem:[%s3 + $0x2c0] sm:$0xff]
    %v545 = vld [vmem:[%s3 + $0x2c8] sm:$0xff]
    %v546 = vld [vmem:[%s3 + $0x2d0] sm:$0xff]
    %v547 = vld [vmem:[%s3 + $0x2d8] sm:$0xff]
    %v548 = vld [vmem:[%s3 + $0x2e0] sm:$0xff]
    %v549 = vld [vmem:[%s3 + $0x2e8] sm:$0xff]
    %v550 = vld [vmem:[%s3 + $0x2f0] sm:$0xff]
    %v551 = vld [vmem:[%s3 + $0x2f8] sm:$0xff]
    %v552 = vld [vmem:[%s3 + $0x300] sm:$0xff]
    %v553 = vld [vmem:[%s3 + $0x308] sm:$0xff]
    %v554 = vld [vmem:[%s3 + $0x310] sm:$0xff]
    %v555 = vld [vmem:[%s3 + $0x318] sm:$0xff]
    %v556 = vld [vmem:[%s3 + $0x320] sm:$0xff]
    %v557 = vld [vmem:[%s3 + $0x328] sm:$0xff]
    %v558 = vld [vmem:[%s3 + $0x330] sm:$0xff]
    %v559 = vld [vmem:[%s3 + $0x338] sm:$0xff]
    %v560 = vld [vmem:[%s3 + $0x340] sm:$0xff]
    %v561 = vld [vmem:[%s3 + $0x348] sm:$0xff]
    %v562 = vld [vmem:[%s3 + $0x350] sm:$0xff]
    %v563 = vld [vmem:[%s3 + $0x358] sm:$0xff]
    %v564 = vld [vmem:[%s3 + $0x360] sm:$0xff]
    %v565 = vld [vmem:[%s3 + $0x368] sm:$0xff]
    %v566 = vld [vmem:[%s3 + $0x370] sm:$0xff]
    %v567 = vld [vmem:[%s3 + $0x378] sm:$0xff]
    %v568 = vld [vmem:[%s3 + $0x380] sm:$0xff]
    %v569 = vld [vmem:[%s3 + $0x388] sm:$0xff]
    %v570 = vld [vmem:[%s3 + $0x390] sm:$0xff]
    %v571 = vld [vmem:[%s3 + $0x398] sm:$0xff]
    %v572 = vld [vmem:[%s3 + $0x3a0] sm:$0xff]
    %v573 = vld [vmem:[%s3 + $0x3a8] sm:$0xff]
    %v574 = vld [vmem:[%s3 + $0x3b0] sm:$0xff]
    %v575 = vld [vmem:[%s3 + $0x3b8] sm:$0xff]
    %v576 = vld [vmem:[%s3 + $0x3c0] sm:$0xff]
    %v577 = vld [vmem:[%s3 + $0x3c8] sm:$0xff]
    %v578 = vld [vmem:[%s3 + $0x3d0] sm:$0xff]
    %v579 = vld [vmem:[%s3 + $0x3d8] sm:$0xff]
    %v580 = vld [vmem:[%s3 + $0x3e0] sm:$0xff]
    %v581 = vld [vmem:[%s3 + $0x3e8] sm:$0xff]
    %v582 = vld [vmem:[%s3 + $0x3f0] sm:$0xff]
    %v583 = vld [vmem:[%s3 + $0x3f8] sm:$0xff]
    %v584 = vld [vmem:[%s3 + $0x400] sm:$0xff]
    %v585 = vld [vmem:[%s3 + $0x408] sm:$0xff]
    %v586 = vld [vmem:[%s3 + $0x410] sm:$0xff]
    %v587 = vld [vmem:[%s3 + $0x418] sm:$0xff]
    %v588 = vld [vmem:[%s3 + $0x420] sm:$0xff]
    %v589 = vld [vmem:[%s3 + $0x428] sm:$0xff]
    %v590 = vld [vmem:[%s3 + $0x430] sm:$0xff]
    %v591 = vld [vmem:[%s3 + $0x438] sm:$0xff]
    %v592 = vld [vmem:[%s3 + $0x440] sm:$0xff]
    %v593 = vld [vmem:[%s3 + $0x448] sm:$0xff]
    %v594 = vld [vmem:[%s3 + $0x450] sm:$0xff]
    %v595 = vld [vmem:[%s3 + $0x458] sm:$0xff]
    %v596 = vld [vmem:[%s3 + $0x460] sm:$0xff]
    %v597 = vld [vmem:[%s3 + $0x468] sm:$0xff]
    %v598 = vld [vmem:[%s3 + $0x470] sm:$0xff]
    %v599 = vld [vmem:[%s3 + $0x478] sm:$0xff]
    %v600 = vld [vmem:[%s3 + $0x480] sm:$0xff]
    %v601 = vld [vmem:[%s3 + $0x488] sm:$0xff]
    %v602 = vld [vmem:[%s3 + $0x490] sm:$0xff]
    %v603 = vld [vmem:[%s3 + $0x498] sm:$0xff]
    %v604 = vld [vmem:[%s3 + $0x4a0] sm:$0xff]
    %v605 = vld [vmem:[%s3 + $0x4a8] sm:$0xff]
    %v606 = vld [vmem:[%s3 + $0x4b0] sm:$0xff]
    %v607 = vld [vmem:[%s3 + $0x4b8] sm:$0xff]
    %v608 = vld [vmem:[%s3 + $0x4c0] sm:$0xff]
    %v609 = vld [vmem:[%s3 + $0x4c8] sm:$0xff]
    %v610 = vld [vmem:[%s3 + $0x4d0] sm:$0xff]
    %v611 = vld [vmem:[%s3 + $0x4d8] sm:$0xff]
    %v612 = vld [vmem:[%s3 + $0x4e0] sm:$0xff]
    %v613 = vld [vmem:[%s3 + $0x4e8] sm:$0xff]
    %v614 = vld [vmem:[%s3 + $0x4f0] sm:$0xff]
    %v615 = vld [vmem:[%s3 + $0x4f8] sm:$0xff]
    %v616 = vld [vmem:[%s3 + $0x500] sm:$0xff]
    %v617 = vld [vmem:[%s3 + $0x508] sm:$0xff]
    %v618 = vld [vmem:[%s3 + $0x510] sm:$0xff]
    %v619 = vld [vmem:[%s3 + $0x518] sm:$0xff]
    %v620 = vld [vmem:[%s3 + $0x520] sm:$0xff]
    %v621 = vld [vmem:[%s3 + $0x528] sm:$0xff]
    %v622 = vld [vmem:[%s3 + $0x530] sm:$0xff]
    %v623 = vld [vmem:[%s3 + $0x538] sm:$0xff]
    %v624 = vld [vmem:[%s3 + $0x540] sm:$0xff]
    %v625 = vld [vmem:[%s3 + $0x548] sm:$0xff]
    %v626 = vld [vmem:[%s3 + $0x550] sm:$0xff]
    %v627 = vld [vmem:[%s3 + $0x558] sm:$0xff]
    %v628 = vld [vmem:[%s3 + $0x560] sm:$0xff]
    %v629 = vld [vmem:[%s3 + $0x568] sm:$0xff]
    %v630 = vld [vmem:[%s3 + $0x570] sm:$0xff]
    %v631 = vld [vmem:[%s3 + $0x578] sm:$0xff]
    %v632 = vld [vmem:[%s3 + $0x580] sm:$0xff]
    %v633 = vld [vmem:[%s3 + $0x588] sm:$0xff]
    %v634 = vld [vmem:[%s3 + $0x590] sm:$0xff]
    %v635 = vld [vmem:[%s3 + $0x598] sm:$0xff]
    %v636 = vld [vmem:[%s3 + $0x5a0] sm:$0xff]
    %v637 = vld [vmem:[%s3 + $0x5a8] sm:$0xff]
    %v638 = vld [vmem:[%s3 + $0x5b0] sm:$0xff]
    %v639 = vld [vmem:[%s3 + $0x5b8] sm:$0xff]
    %v640 = vld [vmem:[%s3 + $0x5c0] sm:$0xff]
    %v641 = vld [vmem:[%s3 + $0x5c8] sm:$0xff]
    %v642 = vld [vmem:[%s3 + $0x5d0] sm:$0xff]
    %v643 = vld [vmem:[%s3 + $0x5d8] sm:$0xff]
    %v644 = vld [vmem:[%s3 + $0x5e0] sm:$0xff]
    %v645 = vld [vmem:[%s3 + $0x5e8] sm:$0xff]
    %v646 = vld [vmem:[%s3 + $0x5f0] sm:$0xff]
    %v647 = vld [vmem:[%s3 + $0x5f8] sm:$0xff]
    %v648 = vld [vmem:[%s3 + $0x600] sm:$0xff]
    %v649 = vld [vmem:[%s3 + $0x608] sm:$0xff]
    %v650 = vld [vmem:[%s3 + $0x610] sm:$0xff]
    %v651 = vld [vmem:[%s3 + $0x618] sm:$0xff]
    %v652 = vld [vmem:[%s3 + $0x620] sm:$0xff]
    %v653 = vld [vmem:[%s3 + $0x628] sm:$0xff]
    %v654 = vld [vmem:[%s3 + $0x630] sm:$0xff]
    %v655 = vld [vmem:[%s3 + $0x638] sm:$0xff]
    %v656 = vld [vmem:[%s3 + $0x640] sm:$0xff]
    %v657 = vld [vmem:[%s3 + $0x648] sm:$0xff]
    %v658 = vld [vmem:[%s3 + $0x650] sm:$0xff]
    %v659 = vld [vmem:[%s3 + $0x658] sm:$0xff]
    %v660 = vld [vmem:[%s3 + $0x660] sm:$0xff]
    %v661 = vld [vmem:[%s3 + $0x668] sm:$0xff]
    %v662 = vld [vmem:[%s3 + $0x670] sm:$0xff]
    %v663 = vld [vmem:[%s3 + $0x678] sm:$0xff]
    %v664 = vld [vmem:[%s3 + $0x680] sm:$0xff]
    %v665 = vld [vmem:[%s3 + $0x688] sm:$0xff]
    %v666 = vld [vmem:[%s3 + $0x690] sm:$0xff]
    %v667 = vld [vmem:[%s3 + $0x698] sm:$0xff]
    %v668 = vld [vmem:[%s3 + $0x6a0] sm:$0xff]
    %v669 = vld [vmem:[%s3 + $0x6a8] sm:$0xff]
    %v670 = vld [vmem:[%s3 + $0x6b0] sm:$0xff]
    %v671 = vld [vmem:[%s3 + $0x6b8] sm:$0xff]
    %v672 = vld [vmem:[%s3 + $0x6c0] sm:$0xff]
    %v673 = vld [vmem:[%s3 + $0x6c8] sm:$0xff]
    %v674 = vld [vmem:[%s3 + $0x6d0] sm:$0xff]
    %v675 = vld [vmem:[%s3 + $0x6d8] sm:$0xff]
    %v676 = vld [vmem:[%s3 + $0x6e0] sm:$0xff]
    %v677 = vld [vmem:[%s3 + $0x6e8] sm:$0xff]
    %v678 = vld [vmem:[%s3 + $0x6f0] sm:$0xff]
    %v679 = vld [vmem:[%s3 + $0x6f8] sm:$0xff]
    %v680 = vld [vmem:[%s3 + $0x700] sm:$0xff]
    %v681 = vld [vmem:[%s3 + $0x708] sm:$0xff]
    %v682 = vld [vmem:[%s3 + $0x710] sm:$0xff]
    %v683 = vld [vmem:[%s3 + $0x718] sm:$0xff]
    %v684 = vld [vmem:[%s3 + $0x720] sm:$0xff]
    %v685 = vld [vmem:[%s3 + $0x728] sm:$0xff]
    %v686 = vld [vmem:[%s3 + $0x730] sm:$0xff]
    %v687 = vld [vmem:[%s3 + $0x738] sm:$0xff]
    %v688 = vld [vmem:[%s3 + $0x740] sm:$0xff]
    %v689 = vld [vmem:[%s3 + $0x748] sm:$0xff]
    %v690 = vld [vmem:[%s3 + $0x750] sm:$0xff]
    %v691 = vld [vmem:[%s3 + $0x758] sm:$0xff]
    %v692 = vld [vmem:[%s3 + $0x760] sm:$0xff]
    %v693 = vld [vmem:[%s3 + $0x768] sm:$0xff]
    %v694 = vld [vmem:[%s3 + $0x770] sm:$0xff]
    %v695 = vld [vmem:[%s3 + $0x778] sm:$0xff]
    %v696 = vld [vmem:[%s3 + $0x780] sm:$0xff]
    %v697 = vld [vmem:[%s3 + $0x788] sm:$0xff]
    %v698 = vld [vmem:[%s3 + $0x790] sm:$0xff]
    %v699 = vld [vmem:[%s3 + $0x798] sm:$0xff]
    %v700 = vld [vmem:[%s3 + $0x7a0] sm:$0xff]
    %v701 = vld [vmem:[%s3 + $0x7a8] sm:$0xff]
    %v702 = vld [vmem:[%s3 + $0x7b0] sm:$0xff]
    %v703 = vld [vmem:[%s3 + $0x7b8] sm:$0xff]
    %v704 = vld [vmem:[%s3 + $0x7c0] sm:$0xff]
    %v705 = vld [vmem:[%s3 + $0x7c8] sm:$0xff]
    %v706 = vld [vmem:[%s3 + $0x7d0] sm:$0xff]
    %v707 = vld [vmem:[%s3 + $0x7d8] sm:$0xff]
    %v708 = vld [vmem:[%s3 + $0x7e0] sm:$0xff]
    %v709 = vld [vmem:[%s3 + $0x7e8] sm:$0xff]
    %v710 = vld [vmem:[%s3 + $0x7f0] sm:$0xff]
    %v711 = vld [vmem:[%s3 + $0x7f8] sm:$0xff]
    %v712 = vld [vmem:[%s3 + $0x800] sm:$0xff]
    %v713 = vld [vmem:[%s3 + $0x808] sm:$0xff]
    %v714 = vld [vmem:[%s3 + $0x810] sm:$0xff]
    %v715 = vld [vmem:[%s3 + $0x818] sm:$0xff]
    %v716 = vld [vmem:[%s3 + $0x820] sm:$0xff]
    %v717 = vld [vmem:[%s3 + $0x828] sm:$0xff]
    %v718 = vld [vmem:[%s3 + $0x830] sm:$0xff]
    %v719 = vld [vmem:[%s3 + $0x838] sm:$0xff]
    %v720 = vld [vmem:[%s3 + $0x840] sm:$0xff]
    %v721 = vld [vmem:[%s3 + $0x848] sm:$0xff]
    %v722 = vld [vmem:[%s3 + $0x850] sm:$0xff]
    %v723 = vld [vmem:[%s3 + $0x858] sm:$0xff]
    %v724 = vld [vmem:[%s3 + $0x860] sm:$0xff]
    %v725 = vld [vmem:[%s3 + $0x868] sm:$0xff]
    %v726 = vld [vmem:[%s3 + $0x870] sm:$0xff]
    %v727 = vld [vmem:[%s3 + $0x878] sm:$0xff]
    %v728 = vld [vmem:[%s3 + $0x880] sm:$0xff]
    %v729 = vld [vmem:[%s3 + $0x888] sm:$0xff]
    %v730 = vld [vmem:[%s3 + $0x890] sm:$0xff]
    %v731 = vld [vmem:[%s3 + $0x898] sm:$0xff]
    %v732 = vld [vmem:[%s3 + $0x8a0] sm:$0xff]
    %v733 = vld [vmem:[%s3 + $0x8a8] sm:$0xff]
    %v734 = vld [vmem:[%s3 + $0x8b0] sm:$0xff]
    %v735 = vld [vmem:[%s3 + $0x8b8] sm:$0xff]
    %v736 = vld [vmem:[%s3 + $0x8c0] sm:$0xff]
    %v737 = vld [vmem:[%s3 + $0x8c8] sm:$0xff]
    %v738 = vld [vmem:[%s3 + $0x8d0] sm:$0xff]
    %v739 = vld [vmem:[%s3 + $0x8d8] sm:$0xff]
    %v740 = vld [vmem:[%s3 + $0x8e0] sm:$0xff]
    %v741 = vld [vmem:[%s3 + $0x8e8] sm:$0xff]
    %v742 = vld [vmem:[%s3 + $0x8f0] sm:$0xff]
    %v743 = vld [vmem:[%s3 + $0x8f8] sm:$0xff]
    %v744 = vld [vmem:[%s3 + $0x900] sm:$0xff]
    %v745 = vld [vmem:[%s3 + $0x908] sm:$0xff]
    %v746 = vld [vmem:[%s3 + $0x910] sm:$0xff]
    %v747 = vld [vmem:[%s3 + $0x918] sm:$0xff]
    %v748 = vld [vmem:[%s3 + $0x920] sm:$0xff]
    %v749 = vld [vmem:[%s3 + $0x928] sm:$0xff]
    %v750 = vld [vmem:[%s3 + $0x930] sm:$0xff]
    %v751 = vld [vmem:[%s3 + $0x938] sm:$0xff]
    %v752 = vld [vmem:[%s3 + $0x940] sm:$0xff]
    %v753 = vld [vmem:[%s3 + $0x948] sm:$0xff]
    %v754 = vld [vmem:[%s3 + $0x950] sm:$0xff]
    %v755 = vld [vmem:[%s3 + $0x958] sm:$0xff]
    %v756 = vld [vmem:[%s3 + $0x960] sm:$0xff]
    %v757 = vld [vmem:[%s3 + $0x968] sm:$0xff]
    %v758 = vld [vmem:[%s3 + $0x970] sm:$0xff]
    %v759 = vld [vmem:[%s3 + $0x978] sm:$0xff]
    %v760 = vld [vmem:[%s3 + $0x980] sm:$0xff]
    %v761 = vld [vmem:[%s3 + $0x988] sm:$0xff]
    %v762 = vld [vmem:[%s3 + $0x990] sm:$0xff]
    %v763 = vld [vmem:[%s3 + $0x998] sm:$0xff]
    %v764 = vld [vmem:[%s3 + $0x9a0] sm:$0xff]
    %v765 = vld [vmem:[%s3 + $0x9a8] sm:$0xff]
    %v766 = vld [vmem:[%s3 + $0x9b0] sm:$0xff]
    %v767 = vld [vmem:[%s3 + $0x9b8] sm:$0xff]
    %v768 = vld [vmem:[%s3 + $0x9c0] sm:$0xff]
    %v769 = vld [vmem:[%s3 + $0x9c8] sm:$0xff]
    %v770 = vld [vmem:[%s3 + $0x9d0] sm:$0xff]
    %v771 = vld [vmem:[%s3 + $0x9d8] sm:$0xff]
    %v772 = vld [vmem:[%s3 + $0x9e0] sm:$0xff]
    %v773 = vld [vmem:[%s3 + $0x9e8] sm:$0xff]
    %v774 = vld [vmem:[%s3 + $0x9f0] sm:$0xff]
    %v775 = vld [vmem:[%s3 + $0x9f8] sm:$0xff]
    %v776 = vld [vmem:[%s3 + $0xa00] sm:$0xff]
    %v777 = vld [vmem:[%s3 + $0xa08] sm:$0xff]
    %v778 = vld [vmem:[%s3 + $0xa10] sm:$0xff]
    %v779 = vld [vmem:[%s3 + $0xa18] sm:$0xff]
    %v780 = vld [vmem:[%s3 + $0xa20] sm:$0xff]
    %v781 = vld [vmem:[%s3 + $0xa28] sm:$0xff]
    %v782 = vld [vmem:[%s3 + $0xa30] sm:$0xff]
    %v783 = vld [vmem:[%s3 + $0xa38] sm:$0xff]
    %v784 = vld [vmem:[%s3 + $0xa40] sm:$0xff]
    %v785 = vld [vmem:[%s3 + $0xa48] sm:$0xff]
    %v786 = vld [vmem:[%s3 + $0xa50] sm:$0xff]
    %v787 = vld [vmem:[%s3 + $0xa58] sm:$0xff]
    %v788 = vld [vmem:[%s3 + $0xa60] sm:$0xff]
    %v789 = vld [vmem:[%s3 + $0xa68] sm:$0xff]
    %v790 = vld [vmem:[%s3 + $0xa70] sm:$0xff]
    %v791 = vld [vmem:[%s3 + $0xa78] sm:$0xff]
    %v792 = vld [vmem:[%s3 + $0xa80] sm:$0xff]
    %v793 = vld [vmem:[%s3 + $0xa88] sm:$0xff]
    %v794 = vld [vmem:[%s3 + $0xa90] sm:$0xff]
    %v795 = vld [vmem:[%s3 + $0xa98] sm:$0xff]
    %v796 = vld [vmem:[%s3 + $0xaa0] sm:$0xff]
    %v797 = vld [vmem:[%s3 + $0xaa8] sm:$0xff]
    %v798 = vld [vmem:[%s3 + $0xab0] sm:$0xff]
    %v799 = vld [vmem:[%s3 + $0xab8] sm:$0xff]
    %v800 = vld [vmem:[%s3 + $0xac0] sm:$0xff]
    %v801 = vld [vmem:[%s3 + $0xac8] sm:$0xff]
    %v802 = vld [vmem:[%s3 + $0xad0] sm:$0xff]
    %v803 = vld [vmem:[%s3 + $0xad8] sm:$0xff]
    %v804 = vld [vmem:[%s3 + $0xae0] sm:$0xff]
    %v805 = vld [vmem:[%s3 + $0xae8] sm:$0xff]
    %v806 = vld [vmem:[%s3 + $0xaf0] sm:$0xff]
    %v807 = vld [vmem:[%s3 + $0xaf8] sm:$0xff]
    %v808 = vld [vmem:[%s3 + $0xb00] sm:$0xff]
    %v809 = vld [vmem:[%s3 + $0xb08] sm:$0xff]
    %v810 = vld [vmem:[%s3 + $0xb10] sm:$0xff]
    %v811 = vld [vmem:[%s3 + $0xb18] sm:$0xff]
    %v812 = vld [vmem:[%s3 + $0xb20] sm:$0xff]
    %v813 = vld [vmem:[%s3 + $0xb28] sm:$0xff]
    %v814 = vld [vmem:[%s3 + $0xb30] sm:$0xff]
    %v815 = vld [vmem:[%s3 + $0xb38] sm:$0xff]
    %v816 = vld [vmem:[%s3 + $0xb40] sm:$0xff]
    %v817 = vld [vmem:[%s3 + $0xb48] sm:$0xff]
    %v818 = vld [vmem:[%s3 + $0xb50] sm:$0xff]
    %v819 = vld [vmem:[%s3 + $0xb58] sm:$0xff]
    %v820 = vld [vmem:[%s3 + $0xb60] sm:$0xff]
    %v821 = vld [vmem:[%s3 + $0xb68] sm:$0xff]
    %v822 = vld [vmem:[%s3 + $0xb70] sm:$0xff]
    %v823 = vld [vmem:[%s3 + $0xb78] sm:$0xff]
    %v824 = vld [vmem:[%s3 + $0xb80] sm:$0xff]
    %v825 = vld [vmem:[%s3 + $0xb88] sm:$0xff]
    %v826 = vld [vmem:[%s3 + $0xb90] sm:$0xff]
    %v827 = vld [vmem:[%s3 + $0xb98] sm:$0xff]
    %v828 = vld [vmem:[%s3 + $0xba0] sm:$0xff]
    %v829 = vld [vmem:[%s3 + $0xba8] sm:$0xff]
    %v830 = vld [vmem:[%s3 + $0xbb0] sm:$0xff]
    %v831 = vld [vmem:[%s3 + $0xbb8] sm:$0xff]
    %v832 = vld [vmem:[%s3 + $0xbc0] sm:$0xff]
    %v833 = vld [vmem:[%s3 + $0xbc8] sm:$0xff]
    %v834 = vld [vmem:[%s3 + $0xbd0] sm:$0xff]
    %v835 = vld [vmem:[%s3 + $0xbd8] sm:$0xff]
    %v836 = vld [vmem:[%s3 + $0xbe0] sm:$0xff]
    %v837 = vld [vmem:[%s3 + $0xbe8] sm:$0xff]
    %v838 = vld [vmem:[%s3 + $0xbf0] sm:$0xff]
    %v839 = vld [vmem:[%s3 + $0xbf8] sm:$0xff]
    %v840 = vld [vmem:[%s3 + $0xc00] sm:$0xff]
    %v841 = vld [vmem:[%s3 + $0xc08] sm:$0xff]
    %v842 = vld [vmem:[%s3 + $0xc10] sm:$0xff]
    %v843 = vld [vmem:[%s3 + $0xc18] sm:$0xff]
    %v844 = vld [vmem:[%s3 + $0xc20] sm:$0xff]
    %v845 = vld [vmem:[%s3 + $0xc28] sm:$0xff]
    %v846 = vld [vmem:[%s3 + $0xc30] sm:$0xff]
    %v847 = vld [vmem:[%s3 + $0xc38] sm:$0xff]
    %v848 = vld [vmem:[%s3 + $0xc40] sm:$0xff]
    %v849 = vld [vmem:[%s3 + $0xc48] sm:$0xff]
    %v850 = vld [vmem:[%s3 + $0xc50] sm:$0xff]
    %v851 = vld [vmem:[%s3 + $0xc58] sm:$0xff]
    %v852 = vld [vmem:[%s3 + $0xc60] sm:$0xff]
    %v853 = vld [vmem:[%s3 + $0xc68] sm:$0xff]
    %v854 = vld [vmem:[%s3 + $0xc70] sm:$0xff]
    %v855 = vld [vmem:[%s3 + $0xc78] sm:$0xff]
    %s856 = scalar_lea.vmem %s3, 3200
    %v857 = vld [vmem:[%s856] sm:$0xff]
    %v858 = vld [vmem:[%s856 + $0x8] sm:$0xff]
    %v859 = vld [vmem:[%s856 + $0x10] sm:$0xff]
    %v860 = vld [vmem:[%s856 + $0x18] sm:$0xff]
    %v861 = vld [vmem:[%s856 + $0x20] sm:$0xff]
    %v862 = vld [vmem:[%s856 + $0x28] sm:$0xff]
    %v863 = vld [vmem:[%s856 + $0x30] sm:$0xff]
    %v864 = vld [vmem:[%s856 + $0x38] sm:$0xff]
    %v865 = vld [vmem:[%s856 + $0x40] sm:$0xff]
    %v866 = vld [vmem:[%s856 + $0x48] sm:$0xff]
    %v867 = vld [vmem:[%s856 + $0x50] sm:$0xff]
    %v868 = vld [vmem:[%s856 + $0x58] sm:$0xff]
    %v869 = vld [vmem:[%s856 + $0x60] sm:$0xff]
    %v870 = vld [vmem:[%s856 + $0x68] sm:$0xff]
    %v871 = vld [vmem:[%s856 + $0x70] sm:$0xff]
    %v872 = vld [vmem:[%s856 + $0x78] sm:$0xff]
    %v873 = vld [vmem:[%s856 + $0x80] sm:$0xff]
    %v874 = vld [vmem:[%s856 + $0x88] sm:$0xff]
    %v875 = vld [vmem:[%s856 + $0x90] sm:$0xff]
    %v876 = vld [vmem:[%s856 + $0x98] sm:$0xff]
    %v877 = vld [vmem:[%s856 + $0xa0] sm:$0xff]
    %v878 = vld [vmem:[%s856 + $0xa8] sm:$0xff]
    %v879 = vld [vmem:[%s856 + $0xb0] sm:$0xff]
    %v880 = vld [vmem:[%s856 + $0xb8] sm:$0xff]
    %v881 = vld [vmem:[%s856 + $0xc0] sm:$0xff]
    %v882 = vld [vmem:[%s856 + $0xc8] sm:$0xff]
    %v883 = vld [vmem:[%s856 + $0xd0] sm:$0xff]
    %v884 = vld [vmem:[%s856 + $0xd8] sm:$0xff]
    %v885 = vld [vmem:[%s856 + $0xe0] sm:$0xff]
    %v886 = vld [vmem:[%s856 + $0xe8] sm:$0xff]
    %v887 = vld [vmem:[%s856 + $0xf0] sm:$0xff]
    %v888 = vld [vmem:[%s856 + $0xf8] sm:$0xff]
    %v889 = vld [vmem:[%s856 + $0x100] sm:$0xff]
    %v890 = vld [vmem:[%s856 + $0x108] sm:$0xff]
    %v891 = vld [vmem:[%s856 + $0x110] sm:$0xff]
    %v892 = vld [vmem:[%s856 + $0x118] sm:$0xff]
    %v893 = vld [vmem:[%s856 + $0x120] sm:$0xff]
    %v894 = vld [vmem:[%s856 + $0x128] sm:$0xff]
    %v895 = vld [vmem:[%s856 + $0x130] sm:$0xff]
    %v896 = vld [vmem:[%s856 + $0x138] sm:$0xff]
    %v897 = vld [vmem:[%s856 + $0x140] sm:$0xff]
    %v898 = vld [vmem:[%s856 + $0x148] sm:$0xff]
    %v899 = vld [vmem:[%s856 + $0x150] sm:$0xff]
    %v900 = vld [vmem:[%s856 + $0x158] sm:$0xff]
    %v901 = vld [vmem:[%s856 + $0x160] sm:$0xff]
    %v902 = vld [vmem:[%s856 + $0x168] sm:$0xff]
    %v903 = vld [vmem:[%s856 + $0x170] sm:$0xff]
    %v904 = vld [vmem:[%s856 + $0x178] sm:$0xff]
    %v905 = vld [vmem:[%s856 + $0x180] sm:$0xff]
    %v906 = vld [vmem:[%s856 + $0x188] sm:$0xff]
    %v907 = vld [vmem:[%s856 + $0x190] sm:$0xff]
    %v908 = vld [vmem:[%s856 + $0x198] sm:$0xff]
    %v909 = vld [vmem:[%s856 + $0x1a0] sm:$0xff]
    %v910 = vld [vmem:[%s856 + $0x1a8] sm:$0xff]
    %v911 = vld [vmem:[%s856 + $0x1b0] sm:$0xff]
    %v912 = vld [vmem:[%s856 + $0x1b8] sm:$0xff]
    %v913 = vld [vmem:[%s856 + $0x1c0] sm:$0xff]
    %v914 = vld [vmem:[%s856 + $0x1c8] sm:$0xff]
    %v915 = vld [vmem:[%s856 + $0x1d0] sm:$0xff]
    %v916 = vld [vmem:[%s856 + $0x1d8] sm:$0xff]
    %v917 = vld [vmem:[%s856 + $0x1e0] sm:$0xff]
    %v918 = vld [vmem:[%s856 + $0x1e8] sm:$0xff]
    %v919 = vld [vmem:[%s856 + $0x1f0] sm:$0xff]
    %v920 = vld [vmem:[%s856 + $0x1f8] sm:$0xff]
    %v921 = vld [vmem:[%s856 + $0x200] sm:$0xff]
    %v922 = vld [vmem:[%s856 + $0x208] sm:$0xff]
    %v923 = vld [vmem:[%s856 + $0x210] sm:$0xff]
    %v924 = vld [vmem:[%s856 + $0x218] sm:$0xff]
    %v925 = vld [vmem:[%s856 + $0x220] sm:$0xff]
    %v926 = vld [vmem:[%s856 + $0x228] sm:$0xff]
    %v927 = vld [vmem:[%s856 + $0x230] sm:$0xff]
    %v928 = vld [vmem:[%s856 + $0x238] sm:$0xff]
    %v929 = vld [vmem:[%s856 + $0x240] sm:$0xff]
    %v930 = vld [vmem:[%s856 + $0x248] sm:$0xff]
    %v931 = vld [vmem:[%s856 + $0x250] sm:$0xff]
    %v932 = vld [vmem:[%s856 + $0x258] sm:$0xff]
    %v933 = vld [vmem:[%s856 + $0x260] sm:$0xff]
    %v934 = vld [vmem:[%s856 + $0x268] sm:$0xff]
    %v935 = vld [vmem:[%s856 + $0x270] sm:$0xff]
    %v936 = vld [vmem:[%s856 + $0x278] sm:$0xff]
    %v937 = vld [vmem:[%s856 + $0x280] sm:$0xff]
    %v938 = vld [vmem:[%s856 + $0x288] sm:$0xff]
    %v939 = vld [vmem:[%s856 + $0x290] sm:$0xff]
    %v940 = vld [vmem:[%s856 + $0x298] sm:$0xff]
    %v941 = vld [vmem:[%s856 + $0x2a0] sm:$0xff]
    %v942 = vld [vmem:[%s856 + $0x2a8] sm:$0xff]
    %v943 = vld [vmem:[%s856 + $0x2b0] sm:$0xff]
    %v944 = vld [vmem:[%s856 + $0x2b8] sm:$0xff]
    %v945 = vld [vmem:[%s856 + $0x2c0] sm:$0xff]
    %v946 = vld [vmem:[%s856 + $0x2c8] sm:$0xff]
    %v947 = vld [vmem:[%s856 + $0x2d0] sm:$0xff]
    %v948 = vld [vmem:[%s856 + $0x2d8] sm:$0xff]
    %v949 = vld [vmem:[%s856 + $0x2e0] sm:$0xff]
    %v950 = vld [vmem:[%s856 + $0x2e8] sm:$0xff]
    %v951 = vld [vmem:[%s856 + $0x2f0] sm:$0xff]
    %v952 = vld [vmem:[%s856 + $0x2f8] sm:$0xff]
    %v953 = vld [vmem:[%s856 + $0x300] sm:$0xff]
    %v954 = vld [vmem:[%s856 + $0x308] sm:$0xff]
    %v955 = vld [vmem:[%s856 + $0x310] sm:$0xff]
    %v956 = vld [vmem:[%s856 + $0x318] sm:$0xff]
    %v957 = vld [vmem:[%s856 + $0x320] sm:$0xff]
    %v958 = vld [vmem:[%s856 + $0x328] sm:$0xff]
    %v959 = vld [vmem:[%s856 + $0x330] sm:$0xff]
    %v960 = vld [vmem:[%s856 + $0x338] sm:$0xff]
    %v961 = vld [vmem:[%s856 + $0x340] sm:$0xff]
    %v962 = vld [vmem:[%s856 + $0x348] sm:$0xff]
    %v963 = vld [vmem:[%s856 + $0x350] sm:$0xff]
    %v964 = vld [vmem:[%s856 + $0x358] sm:$0xff]
    %v965 = vld [vmem:[%s856 + $0x360] sm:$0xff]
    %v966 = vld [vmem:[%s856 + $0x368] sm:$0xff]
    %v967 = vld [vmem:[%s856 + $0x370] sm:$0xff]
    %v968 = vld [vmem:[%s856 + $0x378] sm:$0xff]
    %v969 = vld [vmem:[%s856 + $0x380] sm:$0xff]
    %v970 = vld [vmem:[%s856 + $0x388] sm:$0xff]
    %v971 = vld [vmem:[%s856 + $0x390] sm:$0xff]
    %v972 = vld [vmem:[%s856 + $0x398] sm:$0xff]
    %v973 = vld [vmem:[%s856 + $0x3a0] sm:$0xff]
    %v974 = vld [vmem:[%s856 + $0x3a8] sm:$0xff]
    %v975 = vld [vmem:[%s856 + $0x3b0] sm:$0xff]
    %v976 = vld [vmem:[%s856 + $0x3b8] sm:$0xff]
    %v977 = vld [vmem:[%s856 + $0x3c0] sm:$0xff]
    %v978 = vld [vmem:[%s856 + $0x3c8] sm:$0xff]
    %v979 = vld [vmem:[%s856 + $0x3d0] sm:$0xff]
    %v980 = vld [vmem:[%s856 + $0x3d8] sm:$0xff]
    %v981 = vld [vmem:[%s856 + $0x3e0] sm:$0xff]
    %v982 = vld [vmem:[%s856 + $0x3e8] sm:$0xff]
    %v983 = vld [vmem:[%s856 + $0x3f0] sm:$0xff]
    %v984 = vld [vmem:[%s856 + $0x3f8] sm:$0xff]
    %v985 = vld [vmem:[%s856 + $0x400] sm:$0xff]
    %v986 = vld [vmem:[%s856 + $0x408] sm:$0xff]
    %v987 = vld [vmem:[%s856 + $0x410] sm:$0xff]
    %v988 = vld [vmem:[%s856 + $0x418] sm:$0xff]
    %v989 = vld [vmem:[%s856 + $0x420] sm:$0xff]
    %v990 = vld [vmem:[%s856 + $0x428] sm:$0xff]
    %v991 = vld [vmem:[%s856 + $0x430] sm:$0xff]
    %v992 = vld [vmem:[%s856 + $0x438] sm:$0xff]
    %v993 = vld [vmem:[%s856 + $0x440] sm:$0xff]
    %v994 = vld [vmem:[%s856 + $0x448] sm:$0xff]
    %v995 = vld [vmem:[%s856 + $0x450] sm:$0xff]
    %v996 = vld [vmem:[%s856 + $0x458] sm:$0xff]
    %v997 = vld [vmem:[%s856 + $0x460] sm:$0xff]
    %v998 = vld [vmem:[%s856 + $0x468] sm:$0xff]
    %v999 = vld [vmem:[%s856 + $0x470] sm:$0xff]
    %v1000 = vld [vmem:[%s856 + $0x478] sm:$0xff]
    %v1001 = vld [vmem:[%s856 + $0x480] sm:$0xff]
    %v1002 = vld [vmem:[%s856 + $0x488] sm:$0xff]
    %v1003 = vld [vmem:[%s856 + $0x490] sm:$0xff]
    %v1004 = vld [vmem:[%s856 + $0x498] sm:$0xff]
    %v1005 = vld [vmem:[%s856 + $0x4a0] sm:$0xff]
    %v1006 = vld [vmem:[%s856 + $0x4a8] sm:$0xff]
    %v1007 = vld [vmem:[%s856 + $0x4b0] sm:$0xff]
    %v1008 = vld [vmem:[%s856 + $0x4b8] sm:$0xff]
    %v1009 = vld [vmem:[%s856 + $0x4c0] sm:$0xff]
    %v1010 = vld [vmem:[%s856 + $0x4c8] sm:$0xff]
    %v1011 = vld [vmem:[%s856 + $0x4d0] sm:$0xff]
    %v1012 = vld [vmem:[%s856 + $0x4d8] sm:$0xff]
    %v1013 = vld [vmem:[%s856 + $0x4e0] sm:$0xff]
    %v1014 = vld [vmem:[%s856 + $0x4e8] sm:$0xff]
    %v1015 = vld [vmem:[%s856 + $0x4f0] sm:$0xff]
    %v1016 = vld [vmem:[%s856 + $0x4f8] sm:$0xff]
    %v1017 = vld [vmem:[%s856 + $0x500] sm:$0xff]
    %v1018 = vld [vmem:[%s856 + $0x508] sm:$0xff]
    %v1019 = vld [vmem:[%s856 + $0x510] sm:$0xff]
    %v1020 = vld [vmem:[%s856 + $0x518] sm:$0xff]
    %v1021 = vld [vmem:[%s856 + $0x520] sm:$0xff]
    %v1022 = vld [vmem:[%s856 + $0x528] sm:$0xff]
    %v1023 = vld [vmem:[%s856 + $0x530] sm:$0xff]
    %v1024 = vld [vmem:[%s856 + $0x538] sm:$0xff]
    %v1025 = vld [vmem:[%s856 + $0x540] sm:$0xff]
    %v1026 = vld [vmem:[%s856 + $0x548] sm:$0xff]
    %v1027 = vld [vmem:[%s856 + $0x550] sm:$0xff]
    %v1028 = vld [vmem:[%s856 + $0x558] sm:$0xff]
    %v1029 = vld [vmem:[%s856 + $0x560] sm:$0xff]
    %v1030 = vld [vmem:[%s856 + $0x568] sm:$0xff]
    %v1031 = vld [vmem:[%s856 + $0x570] sm:$0xff]
    %v1032 = vld [vmem:[%s856 + $0x578] sm:$0xff]
    %v1033 = vld [vmem:[%s856 + $0x580] sm:$0xff]
    %v1034 = vld [vmem:[%s856 + $0x588] sm:$0xff]
    %v1035 = vld [vmem:[%s856 + $0x590] sm:$0xff]
    %v1036 = vld [vmem:[%s856 + $0x598] sm:$0xff]
    %v1037 = vld [vmem:[%s856 + $0x5a0] sm:$0xff]
    %v1038 = vld [vmem:[%s856 + $0x5a8] sm:$0xff]
    %v1039 = vld [vmem:[%s856 + $0x5b0] sm:$0xff]
    %v1040 = vld [vmem:[%s856 + $0x5b8] sm:$0xff]
    %v1041 = vld [vmem:[%s856 + $0x5c0] sm:$0xff]
    %v1042 = vld [vmem:[%s856 + $0x5c8] sm:$0xff]
    %v1043 = vld [vmem:[%s856 + $0x5d0] sm:$0xff]
    %v1044 = vld [vmem:[%s856 + $0x5d8] sm:$0xff]
    %v1045 = vld [vmem:[%s856 + $0x5e0] sm:$0xff]
    %v1046 = vld [vmem:[%s856 + $0x5e8] sm:$0xff]
    %v1047 = vld [vmem:[%s856 + $0x5f0] sm:$0xff]
    %v1048 = vld [vmem:[%s856 + $0x5f8] sm:$0xff]
    %v1049 = vld [vmem:[%s856 + $0x600] sm:$0xff]
    %v1050 = vld [vmem:[%s856 + $0x608] sm:$0xff]
    %v1051 = vld [vmem:[%s856 + $0x610] sm:$0xff]
    %v1052 = vld [vmem:[%s856 + $0x618] sm:$0xff]
    %v1053 = vld [vmem:[%s856 + $0x620] sm:$0xff]
    %v1054 = vld [vmem:[%s856 + $0x628] sm:$0xff]
    %v1055 = vld [vmem:[%s856 + $0x630] sm:$0xff]
    %v1056 = vld [vmem:[%s856 + $0x638] sm:$0xff]
    %v1057 = vld [vmem:[%s856 + $0x640] sm:$0xff]
    %v1058 = vld [vmem:[%s856 + $0x648] sm:$0xff]
    %v1059 = vld [vmem:[%s856 + $0x650] sm:$0xff]
    %v1060 = vld [vmem:[%s856 + $0x658] sm:$0xff]
    %v1061 = vld [vmem:[%s856 + $0x660] sm:$0xff]
    %v1062 = vld [vmem:[%s856 + $0x668] sm:$0xff]
    %v1063 = vld [vmem:[%s856 + $0x670] sm:$0xff]
    %v1064 = vld [vmem:[%s856 + $0x678] sm:$0xff]
    %v1065 = vld [vmem:[%s856 + $0x680] sm:$0xff]
    %v1066 = vld [vmem:[%s856 + $0x688] sm:$0xff]
    %v1067 = vld [vmem:[%s856 + $0x690] sm:$0xff]
    %v1068 = vld [vmem:[%s856 + $0x698] sm:$0xff]
    %v1069 = vld [vmem:[%s856 + $0x6a0] sm:$0xff]
    %v1070 = vld [vmem:[%s856 + $0x6a8] sm:$0xff]
    %v1071 = vld [vmem:[%s856 + $0x6b0] sm:$0xff]
    %v1072 = vld [vmem:[%s856 + $0x6b8] sm:$0xff]
    %v1073 = vld [vmem:[%s856 + $0x6c0] sm:$0xff]
    %v1074 = vld [vmem:[%s856 + $0x6c8] sm:$0xff]
    %v1075 = vld [vmem:[%s856 + $0x6d0] sm:$0xff]
    %v1076 = vld [vmem:[%s856 + $0x6d8] sm:$0xff]
    %v1077 = vld [vmem:[%s856 + $0x6e0] sm:$0xff]
    %v1078 = vld [vmem:[%s856 + $0x6e8] sm:$0xff]
    %v1079 = vld [vmem:[%s856 + $0x6f0] sm:$0xff]
    %v1080 = vld [vmem:[%s856 + $0x6f8] sm:$0xff]
    %v1081 = vld [vmem:[%s856 + $0x700] sm:$0xff]
    %v1082 = vld [vmem:[%s856 + $0x708] sm:$0xff]
    %v1083 = vld [vmem:[%s856 + $0x710] sm:$0xff]
    %v1084 = vld [vmem:[%s856 + $0x718] sm:$0xff]
    %v1085 = vld [vmem:[%s856 + $0x720] sm:$0xff]
    %v1086 = vld [vmem:[%s856 + $0x728] sm:$0xff]
    %v1087 = vld [vmem:[%s856 + $0x730] sm:$0xff]
    %v1088 = vld [vmem:[%s856 + $0x738] sm:$0xff]
    %v1089 = vld [vmem:[%s856 + $0x740] sm:$0xff]
    %v1090 = vld [vmem:[%s856 + $0x748] sm:$0xff]
    %v1091 = vld [vmem:[%s856 + $0x750] sm:$0xff]
    %v1092 = vld [vmem:[%s856 + $0x758] sm:$0xff]
    %v1093 = vld [vmem:[%s856 + $0x760] sm:$0xff]
    %v1094 = vld [vmem:[%s856 + $0x768] sm:$0xff]
    %v1095 = vld [vmem:[%s856 + $0x770] sm:$0xff]
    %v1096 = vld [vmem:[%s856 + $0x778] sm:$0xff]
    %v1097 = vld [vmem:[%s856 + $0x780] sm:$0xff]
    %v1098 = vld [vmem:[%s856 + $0x788] sm:$0xff]
    %v1099 = vld [vmem:[%s856 + $0x790] sm:$0xff]
    %v1100 = vld [vmem:[%s856 + $0x798] sm:$0xff]
    %v1101 = vld [vmem:[%s856 + $0x7a0] sm:$0xff]
    %v1102 = vld [vmem:[%s856 + $0x7a8] sm:$0xff]
    %v1103 = vld [vmem:[%s856 + $0x7b0] sm:$0xff]
    %v1104 = vld [vmem:[%s856 + $0x7b8] sm:$0xff]
    %v1105 = vld [vmem:[%s856 + $0x7c0] sm:$0xff]
    %v1106 = vld [vmem:[%s856 + $0x7c8] sm:$0xff]
    %v1107 = vld [vmem:[%s856 + $0x7d0] sm:$0xff]
    %v1108 = vld [vmem:[%s856 + $0x7d8] sm:$0xff]
    %v1109 = vld [vmem:[%s856 + $0x7e0] sm:$0xff]
    %v1110 = vld [vmem:[%s856 + $0x7e8] sm:$0xff]
    %v1111 = vld [vmem:[%s856 + $0x7f0] sm:$0xff]
    %v1112 = vld [vmem:[%s856 + $0x7f8] sm:$0xff]
    %v1113 = vld [vmem:[%s856 + $0x800] sm:$0xff]
    %v1114 = vld [vmem:[%s856 + $0x808] sm:$0xff]
    %v1115 = vld [vmem:[%s856 + $0x810] sm:$0xff]
    %v1116 = vld [vmem:[%s856 + $0x818] sm:$0xff]
    %v1117 = vld [vmem:[%s856 + $0x820] sm:$0xff]
    %v1118 = vld [vmem:[%s856 + $0x828] sm:$0xff]
    %v1119 = vld [vmem:[%s856 + $0x830] sm:$0xff]
    %v1120 = vld [vmem:[%s856 + $0x838] sm:$0xff]
    %v1121 = vld [vmem:[%s856 + $0x840] sm:$0xff]
    %v1122 = vld [vmem:[%s856 + $0x848] sm:$0xff]
    %v1123 = vld [vmem:[%s856 + $0x850] sm:$0xff]
    %v1124 = vld [vmem:[%s856 + $0x858] sm:$0xff]
    %v1125 = vld [vmem:[%s856 + $0x860] sm:$0xff]
    %v1126 = vld [vmem:[%s856 + $0x868] sm:$0xff]
    %v1127 = vld [vmem:[%s856 + $0x870] sm:$0xff]
    %v1128 = vld [vmem:[%s856 + $0x878] sm:$0xff]
    %v1129 = vld [vmem:[%s856 + $0x880] sm:$0xff]
    %v1130 = vld [vmem:[%s856 + $0x888] sm:$0xff]
    %v1131 = vld [vmem:[%s856 + $0x890] sm:$0xff]
    %v1132 = vld [vmem:[%s856 + $0x898] sm:$0xff]
    %v1133 = vld [vmem:[%s856 + $0x8a0] sm:$0xff]
    %v1134 = vld [vmem:[%s856 + $0x8a8] sm:$0xff]
    %v1135 = vld [vmem:[%s856 + $0x8b0] sm:$0xff]
    %v1136 = vld [vmem:[%s856 + $0x8b8] sm:$0xff]
    %v1137 = vld [vmem:[%s856 + $0x8c0] sm:$0xff]
    %v1138 = vld [vmem:[%s856 + $0x8c8] sm:$0xff]
    %v1139 = vld [vmem:[%s856 + $0x8d0] sm:$0xff]
    %v1140 = vld [vmem:[%s856 + $0x8d8] sm:$0xff]
    %v1141 = vld [vmem:[%s856 + $0x8e0] sm:$0xff]
    %v1142 = vld [vmem:[%s856 + $0x8e8] sm:$0xff]
    %v1143 = vld [vmem:[%s856 + $0x8f0] sm:$0xff]
    %v1144 = vld [vmem:[%s856 + $0x8f8] sm:$0xff]
    %v1145 = vld [vmem:[%s856 + $0x900] sm:$0xff]
    %v1146 = vld [vmem:[%s856 + $0x908] sm:$0xff]
    %v1147 = vld [vmem:[%s856 + $0x910] sm:$0xff]
    %v1148 = vld [vmem:[%s856 + $0x918] sm:$0xff]
    %v1149 = vld [vmem:[%s856 + $0x920] sm:$0xff]
    %v1150 = vld [vmem:[%s856 + $0x928] sm:$0xff]
    %v1151 = vld [vmem:[%s856 + $0x930] sm:$0xff]
    %v1152 = vld [vmem:[%s856 + $0x938] sm:$0xff]
    %v1153 = vld [vmem:[%s856 + $0x940] sm:$0xff]
    %v1154 = vld [vmem:[%s856 + $0x948] sm:$0xff]
    %v1155 = vld [vmem:[%s856 + $0x950] sm:$0xff]
    %v1156 = vld [vmem:[%s856 + $0x958] sm:$0xff]
    %v1157 = vld [vmem:[%s856 + $0x960] sm:$0xff]
    %v1158 = vld [vmem:[%s856 + $0x968] sm:$0xff]
    %v1159 = vld [vmem:[%s856 + $0x970] sm:$0xff]
    %v1160 = vld [vmem:[%s856 + $0x978] sm:$0xff]
    %v1161 = vld [vmem:[%s856 + $0x980] sm:$0xff]
    %v1162 = vld [vmem:[%s856 + $0x988] sm:$0xff]
    %v1163 = vld [vmem:[%s856 + $0x990] sm:$0xff]
    %v1164 = vld [vmem:[%s856 + $0x998] sm:$0xff]
    %v1165 = vld [vmem:[%s856 + $0x9a0] sm:$0xff]
    %v1166 = vld [vmem:[%s856 + $0x9a8] sm:$0xff]
    %v1167 = vld [vmem:[%s856 + $0x9b0] sm:$0xff]
    %v1168 = vld [vmem:[%s856 + $0x9b8] sm:$0xff]
    %v1169 = vld [vmem:[%s856 + $0x9c0] sm:$0xff]
    %v1170 = vld [vmem:[%s856 + $0x9c8] sm:$0xff]
    %v1171 = vld [vmem:[%s856 + $0x9d0] sm:$0xff]
    %v1172 = vld [vmem:[%s856 + $0x9d8] sm:$0xff]
    %v1173 = vld [vmem:[%s856 + $0x9e0] sm:$0xff]
    %v1174 = vld [vmem:[%s856 + $0x9e8] sm:$0xff]
    %v1175 = vld [vmem:[%s856 + $0x9f0] sm:$0xff]
    %v1176 = vld [vmem:[%s856 + $0x9f8] sm:$0xff]
    %v1177 = vld [vmem:[%s856 + $0xa00] sm:$0xff]
    %v1178 = vld [vmem:[%s856 + $0xa08] sm:$0xff]
    %v1179 = vld [vmem:[%s856 + $0xa10] sm:$0xff]
    %v1180 = vld [vmem:[%s856 + $0xa18] sm:$0xff]
    %v1181 = vld [vmem:[%s856 + $0xa20] sm:$0xff]
    %v1182 = vld [vmem:[%s856 + $0xa28] sm:$0xff]
    %v1183 = vld [vmem:[%s856 + $0xa30] sm:$0xff]
    %v1184 = vld [vmem:[%s856 + $0xa38] sm:$0xff]
    %v1185 = vld [vmem:[%s856 + $0xa40] sm:$0xff]
    %v1186 = vld [vmem:[%s856 + $0xa48] sm:$0xff]
    %v1187 = vld [vmem:[%s856 + $0xa50] sm:$0xff]
    %v1188 = vld [vmem:[%s856 + $0xa58] sm:$0xff]
    %v1189 = vld [vmem:[%s856 + $0xa60] sm:$0xff]
    %v1190 = vld [vmem:[%s856 + $0xa68] sm:$0xff]
    %v1191 = vld [vmem:[%s856 + $0xa70] sm:$0xff]
    %v1192 = vld [vmem:[%s856 + $0xa78] sm:$0xff]
    %v1193 = vld [vmem:[%s856 + $0xa80] sm:$0xff]
    %v1194 = vld [vmem:[%s856 + $0xa88] sm:$0xff]
    %v1195 = vld [vmem:[%s856 + $0xa90] sm:$0xff]
    %v1196 = vld [vmem:[%s856 + $0xa98] sm:$0xff]
    %v1197 = vld [vmem:[%s856 + $0xaa0] sm:$0xff]
    %v1198 = vld [vmem:[%s856 + $0xaa8] sm:$0xff]
    %v1199 = vld [vmem:[%s856 + $0xab0] sm:$0xff]
    %v1200 = vld [vmem:[%s856 + $0xab8] sm:$0xff]
    %v1201 = vld [vmem:[%s856 + $0xac0] sm:$0xff]
    %v1202 = vld [vmem:[%s856 + $0xac8] sm:$0xff]
    %v1203 = vld [vmem:[%s856 + $0xad0] sm:$0xff]
    %v1204 = vld [vmem:[%s856 + $0xad8] sm:$0xff]
    %v1205 = vld [vmem:[%s856 + $0xae0] sm:$0xff]
    %v1206 = vld [vmem:[%s856 + $0xae8] sm:$0xff]
    %v1207 = vld [vmem:[%s856 + $0xaf0] sm:$0xff]
    %v1208 = vld [vmem:[%s856 + $0xaf8] sm:$0xff]
    %v1209 = vld [vmem:[%s856 + $0xb00] sm:$0xff]
    %v1210 = vld [vmem:[%s856 + $0xb08] sm:$0xff]
    %v1211 = vld [vmem:[%s856 + $0xb10] sm:$0xff]
    %v1212 = vld [vmem:[%s856 + $0xb18] sm:$0xff]
    %v1213 = vld [vmem:[%s856 + $0xb20] sm:$0xff]
    %v1214 = vld [vmem:[%s856 + $0xb28] sm:$0xff]
    %v1215 = vld [vmem:[%s856 + $0xb30] sm:$0xff]
    %v1216 = vld [vmem:[%s856 + $0xb38] sm:$0xff]
    %v1217 = vld [vmem:[%s856 + $0xb40] sm:$0xff]
    %v1218 = vld [vmem:[%s856 + $0xb48] sm:$0xff]
    %v1219 = vld [vmem:[%s856 + $0xb50] sm:$0xff]
    %v1220 = vld [vmem:[%s856 + $0xb58] sm:$0xff]
    %v1221 = vld [vmem:[%s856 + $0xb60] sm:$0xff]
    %v1222 = vld [vmem:[%s856 + $0xb68] sm:$0xff]
    %v1223 = vld [vmem:[%s856 + $0xb70] sm:$0xff]
    %v1224 = vld [vmem:[%s856 + $0xb78] sm:$0xff]
    %v1225 = vld [vmem:[%s856 + $0xb80] sm:$0xff]
    %v1226 = vld [vmem:[%s856 + $0xb88] sm:$0xff]
    %v1227 = vld [vmem:[%s856 + $0xb90] sm:$0xff]
    %v1228 = vld [vmem:[%s856 + $0xb98] sm:$0xff]
    %v1229 = vld [vmem:[%s856 + $0xba0] sm:$0xff]
    %v1230 = vld [vmem:[%s856 + $0xba8] sm:$0xff]
    %v1231 = vld [vmem:[%s856 + $0xbb0] sm:$0xff]
    %v1232 = vld [vmem:[%s856 + $0xbb8] sm:$0xff]
    %v1233 = vld [vmem:[%s856 + $0xbc0] sm:$0xff]
    %v1234 = vld [vmem:[%s856 + $0xbc8] sm:$0xff]
    %v1235 = vld [vmem:[%s856 + $0xbd0] sm:$0xff]
    %v1236 = vld [vmem:[%s856 + $0xbd8] sm:$0xff]
    %v1237 = vld [vmem:[%s856 + $0xbe0] sm:$0xff]
    %v1238 = vld [vmem:[%s856 + $0xbe8] sm:$0xff]
    %v1239 = vld [vmem:[%s856 + $0xbf0] sm:$0xff]
    %v1240 = vld [vmem:[%s856 + $0xbf8] sm:$0xff]
    %v1241 = vld [vmem:[%s856 + $0xc00] sm:$0xff]
    %v1242 = vld [vmem:[%s856 + $0xc08] sm:$0xff]
    %v1243 = vld [vmem:[%s856 + $0xc10] sm:$0xff]
    %v1244 = vld [vmem:[%s856 + $0xc18] sm:$0xff]
    %v1245 = vld [vmem:[%s856 + $0xc20] sm:$0xff]
    %v1246 = vld [vmem:[%s856 + $0xc28] sm:$0xff]
    %v1247 = vld [vmem:[%s856 + $0xc30] sm:$0xff]
    %v1248 = vld [vmem:[%s856 + $0xc38] sm:$0xff]
    %v1249 = vld [vmem:[%s856 + $0xc40] sm:$0xff]
    %v1250 = vld [vmem:[%s856 + $0xc48] sm:$0xff]
    %v1251 = vld [vmem:[%s856 + $0xc50] sm:$0xff]
    %v1252 = vld [vmem:[%s856 + $0xc58] sm:$0xff]
    %v1253 = vld [vmem:[%s856 + $0xc60] sm:$0xff]
    %v1254 = vld [vmem:[%s856 + $0xc68] sm:$0xff]
    %v1255 = vld [vmem:[%s856 + $0xc70] sm:$0xff]
    %v1256 = vld [vmem:[%s856 + $0xc78] sm:$0xff]
    %1257 = vmatprep.subr.mxu0 %v858
    %1258 = vmatpush1.msra.mxu0 %v857
    %1259 = vmatprep.subr.mxu0 %v863
    %1260 = vmatpush1.msra.mxu0 %v862
    %1261 = vmatprep.subr.mxu0 %v868
    %1262 = vmatpush1.msra.mxu0 %v867
    %1263 = vmatprep.subr.mxu0 %v873
    %1264 = vmatpush1.msra.mxu0 %v872
    %1265 = vmatprep.subr.mxu0 %v878
    %1266 = vmatpush1.msra.mxu0 %v877
    %1267 = vmatprep.subr.mxu0 %v883
    %1268 = vmatpush1.msra.mxu0 %v882
    %1269 = vmatprep.subr.mxu0 %v888
    %1270 = vmatpush1.msra.mxu0 %v887
    %1271 = vmatprep.subr.mxu0 %v893
    %1272 = vmatpush1.msra.mxu0 %v892
    %1273 = vmatprep.subr.mxu0 %v898
    %1274 = vmatpush1.msra.mxu0 %v897
    %1275 = vmatprep.subr.mxu0 %v903
    %1276 = vmatpush1.msra.mxu0 %v902
    %1277 = vmatprep.subr.mxu0 %v908
    %1278 = vmatpush1.msra.mxu0 %v907
    %1279 = vmatprep.subr.mxu0 %v913
    %1280 = vmatpush1.msra.mxu0 %v912
    %1281 = vmatprep.subr.mxu0 %v918
    %1282 = vmatpush1.msra.mxu0 %v917
    %1283 = vmatprep.subr.mxu0 %v923
    %1284 = vmatpush1.msra.mxu0 %v922
    %1285 = vmatprep.subr.mxu0 %v928
    %1286 = vmatpush1.msra.mxu0 %v927
    %1287 = vmatprep.subr.mxu0 %v933
    %1288 = vmatpush1.msra.mxu0 %v932
    %1289 = vmatprep.subr.mxu0 %v938
    %1290 = vmatpush1.msra.mxu0 %v937
    %1291 = vmatprep.subr.mxu0 %v943
    %1292 = vmatpush1.msra.mxu0 %v942
    %1293 = vmatprep.subr.mxu0 %v948
    %1294 = vmatpush1.msra.mxu0 %v947
    %1295 = vmatprep.subr.mxu0 %v953
    %1296 = vmatpush1.msra.mxu0 %v952
    %1297 = vmatprep.subr.mxu0 %v958
    %1298 = vmatpush1.msra.mxu0 %v957
    %1299 = vmatprep.subr.mxu0 %v963
    %1300 = vmatpush1.msra.mxu0 %v962
    %1301 = vmatprep.subr.mxu0 %v968
    %1302 = vmatpush1.msra.mxu0 %v967
    %1303 = vmatprep.subr.mxu0 %v973
    %1304 = vmatpush1.msra.mxu0 %v972
    %1305 = vmatprep.subr.mxu0 %v978
    %1306 = vmatpush1.msra.mxu0 %v977
    %1307 = vmatprep.subr.mxu0 %v983
    %1308 = vmatpush1.msra.mxu0 %v982
    %1309 = vmatprep.subr.mxu0 %v988
    %1310 = vmatpush1.msra.mxu0 %v987
    %1311 = vmatprep.subr.mxu0 %v993
    %1312 = vmatpush1.msra.mxu0 %v992
    %1313 = vmatprep.subr.mxu0 %v998
    %1314 = vmatpush1.msra.mxu0 %v997
    %1315 = vmatprep.subr.mxu0 %v1003
    %1316 = vmatpush1.msra.mxu0 %v1002
    %1317 = vmatprep.subr.mxu0 %v1008
    %1318 = vmatpush1.msra.mxu0 %v1007
    %1319 = vmatprep.subr.mxu0 %v1013
    %1320 = vmatpush1.msra.mxu0 %v1012
    %1321 = vmatprep.mubr.f32.mxu0 %v437
    %1322 = vmatmul.mubr.f32.gmra.mrb[0].mxu0 %v436
    %v1323 = vpop.f32.mrb[0].mxu0
    %v1324 = vadd.f32 0.0, %v1323
    %v1325 = vpop.f32.mrb[0].mxu0
    %v1326 = vadd.f32 0.0, %v1325
    %1327 = vmatprep.mubr.f32.mxu0 %v442
    %1328 = vmatmul.mubr.f32.gmra.mrb[0].mxu0 %v441
    %v1329 = vpop.f32.mrb[0].mxu0
    %v1330 = vadd.f32 0.0, %v1329
    %v1331 = vpop.f32.mrb[0].mxu0
    %v1332 = vadd.f32 0.0, %v1331
    %1333 = vmatprep.mubr.f32.mxu0 %v447
    %1334 = vmatmul.mubr.f32.gmra.mrb[0].mxu0 %v446
    %v1335 = vpop.f32.mrb[0].mxu0
    %v1336 = vadd.f32 0.0, %v1335
    %v1337 = vpop.f32.mrb[0].mxu0
    %v1338 = vadd.f32 0.0, %v1337
    %1339 = vmatprep.mubr.f32.mxu0 %v452
    %1340 = vmatmul.mubr.f32.gmra.mrb[0].mxu0 %v451
    %v1341 = vpop.f32.mrb[0].mxu0
    %v1342 = vadd.f32 0.0, %v1341
    %v1343 = vpop.f32.mrb[0].mxu0
    %v1344 = vadd.f32 0.0, %v1343
    %1345 = vdwg.mxu0
    %1346 = vmatprep.subr.mxu0 %v1018
    %1347 = vmatpush1.msra.mxu0 %v1017
    %1348 = vmatprep.subr.mxu0 %v1023
    %1349 = vmatpush1.msra.mxu0 %v1022
    %1350 = vmatprep.subr.mxu0 %v1028
    %1351 = vmatpush1.msra.mxu0 %v1027
    %1352 = vmatprep.subr.mxu0 %v1033
    %1353 = vmatpush1.msra.mxu0 %v1032
    %1354 = vmatprep.subr.mxu0 %v1038
    %1355 = vmatpush1.msra.mxu0 %v1037
    %1356 = vmatprep.subr.mxu0 %v1043
    %1357 = vmatpush1.msra.mxu0 %v1042
    %1358 = vmatprep.subr.mxu0 %v1048
    %1359 = vmatpush1.msra.mxu0 %v1047
    %1360 = vmatprep.subr.mxu0 %v1053
    %1361 = vmatpush1.msra.mxu0 %v1052
    %1362 = vmatprep.subr.mxu0 %v1058
    %1363 = vmatpush1.msra.mxu0 %v1057
    %1364 = vmatprep.subr.mxu0 %v1063
    %1365 = vmatpush1.msra.mxu0 %v1062
    %1366 = vmatprep.subr.mxu0 %v1068
    %1367 = vmatpush1.msra.mxu0 %v1067
    %1368 = vmatprep.subr.mxu0 %v1073
    %1369 = vmatpush1.msra.mxu0 %v1072
    %1370 = vmatprep.subr.mxu0 %v1078
    %1371 = vmatpush1.msra.mxu0 %v1077
    %1372 = vmatprep.subr.mxu0 %v1083
    %1373 = vmatpush1.msra.mxu0 %v1082
    %1374 = vmatprep.subr.mxu0 %v1088
    %1375 = vmatpush1.msra.mxu0 %v1087
    %1376 = vmatprep.subr.mxu0 %v1093
    %1377 = vmatpush1.msra.mxu0 %v1092
    %1378 = vmatprep.subr.mxu0 %v1098
    %1379 = vmatpush1.msra.mxu0 %v1097
    %1380 = vmatprep.subr.mxu0 %v1103
    %1381 = vmatpush1.msra.mxu0 %v1102
    %1382 = vmatprep.subr.mxu0 %v1108
    %1383 = vmatpush1.msra.mxu0 %v1107
    %1384 = vmatprep.subr.mxu0 %v1113
    %1385 = vmatpush1.msra.mxu0 %v1112
    %1386 = vmatprep.subr.mxu0 %v1118
    %1387 = vmatpush1.msra.mxu0 %v1117
    %1388 = vmatprep.subr.mxu0 %v1123
    %1389 = vmatpush1.msra.mxu0 %v1122
    %1390 = vmatprep.subr.mxu0 %v1128
    %1391 = vmatpush1.msra.mxu0 %v1127
    %1392 = vmatprep.subr.mxu0 %v1133
    %1393 = vmatpush1.msra.mxu0 %v1132
    %1394 = vmatprep.subr.mxu0 %v1138
    %1395 = vmatpush1.msra.mxu0 %v1137
    %1396 = vmatprep.subr.mxu0 %v1143
    %1397 = vmatpush1.msra.mxu0 %v1142
    %1398 = vmatprep.subr.mxu0 %v1148
    %1399 = vmatpush1.msra.mxu0 %v1147
    %1400 = vmatprep.subr.mxu0 %v1153
    %1401 = vmatpush1.msra.mxu0 %v1152
    %1402 = vmatprep.subr.mxu0 %v1158
    %1403 = vmatpush1.msra.mxu0 %v1157
    %1404 = vmatprep.subr.mxu0 %v1163
    %1405 = vmatpush1.msra.mxu0 %v1162
    %1406 = vmatprep.subr.mxu0 %v1168
    %1407 = vmatpush1.msra.mxu0 %v1167
    %1408 = vmatprep.subr.mxu0 %v1173
    %1409 = vmatpush1.msra.mxu0 %v1172
    %1410 = vmatprep.mubr.f32.mxu0 %v439
    %1411 = vmatmul.mubr.f32.gmra.mrb[0].mxu0 %v438
    %v1412 = vpop.f32.mrb[0].mxu0
    %v1413 = vadd.f32 %v1324, %v1412
    %v1414 = vpop.f32.mrb[0].mxu0
    %v1415 = vadd.f32 %v1326, %v1414
    %1416 = vmatprep.mubr.f32.mxu0 %v444
    %1417 = vmatmul.mubr.f32.gmra.mrb[0].mxu0 %v443
    %v1418 = vpop.f32.mrb[0].mxu0
    %v1419 = vadd.f32 %v1330, %v1418
    %v1420 = vpop.f32.mrb[0].mxu0
    %v1421 = vadd.f32 %v1332, %v1420
    %1422 = vmatprep.mubr.f32.mxu0 %v449
    %1423 = vmatmul.mubr.f32.gmra.mrb[0].mxu0 %v448
    %v1424 = vpop.f32.mrb[0].mxu0
    %v1425 = vadd.f32 %v1336, %v1424
    %v1426 = vpop.f32.mrb[0].mxu0
    %v1427 = vadd.f32 %v1338, %v1426
    %1428 = vmatprep.mubr.f32.mxu0 %v454
    %1429 = vmatmul.mubr.f32.gmra.mrb[0].mxu0 %v453
    %v1430 = vpop.f32.mrb[0].mxu0
    %v1431 = vadd.f32 %v1342, %v1430
    %v1432 = vpop.f32.mrb[0].mxu0
    %v1433 = vadd.f32 %v1344, %v1432
    %1434 = vdwg.mxu0
    %1435 = vmatprep.subr.mxu0 %v1178
    %1436 = vmatpush1.msra.mxu0 %v1177
    %1437 = vmatprep.subr.mxu0 %v1183
    %1438 = vmatpush1.msra.mxu0 %v1182
    %1439 = vmatprep.subr.mxu0 %v1188
    %1440 = vmatpush1.msra.mxu0 %v1187
    %1441 = vmatprep.subr.mxu0 %v1193
    %1442 = vmatpush1.msra.mxu0 %v1192
    %1443 = vmatprep.subr.mxu0 %v1198
    %1444 = vmatpush1.msra.mxu0 %v1197
    %1445 = vmatprep.subr.mxu0 %v1203
    %1446 = vmatpush1.msra.mxu0 %v1202
    %1447 = vmatprep.subr.mxu0 %v1208
    %1448 = vmatpush1.msra.mxu0 %v1207
    %1449 = vmatprep.subr.mxu0 %v1213
    %1450 = vmatpush1.msra.mxu0 %v1212
    %1451 = vmatprep.subr.mxu0 %v1218
    %1452 = vmatpush1.msra.mxu0 %v1217
    %1453 = vmatprep.subr.mxu0 %v1223
    %1454 = vmatpush1.msra.mxu0 %v1222
    %1455 = vmatprep.subr.mxu0 %v1228
    %1456 = vmatpush1.msra.mxu0 %v1227
    %1457 = vmatprep.subr.mxu0 %v1233
    %1458 = vmatpush1.msra.mxu0 %v1232
    %1459 = vmatprep.subr.mxu0 %v1238
    %1460 = vmatpush1.msra.mxu0 %v1237
    %1461 = vmatprep.subr.mxu0 %v1243
    %1462 = vmatpush1.msra.mxu0 %v1242
    %1463 = vmatprep.subr.mxu0 %v1248
    %1464 = vmatpush1.msra.mxu0 %v1247
    %1465 = vmatprep.subr.mxu0 %v1253
    %1466 = vmatpush1.msra.mxu0 %v1252
    %1467 = vmatprep.subr.mxu0 0.0
    %1468 = vmatpush1.msra.mxu0 0.0
    %1469 = vmatprep.subr.mxu0 0.0
    %1470 = vmatpush1.msra.mxu0 0.0
    %1471 = vmatprep.subr.mxu0 0.0
    %1472 = vmatpush1.msra.mxu0 0.0
    %1473 = vmatprep.subr.mxu0 0.0
    %1474 = vmatpush1.msra.mxu0 0.0
    %1475 = vmatprep.subr.mxu0 0.0
    %1476 = vmatpush1.msra.mxu0 0.0
    %1477 = vmatprep.subr.mxu0 0.0
    %1478 = vmatpush1.msra.mxu0 0.0
    %1479 = vmatprep.subr.mxu0 0.0
    %1480 = vmatpush1.msra.mxu0 0.0
    %1481 = vmatprep.subr.mxu0 0.0
    %1482 = vmatpush1.msra.mxu0 0.0
    %1483 = vmatprep.subr.mxu0 0.0
    %1484 = vmatpush1.msra.mxu0 0.0
    %1485 = vmatprep.subr.mxu0 0.0
    %1486 = vmatpush1.msra.mxu0 0.0
    %1487 = vmatprep.subr.mxu0 0.0
    %1488 = vmatpush1.msra.mxu0 0.0
    %1489 = vmatprep.subr.mxu0 0.0
    %1490 = vmatpush1.msra.mxu0 0.0
    %1491 = vmatprep.subr.mxu0 0.0
    %1492 = vmatpush1.msra.mxu0 0.0
    %1493 = vmatprep.subr.mxu0 0.0
    %1494 = vmatpush1.msra.mxu0 0.0
    %1495 = vmatprep.subr.mxu0 0.0
    %1496 = vmatpush1.msra.mxu0 0.0
    %1497 = vmatprep.subr.mxu0 0.0
    %1498 = vmatpush1.msra.mxu0 0.0
    %1499 = vmatprep.mubr.f32.mxu0 0.0
    %1500 = vmatmul.mubr.f32.gmra.mrb[0].mxu0 %v440
    %v1501 = vpop.f32.mrb[0].mxu0
    %v1502 = vadd.f32 %v1413, %v1501
    %v1503 = vpop.f32.mrb[0].mxu0
    %v1504 = vadd.f32 %v1415, %v1503
    %1505 = vmatprep.mubr.f32.mxu0 0.0
    %1506 = vmatmul.mubr.f32.gmra.mrb[0].mxu0 %v445
    %v1507 = vpop.f32.mrb[0].mxu0
    %v1508 = vadd.f32 %v1419, %v1507
    %v1509 = vpop.f32.mrb[0].mxu0
    %v1510 = vadd.f32 %v1421, %v1509
    %1511 = vmatprep.mubr.f32.mxu0 0.0
    %1512 = vmatmul.mubr.f32.gmra.mrb[0].mxu0 %v450
    %v1513 = vpop.f32.mrb[0].mxu0
    %v1514 = vadd.f32 %v1425, %v1513
    %v1515 = vpop.f32.mrb[0].mxu0
    %v1516 = vadd.f32 %v1427, %v1515
    %1517 = vmatprep.mubr.f32.mxu0 0.0
    %1518 = vmatmul.mubr.f32.gmra.mrb[0].mxu0 %v455
    %v1519 = vpop.f32.mrb[0].mxu0
    %v1520 = vadd.f32 %v1431, %v1519
    %v1521 = vpop.f32.mrb[0].mxu0
    %v1522 = vadd.f32 %v1433, %v1521
    %1523 = vdwg.mxu0
    %1524 = vmatprep.subr.mxu0 %v860
    %1525 = vmatpush1.msra.mxu0 %v859
    %1526 = vmatprep.subr.mxu0 %v865
    %1527 = vmatpush1.msra.mxu0 %v864
    %1528 = vmatprep.subr.mxu0 %v870
    %1529 = vmatpush1.msra.mxu0 %v869
    %1530 = vmatprep.subr.mxu0 %v875
    %1531 = vmatpush1.msra.mxu0 %v874
    %1532 = vmatprep.subr.mxu0 %v880
    %1533 = vmatpush1.msra.mxu0 %v879
    %1534 = vmatprep.subr.mxu0 %v885
    %1535 = vmatpush1.msra.mxu0 %v884
    %1536 = vmatprep.subr.mxu0 %v890
    %1537 = vmatpush1.msra.mxu0 %v889
    %1538 = vmatprep.subr.mxu0 %v895
    %1539 = vmatpush1.msra.mxu0 %v894
    %1540 = vmatprep.subr.mxu0 %v900
    %1541 = vmatpush1.msra.mxu0 %v899
    %1542 = vmatprep.subr.mxu0 %v905
    %1543 = vmatpush1.msra.mxu0 %v904
    %1544 = vmatprep.subr.mxu0 %v910
    %1545 = vmatpush1.msra.mxu0 %v909
    %1546 = vmatprep.subr.mxu0 %v915
    %1547 = vmatpush1.msra.mxu0 %v914
    %1548 = vmatprep.subr.mxu0 %v920
    %1549 = vmatpush1.msra.mxu0 %v919
    %1550 = vmatprep.subr.mxu0 %v925
    %1551 = vmatpush1.msra.mxu0 %v924
    %1552 = vmatprep.subr.mxu0 %v930
    %1553 = vmatpush1.msra.mxu0 %v929
    %1554 = vmatprep.subr.mxu0 %v935
    %1555 = vmatpush1.msra.mxu0 %v934
    %1556 = vmatprep.subr.mxu0 %v940
    %1557 = vmatpush1.msra.mxu0 %v939
    %1558 = vmatprep.subr.mxu0 %v945
    %1559 = vmatpush1.msra.mxu0 %v944
    %1560 = vmatprep.subr.mxu0 %v950
    %1561 = vmatpush1.msra.mxu0 %v949
    %1562 = vmatprep.subr.mxu0 %v955
    %1563 = vmatpush1.msra.mxu0 %v954
    %1564 = vmatprep.subr.mxu0 %v960
    %1565 = vmatpush1.msra.mxu0 %v959
    %1566 = vmatprep.subr.mxu0 %v965
    %1567 = vmatpush1.msra.mxu0 %v964
    %1568 = vmatprep.subr.mxu0 %v970
    %1569 = vmatpush1.msra.mxu0 %v969
    %1570 = vmatprep.subr.mxu0 %v975
    %1571 = vmatpush1.msra.mxu0 %v974
    %1572 = vmatprep.subr.mxu0 %v980
    %1573 = vmatpush1.msra.mxu0 %v979
    %1574 = vmatprep.subr.mxu0 %v985
    %1575 = vmatpush1.msra.mxu0 %v984
    %1576 = vmatprep.subr.mxu0 %v990
    %1577 = vmatpush1.msra.mxu0 %v989
    %1578 = vmatprep.subr.mxu0 %v995
    %1579 = vmatpush1.msra.mxu0 %v994
    %1580 = vmatprep.subr.mxu0 %v1000
    %1581 = vmatpush1.msra.mxu0 %v999
    %1582 = vmatprep.subr.mxu0 %v1005
    %1583 = vmatpush1.msra.mxu0 %v1004
    %1584 = vmatprep.subr.mxu0 %v1010
    %1585 = vmatpush1.msra.mxu0 %v1009
    %1586 = vmatprep.subr.mxu0 %v1015
    %1587 = vmatpush1.msra.mxu0 %v1014
    %1588 = vmatprep.mubr.f32.mxu0 %v437
    %1589 = vmatmul.mubr.f32.gmra.mrb[0].mxu0 %v436
    %v1590 = vpop.f32.mrb[0].mxu0
    %v1591 = vadd.f32 0.0, %v1590
    %v1592 = vpop.f32.mrb[0].mxu0
    %v1593 = vadd.f32 0.0, %v1592
    %1594 = vmatprep.mubr.f32.mxu0 %v442
    %1595 = vmatmul.mubr.f32.gmra.mrb[0].mxu0 %v441
    %v1596 = vpop.f32.mrb[0].mxu0
    %v1597 = vadd.f32 0.0, %v1596
    %v1598 = vpop.f32.mrb[0].mxu0
    %v1599 = vadd.f32 0.0, %v1598
    %1600 = vmatprep.mubr.f32.mxu0 %v447
    %1601 = vmatmul.mubr.f32.gmra.mrb[0].mxu0 %v446
    %v1602 = vpop.f32.mrb[0].mxu0
    %v1603 = vadd.f32 0.0, %v1602
    %v1604 = vpop.f32.mrb[0].mxu0
    %v1605 = vadd.f32 0.0, %v1604
    %1606 = vmatprep.mubr.f32.mxu0 %v452
    %1607 = vmatmul.mubr.f32.gmra.mrb[0].mxu0 %v451
    %v1608 = vpop.f32.mrb[0].mxu0
    %v1609 = vadd.f32 0.0, %v1608
    %v1610 = vpop.f32.mrb[0].mxu0
    %v1611 = vadd.f32 0.0, %v1610
    %1612 = vdwg.mxu0
    %1613 = vmatprep.subr.mxu0 %v1020
    %1614 = vmatpush1.msra.mxu0 %v1019
    %1615 = vmatprep.subr.mxu0 %v1025
    %1616 = vmatpush1.msra.mxu0 %v1024
    %1617 = vmatprep.subr.mxu0 %v1030
    %1618 = vmatpush1.msra.mxu0 %v1029
    %1619 = vmatprep.subr.mxu0 %v1035
    %1620 = vmatpush1.msra.mxu0 %v1034
    %1621 = vmatprep.subr.mxu0 %v1040
    %1622 = vmatpush1.msra.mxu0 %v1039
    %1623 = vmatprep.subr.mxu0 %v1045
    %1624 = vmatpush1.msra.mxu0 %v1044
    %1625 = vmatprep.subr.mxu0 %v1050
    %1626 = vmatpush1.msra.mxu0 %v1049
    %1627 = vmatprep.subr.mxu0 %v1055
    %1628 = vmatpush1.msra.mxu0 %v1054
    %1629 = vmatprep.subr.mxu0 %v1060
    %1630 = vmatpush1.msra.mxu0 %v1059
    %1631 = vmatprep.subr.mxu0 %v1065
    %1632 = vmatpush1.msra.mxu0 %v1064
    %1633 = vmatprep.subr.mxu0 %v1070
    %1634 = vmatpush1.msra.mxu0 %v1069
    %1635 = vmatprep.subr.mxu0 %v1075
    %1636 = vmatpush1.msra.mxu0 %v1074
    %1637 = vmatprep.subr.mxu0 %v1080
    %1638 = vmatpush1.msra.mxu0 %v1079
    %1639 = vmatprep.subr.mxu0 %v1085
    %1640 = vmatpush1.msra.mxu0 %v1084
    %1641 = vmatprep.subr.mxu0 %v1090
    %1642 = vmatpush1.msra.mxu0 %v1089
    %1643 = vmatprep.subr.mxu0 %v1095
    %1644 = vmatpush1.msra.mxu0 %v1094
    %1645 = vmatprep.subr.mxu0 %v1100
    %1646 = vmatpush1.msra.mxu0 %v1099
    %1647 = vmatprep.subr.mxu0 %v1105
    %1648 = vmatpush1.msra.mxu0 %v1104
    %1649 = vmatprep.subr.mxu0 %v1110
    %1650 = vmatpush1.msra.mxu0 %v1109
    %1651 = vmatprep.subr.mxu0 %v1115
    %1652 = vmatpush1.msra.mxu0 %v1114
    %1653 = vmatprep.subr.mxu0 %v1120
    %1654 = vmatpush1.msra.mxu0 %v1119
    %1655 = vmatprep.subr.mxu0 %v1125
    %1656 = vmatpush1.msra.mxu0 %v1124
    %1657 = vmatprep.subr.mxu0 %v1130
    %1658 = vmatpush1.msra.mxu0 %v1129
    %1659 = vmatprep.subr.mxu0 %v1135
    %1660 = vmatpush1.msra.mxu0 %v1134
    %1661 = vmatprep.subr.mxu0 %v1140
    %1662 = vmatpush1.msra.mxu0 %v1139
    %1663 = vmatprep.subr.mxu0 %v1145
    %1664 = vmatpush1.msra.mxu0 %v1144
    %1665 = vmatprep.subr.mxu0 %v1150
    %1666 = vmatpush1.msra.mxu0 %v1149
    %1667 = vmatprep.subr.mxu0 %v1155
    %1668 = vmatpush1.msra.mxu0 %v1154
    %1669 = vmatprep.subr.mxu0 %v1160
    %1670 = vmatpush1.msra.mxu0 %v1159
    %1671 = vmatprep.subr.mxu0 %v1165
    %1672 = vmatpush1.msra.mxu0 %v1164
    %1673 = vmatprep.subr.mxu0 %v1170
    %1674 = vmatpush1.msra.mxu0 %v1169
    %1675 = vmatprep.subr.mxu0 %v1175
    %1676 = vmatpush1.msra.mxu0 %v1174
    %1677 = vmatprep.mubr.f32.mxu0 %v439
    %1678 = vmatmul.mubr.f32.gmra.mrb[0].mxu0 %v438
    %v1679 = vpop.f32.mrb[0].mxu0
    %v1680 = vadd.f32 %v1591, %v1679
    %v1681 = vpop.f32.mrb[0].mxu0
    %v1682 = vadd.f32 %v1593, %v1681
    %1683 = vmatprep.mubr.f32.mxu0 %v444
    %1684 = vmatmul.mubr.f32.gmra.mrb[0].mxu0 %v443
    %v1685 = vpop.f32.mrb[0].mxu0
    %v1686 = vadd.f32 %v1597, %v1685
    %v1687 = vpop.f32.mrb[0].mxu0
    %v1688 = vadd.f32 %v1599, %v1687
    %1689 = vmatprep.mubr.f32.mxu0 %v449
    %1690 = vmatmul.mubr.f32.gmra.mrb[0].mxu0 %v448
    %v1691 = vpop.f32.mrb[0].mxu0
    %v1692 = vadd.f32 %v1603, %v1691
    %v1693 = vpop.f32.mrb[0].mxu0
    %v1694 = vadd.f32 %v1605, %v1693
    %1695 = vmatprep.mubr.f32.mxu0 %v454
    %1696 = vmatmul.mubr.f32.gmra.mrb[0].mxu0 %v453
    %v1697 = vpop.f32.mrb[0].mxu0
    %v1698 = vadd.f32 %v1609, %v1697
    %v1699 = vpop.f32.mrb[0].mxu0
    %v1700 = vadd.f32 %v1611, %v1699
    %1701 = vdwg.mxu0
    %1702 = vmatprep.subr.mxu0 %v1180
    %1703 = vmatpush1.msra.mxu0 %v1179
    %1704 = vmatprep.subr.mxu0 %v1185
    %1705 = vmatpush1.msra.mxu0 %v1184
    %1706 = vmatprep.subr.mxu0 %v1190
    %1707 = vmatpush1.msra.mxu0 %v1189
    %1708 = vmatprep.subr.mxu0 %v1195
    %1709 = vmatpush1.msra.mxu0 %v1194
    %1710 = vmatprep.subr.mxu0 %v1200
    %1711 = vmatpush1.msra.mxu0 %v1199
    %1712 = vmatprep.subr.mxu0 %v1205
    %1713 = vmatpush1.msra.mxu0 %v1204
    %1714 = vmatprep.subr.mxu0 %v1210
    %1715 = vmatpush1.msra.mxu0 %v1209
    %1716 = vmatprep.subr.mxu0 %v1215
    %1717 = vmatpush1.msra.mxu0 %v1214
    %1718 = vmatprep.subr.mxu0 %v1220
    %1719 = vmatpush1.msra.mxu0 %v1219
    %1720 = vmatprep.subr.mxu0 %v1225
    %1721 = vmatpush1.msra.mxu0 %v1224
    %1722 = vmatprep.subr.mxu0 %v1230
    %1723 = vmatpush1.msra.mxu0 %v1229
    %1724 = vmatprep.subr.mxu0 %v1235
    %1725 = vmatpush1.msra.mxu0 %v1234
    %1726 = vmatprep.subr.mxu0 %v1240
    %1727 = vmatpush1.msra.mxu0 %v1239
    %1728 = vmatprep.subr.mxu0 %v1245
    %1729 = vmatpush1.msra.mxu0 %v1244
    %1730 = vmatprep.subr.mxu0 %v1250
    %1731 = vmatpush1.msra.mxu0 %v1249
    %1732 = vmatprep.subr.mxu0 %v1255
    %1733 = vmatpush1.msra.mxu0 %v1254
    %1734 = vmatprep.subr.mxu0 0.0
    %1735 = vmatpush1.msra.mxu0 0.0
    %1736 = vmatprep.subr.mxu0 0.0
    %1737 = vmatpush1.msra.mxu0 0.0
    %1738 = vmatprep.subr.mxu0 0.0
    %1739 = vmatpush1.msra.mxu0 0.0
    %1740 = vmatprep.subr.mxu0 0.0
    %1741 = vmatpush1.msra.mxu0 0.0
    %1742 = vmatprep.subr.mxu0 0.0
    %1743 = vmatpush1.msra.mxu0 0.0
    %1744 = vmatprep.subr.mxu0 0.0
    %1745 = vmatpush1.msra.mxu0 0.0
    %1746 = vmatprep.subr.mxu0 0.0
    %1747 = vmatpush1.msra.mxu0 0.0
    %1748 = vmatprep.subr.mxu0 0.0
    %1749 = vmatpush1.msra.mxu0 0.0
    %1750 = vmatprep.subr.mxu0 0.0
    %1751 = vmatpush1.msra.mxu0 0.0
    %1752 = vmatprep.subr.mxu0 0.0
    %1753 = vmatpush1.msra.mxu0 0.0
    %1754 = vmatprep.subr.mxu0 0.0
    %1755 = vmatpush1.msra.mxu0 0.0
    %1756 = vmatprep.subr.mxu0 0.0
    %1757 = vmatpush1.msra.mxu0 0.0
    %1758 = vmatprep.subr.mxu0 0.0
    %1759 = vmatpush1.msra.mxu0 0.0
    %1760 = vmatprep.subr.mxu0 0.0
    %1761 = vmatpush1.msra.mxu0 0.0
    %1762 = vmatprep.subr.mxu0 0.0
    %1763 = vmatpush1.msra.mxu0 0.0
    %1764 = vmatprep.subr.mxu0 0.0
    %1765 = vmatpush1.msra.mxu0 0.0
    %1766 = vmatprep.mubr.f32.mxu0 0.0
    %1767 = vmatmul.mubr.f32.gmra.mrb[0].mxu0 %v440
    %v1768 = vpop.f32.mrb[0].mxu0
    %v1769 = vadd.f32 %v1680, %v1768
    %v1770 = vpop.f32.mrb[0].mxu0
    %v1771 = vadd.f32 %v1682, %v1770
    %1772 = vmatprep.mubr.f32.mxu0 0.0
    %1773 = vmatmul.mubr.f32.gmra.mrb[0].mxu0 %v445
    %v1774 = vpop.f32.mrb[0].mxu0
    %v1775 = vadd.f32 %v1686, %v1774
    %v1776 = vpop.f32.mrb[0].mxu0
    %v1777 = vadd.f32 %v1688, %v1776
    %1778 = vmatprep.mubr.f32.mxu0 0.0
    %1779 = vmatmul.mubr.f32.gmra.mrb[0].mxu0 %v450
    %v1780 = vpop.f32.mrb[0].mxu0
    %v1781 = vadd.f32 %v1692, %v1780
    %v1782 = vpop.f32.mrb[0].mxu0
    %v1783 = vadd.f32 %v1694, %v1782
    %1784 = vmatprep.mubr.f32.mxu0 0.0
    %1785 = vmatmul.mubr.f32.gmra.mrb[0].mxu0 %v455
    %v1786 = vpop.f32.mrb[0].mxu0
    %v1787 = vadd.f32 %v1698, %v1786
    %v1788 = vpop.f32.mrb[0].mxu0
    %v1789 = vadd.f32 %v1700, %v1788
    %1790 = vdwg.mxu0
    %1791 = vmatprep.subr.mxu0 0.0
    %1792 = vmatpush1.msra.mxu0 %v861
    %1793 = vmatprep.subr.mxu0 0.0
    %1794 = vmatpush1.msra.mxu0 %v866
    %1795 = vmatprep.subr.mxu0 0.0
    %1796 = vmatpush1.msra.mxu0 %v871
    %1797 = vmatprep.subr.mxu0 0.0
    %1798 = vmatpush1.msra.mxu0 %v876
    %1799 = vmatprep.subr.mxu0 0.0
    %1800 = vmatpush1.msra.mxu0 %v881
    %1801 = vmatprep.subr.mxu0 0.0
    %1802 = vmatpush1.msra.mxu0 %v886
    %1803 = vmatprep.subr.mxu0 0.0
    %1804 = vmatpush1.msra.mxu0 %v891
    %1805 = vmatprep.subr.mxu0 0.0
    %1806 = vmatpush1.msra.mxu0 %v896
    %1807 = vmatprep.subr.mxu0 0.0
    %1808 = vmatpush1.msra.mxu0 %v901
    %1809 = vmatprep.subr.mxu0 0.0
    %1810 = vmatpush1.msra.mxu0 %v906
    %1811 = vmatprep.subr.mxu0 0.0
    %1812 = vmatpush1.msra.mxu0 %v911
    %1813 = vmatprep.subr.mxu0 0.0
    %1814 = vmatpush1.msra.mxu0 %v916
    %1815 = vmatprep.subr.mxu0 0.0
    %1816 = vmatpush1.msra.mxu0 %v921
    %1817 = vmatprep.subr.mxu0 0.0
    %1818 = vmatpush1.msra.mxu0 %v926
    %1819 = vmatprep.subr.mxu0 0.0
    %1820 = vmatpush1.msra.mxu0 %v931
    %1821 = vmatprep.subr.mxu0 0.0
    %1822 = vmatpush1.msra.mxu0 %v936
    %1823 = vmatprep.subr.mxu0 0.0
    %1824 = vmatpush1.msra.mxu0 %v941
    %1825 = vmatprep.subr.mxu0 0.0
    %1826 = vmatpush1.msra.mxu0 %v946
    %1827 = vmatprep.subr.mxu0 0.0
    %1828 = vmatpush1.msra.mxu0 %v951
    %1829 = vmatprep.subr.mxu0 0.0
    %1830 = vmatpush1.msra.mxu0 %v956
    %1831 = vmatprep.subr.mxu0 0.0
    %1832 = vmatpush1.msra.mxu0 %v961
    %1833 = vmatprep.subr.mxu0 0.0
    %1834 = vmatpush1.msra.mxu0 %v966
    %1835 = vmatprep.subr.mxu0 0.0
    %1836 = vmatpush1.msra.mxu0 %v971
    %1837 = vmatprep.subr.mxu0 0.0
    %1838 = vmatpush1.msra.mxu0 %v976
    %1839 = vmatprep.subr.mxu0 0.0
    %1840 = vmatpush1.msra.mxu0 %v981
    %1841 = vmatprep.subr.mxu0 0.0
    %1842 = vmatpush1.msra.mxu0 %v986
    %1843 = vmatprep.subr.mxu0 0.0
    %1844 = vmatpush1.msra.mxu0 %v991
    %1845 = vmatprep.subr.mxu0 0.0
    %1846 = vmatpush1.msra.mxu0 %v996
    %1847 = vmatprep.subr.mxu0 0.0
    %1848 = vmatpush1.msra.mxu0 %v1001
    %1849 = vmatprep.subr.mxu0 0.0
    %1850 = vmatpush1.msra.mxu0 %v1006
    %1851 = vmatprep.subr.mxu0 0.0
    %1852 = vmatpush1.msra.mxu0 %v1011
    %1853 = vmatprep.subr.mxu0 0.0
    %1854 = vmatpush1.msra.mxu0 %v1016
    %1855 = vmatprep.mubr.f32.mxu0 %v437
    %1856 = vmatmul.mubr.f32.gmra.mrb[0].mxu0 %v436
    %v1857 = vpop.f32.mrb[0].mxu0
    %v1858 = vadd.f32 0.0, %v1857
    %v1859 = vpop.f32.mrb[0].mxu0
    %1860 = vmatprep.mubr.f32.mxu0 %v442
    %1861 = vmatmul.mubr.f32.gmra.mrb[0].mxu0 %v441
    %v1862 = vpop.f32.mrb[0].mxu0
    %v1863 = vadd.f32 0.0, %v1862
    %v1864 = vpop.f32.mrb[0].mxu0
    %1865 = vmatprep.mubr.f32.mxu0 %v447
    %1866 = vmatmul.mubr.f32.gmra.mrb[0].mxu0 %v446
    %v1867 = vpop.f32.mrb[0].mxu0
    %v1868 = vadd.f32 0.0, %v1867
    %v1869 = vpop.f32.mrb[0].mxu0
    %1870 = vmatprep.mubr.f32.mxu0 %v452
    %1871 = vmatmul.mubr.f32.gmra.mrb[0].mxu0 %v451
    %v1872 = vpop.f32.mrb[0].mxu0
    %v1873 = vadd.f32 0.0, %v1872
    %v1874 = vpop.f32.mrb[0].mxu0
    %1875 = vdwg.mxu0
    %1876 = vmatprep.subr.mxu0 0.0
    %1877 = vmatpush1.msra.mxu0 %v1021
    %1878 = vmatprep.subr.mxu0 0.0
    %1879 = vmatpush1.msra.mxu0 %v1026
    %1880 = vmatprep.subr.mxu0 0.0
    %1881 = vmatpush1.msra.mxu0 %v1031
    %1882 = vmatprep.subr.mxu0 0.0
    %1883 = vmatpush1.msra.mxu0 %v1036
    %1884 = vmatprep.subr.mxu0 0.0
    %1885 = vmatpush1.msra.mxu0 %v1041
    %1886 = vmatprep.subr.mxu0 0.0
    %1887 = vmatpush1.msra.mxu0 %v1046
    %1888 = vmatprep.subr.mxu0 0.0
    %1889 = vmatpush1.msra.mxu0 %v1051
    %1890 = vmatprep.subr.mxu0 0.0
    %1891 = vmatpush1.msra.mxu0 %v1056
    %1892 = vmatprep.subr.mxu0 0.0
    %1893 = vmatpush1.msra.mxu0 %v1061
    %1894 = vmatprep.subr.mxu0 0.0
    %1895 = vmatpush1.msra.mxu0 %v1066
    %1896 = vmatprep.subr.mxu0 0.0
    %1897 = vmatpush1.msra.mxu0 %v1071
    %1898 = vmatprep.subr.mxu0 0.0
    %1899 = vmatpush1.msra.mxu0 %v1076
    %1900 = vmatprep.subr.mxu0 0.0
    %1901 = vmatpush1.msra.mxu0 %v1081
    %1902 = vmatprep.subr.mxu0 0.0
    %1903 = vmatpush1.msra.mxu0 %v1086
    %1904 = vmatprep.subr.mxu0 0.0
    %1905 = vmatpush1.msra.mxu0 %v1091
    %1906 = vmatprep.subr.mxu0 0.0
    %1907 = vmatpush1.msra.mxu0 %v1096
    %1908 = vmatprep.subr.mxu0 0.0
    %1909 = vmatpush1.msra.mxu0 %v1101
    %1910 = vmatprep.subr.mxu0 0.0
    %1911 = vmatpush1.msra.mxu0 %v1106
    %1912 = vmatprep.subr.mxu0 0.0
    %1913 = vmatpush1.msra.mxu0 %v1111
    %1914 = vmatprep.subr.mxu0 0.0
    %1915 = vmatpush1.msra.mxu0 %v1116
    %1916 = vmatprep.subr.mxu0 0.0
    %1917 = vmatpush1.msra.mxu0 %v1121
    %1918 = vmatprep.subr.mxu0 0.0
    %1919 = vmatpush1.msra.mxu0 %v1126
    %1920 = vmatprep.subr.mxu0 0.0
    %1921 = vmatpush1.msra.mxu0 %v1131
    %1922 = vmatprep.subr.mxu0 0.0
    %1923 = vmatpush1.msra.mxu0 %v1136
    %1924 = vmatprep.subr.mxu0 0.0
    %1925 = vmatpush1.msra.mxu0 %v1141
    %1926 = vmatprep.subr.mxu0 0.0
    %1927 = vmatpush1.msra.mxu0 %v1146
    %1928 = vmatprep.subr.mxu0 0.0
    %1929 = vmatpush1.msra.mxu0 %v1151
    %1930 = vmatprep.subr.mxu0 0.0
    %1931 = vmatpush1.msra.mxu0 %v1156
    %1932 = vmatprep.subr.mxu0 0.0
    %1933 = vmatpush1.msra.mxu0 %v1161
    %1934 = vmatprep.subr.mxu0 0.0
    %1935 = vmatpush1.msra.mxu0 %v1166
    %1936 = vmatprep.subr.mxu0 0.0
    %1937 = vmatpush1.msra.mxu0 %v1171
    %1938 = vmatprep.subr.mxu0 0.0
    %1939 = vmatpush1.msra.mxu0 %v1176
    %1940 = vmatprep.mubr.f32.mxu0 %v439
    %1941 = vmatmul.mubr.f32.gmra.mrb[0].mxu0 %v438
    %v1942 = vpop.f32.mrb[0].mxu0
    %v1943 = vadd.f32 %v1858, %v1942
    %v1944 = vpop.f32.mrb[0].mxu0
    %1945 = vmatprep.mubr.f32.mxu0 %v444
    %1946 = vmatmul.mubr.f32.gmra.mrb[0].mxu0 %v443
    %v1947 = vpop.f32.mrb[0].mxu0
    %v1948 = vadd.f32 %v1863, %v1947
    %v1949 = vpop.f32.mrb[0].mxu0
    %1950 = vmatprep.mubr.f32.mxu0 %v449
    %1951 = vmatmul.mubr.f32.gmra.mrb[0].mxu0 %v448
    %v1952 = vpop.f32.mrb[0].mxu0
    %v1953 = vadd.f32 %v1868, %v1952
    %v1954 = vpop.f32.mrb[0].mxu0
    %1955 = vmatprep.mubr.f32.mxu0 %v454
    %1956 = vmatmul.mubr.f32.gmra.mrb[0].mxu0 %v453
    %v1957 = vpop.f32.mrb[0].mxu0
    %v1958 = vadd.f32 %v1873, %v1957
    %v1959 = vpop.f32.mrb[0].mxu0
    %1960 = vdwg.mxu0
    %1961 = vmatprep.subr.mxu0 0.0
    %1962 = vmatpush1.msra.mxu0 %v1181
    %1963 = vmatprep.subr.mxu0 0.0
    %1964 = vmatpush1.msra.mxu0 %v1186
    %1965 = vmatprep.subr.mxu0 0.0
    %1966 = vmatpush1.msra.mxu0 %v1191
    %1967 = vmatprep.subr.mxu0 0.0
    %1968 = vmatpush1.msra.mxu0 %v1196
    %1969 = vmatprep.subr.mxu0 0.0
    %1970 = vmatpush1.msra.mxu0 %v1201
    %1971 = vmatprep.subr.mxu0 0.0
    %1972 = vmatpush1.msra.mxu0 %v1206
    %1973 = vmatprep.subr.mxu0 0.0
    %1974 = vmatpush1.msra.mxu0 %v1211
    %1975 = vmatprep.subr.mxu0 0.0
    %1976 = vmatpush1.msra.mxu0 %v1216
    %1977 = vmatprep.subr.mxu0 0.0
    %1978 = vmatpush1.msra.mxu0 %v1221
    %1979 = vmatprep.subr.mxu0 0.0
    %1980 = vmatpush1.msra.mxu0 %v1226
    %1981 = vmatprep.subr.mxu0 0.0
    %1982 = vmatpush1.msra.mxu0 %v1231
    %1983 = vmatprep.subr.mxu0 0.0
    %1984 = vmatpush1.msra.mxu0 %v1236
    %1985 = vmatprep.subr.mxu0 0.0
    %1986 = vmatpush1.msra.mxu0 %v1241
    %1987 = vmatprep.subr.mxu0 0.0
    %1988 = vmatpush1.msra.mxu0 %v1246
    %1989 = vmatprep.subr.mxu0 0.0
    %1990 = vmatpush1.msra.mxu0 %v1251
    %1991 = vmatprep.subr.mxu0 0.0
    %1992 = vmatpush1.msra.mxu0 %v1256
    %1993 = vmatprep.subr.mxu0 0.0
    %1994 = vmatpush1.msra.mxu0 0.0
    %1995 = vmatprep.subr.mxu0 0.0
    %1996 = vmatpush1.msra.mxu0 0.0
    %1997 = vmatprep.subr.mxu0 0.0
    %1998 = vmatpush1.msra.mxu0 0.0
    %1999 = vmatprep.subr.mxu0 0.0
    %2000 = vmatpush1.msra.mxu0 0.0
    %2001 = vmatprep.subr.mxu0 0.0
    %2002 = vmatpush1.msra.mxu0 0.0
    %2003 = vmatprep.subr.mxu0 0.0
    %2004 = vmatpush1.msra.mxu0 0.0
    %2005 = vmatprep.subr.mxu0 0.0
    %2006 = vmatpush1.msra.mxu0 0.0
    %2007 = vmatprep.subr.mxu0 0.0
    %2008 = vmatpush1.msra.mxu0 0.0
    %2009 = vmatprep.subr.mxu0 0.0
    %2010 = vmatpush1.msra.mxu0 0.0
    %2011 = vmatprep.subr.mxu0 0.0
    %2012 = vmatpush1.msra.mxu0 0.0
    %2013 = vmatprep.subr.mxu0 0.0
    %2014 = vmatpush1.msra.mxu0 0.0
    %2015 = vmatprep.subr.mxu0 0.0
    %2016 = vmatpush1.msra.mxu0 0.0
    %2017 = vmatprep.subr.mxu0 0.0
    %2018 = vmatpush1.msra.mxu0 0.0
    %2019 = vmatprep.subr.mxu0 0.0
    %2020 = vmatpush1.msra.mxu0 0.0
    %2021 = vmatprep.subr.mxu0 0.0
    %2022 = vmatpush1.msra.mxu0 0.0
    %2023 = vmatprep.subr.mxu0 0.0
    %2024 = vmatpush1.msra.mxu0 0.0
    %2025 = vmatprep.mubr.f32.mxu0 0.0
    %2026 = vmatmul.mubr.f32.gmra.mrb[0].mxu0 %v440
    %v2027 = vpop.f32.mrb[0].mxu0
    %v2028 = vadd.f32 %v1943, %v2027
    %v2029 = vpop.f32.mrb[0].mxu0
    %2030 = vmatprep.mubr.f32.mxu0 0.0
    %2031 = vmatmul.mubr.f32.gmra.mrb[0].mxu0 %v445
    %v2032 = vpop.f32.mrb[0].mxu0
    %v2033 = vadd.f32 %v1948, %v2032
    %v2034 = vpop.f32.mrb[0].mxu0
    %2035 = vmatprep.mubr.f32.mxu0 0.0
    %2036 = vmatmul.mubr.f32.gmra.mrb[0].mxu0 %v450
    %v2037 = vpop.f32.mrb[0].mxu0
    %v2038 = vadd.f32 %v1953, %v2037
    %v2039 = vpop.f32.mrb[0].mxu0
    %2040 = vmatprep.mubr.f32.mxu0 0.0
    %2041 = vmatmul.mubr.f32.gmra.mrb[0].mxu0 %v455
    %v2042 = vpop.f32.mrb[0].mxu0
    %v2043 = vadd.f32 %v1958, %v2042
    %v2044 = vpop.f32.mrb[0].mxu0
    %2045 = vdwg.mxu0
    %2046 = vmatprep.subr.mxu0 %v457
    %2047 = vmatpush1.msra.mxu0 %v456
    %2048 = vmatprep.subr.mxu0 %v462
    %2049 = vmatpush1.msra.mxu0 %v461
    %2050 = vmatprep.subr.mxu0 %v467
    %2051 = vmatpush1.msra.mxu0 %v466
    %2052 = vmatprep.subr.mxu0 %v472
    %2053 = vmatpush1.msra.mxu0 %v471
    %2054 = vmatprep.subr.mxu0 %v477
    %2055 = vmatpush1.msra.mxu0 %v476
    %2056 = vmatprep.subr.mxu0 %v482
    %2057 = vmatpush1.msra.mxu0 %v481
    %2058 = vmatprep.subr.mxu0 %v487
    %2059 = vmatpush1.msra.mxu0 %v486
    %2060 = vmatprep.subr.mxu0 %v492
    %2061 = vmatpush1.msra.mxu0 %v491
    %2062 = vmatprep.subr.mxu0 %v497
    %2063 = vmatpush1.msra.mxu0 %v496
    %2064 = vmatprep.subr.mxu0 %v502
    %2065 = vmatpush1.msra.mxu0 %v501
    %2066 = vmatprep.subr.mxu0 %v507
    %2067 = vmatpush1.msra.mxu0 %v506
    %2068 = vmatprep.subr.mxu0 %v512
    %2069 = vmatpush1.msra.mxu0 %v511
    %2070 = vmatprep.subr.mxu0 %v517
    %2071 = vmatpush1.msra.mxu0 %v516
    %2072 = vmatprep.subr.mxu0 %v522
    %2073 = vmatpush1.msra.mxu0 %v521
    %2074 = vmatprep.subr.mxu0 %v527
    %2075 = vmatpush1.msra.mxu0 %v526
    %2076 = vmatprep.subr.mxu0 %v532
    %2077 = vmatpush1.msra.mxu0 %v531
    %2078 = vmatprep.subr.mxu0 %v537
    %2079 = vmatpush1.msra.mxu0 %v536
    %2080 = vmatprep.subr.mxu0 %v542
    %2081 = vmatpush1.msra.mxu0 %v541
    %2082 = vmatprep.subr.mxu0 %v547
    %2083 = vmatpush1.msra.mxu0 %v546
    %2084 = vmatprep.subr.mxu0 %v552
    %2085 = vmatpush1.msra.mxu0 %v551
    %2086 = vmatprep.subr.mxu0 %v557
    %2087 = vmatpush1.msra.mxu0 %v556
    %2088 = vmatprep.subr.mxu0 %v562
    %2089 = vmatpush1.msra.mxu0 %v561
    %2090 = vmatprep.subr.mxu0 %v567
    %2091 = vmatpush1.msra.mxu0 %v566
    %2092 = vmatprep.subr.mxu0 %v572
    %2093 = vmatpush1.msra.mxu0 %v571
    %2094 = vmatprep.subr.mxu0 %v577
    %2095 = vmatpush1.msra.mxu0 %v576
    %2096 = vmatprep.subr.mxu0 %v582
    %2097 = vmatpush1.msra.mxu0 %v581
    %2098 = vmatprep.subr.mxu0 %v587
    %2099 = vmatpush1.msra.mxu0 %v586
    %2100 = vmatprep.subr.mxu0 %v592
    %2101 = vmatpush1.msra.mxu0 %v591
    %2102 = vmatprep.subr.mxu0 %v597
    %2103 = vmatpush1.msra.mxu0 %v596
    %2104 = vmatprep.subr.mxu0 %v602
    %2105 = vmatpush1.msra.mxu0 %v601
    %2106 = vmatprep.subr.mxu0 %v607
    %2107 = vmatpush1.msra.mxu0 %v606
    %2108 = vmatprep.subr.mxu0 %v612
    %2109 = vmatpush1.msra.mxu0 %v611
    %2110 = vmatprep.mubr.f32.mxu0 0.0
    %2111 = vmatmul.mubr.f32.gmra.mrb[0].mxu0 0.0
    %v2112 = vpop.f32.mrb[0].mxu0
    %v2113 = vadd.f32 %v1502, %v2112
    %v2114 = vpop.f32.mrb[0].mxu0
    %v2115 = vadd.f32 %v1504, %v2114
    %2116 = vmatprep.mubr.f32.mxu0 %v437
    %2117 = vmatmul.mubr.f32.gmra.mrb[0].mxu0 %v436
    %v2118 = vpop.f32.mrb[0].mxu0
    %v2119 = vadd.f32 %v1508, %v2118
    %v2120 = vpop.f32.mrb[0].mxu0
    %v2121 = vadd.f32 %v1510, %v2120
    %2122 = vmatprep.mubr.f32.mxu0 %v442
    %2123 = vmatmul.mubr.f32.gmra.mrb[0].mxu0 %v441
    %v2124 = vpop.f32.mrb[0].mxu0
    %v2125 = vadd.f32 %v1514, %v2124
    %v2126 = vpop.f32.mrb[0].mxu0
    %v2127 = vadd.f32 %v1516, %v2126
    %2128 = vmatprep.mubr.f32.mxu0 %v447
    %2129 = vmatmul.mubr.f32.gmra.mrb[0].mxu0 %v446
    %v2130 = vpop.f32.mrb[0].mxu0
    %v2131 = vadd.f32 %v1520, %v2130
    %v2132 = vpop.f32.mrb[0].mxu0
    %v2133 = vadd.f32 %v1522, %v2132
    %2134 = vdwg.mxu0
    %2135 = vmatprep.subr.mxu0 %v617
    %2136 = vmatpush1.msra.mxu0 %v616
    %2137 = vmatprep.subr.mxu0 %v622
    %2138 = vmatpush1.msra.mxu0 %v621
    %2139 = vmatprep.subr.mxu0 %v627
    %2140 = vmatpush1.msra.mxu0 %v626
    %2141 = vmatprep.subr.mxu0 %v632
    %2142 = vmatpush1.msra.mxu0 %v631
    %2143 = vmatprep.subr.mxu0 %v637
    %2144 = vmatpush1.msra.mxu0 %v636
    %2145 = vmatprep.subr.mxu0 %v642
    %2146 = vmatpush1.msra.mxu0 %v641
    %2147 = vmatprep.subr.mxu0 %v647
    %2148 = vmatpush1.msra.mxu0 %v646
    %2149 = vmatprep.subr.mxu0 %v652
    %2150 = vmatpush1.msra.mxu0 %v651
    %2151 = vmatprep.subr.mxu0 %v657
    %2152 = vmatpush1.msra.mxu0 %v656
    %2153 = vmatprep.subr.mxu0 %v662
    %2154 = vmatpush1.msra.mxu0 %v661
    %2155 = vmatprep.subr.mxu0 %v667
    %2156 = vmatpush1.msra.mxu0 %v666
    %2157 = vmatprep.subr.mxu0 %v672
    %2158 = vmatpush1.msra.mxu0 %v671
    %2159 = vmatprep.subr.mxu0 %v677
    %2160 = vmatpush1.msra.mxu0 %v676
    %2161 = vmatprep.subr.mxu0 %v682
    %2162 = vmatpush1.msra.mxu0 %v681
    %2163 = vmatprep.subr.mxu0 %v687
    %2164 = vmatpush1.msra.mxu0 %v686
    %2165 = vmatprep.subr.mxu0 %v692
    %2166 = vmatpush1.msra.mxu0 %v691
    %2167 = vmatprep.subr.mxu0 %v697
    %2168 = vmatpush1.msra.mxu0 %v696
    %2169 = vmatprep.subr.mxu0 %v702
    %2170 = vmatpush1.msra.mxu0 %v701
    %2171 = vmatprep.subr.mxu0 %v707
    %2172 = vmatpush1.msra.mxu0 %v706
    %2173 = vmatprep.subr.mxu0 %v712
    %2174 = vmatpush1.msra.mxu0 %v711
    %2175 = vmatprep.subr.mxu0 %v717
    %2176 = vmatpush1.msra.mxu0 %v716
    %2177 = vmatprep.subr.mxu0 %v722
    %2178 = vmatpush1.msra.mxu0 %v721
    %2179 = vmatprep.subr.mxu0 %v727
    %2180 = vmatpush1.msra.mxu0 %v726
    %2181 = vmatprep.subr.mxu0 %v732
    %2182 = vmatpush1.msra.mxu0 %v731
    %2183 = vmatprep.subr.mxu0 %v737
    %2184 = vmatpush1.msra.mxu0 %v736
    %2185 = vmatprep.subr.mxu0 %v742
    %2186 = vmatpush1.msra.mxu0 %v741
    %2187 = vmatprep.subr.mxu0 %v747
    %2188 = vmatpush1.msra.mxu0 %v746
    %2189 = vmatprep.subr.mxu0 %v752
    %2190 = vmatpush1.msra.mxu0 %v751
    %2191 = vmatprep.subr.mxu0 %v757
    %2192 = vmatpush1.msra.mxu0 %v756
    %2193 = vmatprep.subr.mxu0 %v762
    %2194 = vmatpush1.msra.mxu0 %v761
    %2195 = vmatprep.subr.mxu0 %v767
    %2196 = vmatpush1.msra.mxu0 %v766
    %2197 = vmatprep.subr.mxu0 %v772
    %2198 = vmatpush1.msra.mxu0 %v771
    %2199 = vmatprep.mubr.f32.mxu0 0.0
    %2200 = vmatmul.mubr.f32.gmra.mrb[0].mxu0 0.0
    %v2201 = vpop.f32.mrb[0].mxu0
    %v2202 = vadd.f32 %v2113, %v2201
    %v2203 = vpop.f32.mrb[0].mxu0
    %v2204 = vadd.f32 %v2115, %v2203
    %2205 = vmatprep.mubr.f32.mxu0 %v439
    %2206 = vmatmul.mubr.f32.gmra.mrb[0].mxu0 %v438
    %v2207 = vpop.f32.mrb[0].mxu0
    %v2208 = vadd.f32 %v2119, %v2207
    %v2209 = vpop.f32.mrb[0].mxu0
    %v2210 = vadd.f32 %v2121, %v2209
    %2211 = vmatprep.mubr.f32.mxu0 %v444
    %2212 = vmatmul.mubr.f32.gmra.mrb[0].mxu0 %v443
    %v2213 = vpop.f32.mrb[0].mxu0
    %v2214 = vadd.f32 %v2125, %v2213
    %v2215 = vpop.f32.mrb[0].mxu0
    %v2216 = vadd.f32 %v2127, %v2215
    %2217 = vmatprep.mubr.f32.mxu0 %v449
    %2218 = vmatmul.mubr.f32.gmra.mrb[0].mxu0 %v448
    %v2219 = vpop.f32.mrb[0].mxu0
    %v2220 = vadd.f32 %v2131, %v2219
    %v2221 = vpop.f32.mrb[0].mxu0
    %v2222 = vadd.f32 %v2133, %v2221
    %2223 = vdwg.mxu0
    %2224 = vmatprep.subr.mxu0 %v777
    %2225 = vmatpush1.msra.mxu0 %v776
    %2226 = vmatprep.subr.mxu0 %v782
    %2227 = vmatpush1.msra.mxu0 %v781
    %2228 = vmatprep.subr.mxu0 %v787
    %2229 = vmatpush1.msra.mxu0 %v786
    %2230 = vmatprep.subr.mxu0 %v792
    %2231 = vmatpush1.msra.mxu0 %v791
    %2232 = vmatprep.subr.mxu0 %v797
    %2233 = vmatpush1.msra.mxu0 %v796
    %2234 = vmatprep.subr.mxu0 %v802
    %2235 = vmatpush1.msra.mxu0 %v801
    %2236 = vmatprep.subr.mxu0 %v807
    %2237 = vmatpush1.msra.mxu0 %v806
    %2238 = vmatprep.subr.mxu0 %v812
    %2239 = vmatpush1.msra.mxu0 %v811
    %2240 = vmatprep.subr.mxu0 %v817
    %2241 = vmatpush1.msra.mxu0 %v816
    %2242 = vmatprep.subr.mxu0 %v822
    %2243 = vmatpush1.msra.mxu0 %v821
    %2244 = vmatprep.subr.mxu0 %v827
    %2245 = vmatpush1.msra.mxu0 %v826
    %2246 = vmatprep.subr.mxu0 %v832
    %2247 = vmatpush1.msra.mxu0 %v831
    %2248 = vmatprep.subr.mxu0 %v837
    %2249 = vmatpush1.msra.mxu0 %v836
    %2250 = vmatprep.subr.mxu0 %v842
    %2251 = vmatpush1.msra.mxu0 %v841
    %2252 = vmatprep.subr.mxu0 %v847
    %2253 = vmatpush1.msra.mxu0 %v846
    %2254 = vmatprep.subr.mxu0 %v852
    %2255 = vmatpush1.msra.mxu0 %v851
    %2256 = vmatprep.subr.mxu0 0.0
    %2257 = vmatpush1.msra.mxu0 0.0
    %2258 = vmatprep.subr.mxu0 0.0
    %2259 = vmatpush1.msra.mxu0 0.0
    %2260 = vmatprep.subr.mxu0 0.0
    %2261 = vmatpush1.msra.mxu0 0.0
    %2262 = vmatprep.subr.mxu0 0.0
    %2263 = vmatpush1.msra.mxu0 0.0
    %2264 = vmatprep.subr.mxu0 0.0
    %2265 = vmatpush1.msra.mxu0 0.0
    %2266 = vmatprep.subr.mxu0 0.0
    %2267 = vmatpush1.msra.mxu0 0.0
    %2268 = vmatprep.subr.mxu0 0.0
    %2269 = vmatpush1.msra.mxu0 0.0
    %2270 = vmatprep.subr.mxu0 0.0
    %2271 = vmatpush1.msra.mxu0 0.0
    %2272 = vmatprep.subr.mxu0 0.0
    %2273 = vmatpush1.msra.mxu0 0.0
    %2274 = vmatprep.subr.mxu0 0.0
    %2275 = vmatpush1.msra.mxu0 0.0
    %2276 = vmatprep.subr.mxu0 0.0
    %2277 = vmatpush1.msra.mxu0 0.0
    %2278 = vmatprep.subr.mxu0 0.0
    %2279 = vmatpush1.msra.mxu0 0.0
    %2280 = vmatprep.subr.mxu0 0.0
    %2281 = vmatpush1.msra.mxu0 0.0
    %2282 = vmatprep.subr.mxu0 0.0
    %2283 = vmatpush1.msra.mxu0 0.0
    %2284 = vmatprep.subr.mxu0 0.0
    %2285 = vmatpush1.msra.mxu0 0.0
    %2286 = vmatprep.subr.mxu0 0.0
    %2287 = vmatpush1.msra.mxu0 0.0
    %2288 = vmatprep.mubr.f32.mxu0 0.0
    %2289 = vmatmul.mubr.f32.gmra.mrb[0].mxu0 0.0
    %v2290 = vpop.f32.mrb[0].mxu0
    %v2291 = vadd.f32 %v2202, %v2290
    %v2292 = vpop.f32.mrb[0].mxu0
    %v2293 = vadd.f32 %v2204, %v2292
    %2294 = vmatprep.mubr.f32.mxu0 0.0
    %2295 = vmatmul.mubr.f32.gmra.mrb[0].mxu0 %v440
    %v2296 = vpop.f32.mrb[0].mxu0
    %v2297 = vadd.f32 %v2208, %v2296
    %v2298 = vpop.f32.mrb[0].mxu0
    %v2299 = vadd.f32 %v2210, %v2298
    %2300 = vmatprep.mubr.f32.mxu0 0.0
    %2301 = vmatmul.mubr.f32.gmra.mrb[0].mxu0 %v445
    %v2302 = vpop.f32.mrb[0].mxu0
    %v2303 = vadd.f32 %v2214, %v2302
    %v2304 = vpop.f32.mrb[0].mxu0
    %v2305 = vadd.f32 %v2216, %v2304
    %2306 = vmatprep.mubr.f32.mxu0 0.0
    %2307 = vmatmul.mubr.f32.gmra.mrb[0].mxu0 %v450
    %v2308 = vpop.f32.mrb[0].mxu0
    %v2309 = vadd.f32 %v2220, %v2308
    %v2310 = vpop.f32.mrb[0].mxu0
    %v2311 = vadd.f32 %v2222, %v2310
    %2312 = vdwg.mxu0
    %2313 = vmatprep.subr.mxu0 %v459
    %2314 = vmatpush1.msra.mxu0 %v458
    %2315 = vmatprep.subr.mxu0 %v464
    %2316 = vmatpush1.msra.mxu0 %v463
    %2317 = vmatprep.subr.mxu0 %v469
    %2318 = vmatpush1.msra.mxu0 %v468
    %2319 = vmatprep.subr.mxu0 %v474
    %2320 = vmatpush1.msra.mxu0 %v473
    %2321 = vmatprep.subr.mxu0 %v479
    %2322 = vmatpush1.msra.mxu0 %v478
    %2323 = vmatprep.subr.mxu0 %v484
    %2324 = vmatpush1.msra.mxu0 %v483
    %2325 = vmatprep.subr.mxu0 %v489
    %2326 = vmatpush1.msra.mxu0 %v488
    %2327 = vmatprep.subr.mxu0 %v494
    %2328 = vmatpush1.msra.mxu0 %v493
    %2329 = vmatprep.subr.mxu0 %v499
    %2330 = vmatpush1.msra.mxu0 %v498
    %2331 = vmatprep.subr.mxu0 %v504
    %2332 = vmatpush1.msra.mxu0 %v503
    %2333 = vmatprep.subr.mxu0 %v509
    %2334 = vmatpush1.msra.mxu0 %v508
    %2335 = vmatprep.subr.mxu0 %v514
    %2336 = vmatpush1.msra.mxu0 %v513
    %2337 = vmatprep.subr.mxu0 %v519
    %2338 = vmatpush1.msra.mxu0 %v518
    %2339 = vmatprep.subr.mxu0 %v524
    %2340 = vmatpush1.msra.mxu0 %v523
    %2341 = vmatprep.subr.mxu0 %v529
    %2342 = vmatpush1.msra.mxu0 %v528
    %2343 = vmatprep.subr.mxu0 %v534
    %2344 = vmatpush1.msra.mxu0 %v533
    %2345 = vmatprep.subr.mxu0 %v539
    %2346 = vmatpush1.msra.mxu0 %v538
    %2347 = vmatprep.subr.mxu0 %v544
    %2348 = vmatpush1.msra.mxu0 %v543
    %2349 = vmatprep.subr.mxu0 %v549
    %2350 = vmatpush1.msra.mxu0 %v548
    %2351 = vmatprep.subr.mxu0 %v554
    %2352 = vmatpush1.msra.mxu0 %v553
    %2353 = vmatprep.subr.mxu0 %v559
    %2354 = vmatpush1.msra.mxu0 %v558
    %2355 = vmatprep.subr.mxu0 %v564
    %2356 = vmatpush1.msra.mxu0 %v563
    %2357 = vmatprep.subr.mxu0 %v569
    %2358 = vmatpush1.msra.mxu0 %v568
    %2359 = vmatprep.subr.mxu0 %v574
    %2360 = vmatpush1.msra.mxu0 %v573
    %2361 = vmatprep.subr.mxu0 %v579
    %2362 = vmatpush1.msra.mxu0 %v578
    %2363 = vmatprep.subr.mxu0 %v584
    %2364 = vmatpush1.msra.mxu0 %v583
    %2365 = vmatprep.subr.mxu0 %v589
    %2366 = vmatpush1.msra.mxu0 %v588
    %2367 = vmatprep.subr.mxu0 %v594
    %2368 = vmatpush1.msra.mxu0 %v593
    %2369 = vmatprep.subr.mxu0 %v599
    %2370 = vmatpush1.msra.mxu0 %v598
    %2371 = vmatprep.subr.mxu0 %v604
    %2372 = vmatpush1.msra.mxu0 %v603
    %2373 = vmatprep.subr.mxu0 %v609
    %2374 = vmatpush1.msra.mxu0 %v608
    %2375 = vmatprep.subr.mxu0 %v614
    %2376 = vmatpush1.msra.mxu0 %v613
    %2377 = vmatprep.mubr.f32.mxu0 0.0
    %2378 = vmatmul.mubr.f32.gmra.mrb[0].mxu0 0.0
    %v2379 = vpop.f32.mrb[0].mxu0
    %v2380 = vadd.f32 %v1769, %v2379
    %v2381 = vpop.f32.mrb[0].mxu0
    %v2382 = vadd.f32 %v1771, %v2381
    %2383 = vmatprep.mubr.f32.mxu0 %v437
    %2384 = vmatmul.mubr.f32.gmra.mrb[0].mxu0 %v436
    %v2385 = vpop.f32.mrb[0].mxu0
    %v2386 = vadd.f32 %v1775, %v2385
    %v2387 = vpop.f32.mrb[0].mxu0
    %v2388 = vadd.f32 %v1777, %v2387
    %2389 = vmatprep.mubr.f32.mxu0 %v442
    %2390 = vmatmul.mubr.f32.gmra.mrb[0].mxu0 %v441
    %v2391 = vpop.f32.mrb[0].mxu0
    %v2392 = vadd.f32 %v1781, %v2391
    %v2393 = vpop.f32.mrb[0].mxu0
    %v2394 = vadd.f32 %v1783, %v2393
    %2395 = vmatprep.mubr.f32.mxu0 %v447
    %2396 = vmatmul.mubr.f32.gmra.mrb[0].mxu0 %v446
    %v2397 = vpop.f32.mrb[0].mxu0
    %v2398 = vadd.f32 %v1787, %v2397
    %v2399 = vpop.f32.mrb[0].mxu0
    %v2400 = vadd.f32 %v1789, %v2399
    %2401 = vdwg.mxu0
    %2402 = vmatprep.subr.mxu0 %v619
    %2403 = vmatpush1.msra.mxu0 %v618
    %2404 = vmatprep.subr.mxu0 %v624
    %2405 = vmatpush1.msra.mxu0 %v623
    %2406 = vmatprep.subr.mxu0 %v629
    %2407 = vmatpush1.msra.mxu0 %v628
    %2408 = vmatprep.subr.mxu0 %v634
    %2409 = vmatpush1.msra.mxu0 %v633
    %2410 = vmatprep.subr.mxu0 %v639
    %2411 = vmatpush1.msra.mxu0 %v638
    %2412 = vmatprep.subr.mxu0 %v644
    %2413 = vmatpush1.msra.mxu0 %v643
    %2414 = vmatprep.subr.mxu0 %v649
    %2415 = vmatpush1.msra.mxu0 %v648
    %2416 = vmatprep.subr.mxu0 %v654
    %2417 = vmatpush1.msra.mxu0 %v653
    %2418 = vmatprep.subr.mxu0 %v659
    %2419 = vmatpush1.msra.mxu0 %v658
    %2420 = vmatprep.subr.mxu0 %v664
    %2421 = vmatpush1.msra.mxu0 %v663
    %2422 = vmatprep.subr.mxu0 %v669
    %2423 = vmatpush1.msra.mxu0 %v668
    %2424 = vmatprep.subr.mxu0 %v674
    %2425 = vmatpush1.msra.mxu0 %v673
    %2426 = vmatprep.subr.mxu0 %v679
    %2427 = vmatpush1.msra.mxu0 %v678
    %2428 = vmatprep.subr.mxu0 %v684
    %2429 = vmatpush1.msra.mxu0 %v683
    %2430 = vmatprep.subr.mxu0 %v689
    %2431 = vmatpush1.msra.mxu0 %v688
    %2432 = vmatprep.subr.mxu0 %v694
    %2433 = vmatpush1.msra.mxu0 %v693
    %2434 = vmatprep.subr.mxu0 %v699
    %2435 = vmatpush1.msra.mxu0 %v698
    %2436 = vmatprep.subr.mxu0 %v704
    %2437 = vmatpush1.msra.mxu0 %v703
    %2438 = vmatprep.subr.mxu0 %v709
    %2439 = vmatpush1.msra.mxu0 %v708
    %2440 = vmatprep.subr.mxu0 %v714
    %2441 = vmatpush1.msra.mxu0 %v713
    %2442 = vmatprep.subr.mxu0 %v719
    %2443 = vmatpush1.msra.mxu0 %v718
    %2444 = vmatprep.subr.mxu0 %v724
    %2445 = vmatpush1.msra.mxu0 %v723
    %2446 = vmatprep.subr.mxu0 %v729
    %2447 = vmatpush1.msra.mxu0 %v728
    %2448 = vmatprep.subr.mxu0 %v734
    %2449 = vmatpush1.msra.mxu0 %v733
    %2450 = vmatprep.subr.mxu0 %v739
    %2451 = vmatpush1.msra.mxu0 %v738
    %2452 = vmatprep.subr.mxu0 %v744
    %2453 = vmatpush1.msra.mxu0 %v743
    %2454 = vmatprep.subr.mxu0 %v749
    %2455 = vmatpush1.msra.mxu0 %v748
    %2456 = vmatprep.subr.mxu0 %v754
    %2457 = vmatpush1.msra.mxu0 %v753
    %2458 = vmatprep.subr.mxu0 %v759
    %2459 = vmatpush1.msra.mxu0 %v758
    %2460 = vmatprep.subr.mxu0 %v764
    %2461 = vmatpush1.msra.mxu0 %v763
    %2462 = vmatprep.subr.mxu0 %v769
    %2463 = vmatpush1.msra.mxu0 %v768
    %2464 = vmatprep.subr.mxu0 %v774
    %2465 = vmatpush1.msra.mxu0 %v773
    %2466 = vmatprep.mubr.f32.mxu0 0.0
    %2467 = vmatmul.mubr.f32.gmra.mrb[0].mxu0 0.0
    %v2468 = vpop.f32.mrb[0].mxu0
    %v2469 = vadd.f32 %v2380, %v2468
    %v2470 = vpop.f32.mrb[0].mxu0
    %v2471 = vadd.f32 %v2382, %v2470
    %2472 = vmatprep.mubr.f32.mxu0 %v439
    %2473 = vmatmul.mubr.f32.gmra.mrb[0].mxu0 %v438
    %v2474 = vpop.f32.mrb[0].mxu0
    %v2475 = vadd.f32 %v2386, %v2474
    %v2476 = vpop.f32.mrb[0].mxu0
    %v2477 = vadd.f32 %v2388, %v2476
    %2478 = vmatprep.mubr.f32.mxu0 %v444
    %2479 = vmatmul.mubr.f32.gmra.mrb[0].mxu0 %v443
    %v2480 = vpop.f32.mrb[0].mxu0
    %v2481 = vadd.f32 %v2392, %v2480
    %v2482 = vpop.f32.mrb[0].mxu0
    %v2483 = vadd.f32 %v2394, %v2482
    %2484 = vmatprep.mubr.f32.mxu0 %v449
    %2485 = vmatmul.mubr.f32.gmra.mrb[0].mxu0 %v448
    %v2486 = vpop.f32.mrb[0].mxu0
    %v2487 = vadd.f32 %v2398, %v2486
    %v2488 = vpop.f32.mrb[0].mxu0
    %v2489 = vadd.f32 %v2400, %v2488
    %2490 = vdwg.mxu0
    %2491 = vmatprep.subr.mxu0 %v779
    %2492 = vmatpush1.msra.mxu0 %v778
    %2493 = vmatprep.subr.mxu0 %v784
    %2494 = vmatpush1.msra.mxu0 %v783
    %2495 = vmatprep.subr.mxu0 %v789
    %2496 = vmatpush1.msra.mxu0 %v788
    %2497 = vmatprep.subr.mxu0 %v794
    %2498 = vmatpush1.msra.mxu0 %v793
    %2499 = vmatprep.subr.mxu0 %v799
    %2500 = vmatpush1.msra.mxu0 %v798
    %2501 = vmatprep.subr.mxu0 %v804
    %2502 = vmatpush1.msra.mxu0 %v803
    %2503 = vmatprep.subr.mxu0 %v809
    %2504 = vmatpush1.msra.mxu0 %v808
    %2505 = vmatprep.subr.mxu0 %v814
    %2506 = vmatpush1.msra.mxu0 %v813
    %2507 = vmatprep.subr.mxu0 %v819
    %2508 = vmatpush1.msra.mxu0 %v818
    %2509 = vmatprep.subr.mxu0 %v824
    %2510 = vmatpush1.msra.mxu0 %v823
    %2511 = vmatprep.subr.mxu0 %v829
    %2512 = vmatpush1.msra.mxu0 %v828
    %2513 = vmatprep.subr.mxu0 %v834
    %2514 = vmatpush1.msra.mxu0 %v833
    %2515 = vmatprep.subr.mxu0 %v839
    %2516 = vmatpush1.msra.mxu0 %v838
    %2517 = vmatprep.subr.mxu0 %v844
    %2518 = vmatpush1.msra.mxu0 %v843
    %2519 = vmatprep.subr.mxu0 %v849
    %2520 = vmatpush1.msra.mxu0 %v848
    %2521 = vmatprep.subr.mxu0 %v854
    %2522 = vmatpush1.msra.mxu0 %v853
    %2523 = vmatprep.subr.mxu0 0.0
    %2524 = vmatpush1.msra.mxu0 0.0
    %2525 = vmatprep.subr.mxu0 0.0
    %2526 = vmatpush1.msra.mxu0 0.0
    %2527 = vmatprep.subr.mxu0 0.0
    %2528 = vmatpush1.msra.mxu0 0.0
    %2529 = vmatprep.subr.mxu0 0.0
    %2530 = vmatpush1.msra.mxu0 0.0
    %2531 = vmatprep.subr.mxu0 0.0
    %2532 = vmatpush1.msra.mxu0 0.0
    %2533 = vmatprep.subr.mxu0 0.0
    %2534 = vmatpush1.msra.mxu0 0.0
    %2535 = vmatprep.subr.mxu0 0.0
    %2536 = vmatpush1.msra.mxu0 0.0
    %2537 = vmatprep.subr.mxu0 0.0
    %2538 = vmatpush1.msra.mxu0 0.0
    %2539 = vmatprep.subr.mxu0 0.0
    %2540 = vmatpush1.msra.mxu0 0.0
    %2541 = vmatprep.subr.mxu0 0.0
    %2542 = vmatpush1.msra.mxu0 0.0
    %2543 = vmatprep.subr.mxu0 0.0
    %2544 = vmatpush1.msra.mxu0 0.0
    %2545 = vmatprep.subr.mxu0 0.0
    %2546 = vmatpush1.msra.mxu0 0.0
    %2547 = vmatprep.subr.mxu0 0.0
    %2548 = vmatpush1.msra.mxu0 0.0
    %2549 = vmatprep.subr.mxu0 0.0
    %2550 = vmatpush1.msra.mxu0 0.0
    %2551 = vmatprep.subr.mxu0 0.0
    %2552 = vmatpush1.msra.mxu0 0.0
    %2553 = vmatprep.subr.mxu0 0.0
    %2554 = vmatpush1.msra.mxu0 0.0
    %2555 = vmatprep.mubr.f32.mxu0 0.0
    %2556 = vmatmul.mubr.f32.gmra.mrb[0].mxu0 0.0
    %v2557 = vpop.f32.mrb[0].mxu0
    %v2558 = vadd.f32 %v2469, %v2557
    %v2559 = vpop.f32.mrb[0].mxu0
    %v2560 = vadd.f32 %v2471, %v2559
    %2561 = vmatprep.mubr.f32.mxu0 0.0
    %2562 = vmatmul.mubr.f32.gmra.mrb[0].mxu0 %v440
    %v2563 = vpop.f32.mrb[0].mxu0
    %v2564 = vadd.f32 %v2475, %v2563
    %v2565 = vpop.f32.mrb[0].mxu0
    %v2566 = vadd.f32 %v2477, %v2565
    %2567 = vmatprep.mubr.f32.mxu0 0.0
    %2568 = vmatmul.mubr.f32.gmra.mrb[0].mxu0 %v445
    %v2569 = vpop.f32.mrb[0].mxu0
    %v2570 = vadd.f32 %v2481, %v2569
    %v2571 = vpop.f32.mrb[0].mxu0
    %v2572 = vadd.f32 %v2483, %v2571
    %2573 = vmatprep.mubr.f32.mxu0 0.0
    %2574 = vmatmul.mubr.f32.gmra.mrb[0].mxu0 %v450
    %v2575 = vpop.f32.mrb[0].mxu0
    %v2576 = vadd.f32 %v2487, %v2575
    %v2577 = vpop.f32.mrb[0].mxu0
    %v2578 = vadd.f32 %v2489, %v2577
    %2579 = vdwg.mxu0
    %2580 = vmatprep.subr.mxu0 0.0
    %2581 = vmatpush1.msra.mxu0 %v460
    %2582 = vmatprep.subr.mxu0 0.0
    %2583 = vmatpush1.msra.mxu0 %v465
    %2584 = vmatprep.subr.mxu0 0.0
    %2585 = vmatpush1.msra.mxu0 %v470
    %2586 = vmatprep.subr.mxu0 0.0
    %2587 = vmatpush1.msra.mxu0 %v475
    %2588 = vmatprep.subr.mxu0 0.0
    %2589 = vmatpush1.msra.mxu0 %v480
    %2590 = vmatprep.subr.mxu0 0.0
    %2591 = vmatpush1.msra.mxu0 %v485
    %2592 = vmatprep.subr.mxu0 0.0
    %2593 = vmatpush1.msra.mxu0 %v490
    %2594 = vmatprep.subr.mxu0 0.0
    %2595 = vmatpush1.msra.mxu0 %v495
    %2596 = vmatprep.subr.mxu0 0.0
    %2597 = vmatpush1.msra.mxu0 %v500
    %2598 = vmatprep.subr.mxu0 0.0
    %2599 = vmatpush1.msra.mxu0 %v505
    %2600 = vmatprep.subr.mxu0 0.0
    %2601 = vmatpush1.msra.mxu0 %v510
    %2602 = vmatprep.subr.mxu0 0.0
    %2603 = vmatpush1.msra.mxu0 %v515
    %2604 = vmatprep.subr.mxu0 0.0
    %2605 = vmatpush1.msra.mxu0 %v520
    %2606 = vmatprep.subr.mxu0 0.0
    %2607 = vmatpush1.msra.mxu0 %v525
    %2608 = vmatprep.subr.mxu0 0.0
    %2609 = vmatpush1.msra.mxu0 %v530
    %2610 = vmatprep.subr.mxu0 0.0
    %2611 = vmatpush1.msra.mxu0 %v535
    %2612 = vmatprep.subr.mxu0 0.0
    %2613 = vmatpush1.msra.mxu0 %v540
    %2614 = vmatprep.subr.mxu0 0.0
    %2615 = vmatpush1.msra.mxu0 %v545
    %2616 = vmatprep.subr.mxu0 0.0
    %2617 = vmatpush1.msra.mxu0 %v550
    %2618 = vmatprep.subr.mxu0 0.0
    %2619 = vmatpush1.msra.mxu0 %v555
    %2620 = vmatprep.subr.mxu0 0.0
    %2621 = vmatpush1.msra.mxu0 %v560
    %2622 = vmatprep.subr.mxu0 0.0
    %2623 = vmatpush1.msra.mxu0 %v565
    %2624 = vmatprep.subr.mxu0 0.0
    %2625 = vmatpush1.msra.mxu0 %v570
    %2626 = vmatprep.subr.mxu0 0.0
    %2627 = vmatpush1.msra.mxu0 %v575
    %2628 = vmatprep.subr.mxu0 0.0
    %2629 = vmatpush1.msra.mxu0 %v580
    %2630 = vmatprep.subr.mxu0 0.0
    %2631 = vmatpush1.msra.mxu0 %v585
    %2632 = vmatprep.subr.mxu0 0.0
    %2633 = vmatpush1.msra.mxu0 %v590
    %2634 = vmatprep.subr.mxu0 0.0
    %2635 = vmatpush1.msra.mxu0 %v595
    %2636 = vmatprep.subr.mxu0 0.0
    %2637 = vmatpush1.msra.mxu0 %v600
    %2638 = vmatprep.subr.mxu0 0.0
    %2639 = vmatpush1.msra.mxu0 %v605
    %2640 = vmatprep.subr.mxu0 0.0
    %2641 = vmatpush1.msra.mxu0 %v610
    %2642 = vmatprep.subr.mxu0 0.0
    %2643 = vmatpush1.msra.mxu0 %v615
    %2644 = vmatprep.mubr.f32.mxu0 0.0
    %2645 = vmatmul.mubr.f32.gmra.mrb[0].mxu0 0.0
    %v2646 = vpop.f32.mrb[0].mxu0
    %v2647 = vadd.f32 %v2028, %v2646
    %v2648 = vpop.f32.mrb[0].mxu0
    %2649 = vmatprep.mubr.f32.mxu0 %v437
    %2650 = vmatmul.mubr.f32.gmra.mrb[0].mxu0 %v436
    %v2651 = vpop.f32.mrb[0].mxu0
    %v2652 = vadd.f32 %v2033, %v2651
    %v2653 = vpop.f32.mrb[0].mxu0
    %2654 = vmatprep.mubr.f32.mxu0 %v442
    %2655 = vmatmul.mubr.f32.gmra.mrb[0].mxu0 %v441
    %v2656 = vpop.f32.mrb[0].mxu0
    %v2657 = vadd.f32 %v2038, %v2656
    %v2658 = vpop.f32.mrb[0].mxu0
    %2659 = vmatprep.mubr.f32.mxu0 %v447
    %2660 = vmatmul.mubr.f32.gmra.mrb[0].mxu0 %v446
    %v2661 = vpop.f32.mrb[0].mxu0
    %v2662 = vadd.f32 %v2043, %v2661
    %v2663 = vpop.f32.mrb[0].mxu0
    %2664 = vdwg.mxu0
    %2665 = vmatprep.subr.mxu0 0.0
    %2666 = vmatpush1.msra.mxu0 %v620
    %2667 = vmatprep.subr.mxu0 0.0
    %2668 = vmatpush1.msra.mxu0 %v625
    %2669 = vmatprep.subr.mxu0 0.0
    %2670 = vmatpush1.msra.mxu0 %v630
    %2671 = vmatprep.subr.mxu0 0.0
    %2672 = vmatpush1.msra.mxu0 %v635
    %2673 = vmatprep.subr.mxu0 0.0
    %2674 = vmatpush1.msra.mxu0 %v640
    %2675 = vmatprep.subr.mxu0 0.0
    %2676 = vmatpush1.msra.mxu0 %v645
    %2677 = vmatprep.subr.mxu0 0.0
    %2678 = vmatpush1.msra.mxu0 %v650
    %2679 = vmatprep.subr.mxu0 0.0
    %2680 = vmatpush1.msra.mxu0 %v655
    %2681 = vmatprep.subr.mxu0 0.0
    %2682 = vmatpush1.msra.mxu0 %v660
    %2683 = vmatprep.subr.mxu0 0.0
    %2684 = vmatpush1.msra.mxu0 %v665
    %2685 = vmatprep.subr.mxu0 0.0
    %2686 = vmatpush1.msra.mxu0 %v670
    %2687 = vmatprep.subr.mxu0 0.0
    %2688 = vmatpush1.msra.mxu0 %v675
    %2689 = vmatprep.subr.mxu0 0.0
    %2690 = vmatpush1.msra.mxu0 %v680
    %2691 = vmatprep.subr.mxu0 0.0
    %2692 = vmatpush1.msra.mxu0 %v685
    %2693 = vmatprep.subr.mxu0 0.0
    %2694 = vmatpush1.msra.mxu0 %v690
    %2695 = vmatprep.subr.mxu0 0.0
    %2696 = vmatpush1.msra.mxu0 %v695
    %2697 = vmatprep.subr.mxu0 0.0
    %2698 = vmatpush1.msra.mxu0 %v700
    %2699 = vmatprep.subr.mxu0 0.0
    %2700 = vmatpush1.msra.mxu0 %v705
    %2701 = vmatprep.subr.mxu0 0.0
    %2702 = vmatpush1.msra.mxu0 %v710
    %2703 = vmatprep.subr.mxu0 0.0
    %2704 = vmatpush1.msra.mxu0 %v715
    %2705 = vmatprep.subr.mxu0 0.0
    %2706 = vmatpush1.msra.mxu0 %v720
    %2707 = vmatprep.subr.mxu0 0.0
    %2708 = vmatpush1.msra.mxu0 %v725
    %2709 = vmatprep.subr.mxu0 0.0
    %2710 = vmatpush1.msra.mxu0 %v730
    %2711 = vmatprep.subr.mxu0 0.0
    %2712 = vmatpush1.msra.mxu0 %v735
    %2713 = vmatprep.subr.mxu0 0.0
    %2714 = vmatpush1.msra.mxu0 %v740
    %2715 = vmatprep.subr.mxu0 0.0
    %2716 = vmatpush1.msra.mxu0 %v745
    %2717 = vmatprep.subr.mxu0 0.0
    %2718 = vmatpush1.msra.mxu0 %v750
    %2719 = vmatprep.subr.mxu0 0.0
    %2720 = vmatpush1.msra.mxu0 %v755
    %2721 = vmatprep.subr.mxu0 0.0
    %2722 = vmatpush1.msra.mxu0 %v760
    %2723 = vmatprep.subr.mxu0 0.0
    %2724 = vmatpush1.msra.mxu0 %v765
    %2725 = vmatprep.subr.mxu0 0.0
    %2726 = vmatpush1.msra.mxu0 %v770
    %2727 = vmatprep.subr.mxu0 0.0
    %2728 = vmatpush1.msra.mxu0 %v775
    %2729 = vmatprep.mubr.f32.mxu0 0.0
    %2730 = vmatmul.mubr.f32.gmra.mrb[0].mxu0 0.0
    %v2731 = vpop.f32.mrb[0].mxu0
    %v2732 = vadd.f32 %v2647, %v2731
    %v2733 = vpop.f32.mrb[0].mxu0
    %2734 = vmatprep.mubr.f32.mxu0 %v439
    %2735 = vmatmul.mubr.f32.gmra.mrb[0].mxu0 %v438
    %v2736 = vpop.f32.mrb[0].mxu0
    %v2737 = vadd.f32 %v2652, %v2736
    %v2738 = vpop.f32.mrb[0].mxu0
    %2739 = vmatprep.mubr.f32.mxu0 %v444
    %2740 = vmatmul.mubr.f32.gmra.mrb[0].mxu0 %v443
    %v2741 = vpop.f32.mrb[0].mxu0
    %v2742 = vadd.f32 %v2657, %v2741
    %v2743 = vpop.f32.mrb[0].mxu0
    %2744 = vmatprep.mubr.f32.mxu0 %v449
    %2745 = vmatmul.mubr.f32.gmra.mrb[0].mxu0 %v448
    %v2746 = vpop.f32.mrb[0].mxu0
    %v2747 = vadd.f32 %v2662, %v2746
    %v2748 = vpop.f32.mrb[0].mxu0
    %2749 = vdwg.mxu0
    %2750 = vmatprep.subr.mxu0 0.0
    %2751 = vmatpush1.msra.mxu0 %v780
    %2752 = vmatprep.subr.mxu0 0.0
    %2753 = vmatpush1.msra.mxu0 %v785
    %2754 = vmatprep.subr.mxu0 0.0
    %2755 = vmatpush1.msra.mxu0 %v790
    %2756 = vmatprep.subr.mxu0 0.0
    %2757 = vmatpush1.msra.mxu0 %v795
    %2758 = vmatprep.subr.mxu0 0.0
    %2759 = vmatpush1.msra.mxu0 %v800
    %2760 = vmatprep.subr.mxu0 0.0
    %2761 = vmatpush1.msra.mxu0 %v805
    %2762 = vmatprep.subr.mxu0 0.0
    %2763 = vmatpush1.msra.mxu0 %v810
    %2764 = vmatprep.subr.mxu0 0.0
    %2765 = vmatpush1.msra.mxu0 %v815
    %2766 = vmatprep.subr.mxu0 0.0
    %2767 = vmatpush1.msra.mxu0 %v820
    %2768 = vmatprep.subr.mxu0 0.0
    %2769 = vmatpush1.msra.mxu0 %v825
    %2770 = vmatprep.subr.mxu0 0.0
    %2771 = vmatpush1.msra.mxu0 %v830
    %2772 = vmatprep.subr.mxu0 0.0
    %2773 = vmatpush1.msra.mxu0 %v835
    %2774 = vmatprep.subr.mxu0 0.0
    %2775 = vmatpush1.msra.mxu0 %v840
    %2776 = vmatprep.subr.mxu0 0.0
    %2777 = vmatpush1.msra.mxu0 %v845
    %2778 = vmatprep.subr.mxu0 0.0
    %2779 = vmatpush1.msra.mxu0 %v850
    %2780 = vmatprep.subr.mxu0 0.0
    %2781 = vmatpush1.msra.mxu0 %v855
    %2782 = vmatprep.subr.mxu0 0.0
    %2783 = vmatpush1.msra.mxu0 0.0
    %2784 = vmatprep.subr.mxu0 0.0
    %2785 = vmatpush1.msra.mxu0 0.0
    %2786 = vmatprep.subr.mxu0 0.0
    %2787 = vmatpush1.msra.mxu0 0.0
    %2788 = vmatprep.subr.mxu0 0.0
    %2789 = vmatpush1.msra.mxu0 0.0
    %2790 = vmatprep.subr.mxu0 0.0
    %2791 = vmatpush1.msra.mxu0 0.0
    %2792 = vmatprep.subr.mxu0 0.0
    %2793 = vmatpush1.msra.mxu0 0.0
    %2794 = vmatprep.subr.mxu0 0.0
    %2795 = vmatpush1.msra.mxu0 0.0
    %2796 = vmatprep.subr.mxu0 0.0
    %2797 = vmatpush1.msra.mxu0 0.0
    %2798 = vmatprep.subr.mxu0 0.0
    %2799 = vmatpush1.msra.mxu0 0.0
    %2800 = vmatprep.subr.mxu0 0.0
    %2801 = vmatpush1.msra.mxu0 0.0
    %2802 = vmatprep.subr.mxu0 0.0
    %2803 = vmatpush1.msra.mxu0 0.0
    %2804 = vmatprep.subr.mxu0 0.0
    %2805 = vmatpush1.msra.mxu0 0.0
    %2806 = vmatprep.subr.mxu0 0.0
    %2807 = vmatpush1.msra.mxu0 0.0
    %2808 = vmatprep.subr.mxu0 0.0
    %2809 = vmatpush1.msra.mxu0 0.0
    %2810 = vmatprep.subr.mxu0 0.0
    %2811 = vmatpush1.msra.mxu0 0.0
    %2812 = vmatprep.subr.mxu0 0.0
    %2813 = vmatpush1.msra.mxu0 0.0
    %2814 = vmatprep.mubr.f32.mxu0 0.0
    %2815 = vmatmul.mubr.f32.gmra.mrb[0].mxu0 0.0
    %v2816 = vpop.f32.mrb[0].mxu0
    %v2817 = vadd.f32 %v2732, %v2816
    %v2818 = vpop.f32.mrb[0].mxu0
    %2819 = vmatprep.mubr.f32.mxu0 0.0
    %2820 = vmatmul.mubr.f32.gmra.mrb[0].mxu0 %v440
    %v2821 = vpop.f32.mrb[0].mxu0
    %v2822 = vadd.f32 %v2737, %v2821
    %v2823 = vpop.f32.mrb[0].mxu0
    %2824 = vmatprep.mubr.f32.mxu0 0.0
    %2825 = vmatmul.mubr.f32.gmra.mrb[0].mxu0 %v445
    %v2826 = vpop.f32.mrb[0].mxu0
    %v2827 = vadd.f32 %v2742, %v2826
    %v2828 = vpop.f32.mrb[0].mxu0
    %2829 = vmatprep.mubr.f32.mxu0 0.0
    %2830 = vmatmul.mubr.f32.gmra.mrb[0].mxu0 %v450
    %v2831 = vpop.f32.mrb[0].mxu0
    %v2832 = vadd.f32 %v2747, %v2831
    %v2833 = vpop.f32.mrb[0].mxu0
    %2834 = vdwg.mxu0
    %s2835 = scalar_lea.vmem %s3, 6400
    %v2836 = vld [vmem:[%s2835] sm:$0xff]
    %v2837 = vld [vmem:[%s2835 + $0x8] sm:$0xff]
    %v2838 = vld [vmem:[%s2835 + $0x10] sm:$0xff]
    %v2839 = vld [vmem:[%s2835 + $0x18] sm:$0xff]
    %v2840 = vld [vmem:[%s2835 + $0x20] sm:$0xff]
    %v2841 = vld [vmem:[%s2835 + $0x28] sm:$0xff]
    %v2842 = vld [vmem:[%s2835 + $0x30] sm:$0xff]
    %v2843 = vld [vmem:[%s2835 + $0x38] sm:$0xff]
    %v2844 = vld [vmem:[%s2835 + $0x40] sm:$0xff]
    %v2845 = vld [vmem:[%s2835 + $0x48] sm:$0xff]
    %v2846 = vld [vmem:[%s2835 + $0x50] sm:$0xff]
    %v2847 = vld [vmem:[%s2835 + $0x58] sm:$0xff]
    %v2848 = vld [vmem:[%s2835 + $0x60] sm:$0xff]
    %v2849 = vld [vmem:[%s2835 + $0x68] sm:$0xff]
    %v2850 = vld [vmem:[%s2835 + $0x70] sm:$0xff]
    %v2851 = vld [vmem:[%s2835 + $0x78] sm:$0xff]
    %v2852 = vld [vmem:[%s2835 + $0x80] sm:$0xff]
    %v2853 = vld [vmem:[%s2835 + $0x88] sm:$0xff]
    %v2854 = vld [vmem:[%s2835 + $0x90] sm:$0xff]
    %v2855 = vld [vmem:[%s2835 + $0x98] sm:$0xff]
    %v2856 = vld [vmem:[%s2835 + $0xa0] sm:$0xff]
    %v2857 = vld [vmem:[%s2835 + $0xa8] sm:$0xff]
    %v2858 = vld [vmem:[%s2835 + $0xb0] sm:$0xff]
    %v2859 = vld [vmem:[%s2835 + $0xb8] sm:$0xff]
    %v2860 = vld [vmem:[%s2835 + $0xc0] sm:$0xff]
    %v2861 = vld [vmem:[%s2835 + $0xc8] sm:$0xff]
    %v2862 = vld [vmem:[%s2835 + $0xd0] sm:$0xff]
    %v2863 = vld [vmem:[%s2835 + $0xd8] sm:$0xff]
    %v2864 = vld [vmem:[%s2835 + $0xe0] sm:$0xff]
    %v2865 = vld [vmem:[%s2835 + $0xe8] sm:$0xff]
    %v2866 = vld [vmem:[%s2835 + $0xf0] sm:$0xff]
    %v2867 = vld [vmem:[%s2835 + $0xf8] sm:$0xff]
    %v2868 = vld [vmem:[%s2835 + $0x100] sm:$0xff]
    %v2869 = vld [vmem:[%s2835 + $0x108] sm:$0xff]
    %v2870 = vld [vmem:[%s2835 + $0x110] sm:$0xff]
    %v2871 = vld [vmem:[%s2835 + $0x118] sm:$0xff]
    %v2872 = vld [vmem:[%s2835 + $0x120] sm:$0xff]
    %v2873 = vld [vmem:[%s2835 + $0x128] sm:$0xff]
    %v2874 = vld [vmem:[%s2835 + $0x130] sm:$0xff]
    %v2875 = vld [vmem:[%s2835 + $0x138] sm:$0xff]
    %v2876 = vld [vmem:[%s2835 + $0x140] sm:$0xff]
    %v2877 = vld [vmem:[%s2835 + $0x148] sm:$0xff]
    %v2878 = vld [vmem:[%s2835 + $0x150] sm:$0xff]
    %v2879 = vld [vmem:[%s2835 + $0x158] sm:$0xff]
    %v2880 = vld [vmem:[%s2835 + $0x160] sm:$0xff]
    %v2881 = vld [vmem:[%s2835 + $0x168] sm:$0xff]
    %v2882 = vld [vmem:[%s2835 + $0x170] sm:$0xff]
    %v2883 = vld [vmem:[%s2835 + $0x178] sm:$0xff]
    %v2884 = vld [vmem:[%s2835 + $0x180] sm:$0xff]
    %v2885 = vld [vmem:[%s2835 + $0x188] sm:$0xff]
    %v2886 = vld [vmem:[%s2835 + $0x190] sm:$0xff]
    %v2887 = vld [vmem:[%s2835 + $0x198] sm:$0xff]
    %v2888 = vld [vmem:[%s2835 + $0x1a0] sm:$0xff]
    %v2889 = vld [vmem:[%s2835 + $0x1a8] sm:$0xff]
    %v2890 = vld [vmem:[%s2835 + $0x1b0] sm:$0xff]
    %v2891 = vld [vmem:[%s2835 + $0x1b8] sm:$0xff]
    %v2892 = vld [vmem:[%s2835 + $0x1c0] sm:$0xff]
    %v2893 = vld [vmem:[%s2835 + $0x1c8] sm:$0xff]
    %v2894 = vld [vmem:[%s2835 + $0x1d0] sm:$0xff]
    %v2895 = vld [vmem:[%s2835 + $0x1d8] sm:$0xff]
    %v2896 = vld [vmem:[%s2835 + $0x1e0] sm:$0xff]
    %v2897 = vld [vmem:[%s2835 + $0x1e8] sm:$0xff]
    %v2898 = vld [vmem:[%s2835 + $0x1f0] sm:$0xff]
    %v2899 = vld [vmem:[%s2835 + $0x1f8] sm:$0xff]
    %v2900 = vld [vmem:[%s2835 + $0x200] sm:$0xff]
    %v2901 = vld [vmem:[%s2835 + $0x208] sm:$0xff]
    %v2902 = vld [vmem:[%s2835 + $0x210] sm:$0xff]
    %v2903 = vld [vmem:[%s2835 + $0x218] sm:$0xff]
    %v2904 = vld [vmem:[%s2835 + $0x220] sm:$0xff]
    %v2905 = vld [vmem:[%s2835 + $0x228] sm:$0xff]
    %v2906 = vld [vmem:[%s2835 + $0x230] sm:$0xff]
    %v2907 = vld [vmem:[%s2835 + $0x238] sm:$0xff]
    %v2908 = vld [vmem:[%s2835 + $0x240] sm:$0xff]
    %v2909 = vld [vmem:[%s2835 + $0x248] sm:$0xff]
    %v2910 = vld [vmem:[%s2835 + $0x250] sm:$0xff]
    %v2911 = vld [vmem:[%s2835 + $0x258] sm:$0xff]
    %v2912 = vld [vmem:[%s2835 + $0x260] sm:$0xff]
    %v2913 = vld [vmem:[%s2835 + $0x268] sm:$0xff]
    %v2914 = vld [vmem:[%s2835 + $0x270] sm:$0xff]
    %v2915 = vld [vmem:[%s2835 + $0x278] sm:$0xff]
    %v2916 = vld [vmem:[%s2835 + $0x280] sm:$0xff]
    %v2917 = vld [vmem:[%s2835 + $0x288] sm:$0xff]
    %v2918 = vld [vmem:[%s2835 + $0x290] sm:$0xff]
    %v2919 = vld [vmem:[%s2835 + $0x298] sm:$0xff]
    %v2920 = vld [vmem:[%s2835 + $0x2a0] sm:$0xff]
    %v2921 = vld [vmem:[%s2835 + $0x2a8] sm:$0xff]
    %v2922 = vld [vmem:[%s2835 + $0x2b0] sm:$0xff]
    %v2923 = vld [vmem:[%s2835 + $0x2b8] sm:$0xff]
    %v2924 = vld [vmem:[%s2835 + $0x2c0] sm:$0xff]
    %v2925 = vld [vmem:[%s2835 + $0x2c8] sm:$0xff]
    %v2926 = vld [vmem:[%s2835 + $0x2d0] sm:$0xff]
    %v2927 = vld [vmem:[%s2835 + $0x2d8] sm:$0xff]
    %v2928 = vld [vmem:[%s2835 + $0x2e0] sm:$0xff]
    %v2929 = vld [vmem:[%s2835 + $0x2e8] sm:$0xff]
    %v2930 = vld [vmem:[%s2835 + $0x2f0] sm:$0xff]
    %v2931 = vld [vmem:[%s2835 + $0x2f8] sm:$0xff]
    %v2932 = vld [vmem:[%s2835 + $0x300] sm:$0xff]
    %v2933 = vld [vmem:[%s2835 + $0x308] sm:$0xff]
    %v2934 = vld [vmem:[%s2835 + $0x310] sm:$0xff]
    %v2935 = vld [vmem:[%s2835 + $0x318] sm:$0xff]
    %v2936 = vld [vmem:[%s2835 + $0x320] sm:$0xff]
    %v2937 = vld [vmem:[%s2835 + $0x328] sm:$0xff]
    %v2938 = vld [vmem:[%s2835 + $0x330] sm:$0xff]
    %v2939 = vld [vmem:[%s2835 + $0x338] sm:$0xff]
    %v2940 = vld [vmem:[%s2835 + $0x340] sm:$0xff]
    %v2941 = vld [vmem:[%s2835 + $0x348] sm:$0xff]
    %v2942 = vld [vmem:[%s2835 + $0x350] sm:$0xff]
    %v2943 = vld [vmem:[%s2835 + $0x358] sm:$0xff]
    %v2944 = vld [vmem:[%s2835 + $0x360] sm:$0xff]
    %v2945 = vld [vmem:[%s2835 + $0x368] sm:$0xff]
    %v2946 = vld [vmem:[%s2835 + $0x370] sm:$0xff]
    %v2947 = vld [vmem:[%s2835 + $0x378] sm:$0xff]
    %v2948 = vld [vmem:[%s2835 + $0x380] sm:$0xff]
    %v2949 = vld [vmem:[%s2835 + $0x388] sm:$0xff]
    %v2950 = vld [vmem:[%s2835 + $0x390] sm:$0xff]
    %v2951 = vld [vmem:[%s2835 + $0x398] sm:$0xff]
    %v2952 = vld [vmem:[%s2835 + $0x3a0] sm:$0xff]
    %v2953 = vld [vmem:[%s2835 + $0x3a8] sm:$0xff]
    %v2954 = vld [vmem:[%s2835 + $0x3b0] sm:$0xff]
    %v2955 = vld [vmem:[%s2835 + $0x3b8] sm:$0xff]
    %v2956 = vld [vmem:[%s2835 + $0x3c0] sm:$0xff]
    %v2957 = vld [vmem:[%s2835 + $0x3c8] sm:$0xff]
    %v2958 = vld [vmem:[%s2835 + $0x3d0] sm:$0xff]
    %v2959 = vld [vmem:[%s2835 + $0x3d8] sm:$0xff]
    %v2960 = vld [vmem:[%s2835 + $0x3e0] sm:$0xff]
    %v2961 = vld [vmem:[%s2835 + $0x3e8] sm:$0xff]
    %v2962 = vld [vmem:[%s2835 + $0x3f0] sm:$0xff]
    %v2963 = vld [vmem:[%s2835 + $0x3f8] sm:$0xff]
    %v2964 = vld [vmem:[%s2835 + $0x400] sm:$0xff]
    %v2965 = vld [vmem:[%s2835 + $0x408] sm:$0xff]
    %v2966 = vld [vmem:[%s2835 + $0x410] sm:$0xff]
    %v2967 = vld [vmem:[%s2835 + $0x418] sm:$0xff]
    %v2968 = vld [vmem:[%s2835 + $0x420] sm:$0xff]
    %v2969 = vld [vmem:[%s2835 + $0x428] sm:$0xff]
    %v2970 = vld [vmem:[%s2835 + $0x430] sm:$0xff]
    %v2971 = vld [vmem:[%s2835 + $0x438] sm:$0xff]
    %v2972 = vld [vmem:[%s2835 + $0x440] sm:$0xff]
    %v2973 = vld [vmem:[%s2835 + $0x448] sm:$0xff]
    %v2974 = vld [vmem:[%s2835 + $0x450] sm:$0xff]
    %v2975 = vld [vmem:[%s2835 + $0x458] sm:$0xff]
    %v2976 = vld [vmem:[%s2835 + $0x460] sm:$0xff]
    %v2977 = vld [vmem:[%s2835 + $0x468] sm:$0xff]
    %v2978 = vld [vmem:[%s2835 + $0x470] sm:$0xff]
    %v2979 = vld [vmem:[%s2835 + $0x478] sm:$0xff]
    %v2980 = vld [vmem:[%s2835 + $0x480] sm:$0xff]
    %v2981 = vld [vmem:[%s2835 + $0x488] sm:$0xff]
    %v2982 = vld [vmem:[%s2835 + $0x490] sm:$0xff]
    %v2983 = vld [vmem:[%s2835 + $0x498] sm:$0xff]
    %v2984 = vld [vmem:[%s2835 + $0x4a0] sm:$0xff]
    %v2985 = vld [vmem:[%s2835 + $0x4a8] sm:$0xff]
    %v2986 = vld [vmem:[%s2835 + $0x4b0] sm:$0xff]
    %v2987 = vld [vmem:[%s2835 + $0x4b8] sm:$0xff]
    %v2988 = vld [vmem:[%s2835 + $0x4c0] sm:$0xff]
    %v2989 = vld [vmem:[%s2835 + $0x4c8] sm:$0xff]
    %v2990 = vld [vmem:[%s2835 + $0x4d0] sm:$0xff]
    %v2991 = vld [vmem:[%s2835 + $0x4d8] sm:$0xff]
    %v2992 = vld [vmem:[%s2835 + $0x4e0] sm:$0xff]
    %v2993 = vld [vmem:[%s2835 + $0x4e8] sm:$0xff]
    %v2994 = vld [vmem:[%s2835 + $0x4f0] sm:$0xff]
    %v2995 = vld [vmem:[%s2835 + $0x4f8] sm:$0xff]
    %v2996 = vld [vmem:[%s2835 + $0x500] sm:$0xff]
    %v2997 = vld [vmem:[%s2835 + $0x508] sm:$0xff]
    %v2998 = vld [vmem:[%s2835 + $0x510] sm:$0xff]
    %v2999 = vld [vmem:[%s2835 + $0x518] sm:$0xff]
    %v3000 = vld [vmem:[%s2835 + $0x520] sm:$0xff]
    %v3001 = vld [vmem:[%s2835 + $0x528] sm:$0xff]
    %v3002 = vld [vmem:[%s2835 + $0x530] sm:$0xff]
    %v3003 = vld [vmem:[%s2835 + $0x538] sm:$0xff]
    %v3004 = vld [vmem:[%s2835 + $0x540] sm:$0xff]
    %v3005 = vld [vmem:[%s2835 + $0x548] sm:$0xff]
    %v3006 = vld [vmem:[%s2835 + $0x550] sm:$0xff]
    %v3007 = vld [vmem:[%s2835 + $0x558] sm:$0xff]
    %v3008 = vld [vmem:[%s2835 + $0x560] sm:$0xff]
    %v3009 = vld [vmem:[%s2835 + $0x568] sm:$0xff]
    %v3010 = vld [vmem:[%s2835 + $0x570] sm:$0xff]
    %v3011 = vld [vmem:[%s2835 + $0x578] sm:$0xff]
    %v3012 = vld [vmem:[%s2835 + $0x580] sm:$0xff]
    %v3013 = vld [vmem:[%s2835 + $0x588] sm:$0xff]
    %v3014 = vld [vmem:[%s2835 + $0x590] sm:$0xff]
    %v3015 = vld [vmem:[%s2835 + $0x598] sm:$0xff]
    %v3016 = vld [vmem:[%s2835 + $0x5a0] sm:$0xff]
    %v3017 = vld [vmem:[%s2835 + $0x5a8] sm:$0xff]
    %v3018 = vld [vmem:[%s2835 + $0x5b0] sm:$0xff]
    %v3019 = vld [vmem:[%s2835 + $0x5b8] sm:$0xff]
    %v3020 = vld [vmem:[%s2835 + $0x5c0] sm:$0xff]
    %v3021 = vld [vmem:[%s2835 + $0x5c8] sm:$0xff]
    %v3022 = vld [vmem:[%s2835 + $0x5d0] sm:$0xff]
    %v3023 = vld [vmem:[%s2835 + $0x5d8] sm:$0xff]
    %v3024 = vld [vmem:[%s2835 + $0x5e0] sm:$0xff]
    %v3025 = vld [vmem:[%s2835 + $0x5e8] sm:$0xff]
    %v3026 = vld [vmem:[%s2835 + $0x5f0] sm:$0xff]
    %v3027 = vld [vmem:[%s2835 + $0x5f8] sm:$0xff]
    %v3028 = vld [vmem:[%s2835 + $0x600] sm:$0xff]
    %v3029 = vld [vmem:[%s2835 + $0x608] sm:$0xff]
    %v3030 = vld [vmem:[%s2835 + $0x610] sm:$0xff]
    %v3031 = vld [vmem:[%s2835 + $0x618] sm:$0xff]
    %v3032 = vld [vmem:[%s2835 + $0x620] sm:$0xff]
    %v3033 = vld [vmem:[%s2835 + $0x628] sm:$0xff]
    %v3034 = vld [vmem:[%s2835 + $0x630] sm:$0xff]
    %v3035 = vld [vmem:[%s2835 + $0x638] sm:$0xff]
    %v3036 = vld [vmem:[%s2835 + $0x640] sm:$0xff]
    %v3037 = vld [vmem:[%s2835 + $0x648] sm:$0xff]
    %v3038 = vld [vmem:[%s2835 + $0x650] sm:$0xff]
    %v3039 = vld [vmem:[%s2835 + $0x658] sm:$0xff]
    %v3040 = vld [vmem:[%s2835 + $0x660] sm:$0xff]
    %v3041 = vld [vmem:[%s2835 + $0x668] sm:$0xff]
    %v3042 = vld [vmem:[%s2835 + $0x670] sm:$0xff]
    %v3043 = vld [vmem:[%s2835 + $0x678] sm:$0xff]
    %v3044 = vld [vmem:[%s2835 + $0x680] sm:$0xff]
    %v3045 = vld [vmem:[%s2835 + $0x688] sm:$0xff]
    %v3046 = vld [vmem:[%s2835 + $0x690] sm:$0xff]
    %v3047 = vld [vmem:[%s2835 + $0x698] sm:$0xff]
    %v3048 = vld [vmem:[%s2835 + $0x6a0] sm:$0xff]
    %v3049 = vld [vmem:[%s2835 + $0x6a8] sm:$0xff]
    %v3050 = vld [vmem:[%s2835 + $0x6b0] sm:$0xff]
    %v3051 = vld [vmem:[%s2835 + $0x6b8] sm:$0xff]
    %v3052 = vld [vmem:[%s2835 + $0x6c0] sm:$0xff]
    %v3053 = vld [vmem:[%s2835 + $0x6c8] sm:$0xff]
    %v3054 = vld [vmem:[%s2835 + $0x6d0] sm:$0xff]
    %v3055 = vld [vmem:[%s2835 + $0x6d8] sm:$0xff]
    %v3056 = vld [vmem:[%s2835 + $0x6e0] sm:$0xff]
    %v3057 = vld [vmem:[%s2835 + $0x6e8] sm:$0xff]
    %v3058 = vld [vmem:[%s2835 + $0x6f0] sm:$0xff]
    %v3059 = vld [vmem:[%s2835 + $0x6f8] sm:$0xff]
    %v3060 = vld [vmem:[%s2835 + $0x700] sm:$0xff]
    %v3061 = vld [vmem:[%s2835 + $0x708] sm:$0xff]
    %v3062 = vld [vmem:[%s2835 + $0x710] sm:$0xff]
    %v3063 = vld [vmem:[%s2835 + $0x718] sm:$0xff]
    %v3064 = vld [vmem:[%s2835 + $0x720] sm:$0xff]
    %v3065 = vld [vmem:[%s2835 + $0x728] sm:$0xff]
    %v3066 = vld [vmem:[%s2835 + $0x730] sm:$0xff]
    %v3067 = vld [vmem:[%s2835 + $0x738] sm:$0xff]
    %v3068 = vld [vmem:[%s2835 + $0x740] sm:$0xff]
    %v3069 = vld [vmem:[%s2835 + $0x748] sm:$0xff]
    %v3070 = vld [vmem:[%s2835 + $0x750] sm:$0xff]
    %v3071 = vld [vmem:[%s2835 + $0x758] sm:$0xff]
    %v3072 = vld [vmem:[%s2835 + $0x760] sm:$0xff]
    %v3073 = vld [vmem:[%s2835 + $0x768] sm:$0xff]
    %v3074 = vld [vmem:[%s2835 + $0x770] sm:$0xff]
    %v3075 = vld [vmem:[%s2835 + $0x778] sm:$0xff]
    %v3076 = vld [vmem:[%s2835 + $0x780] sm:$0xff]
    %v3077 = vld [vmem:[%s2835 + $0x788] sm:$0xff]
    %v3078 = vld [vmem:[%s2835 + $0x790] sm:$0xff]
    %v3079 = vld [vmem:[%s2835 + $0x798] sm:$0xff]
    %v3080 = vld [vmem:[%s2835 + $0x7a0] sm:$0xff]
    %v3081 = vld [vmem:[%s2835 + $0x7a8] sm:$0xff]
    %v3082 = vld [vmem:[%s2835 + $0x7b0] sm:$0xff]
    %v3083 = vld [vmem:[%s2835 + $0x7b8] sm:$0xff]
    %v3084 = vld [vmem:[%s2835 + $0x7c0] sm:$0xff]
    %v3085 = vld [vmem:[%s2835 + $0x7c8] sm:$0xff]
    %v3086 = vld [vmem:[%s2835 + $0x7d0] sm:$0xff]
    %v3087 = vld [vmem:[%s2835 + $0x7d8] sm:$0xff]
    %v3088 = vld [vmem:[%s2835 + $0x7e0] sm:$0xff]
    %v3089 = vld [vmem:[%s2835 + $0x7e8] sm:$0xff]
    %v3090 = vld [vmem:[%s2835 + $0x7f0] sm:$0xff]
    %v3091 = vld [vmem:[%s2835 + $0x7f8] sm:$0xff]
    %v3092 = vld [vmem:[%s2835 + $0x800] sm:$0xff]
    %v3093 = vld [vmem:[%s2835 + $0x808] sm:$0xff]
    %v3094 = vld [vmem:[%s2835 + $0x810] sm:$0xff]
    %v3095 = vld [vmem:[%s2835 + $0x818] sm:$0xff]
    %v3096 = vld [vmem:[%s2835 + $0x820] sm:$0xff]
    %v3097 = vld [vmem:[%s2835 + $0x828] sm:$0xff]
    %v3098 = vld [vmem:[%s2835 + $0x830] sm:$0xff]
    %v3099 = vld [vmem:[%s2835 + $0x838] sm:$0xff]
    %v3100 = vld [vmem:[%s2835 + $0x840] sm:$0xff]
    %v3101 = vld [vmem:[%s2835 + $0x848] sm:$0xff]
    %v3102 = vld [vmem:[%s2835 + $0x850] sm:$0xff]
    %v3103 = vld [vmem:[%s2835 + $0x858] sm:$0xff]
    %v3104 = vld [vmem:[%s2835 + $0x860] sm:$0xff]
    %v3105 = vld [vmem:[%s2835 + $0x868] sm:$0xff]
    %v3106 = vld [vmem:[%s2835 + $0x870] sm:$0xff]
    %v3107 = vld [vmem:[%s2835 + $0x878] sm:$0xff]
    %v3108 = vld [vmem:[%s2835 + $0x880] sm:$0xff]
    %v3109 = vld [vmem:[%s2835 + $0x888] sm:$0xff]
    %v3110 = vld [vmem:[%s2835 + $0x890] sm:$0xff]
    %v3111 = vld [vmem:[%s2835 + $0x898] sm:$0xff]
    %v3112 = vld [vmem:[%s2835 + $0x8a0] sm:$0xff]
    %v3113 = vld [vmem:[%s2835 + $0x8a8] sm:$0xff]
    %v3114 = vld [vmem:[%s2835 + $0x8b0] sm:$0xff]
    %v3115 = vld [vmem:[%s2835 + $0x8b8] sm:$0xff]
    %v3116 = vld [vmem:[%s2835 + $0x8c0] sm:$0xff]
    %v3117 = vld [vmem:[%s2835 + $0x8c8] sm:$0xff]
    %v3118 = vld [vmem:[%s2835 + $0x8d0] sm:$0xff]
    %v3119 = vld [vmem:[%s2835 + $0x8d8] sm:$0xff]
    %v3120 = vld [vmem:[%s2835 + $0x8e0] sm:$0xff]
    %v3121 = vld [vmem:[%s2835 + $0x8e8] sm:$0xff]
    %v3122 = vld [vmem:[%s2835 + $0x8f0] sm:$0xff]
    %v3123 = vld [vmem:[%s2835 + $0x8f8] sm:$0xff]
    %v3124 = vld [vmem:[%s2835 + $0x900] sm:$0xff]
    %v3125 = vld [vmem:[%s2835 + $0x908] sm:$0xff]
    %v3126 = vld [vmem:[%s2835 + $0x910] sm:$0xff]
    %v3127 = vld [vmem:[%s2835 + $0x918] sm:$0xff]
    %v3128 = vld [vmem:[%s2835 + $0x920] sm:$0xff]
    %v3129 = vld [vmem:[%s2835 + $0x928] sm:$0xff]
    %v3130 = vld [vmem:[%s2835 + $0x930] sm:$0xff]
    %v3131 = vld [vmem:[%s2835 + $0x938] sm:$0xff]
    %v3132 = vld [vmem:[%s2835 + $0x940] sm:$0xff]
    %v3133 = vld [vmem:[%s2835 + $0x948] sm:$0xff]
    %v3134 = vld [vmem:[%s2835 + $0x950] sm:$0xff]
    %v3135 = vld [vmem:[%s2835 + $0x958] sm:$0xff]
    %v3136 = vld [vmem:[%s2835 + $0x960] sm:$0xff]
    %v3137 = vld [vmem:[%s2835 + $0x968] sm:$0xff]
    %v3138 = vld [vmem:[%s2835 + $0x970] sm:$0xff]
    %v3139 = vld [vmem:[%s2835 + $0x978] sm:$0xff]
    %v3140 = vld [vmem:[%s2835 + $0x980] sm:$0xff]
    %v3141 = vld [vmem:[%s2835 + $0x988] sm:$0xff]
    %v3142 = vld [vmem:[%s2835 + $0x990] sm:$0xff]
    %v3143 = vld [vmem:[%s2835 + $0x998] sm:$0xff]
    %v3144 = vld [vmem:[%s2835 + $0x9a0] sm:$0xff]
    %v3145 = vld [vmem:[%s2835 + $0x9a8] sm:$0xff]
    %v3146 = vld [vmem:[%s2835 + $0x9b0] sm:$0xff]
    %v3147 = vld [vmem:[%s2835 + $0x9b8] sm:$0xff]
    %v3148 = vld [vmem:[%s2835 + $0x9c0] sm:$0xff]
    %v3149 = vld [vmem:[%s2835 + $0x9c8] sm:$0xff]
    %v3150 = vld [vmem:[%s2835 + $0x9d0] sm:$0xff]
    %v3151 = vld [vmem:[%s2835 + $0x9d8] sm:$0xff]
    %v3152 = vld [vmem:[%s2835 + $0x9e0] sm:$0xff]
    %v3153 = vld [vmem:[%s2835 + $0x9e8] sm:$0xff]
    %v3154 = vld [vmem:[%s2835 + $0x9f0] sm:$0xff]
    %v3155 = vld [vmem:[%s2835 + $0x9f8] sm:$0xff]
    %v3156 = vld [vmem:[%s2835 + $0xa00] sm:$0xff]
    %v3157 = vld [vmem:[%s2835 + $0xa08] sm:$0xff]
    %v3158 = vld [vmem:[%s2835 + $0xa10] sm:$0xff]
    %v3159 = vld [vmem:[%s2835 + $0xa18] sm:$0xff]
    %v3160 = vld [vmem:[%s2835 + $0xa20] sm:$0xff]
    %v3161 = vld [vmem:[%s2835 + $0xa28] sm:$0xff]
    %v3162 = vld [vmem:[%s2835 + $0xa30] sm:$0xff]
    %v3163 = vld [vmem:[%s2835 + $0xa38] sm:$0xff]
    %v3164 = vld [vmem:[%s2835 + $0xa40] sm:$0xff]
    %v3165 = vld [vmem:[%s2835 + $0xa48] sm:$0xff]
    %v3166 = vld [vmem:[%s2835 + $0xa50] sm:$0xff]
    %v3167 = vld [vmem:[%s2835 + $0xa58] sm:$0xff]
    %v3168 = vld [vmem:[%s2835 + $0xa60] sm:$0xff]
    %v3169 = vld [vmem:[%s2835 + $0xa68] sm:$0xff]
    %v3170 = vld [vmem:[%s2835 + $0xa70] sm:$0xff]
    %v3171 = vld [vmem:[%s2835 + $0xa78] sm:$0xff]
    %v3172 = vld [vmem:[%s2835 + $0xa80] sm:$0xff]
    %v3173 = vld [vmem:[%s2835 + $0xa88] sm:$0xff]
    %v3174 = vld [vmem:[%s2835 + $0xa90] sm:$0xff]
    %v3175 = vld [vmem:[%s2835 + $0xa98] sm:$0xff]
    %v3176 = vld [vmem:[%s2835 + $0xaa0] sm:$0xff]
    %v3177 = vld [vmem:[%s2835 + $0xaa8] sm:$0xff]
    %v3178 = vld [vmem:[%s2835 + $0xab0] sm:$0xff]
    %v3179 = vld [vmem:[%s2835 + $0xab8] sm:$0xff]
    %v3180 = vld [vmem:[%s2835 + $0xac0] sm:$0xff]
    %v3181 = vld [vmem:[%s2835 + $0xac8] sm:$0xff]
    %v3182 = vld [vmem:[%s2835 + $0xad0] sm:$0xff]
    %v3183 = vld [vmem:[%s2835 + $0xad8] sm:$0xff]
    %v3184 = vld [vmem:[%s2835 + $0xae0] sm:$0xff]
    %v3185 = vld [vmem:[%s2835 + $0xae8] sm:$0xff]
    %v3186 = vld [vmem:[%s2835 + $0xaf0] sm:$0xff]
    %v3187 = vld [vmem:[%s2835 + $0xaf8] sm:$0xff]
    %v3188 = vld [vmem:[%s2835 + $0xb00] sm:$0xff]
    %v3189 = vld [vmem:[%s2835 + $0xb08] sm:$0xff]
    %v3190 = vld [vmem:[%s2835 + $0xb10] sm:$0xff]
    %v3191 = vld [vmem:[%s2835 + $0xb18] sm:$0xff]
    %v3192 = vld [vmem:[%s2835 + $0xb20] sm:$0xff]
    %v3193 = vld [vmem:[%s2835 + $0xb28] sm:$0xff]
    %v3194 = vld [vmem:[%s2835 + $0xb30] sm:$0xff]
    %v3195 = vld [vmem:[%s2835 + $0xb38] sm:$0xff]
    %v3196 = vld [vmem:[%s2835 + $0xb40] sm:$0xff]
    %v3197 = vld [vmem:[%s2835 + $0xb48] sm:$0xff]
    %v3198 = vld [vmem:[%s2835 + $0xb50] sm:$0xff]
    %v3199 = vld [vmem:[%s2835 + $0xb58] sm:$0xff]
    %v3200 = vld [vmem:[%s2835 + $0xb60] sm:$0xff]
    %v3201 = vld [vmem:[%s2835 + $0xb68] sm:$0xff]
    %v3202 = vld [vmem:[%s2835 + $0xb70] sm:$0xff]
    %v3203 = vld [vmem:[%s2835 + $0xb78] sm:$0xff]
    %v3204 = vld [vmem:[%s2835 + $0xb80] sm:$0xff]
    %v3205 = vld [vmem:[%s2835 + $0xb88] sm:$0xff]
    %v3206 = vld [vmem:[%s2835 + $0xb90] sm:$0xff]
    %v3207 = vld [vmem:[%s2835 + $0xb98] sm:$0xff]
    %v3208 = vld [vmem:[%s2835 + $0xba0] sm:$0xff]
    %v3209 = vld [vmem:[%s2835 + $0xba8] sm:$0xff]
    %v3210 = vld [vmem:[%s2835 + $0xbb0] sm:$0xff]
    %v3211 = vld [vmem:[%s2835 + $0xbb8] sm:$0xff]
    %v3212 = vld [vmem:[%s2835 + $0xbc0] sm:$0xff]
    %v3213 = vld [vmem:[%s2835 + $0xbc8] sm:$0xff]
    %v3214 = vld [vmem:[%s2835 + $0xbd0] sm:$0xff]
    %v3215 = vld [vmem:[%s2835 + $0xbd8] sm:$0xff]
    %v3216 = vld [vmem:[%s2835 + $0xbe0] sm:$0xff]
    %v3217 = vld [vmem:[%s2835 + $0xbe8] sm:$0xff]
    %v3218 = vld [vmem:[%s2835 + $0xbf0] sm:$0xff]
    %v3219 = vld [vmem:[%s2835 + $0xbf8] sm:$0xff]
    %v3220 = vld [vmem:[%s2835 + $0xc00] sm:$0xff]
    %v3221 = vld [vmem:[%s2835 + $0xc08] sm:$0xff]
    %v3222 = vld [vmem:[%s2835 + $0xc10] sm:$0xff]
    %v3223 = vld [vmem:[%s2835 + $0xc18] sm:$0xff]
    %v3224 = vld [vmem:[%s2835 + $0xc20] sm:$0xff]
    %v3225 = vld [vmem:[%s2835 + $0xc28] sm:$0xff]
    %v3226 = vld [vmem:[%s2835 + $0xc30] sm:$0xff]
    %v3227 = vld [vmem:[%s2835 + $0xc38] sm:$0xff]
    %v3228 = vld [vmem:[%s2835 + $0xc40] sm:$0xff]
    %v3229 = vld [vmem:[%s2835 + $0xc48] sm:$0xff]
    %v3230 = vld [vmem:[%s2835 + $0xc50] sm:$0xff]
    %v3231 = vld [vmem:[%s2835 + $0xc58] sm:$0xff]
    %v3232 = vld [vmem:[%s2835 + $0xc60] sm:$0xff]
    %v3233 = vld [vmem:[%s2835 + $0xc68] sm:$0xff]
    %v3234 = vld [vmem:[%s2835 + $0xc70] sm:$0xff]
    %v3235 = vld [vmem:[%s2835 + $0xc78] sm:$0xff]
    %3236 = vmatprep.subr.mxu0 %v2837
    %3237 = vmatpush1.msra.mxu0 %v2836
    %3238 = vmatprep.subr.mxu0 %v2842
    %3239 = vmatpush1.msra.mxu0 %v2841
    %3240 = vmatprep.subr.mxu0 %v2847
    %3241 = vmatpush1.msra.mxu0 %v2846
    %3242 = vmatprep.subr.mxu0 %v2852
    %3243 = vmatpush1.msra.mxu0 %v2851
    %3244 = vmatprep.subr.mxu0 %v2857
    %3245 = vmatpush1.msra.mxu0 %v2856
    %3246 = vmatprep.subr.mxu0 %v2862
    %3247 = vmatpush1.msra.mxu0 %v2861
    %3248 = vmatprep.subr.mxu0 %v2867
    %3249 = vmatpush1.msra.mxu0 %v2866
    %3250 = vmatprep.subr.mxu0 %v2872
    %3251 = vmatpush1.msra.mxu0 %v2871
    %3252 = vmatprep.subr.mxu0 %v2877
    %3253 = vmatpush1.msra.mxu0 %v2876
    %3254 = vmatprep.subr.mxu0 %v2882
    %3255 = vmatpush1.msra.mxu0 %v2881
    %3256 = vmatprep.subr.mxu0 %v2887
    %3257 = vmatpush1.msra.mxu0 %v2886
    %3258 = vmatprep.subr.mxu0 %v2892
    %3259 = vmatpush1.msra.mxu0 %v2891
    %3260 = vmatprep.subr.mxu0 %v2897
    %3261 = vmatpush1.msra.mxu0 %v2896
    %3262 = vmatprep.subr.mxu0 %v2902
    %3263 = vmatpush1.msra.mxu0 %v2901
    %3264 = vmatprep.subr.mxu0 %v2907
    %3265 = vmatpush1.msra.mxu0 %v2906
    %3266 = vmatprep.subr.mxu0 %v2912
    %3267 = vmatpush1.msra.mxu0 %v2911
    %3268 = vmatprep.subr.mxu0 %v2917
    %3269 = vmatpush1.msra.mxu0 %v2916
    %3270 = vmatprep.subr.mxu0 %v2922
    %3271 = vmatpush1.msra.mxu0 %v2921
    %3272 = vmatprep.subr.mxu0 %v2927
    %3273 = vmatpush1.msra.mxu0 %v2926
    %3274 = vmatprep.subr.mxu0 %v2932
    %3275 = vmatpush1.msra.mxu0 %v2931
    %3276 = vmatprep.subr.mxu0 %v2937
    %3277 = vmatpush1.msra.mxu0 %v2936
    %3278 = vmatprep.subr.mxu0 %v2942
    %3279 = vmatpush1.msra.mxu0 %v2941
    %3280 = vmatprep.subr.mxu0 %v2947
    %3281 = vmatpush1.msra.mxu0 %v2946
    %3282 = vmatprep.subr.mxu0 %v2952
    %3283 = vmatpush1.msra.mxu0 %v2951
    %3284 = vmatprep.subr.mxu0 %v2957
    %3285 = vmatpush1.msra.mxu0 %v2956
    %3286 = vmatprep.subr.mxu0 %v2962
    %3287 = vmatpush1.msra.mxu0 %v2961
    %3288 = vmatprep.subr.mxu0 %v2967
    %3289 = vmatpush1.msra.mxu0 %v2966
    %3290 = vmatprep.subr.mxu0 %v2972
    %3291 = vmatpush1.msra.mxu0 %v2971
    %3292 = vmatprep.subr.mxu0 %v2977
    %3293 = vmatpush1.msra.mxu0 %v2976
    %3294 = vmatprep.subr.mxu0 %v2982
    %3295 = vmatpush1.msra.mxu0 %v2981
    %3296 = vmatprep.subr.mxu0 %v2987
    %3297 = vmatpush1.msra.mxu0 %v2986
    %3298 = vmatprep.subr.mxu0 %v2992
    %3299 = vmatpush1.msra.mxu0 %v2991
    %3300 = vmatprep.mubr.f32.mxu0 %v442
    %3301 = vmatmul.mubr.f32.gmra.mrb[0].mxu0 %v441
    %v3302 = vpop.f32.mrb[0].mxu0
    %v3303 = vadd.f32 0.0, %v3302
    %v3304 = vpop.f32.mrb[0].mxu0
    %v3305 = vadd.f32 0.0, %v3304
    %3306 = vmatprep.mubr.f32.mxu0 %v447
    %3307 = vmatmul.mubr.f32.gmra.mrb[0].mxu0 %v446
    %v3308 = vpop.f32.mrb[0].mxu0
    %v3309 = vadd.f32 0.0, %v3308
    %v3310 = vpop.f32.mrb[0].mxu0
    %v3311 = vadd.f32 0.0, %v3310
    %3312 = vmatprep.mubr.f32.mxu0 %v452
    %3313 = vmatmul.mubr.f32.gmra.mrb[0].mxu0 %v451
    %v3314 = vpop.f32.mrb[0].mxu0
    %v3315 = vadd.f32 0.0, %v3314
    %v3316 = vpop.f32.mrb[0].mxu0
    %v3317 = vadd.f32 0.0, %v3316
    %3318 = vmatprep.mubr.f32.mxu0 0.0
    %3319 = vmatmul.mubr.f32.gmra.mrb[0].mxu0 0.0
    %v3320 = vpop.f32.mrb[0].mxu0
    %v3321 = vadd.f32 0.0, %v3320
    %v3322 = vpop.f32.mrb[0].mxu0
    %v3323 = vadd.f32 0.0, %v3322
    %3324 = vdwg.mxu0
    %3325 = vmatprep.subr.mxu0 %v2997
    %3326 = vmatpush1.msra.mxu0 %v2996
    %3327 = vmatprep.subr.mxu0 %v3002
    %3328 = vmatpush1.msra.mxu0 %v3001
    %3329 = vmatprep.subr.mxu0 %v3007
    %3330 = vmatpush1.msra.mxu0 %v3006
    %3331 = vmatprep.subr.mxu0 %v3012
    %3332 = vmatpush1.msra.mxu0 %v3011
    %3333 = vmatprep.subr.mxu0 %v3017
    %3334 = vmatpush1.msra.mxu0 %v3016
    %3335 = vmatprep.subr.mxu0 %v3022
    %3336 = vmatpush1.msra.mxu0 %v3021
    %3337 = vmatprep.subr.mxu0 %v3027
    %3338 = vmatpush1.msra.mxu0 %v3026
    %3339 = vmatprep.subr.mxu0 %v3032
    %3340 = vmatpush1.msra.mxu0 %v3031
    %3341 = vmatprep.subr.mxu0 %v3037
    %3342 = vmatpush1.msra.mxu0 %v3036
    %3343 = vmatprep.subr.mxu0 %v3042
    %3344 = vmatpush1.msra.mxu0 %v3041
    %3345 = vmatprep.subr.mxu0 %v3047
    %3346 = vmatpush1.msra.mxu0 %v3046
    %3347 = vmatprep.subr.mxu0 %v3052
    %3348 = vmatpush1.msra.mxu0 %v3051
    %3349 = vmatprep.subr.mxu0 %v3057
    %3350 = vmatpush1.msra.mxu0 %v3056
    %3351 = vmatprep.subr.mxu0 %v3062
    %3352 = vmatpush1.msra.mxu0 %v3061
    %3353 = vmatprep.subr.mxu0 %v3067
    %3354 = vmatpush1.msra.mxu0 %v3066
    %3355 = vmatprep.subr.mxu0 %v3072
    %3356 = vmatpush1.msra.mxu0 %v3071
    %3357 = vmatprep.subr.mxu0 %v3077
    %3358 = vmatpush1.msra.mxu0 %v3076
    %3359 = vmatprep.subr.mxu0 %v3082
    %3360 = vmatpush1.msra.mxu0 %v3081
    %3361 = vmatprep.subr.mxu0 %v3087
    %3362 = vmatpush1.msra.mxu0 %v3086
    %3363 = vmatprep.subr.mxu0 %v3092
    %3364 = vmatpush1.msra.mxu0 %v3091
    %3365 = vmatprep.subr.mxu0 %v3097
    %3366 = vmatpush1.msra.mxu0 %v3096
    %3367 = vmatprep.subr.mxu0 %v3102
    %3368 = vmatpush1.msra.mxu0 %v3101
    %3369 = vmatprep.subr.mxu0 %v3107
    %3370 = vmatpush1.msra.mxu0 %v3106
    %3371 = vmatprep.subr.mxu0 %v3112
    %3372 = vmatpush1.msra.mxu0 %v3111
    %3373 = vmatprep.subr.mxu0 %v3117
    %3374 = vmatpush1.msra.mxu0 %v3116
    %3375 = vmatprep.subr.mxu0 %v3122
    %3376 = vmatpush1.msra.mxu0 %v3121
    %3377 = vmatprep.subr.mxu0 %v3127
    %3378 = vmatpush1.msra.mxu0 %v3126
    %3379 = vmatprep.subr.mxu0 %v3132
    %3380 = vmatpush1.msra.mxu0 %v3131
    %3381 = vmatprep.subr.mxu0 %v3137
    %3382 = vmatpush1.msra.mxu0 %v3136
    %3383 = vmatprep.subr.mxu0 %v3142
    %3384 = vmatpush1.msra.mxu0 %v3141
    %3385 = vmatprep.subr.mxu0 %v3147
    %3386 = vmatpush1.msra.mxu0 %v3146
    %3387 = vmatprep.subr.mxu0 %v3152
    %3388 = vmatpush1.msra.mxu0 %v3151
    %3389 = vmatprep.mubr.f32.mxu0 %v444
    %3390 = vmatmul.mubr.f32.gmra.mrb[0].mxu0 %v443
    %v3391 = vpop.f32.mrb[0].mxu0
    %v3392 = vadd.f32 %v3303, %v3391
    %v3393 = vpop.f32.mrb[0].mxu0
    %v3394 = vadd.f32 %v3305, %v3393
    %3395 = vmatprep.mubr.f32.mxu0 %v449
    %3396 = vmatmul.mubr.f32.gmra.mrb[0].mxu0 %v448
    %v3397 = vpop.f32.mrb[0].mxu0
    %v3398 = vadd.f32 %v3309, %v3397
    %v3399 = vpop.f32.mrb[0].mxu0
    %v3400 = vadd.f32 %v3311, %v3399
    %3401 = vmatprep.mubr.f32.mxu0 %v454
    %3402 = vmatmul.mubr.f32.gmra.mrb[0].mxu0 %v453
    %v3403 = vpop.f32.mrb[0].mxu0
    %v3404 = vadd.f32 %v3315, %v3403
    %v3405 = vpop.f32.mrb[0].mxu0
    %v3406 = vadd.f32 %v3317, %v3405
    %3407 = vmatprep.mubr.f32.mxu0 0.0
    %3408 = vmatmul.mubr.f32.gmra.mrb[0].mxu0 0.0
    %v3409 = vpop.f32.mrb[0].mxu0
    %v3410 = vadd.f32 %v3321, %v3409
    %v3411 = vpop.f32.mrb[0].mxu0
    %v3412 = vadd.f32 %v3323, %v3411
    %3413 = vdwg.mxu0
    %3414 = vmatprep.subr.mxu0 %v3157
    %3415 = vmatpush1.msra.mxu0 %v3156
    %3416 = vmatprep.subr.mxu0 %v3162
    %3417 = vmatpush1.msra.mxu0 %v3161
    %3418 = vmatprep.subr.mxu0 %v3167
    %3419 = vmatpush1.msra.mxu0 %v3166
    %3420 = vmatprep.subr.mxu0 %v3172
    %3421 = vmatpush1.msra.mxu0 %v3171
    %3422 = vmatprep.subr.mxu0 %v3177
    %3423 = vmatpush1.msra.mxu0 %v3176
    %3424 = vmatprep.subr.mxu0 %v3182
    %3425 = vmatpush1.msra.mxu0 %v3181
    %3426 = vmatprep.subr.mxu0 %v3187
    %3427 = vmatpush1.msra.mxu0 %v3186
    %3428 = vmatprep.subr.mxu0 %v3192
    %3429 = vmatpush1.msra.mxu0 %v3191
    %3430 = vmatprep.subr.mxu0 %v3197
    %3431 = vmatpush1.msra.mxu0 %v3196
    %3432 = vmatprep.subr.mxu0 %v3202
    %3433 = vmatpush1.msra.mxu0 %v3201
    %3434 = vmatprep.subr.mxu0 %v3207
    %3435 = vmatpush1.msra.mxu0 %v3206
    %3436 = vmatprep.subr.mxu0 %v3212
    %3437 = vmatpush1.msra.mxu0 %v3211
    %3438 = vmatprep.subr.mxu0 %v3217
    %3439 = vmatpush1.msra.mxu0 %v3216
    %3440 = vmatprep.subr.mxu0 %v3222
    %3441 = vmatpush1.msra.mxu0 %v3221
    %3442 = vmatprep.subr.mxu0 %v3227
    %3443 = vmatpush1.msra.mxu0 %v3226
    %3444 = vmatprep.subr.mxu0 %v3232
    %3445 = vmatpush1.msra.mxu0 %v3231
    %3446 = vmatprep.subr.mxu0 0.0
    %3447 = vmatpush1.msra.mxu0 0.0
    %3448 = vmatprep.subr.mxu0 0.0
    %3449 = vmatpush1.msra.mxu0 0.0
    %3450 = vmatprep.subr.mxu0 0.0
    %3451 = vmatpush1.msra.mxu0 0.0
    %3452 = vmatprep.subr.mxu0 0.0
    %3453 = vmatpush1.msra.mxu0 0.0
    %3454 = vmatprep.subr.mxu0 0.0
    %3455 = vmatpush1.msra.mxu0 0.0
    %3456 = vmatprep.subr.mxu0 0.0
    %3457 = vmatpush1.msra.mxu0 0.0
    %3458 = vmatprep.subr.mxu0 0.0
    %3459 = vmatpush1.msra.mxu0 0.0
    %3460 = vmatprep.subr.mxu0 0.0
    %3461 = vmatpush1.msra.mxu0 0.0
    %3462 = vmatprep.subr.mxu0 0.0
    %3463 = vmatpush1.msra.mxu0 0.0
    %3464 = vmatprep.subr.mxu0 0.0
    %3465 = vmatpush1.msra.mxu0 0.0
    %3466 = vmatprep.subr.mxu0 0.0
    %3467 = vmatpush1.msra.mxu0 0.0
    %3468 = vmatprep.subr.mxu0 0.0
    %3469 = vmatpush1.msra.mxu0 0.0
    %3470 = vmatprep.subr.mxu0 0.0
    %3471 = vmatpush1.msra.mxu0 0.0
    %3472 = vmatprep.subr.mxu0 0.0
    %3473 = vmatpush1.msra.mxu0 0.0
    %3474 = vmatprep.subr.mxu0 0.0
    %3475 = vmatpush1.msra.mxu0 0.0
    %3476 = vmatprep.subr.mxu0 0.0
    %3477 = vmatpush1.msra.mxu0 0.0
    %3478 = vmatprep.mubr.f32.mxu0 0.0
    %3479 = vmatmul.mubr.f32.gmra.mrb[0].mxu0 %v445
    %v3480 = vpop.f32.mrb[0].mxu0
    %v3481 = vadd.f32 %v3392, %v3480
    %v3482 = vpop.f32.mrb[0].mxu0
    %v3483 = vadd.f32 %v3394, %v3482
    %3484 = vmatprep.mubr.f32.mxu0 0.0
    %3485 = vmatmul.mubr.f32.gmra.mrb[0].mxu0 %v450
    %v3486 = vpop.f32.mrb[0].mxu0
    %v3487 = vadd.f32 %v3398, %v3486
    %v3488 = vpop.f32.mrb[0].mxu0
    %v3489 = vadd.f32 %v3400, %v3488
    %3490 = vmatprep.mubr.f32.mxu0 0.0
    %3491 = vmatmul.mubr.f32.gmra.mrb[0].mxu0 %v455
    %v3492 = vpop.f32.mrb[0].mxu0
    %v3493 = vadd.f32 %v3404, %v3492
    %v3494 = vpop.f32.mrb[0].mxu0
    %v3495 = vadd.f32 %v3406, %v3494
    %3496 = vmatprep.mubr.f32.mxu0 0.0
    %3497 = vmatmul.mubr.f32.gmra.mrb[0].mxu0 0.0
    %v3498 = vpop.f32.mrb[0].mxu0
    %v3499 = vadd.f32 %v3410, %v3498
    %v3500 = vpop.f32.mrb[0].mxu0
    %v3501 = vadd.f32 %v3412, %v3500
    %3502 = vdwg.mxu0
    %3503 = vmatprep.subr.mxu0 %v2839
    %3504 = vmatpush1.msra.mxu0 %v2838
    %3505 = vmatprep.subr.mxu0 %v2844
    %3506 = vmatpush1.msra.mxu0 %v2843
    %3507 = vmatprep.subr.mxu0 %v2849
    %3508 = vmatpush1.msra.mxu0 %v2848
    %3509 = vmatprep.subr.mxu0 %v2854
    %3510 = vmatpush1.msra.mxu0 %v2853
    %3511 = vmatprep.subr.mxu0 %v2859
    %3512 = vmatpush1.msra.mxu0 %v2858
    %3513 = vmatprep.subr.mxu0 %v2864
    %3514 = vmatpush1.msra.mxu0 %v2863
    %3515 = vmatprep.subr.mxu0 %v2869
    %3516 = vmatpush1.msra.mxu0 %v2868
    %3517 = vmatprep.subr.mxu0 %v2874
    %3518 = vmatpush1.msra.mxu0 %v2873
    %3519 = vmatprep.subr.mxu0 %v2879
    %3520 = vmatpush1.msra.mxu0 %v2878
    %3521 = vmatprep.subr.mxu0 %v2884
    %3522 = vmatpush1.msra.mxu0 %v2883
    %3523 = vmatprep.subr.mxu0 %v2889
    %3524 = vmatpush1.msra.mxu0 %v2888
    %3525 = vmatprep.subr.mxu0 %v2894
    %3526 = vmatpush1.msra.mxu0 %v2893
    %3527 = vmatprep.subr.mxu0 %v2899
    %3528 = vmatpush1.msra.mxu0 %v2898
    %3529 = vmatprep.subr.mxu0 %v2904
    %3530 = vmatpush1.msra.mxu0 %v2903
    %3531 = vmatprep.subr.mxu0 %v2909
    %3532 = vmatpush1.msra.mxu0 %v2908
    %3533 = vmatprep.subr.mxu0 %v2914
    %3534 = vmatpush1.msra.mxu0 %v2913
    %3535 = vmatprep.subr.mxu0 %v2919
    %3536 = vmatpush1.msra.mxu0 %v2918
    %3537 = vmatprep.subr.mxu0 %v2924
    %3538 = vmatpush1.msra.mxu0 %v2923
    %3539 = vmatprep.subr.mxu0 %v2929
    %3540 = vmatpush1.msra.mxu0 %v2928
    %3541 = vmatprep.subr.mxu0 %v2934
    %3542 = vmatpush1.msra.mxu0 %v2933
    %3543 = vmatprep.subr.mxu0 %v2939
    %3544 = vmatpush1.msra.mxu0 %v2938
    %3545 = vmatprep.subr.mxu0 %v2944
    %3546 = vmatpush1.msra.mxu0 %v2943
    %3547 = vmatprep.subr.mxu0 %v2949
    %3548 = vmatpush1.msra.mxu0 %v2948
    %3549 = vmatprep.subr.mxu0 %v2954
    %3550 = vmatpush1.msra.mxu0 %v2953
    %3551 = vmatprep.subr.mxu0 %v2959
    %3552 = vmatpush1.msra.mxu0 %v2958
    %3553 = vmatprep.subr.mxu0 %v2964
    %3554 = vmatpush1.msra.mxu0 %v2963
    %3555 = vmatprep.subr.mxu0 %v2969
    %3556 = vmatpush1.msra.mxu0 %v2968
    %3557 = vmatprep.subr.mxu0 %v2974
    %3558 = vmatpush1.msra.mxu0 %v2973
    %3559 = vmatprep.subr.mxu0 %v2979
    %3560 = vmatpush1.msra.mxu0 %v2978
    %3561 = vmatprep.subr.mxu0 %v2984
    %3562 = vmatpush1.msra.mxu0 %v2983
    %3563 = vmatprep.subr.mxu0 %v2989
    %3564 = vmatpush1.msra.mxu0 %v2988
    %3565 = vmatprep.subr.mxu0 %v2994
    %3566 = vmatpush1.msra.mxu0 %v2993
    %3567 = vmatprep.mubr.f32.mxu0 %v442
    %3568 = vmatmul.mubr.f32.gmra.mrb[0].mxu0 %v441
    %v3569 = vpop.f32.mrb[0].mxu0
    %v3570 = vadd.f32 0.0, %v3569
    %v3571 = vpop.f32.mrb[0].mxu0
    %v3572 = vadd.f32 0.0, %v3571
    %3573 = vmatprep.mubr.f32.mxu0 %v447
    %3574 = vmatmul.mubr.f32.gmra.mrb[0].mxu0 %v446
    %v3575 = vpop.f32.mrb[0].mxu0
    %v3576 = vadd.f32 0.0, %v3575
    %v3577 = vpop.f32.mrb[0].mxu0
    %v3578 = vadd.f32 0.0, %v3577
    %3579 = vmatprep.mubr.f32.mxu0 %v452
    %3580 = vmatmul.mubr.f32.gmra.mrb[0].mxu0 %v451
    %v3581 = vpop.f32.mrb[0].mxu0
    %v3582 = vadd.f32 0.0, %v3581
    %v3583 = vpop.f32.mrb[0].mxu0
    %v3584 = vadd.f32 0.0, %v3583
    %3585 = vmatprep.mubr.f32.mxu0 0.0
    %3586 = vmatmul.mubr.f32.gmra.mrb[0].mxu0 0.0
    %v3587 = vpop.f32.mrb[0].mxu0
    %v3588 = vadd.f32 0.0, %v3587
    %v3589 = vpop.f32.mrb[0].mxu0
    %v3590 = vadd.f32 0.0, %v3589
    %3591 = vdwg.mxu0
    %3592 = vmatprep.subr.mxu0 %v2999
    %3593 = vmatpush1.msra.mxu0 %v2998
    %3594 = vmatprep.subr.mxu0 %v3004
    %3595 = vmatpush1.msra.mxu0 %v3003
    %3596 = vmatprep.subr.mxu0 %v3009
    %3597 = vmatpush1.msra.mxu0 %v3008
    %3598 = vmatprep.subr.mxu0 %v3014
    %3599 = vmatpush1.msra.mxu0 %v3013
    %3600 = vmatprep.subr.mxu0 %v3019
    %3601 = vmatpush1.msra.mxu0 %v3018
    %3602 = vmatprep.subr.mxu0 %v3024
    %3603 = vmatpush1.msra.mxu0 %v3023
    %3604 = vmatprep.subr.mxu0 %v3029
    %3605 = vmatpush1.msra.mxu0 %v3028
    %3606 = vmatprep.subr.mxu0 %v3034
    %3607 = vmatpush1.msra.mxu0 %v3033
    %3608 = vmatprep.subr.mxu0 %v3039
    %3609 = vmatpush1.msra.mxu0 %v3038
    %3610 = vmatprep.subr.mxu0 %v3044
    %3611 = vmatpush1.msra.mxu0 %v3043
    %3612 = vmatprep.subr.mxu0 %v3049
    %3613 = vmatpush1.msra.mxu0 %v3048
    %3614 = vmatprep.subr.mxu0 %v3054
    %3615 = vmatpush1.msra.mxu0 %v3053
    %3616 = vmatprep.subr.mxu0 %v3059
    %3617 = vmatpush1.msra.mxu0 %v3058
    %3618 = vmatprep.subr.mxu0 %v3064
    %3619 = vmatpush1.msra.mxu0 %v3063
    %3620 = vmatprep.subr.mxu0 %v3069
    %3621 = vmatpush1.msra.mxu0 %v3068
    %3622 = vmatprep.subr.mxu0 %v3074
    %3623 = vmatpush1.msra.mxu0 %v3073
    %3624 = vmatprep.subr.mxu0 %v3079
    %3625 = vmatpush1.msra.mxu0 %v3078
    %3626 = vmatprep.subr.mxu0 %v3084
    %3627 = vmatpush1.msra.mxu0 %v3083
    %3628 = vmatprep.subr.mxu0 %v3089
    %3629 = vmatpush1.msra.mxu0 %v3088
    %3630 = vmatprep.subr.mxu0 %v3094
    %3631 = vmatpush1.msra.mxu0 %v3093
    %3632 = vmatprep.subr.mxu0 %v3099
    %3633 = vmatpush1.msra.mxu0 %v3098
    %3634 = vmatprep.subr.mxu0 %v3104
    %3635 = vmatpush1.msra.mxu0 %v3103
    %3636 = vmatprep.subr.mxu0 %v3109
    %3637 = vmatpush1.msra.mxu0 %v3108
    %3638 = vmatprep.subr.mxu0 %v3114
    %3639 = vmatpush1.msra.mxu0 %v3113
    %3640 = vmatprep.subr.mxu0 %v3119
    %3641 = vmatpush1.msra.mxu0 %v3118
    %3642 = vmatprep.subr.mxu0 %v3124
    %3643 = vmatpush1.msra.mxu0 %v3123
    %3644 = vmatprep.subr.mxu0 %v3129
    %3645 = vmatpush1.msra.mxu0 %v3128
    %3646 = vmatprep.subr.mxu0 %v3134
    %3647 = vmatpush1.msra.mxu0 %v3133
    %3648 = vmatprep.subr.mxu0 %v3139
    %3649 = vmatpush1.msra.mxu0 %v3138
    %3650 = vmatprep.subr.mxu0 %v3144
    %3651 = vmatpush1.msra.mxu0 %v3143
    %3652 = vmatprep.subr.mxu0 %v3149
    %3653 = vmatpush1.msra.mxu0 %v3148
    %3654 = vmatprep.subr.mxu0 %v3154
    %3655 = vmatpush1.msra.mxu0 %v3153
    %3656 = vmatprep.mubr.f32.mxu0 %v444
    %3657 = vmatmul.mubr.f32.gmra.mrb[0].mxu0 %v443
    %v3658 = vpop.f32.mrb[0].mxu0
    %v3659 = vadd.f32 %v3570, %v3658
    %v3660 = vpop.f32.mrb[0].mxu0
    %v3661 = vadd.f32 %v3572, %v3660
    %3662 = vmatprep.mubr.f32.mxu0 %v449
    %3663 = vmatmul.mubr.f32.gmra.mrb[0].mxu0 %v448
    %v3664 = vpop.f32.mrb[0].mxu0
    %v3665 = vadd.f32 %v3576, %v3664
    %v3666 = vpop.f32.mrb[0].mxu0
    %v3667 = vadd.f32 %v3578, %v3666
    %3668 = vmatprep.mubr.f32.mxu0 %v454
    %3669 = vmatmul.mubr.f32.gmra.mrb[0].mxu0 %v453
    %v3670 = vpop.f32.mrb[0].mxu0
    %v3671 = vadd.f32 %v3582, %v3670
    %v3672 = vpop.f32.mrb[0].mxu0
    %v3673 = vadd.f32 %v3584, %v3672
    %3674 = vmatprep.mubr.f32.mxu0 0.0
    %3675 = vmatmul.mubr.f32.gmra.mrb[0].mxu0 0.0
    %v3676 = vpop.f32.mrb[0].mxu0
    %v3677 = vadd.f32 %v3588, %v3676
    %v3678 = vpop.f32.mrb[0].mxu0
    %v3679 = vadd.f32 %v3590, %v3678
    %3680 = vdwg.mxu0
    %3681 = vmatprep.subr.mxu0 %v3159
    %3682 = vmatpush1.msra.mxu0 %v3158
    %3683 = vmatprep.subr.mxu0 %v3164
    %3684 = vmatpush1.msra.mxu0 %v3163
    %3685 = vmatprep.subr.mxu0 %v3169
    %3686 = vmatpush1.msra.mxu0 %v3168
    %3687 = vmatprep.subr.mxu0 %v3174
    %3688 = vmatpush1.msra.mxu0 %v3173
    %3689 = vmatprep.subr.mxu0 %v3179
    %3690 = vmatpush1.msra.mxu0 %v3178
    %3691 = vmatprep.subr.mxu0 %v3184
    %3692 = vmatpush1.msra.mxu0 %v3183
    %3693 = vmatprep.subr.mxu0 %v3189
    %3694 = vmatpush1.msra.mxu0 %v3188
    %3695 = vmatprep.subr.mxu0 %v3194
    %3696 = vmatpush1.msra.mxu0 %v3193
    %3697 = vmatprep.subr.mxu0 %v3199
    %3698 = vmatpush1.msra.mxu0 %v3198
    %3699 = vmatprep.subr.mxu0 %v3204
    %3700 = vmatpush1.msra.mxu0 %v3203
    %3701 = vmatprep.subr.mxu0 %v3209
    %3702 = vmatpush1.msra.mxu0 %v3208
    %3703 = vmatprep.subr.mxu0 %v3214
    %3704 = vmatpush1.msra.mxu0 %v3213
    %3705 = vmatprep.subr.mxu0 %v3219
    %3706 = vmatpush1.msra.mxu0 %v3218
    %3707 = vmatprep.subr.mxu0 %v3224
    %3708 = vmatpush1.msra.mxu0 %v3223
    %3709 = vmatprep.subr.mxu0 %v3229
    %3710 = vmatpush1.msra.mxu0 %v3228
    %3711 = vmatprep.subr.mxu0 %v3234
    %3712 = vmatpush1.msra.mxu0 %v3233
    %3713 = vmatprep.subr.mxu0 0.0
    %3714 = vmatpush1.msra.mxu0 0.0
    %3715 = vmatprep.subr.mxu0 0.0
    %3716 = vmatpush1.msra.mxu0 0.0
    %3717 = vmatprep.subr.mxu0 0.0
    %3718 = vmatpush1.msra.mxu0 0.0
    %3719 = vmatprep.subr.mxu0 0.0
    %3720 = vmatpush1.msra.mxu0 0.0
    %3721 = vmatprep.subr.mxu0 0.0
    %3722 = vmatpush1.msra.mxu0 0.0
    %3723 = vmatprep.subr.mxu0 0.0
    %3724 = vmatpush1.msra.mxu0 0.0
    %3725 = vmatprep.subr.mxu0 0.0
    %3726 = vmatpush1.msra.mxu0 0.0
    %3727 = vmatprep.subr.mxu0 0.0
    %3728 = vmatpush1.msra.mxu0 0.0
    %3729 = vmatprep.subr.mxu0 0.0
    %3730 = vmatpush1.msra.mxu0 0.0
    %3731 = vmatprep.subr.mxu0 0.0
    %3732 = vmatpush1.msra.mxu0 0.0
    %3733 = vmatprep.subr.mxu0 0.0
    %3734 = vmatpush1.msra.mxu0 0.0
    %3735 = vmatprep.subr.mxu0 0.0
    %3736 = vmatpush1.msra.mxu0 0.0
    %3737 = vmatprep.subr.mxu0 0.0
    %3738 = vmatpush1.msra.mxu0 0.0
    %3739 = vmatprep.subr.mxu0 0.0
    %3740 = vmatpush1.msra.mxu0 0.0
    %3741 = vmatprep.subr.mxu0 0.0
    %3742 = vmatpush1.msra.mxu0 0.0
    %3743 = vmatprep.subr.mxu0 0.0
    %3744 = vmatpush1.msra.mxu0 0.0
    %3745 = vmatprep.mubr.f32.mxu0 0.0
    %3746 = vmatmul.mubr.f32.gmra.mrb[0].mxu0 %v445
    %v3747 = vpop.f32.mrb[0].mxu0
    %v3748 = vadd.f32 %v3659, %v3747
    %v3749 = vpop.f32.mrb[0].mxu0
    %v3750 = vadd.f32 %v3661, %v3749
    %3751 = vmatprep.mubr.f32.mxu0 0.0
    %3752 = vmatmul.mubr.f32.gmra.mrb[0].mxu0 %v450
    %v3753 = vpop.f32.mrb[0].mxu0
    %v3754 = vadd.f32 %v3665, %v3753
    %v3755 = vpop.f32.mrb[0].mxu0
    %v3756 = vadd.f32 %v3667, %v3755
    %3757 = vmatprep.mubr.f32.mxu0 0.0
    %3758 = vmatmul.mubr.f32.gmra.mrb[0].mxu0 %v455
    %v3759 = vpop.f32.mrb[0].mxu0
    %v3760 = vadd.f32 %v3671, %v3759
    %v3761 = vpop.f32.mrb[0].mxu0
    %v3762 = vadd.f32 %v3673, %v3761
    %3763 = vmatprep.mubr.f32.mxu0 0.0
    %3764 = vmatmul.mubr.f32.gmra.mrb[0].mxu0 0.0
    %v3765 = vpop.f32.mrb[0].mxu0
    %v3766 = vadd.f32 %v3677, %v3765
    %v3767 = vpop.f32.mrb[0].mxu0
    %v3768 = vadd.f32 %v3679, %v3767
    %3769 = vdwg.mxu0
    %3770 = vmatprep.subr.mxu0 0.0
    %3771 = vmatpush1.msra.mxu0 %v2840
    %3772 = vmatprep.subr.mxu0 0.0
    %3773 = vmatpush1.msra.mxu0 %v2845
    %3774 = vmatprep.subr.mxu0 0.0
    %3775 = vmatpush1.msra.mxu0 %v2850
    %3776 = vmatprep.subr.mxu0 0.0
    %3777 = vmatpush1.msra.mxu0 %v2855
    %3778 = vmatprep.subr.mxu0 0.0
    %3779 = vmatpush1.msra.mxu0 %v2860
    %3780 = vmatprep.subr.mxu0 0.0
    %3781 = vmatpush1.msra.mxu0 %v2865
    %3782 = vmatprep.subr.mxu0 0.0
    %3783 = vmatpush1.msra.mxu0 %v2870
    %3784 = vmatprep.subr.mxu0 0.0
    %3785 = vmatpush1.msra.mxu0 %v2875
    %3786 = vmatprep.subr.mxu0 0.0
    %3787 = vmatpush1.msra.mxu0 %v2880
    %3788 = vmatprep.subr.mxu0 0.0
    %3789 = vmatpush1.msra.mxu0 %v2885
    %3790 = vmatprep.subr.mxu0 0.0
    %3791 = vmatpush1.msra.mxu0 %v2890
    %3792 = vmatprep.subr.mxu0 0.0
    %3793 = vmatpush1.msra.mxu0 %v2895
    %3794 = vmatprep.subr.mxu0 0.0
    %3795 = vmatpush1.msra.mxu0 %v2900
    %3796 = vmatprep.subr.mxu0 0.0
    %3797 = vmatpush1.msra.mxu0 %v2905
    %3798 = vmatprep.subr.mxu0 0.0
    %3799 = vmatpush1.msra.mxu0 %v2910
    %3800 = vmatprep.subr.mxu0 0.0
    %3801 = vmatpush1.msra.mxu0 %v2915
    %3802 = vmatprep.subr.mxu0 0.0
    %3803 = vmatpush1.msra.mxu0 %v2920
    %3804 = vmatprep.subr.mxu0 0.0
    %3805 = vmatpush1.msra.mxu0 %v2925
    %3806 = vmatprep.subr.mxu0 0.0
    %3807 = vmatpush1.msra.mxu0 %v2930
    %3808 = vmatprep.subr.mxu0 0.0
    %3809 = vmatpush1.msra.mxu0 %v2935
    %3810 = vmatprep.subr.mxu0 0.0
    %3811 = vmatpush1.msra.mxu0 %v2940
    %3812 = vmatprep.subr.mxu0 0.0
    %3813 = vmatpush1.msra.mxu0 %v2945
    %3814 = vmatprep.subr.mxu0 0.0
    %3815 = vmatpush1.msra.mxu0 %v2950
    %3816 = vmatprep.subr.mxu0 0.0
    %3817 = vmatpush1.msra.mxu0 %v2955
    %3818 = vmatprep.subr.mxu0 0.0
    %3819 = vmatpush1.msra.mxu0 %v2960
    %3820 = vmatprep.subr.mxu0 0.0
    %3821 = vmatpush1.msra.mxu0 %v2965
    %3822 = vmatprep.subr.mxu0 0.0
    %3823 = vmatpush1.msra.mxu0 %v2970
    %3824 = vmatprep.subr.mxu0 0.0
    %3825 = vmatpush1.msra.mxu0 %v2975
    %3826 = vmatprep.subr.mxu0 0.0
    %3827 = vmatpush1.msra.mxu0 %v2980
    %3828 = vmatprep.subr.mxu0 0.0
    %3829 = vmatpush1.msra.mxu0 %v2985
    %3830 = vmatprep.subr.mxu0 0.0
    %3831 = vmatpush1.msra.mxu0 %v2990
    %3832 = vmatprep.subr.mxu0 0.0
    %3833 = vmatpush1.msra.mxu0 %v2995
    %3834 = vmatprep.mubr.f32.mxu0 %v442
    %3835 = vmatmul.mubr.f32.gmra.mrb[0].mxu0 %v441
    %v3836 = vpop.f32.mrb[0].mxu0
    %v3837 = vadd.f32 0.0, %v3836
    %v3838 = vpop.f32.mrb[0].mxu0
    %3839 = vmatprep.mubr.f32.mxu0 %v447
    %3840 = vmatmul.mubr.f32.gmra.mrb[0].mxu0 %v446
    %v3841 = vpop.f32.mrb[0].mxu0
    %v3842 = vadd.f32 0.0, %v3841
    %v3843 = vpop.f32.mrb[0].mxu0
    %3844 = vmatprep.mubr.f32.mxu0 %v452
    %3845 = vmatmul.mubr.f32.gmra.mrb[0].mxu0 %v451
    %v3846 = vpop.f32.mrb[0].mxu0
    %v3847 = vadd.f32 0.0, %v3846
    %v3848 = vpop.f32.mrb[0].mxu0
    %3849 = vmatprep.mubr.f32.mxu0 0.0
    %3850 = vmatmul.mubr.f32.gmra.mrb[0].mxu0 0.0
    %v3851 = vpop.f32.mrb[0].mxu0
    %v3852 = vadd.f32 0.0, %v3851
    %v3853 = vpop.f32.mrb[0].mxu0
    %3854 = vdwg.mxu0
    %3855 = vmatprep.subr.mxu0 0.0
    %3856 = vmatpush1.msra.mxu0 %v3000
    %3857 = vmatprep.subr.mxu0 0.0
    %3858 = vmatpush1.msra.mxu0 %v3005
    %3859 = vmatprep.subr.mxu0 0.0
    %3860 = vmatpush1.msra.mxu0 %v3010
    %3861 = vmatprep.subr.mxu0 0.0
    %3862 = vmatpush1.msra.mxu0 %v3015
    %3863 = vmatprep.subr.mxu0 0.0
    %3864 = vmatpush1.msra.mxu0 %v3020
    %3865 = vmatprep.subr.mxu0 0.0
    %3866 = vmatpush1.msra.mxu0 %v3025
    %3867 = vmatprep.subr.mxu0 0.0
    %3868 = vmatpush1.msra.mxu0 %v3030
    %3869 = vmatprep.subr.mxu0 0.0
    %3870 = vmatpush1.msra.mxu0 %v3035
    %3871 = vmatprep.subr.mxu0 0.0
    %3872 = vmatpush1.msra.mxu0 %v3040
    %3873 = vmatprep.subr.mxu0 0.0
    %3874 = vmatpush1.msra.mxu0 %v3045
    %3875 = vmatprep.subr.mxu0 0.0
    %3876 = vmatpush1.msra.mxu0 %v3050
    %3877 = vmatprep.subr.mxu0 0.0
    %3878 = vmatpush1.msra.mxu0 %v3055
    %3879 = vmatprep.subr.mxu0 0.0
    %3880 = vmatpush1.msra.mxu0 %v3060
    %3881 = vmatprep.subr.mxu0 0.0
    %3882 = vmatpush1.msra.mxu0 %v3065
    %3883 = vmatprep.subr.mxu0 0.0
    %3884 = vmatpush1.msra.mxu0 %v3070
    %3885 = vmatprep.subr.mxu0 0.0
    %3886 = vmatpush1.msra.mxu0 %v3075
    %3887 = vmatprep.subr.mxu0 0.0
    %3888 = vmatpush1.msra.mxu0 %v3080
    %3889 = vmatprep.subr.mxu0 0.0
    %3890 = vmatpush1.msra.mxu0 %v3085
    %3891 = vmatprep.subr.mxu0 0.0
    %3892 = vmatpush1.msra.mxu0 %v3090
    %3893 = vmatprep.subr.mxu0 0.0
    %3894 = vmatpush1.msra.mxu0 %v3095
    %3895 = vmatprep.subr.mxu0 0.0
    %3896 = vmatpush1.msra.mxu0 %v3100
    %3897 = vmatprep.subr.mxu0 0.0
    %3898 = vmatpush1.msra.mxu0 %v3105
    %3899 = vmatprep.subr.mxu0 0.0
    %3900 = vmatpush1.msra.mxu0 %v3110
    %3901 = vmatprep.subr.mxu0 0.0
    %3902 = vmatpush1.msra.mxu0 %v3115
    %3903 = vmatprep.subr.mxu0 0.0
    %3904 = vmatpush1.msra.mxu0 %v3120
    %3905 = vmatprep.subr.mxu0 0.0
    %3906 = vmatpush1.msra.mxu0 %v3125
    %3907 = vmatprep.subr.mxu0 0.0
    %3908 = vmatpush1.msra.mxu0 %v3130
    %3909 = vmatprep.subr.mxu0 0.0
    %3910 = vmatpush1.msra.mxu0 %v3135
    %3911 = vmatprep.subr.mxu0 0.0
    %3912 = vmatpush1.msra.mxu0 %v3140
    %3913 = vmatprep.subr.mxu0 0.0
    %3914 = vmatpush1.msra.mxu0 %v3145
    %3915 = vmatprep.subr.mxu0 0.0
    %3916 = vmatpush1.msra.mxu0 %v3150
    %3917 = vmatprep.subr.mxu0 0.0
    %3918 = vmatpush1.msra.mxu0 %v3155
    %3919 = vmatprep.mubr.f32.mxu0 %v444
    %3920 = vmatmul.mubr.f32.gmra.mrb[0].mxu0 %v443
    %v3921 = vpop.f32.mrb[0].mxu0
    %v3922 = vadd.f32 %v3837, %v3921
    %v3923 = vpop.f32.mrb[0].mxu0
    %3924 = vmatprep.mubr.f32.mxu0 %v449
    %3925 = vmatmul.mubr.f32.gmra.mrb[0].mxu0 %v448
    %v3926 = vpop.f32.mrb[0].mxu0
    %v3927 = vadd.f32 %v3842, %v3926
    %v3928 = vpop.f32.mrb[0].mxu0
    %3929 = vmatprep.mubr.f32.mxu0 %v454
    %3930 = vmatmul.mubr.f32.gmra.mrb[0].mxu0 %v453
    %v3931 = vpop.f32.mrb[0].mxu0
    %v3932 = vadd.f32 %v3847, %v3931
    %v3933 = vpop.f32.mrb[0].mxu0
    %3934 = vmatprep.mubr.f32.mxu0 0.0
    %3935 = vmatmul.mubr.f32.gmra.mrb[0].mxu0 0.0
    %v3936 = vpop.f32.mrb[0].mxu0
    %v3937 = vadd.f32 %v3852, %v3936
    %v3938 = vpop.f32.mrb[0].mxu0
    %3939 = vdwg.mxu0
    %3940 = vmatprep.subr.mxu0 0.0
    %3941 = vmatpush1.msra.mxu0 %v3160
    %3942 = vmatprep.subr.mxu0 0.0
    %3943 = vmatpush1.msra.mxu0 %v3165
    %3944 = vmatprep.subr.mxu0 0.0
    %3945 = vmatpush1.msra.mxu0 %v3170
    %3946 = vmatprep.subr.mxu0 0.0
    %3947 = vmatpush1.msra.mxu0 %v3175
    %3948 = vmatprep.subr.mxu0 0.0
    %3949 = vmatpush1.msra.mxu0 %v3180
    %3950 = vmatprep.subr.mxu0 0.0
    %3951 = vmatpush1.msra.mxu0 %v3185
    %3952 = vmatprep.subr.mxu0 0.0
    %3953 = vmatpush1.msra.mxu0 %v3190
    %3954 = vmatprep.subr.mxu0 0.0
    %3955 = vmatpush1.msra.mxu0 %v3195
    %3956 = vmatprep.subr.mxu0 0.0
    %3957 = vmatpush1.msra.mxu0 %v3200
    %3958 = vmatprep.subr.mxu0 0.0
    %3959 = vmatpush1.msra.mxu0 %v3205
    %3960 = vmatprep.subr.mxu0 0.0
    %3961 = vmatpush1.msra.mxu0 %v3210
    %3962 = vmatprep.subr.mxu0 0.0
    %3963 = vmatpush1.msra.mxu0 %v3215
    %3964 = vmatprep.subr.mxu0 0.0
    %3965 = vmatpush1.msra.mxu0 %v3220
    %3966 = vmatprep.subr.mxu0 0.0
    %3967 = vmatpush1.msra.mxu0 %v3225
    %3968 = vmatprep.subr.mxu0 0.0
    %3969 = vmatpush1.msra.mxu0 %v3230
    %3970 = vmatprep.subr.mxu0 0.0
    %3971 = vmatpush1.msra.mxu0 %v3235
    %3972 = vmatprep.subr.mxu0 0.0
    %3973 = vmatpush1.msra.mxu0 0.0
    %3974 = vmatprep.subr.mxu0 0.0
    %3975 = vmatpush1.msra.mxu0 0.0
    %3976 = vmatprep.subr.mxu0 0.0
    %3977 = vmatpush1.msra.mxu0 0.0
    %3978 = vmatprep.subr.mxu0 0.0
    %3979 = vmatpush1.msra.mxu0 0.0
    %3980 = vmatprep.subr.mxu0 0.0
    %3981 = vmatpush1.msra.mxu0 0.0
    %3982 = vmatprep.subr.mxu0 0.0
    %3983 = vmatpush1.msra.mxu0 0.0
    %3984 = vmatprep.subr.mxu0 0.0
    %3985 = vmatpush1.msra.mxu0 0.0
    %3986 = vmatprep.subr.mxu0 0.0
    %3987 = vmatpush1.msra.mxu0 0.0
    %3988 = vmatprep.subr.mxu0 0.0
    %3989 = vmatpush1.msra.mxu0 0.0
    %3990 = vmatprep.subr.mxu0 0.0
    %3991 = vmatpush1.msra.mxu0 0.0
    %3992 = vmatprep.subr.mxu0 0.0
    %3993 = vmatpush1.msra.mxu0 0.0
    %3994 = vmatprep.subr.mxu0 0.0
    %3995 = vmatpush1.msra.mxu0 0.0
    %3996 = vmatprep.subr.mxu0 0.0
    %3997 = vmatpush1.msra.mxu0 0.0
    %3998 = vmatprep.subr.mxu0 0.0
    %3999 = vmatpush1.msra.mxu0 0.0
    %4000 = vmatprep.subr.mxu0 0.0
    %4001 = vmatpush1.msra.mxu0 0.0
    %4002 = vmatprep.subr.mxu0 0.0
    %4003 = vmatpush1.msra.mxu0 0.0
    %4004 = vmatprep.mubr.f32.mxu0 0.0
    %4005 = vmatmul.mubr.f32.gmra.mrb[0].mxu0 %v445
    %v4006 = vpop.f32.mrb[0].mxu0
    %v4007 = vadd.f32 %v3922, %v4006
    %v4008 = vpop.f32.mrb[0].mxu0
    %4009 = vmatprep.mubr.f32.mxu0 0.0
    %4010 = vmatmul.mubr.f32.gmra.mrb[0].mxu0 %v450
    %v4011 = vpop.f32.mrb[0].mxu0
    %v4012 = vadd.f32 %v3927, %v4011
    %v4013 = vpop.f32.mrb[0].mxu0
    %4014 = vmatprep.mubr.f32.mxu0 0.0
    %4015 = vmatmul.mubr.f32.gmra.mrb[0].mxu0 %v455
    %v4016 = vpop.f32.mrb[0].mxu0
    %v4017 = vadd.f32 %v3932, %v4016
    %v4018 = vpop.f32.mrb[0].mxu0
    %4019 = vmatprep.mubr.f32.mxu0 0.0
    %4020 = vmatmul.mubr.f32.gmra.mrb[0].mxu0 0.0
    %v4021 = vpop.f32.mrb[0].mxu0
    %v4022 = vadd.f32 %v3937, %v4021
    %v4023 = vpop.f32.mrb[0].mxu0
    %4024 = vdwg.mxu0
    %v4025 = vadd.f32 %v2291, %v3481
    %v4026 = vadd.f32 %v2293, %v3483
    %v4027 = vadd.f32 %v2558, %v3748
    %v4028 = vadd.f32 %v2560, %v3750
    %v4029 = vadd.f32 %v2817, %v4007
    %v4030 = vadd.f32 %v2297, %v3487
    %v4031 = vadd.f32 %v2299, %v3489
    %v4032 = vadd.f32 %v2564, %v3754
    %v4033 = vadd.f32 %v2566, %v3756
    %v4034 = vadd.f32 %v2822, %v4012
    %v4035 = vadd.f32 %v2303, %v3493
    %v4036 = vadd.f32 %v2305, %v3495
    %v4037 = vadd.f32 %v2570, %v3760
    %v4038 = vadd.f32 %v2572, %v3762
    %v4039 = vadd.f32 %v2827, %v4017
    %v4040 = vadd.f32 %v2309, %v3499
    %v4041 = vadd.f32 %v2311, %v3501
    %v4042 = vadd.f32 %v2576, %v3766
    %v4043 = vadd.f32 %v2578, %v3768
    %v4044 = vadd.f32 %v2832, %v4022
    %s4045 = scalar_lea.vmem %s3, 9600
    %v4046 = vld [vmem:[%s4045] sm:$0xff]
    %v4047 = vld [vmem:[%s4045 + $0x8] sm:$0xff]
    %v4048 = vld [vmem:[%s4045 + $0x10] sm:$0xff]
    %v4049 = vld [vmem:[%s4045 + $0x18] sm:$0xff]
    %v4050 = vld [vmem:[%s4045 + $0x20] sm:$0xff]
    %v4051 = vld [vmem:[%s4045 + $0x28] sm:$0xff]
    %v4052 = vld [vmem:[%s4045 + $0x30] sm:$0xff]
    %v4053 = vld [vmem:[%s4045 + $0x38] sm:$0xff]
    %v4054 = vld [vmem:[%s4045 + $0x40] sm:$0xff]
    %v4055 = vld [vmem:[%s4045 + $0x48] sm:$0xff]
    %v4056 = vld [vmem:[%s4045 + $0x50] sm:$0xff]
    %v4057 = vld [vmem:[%s4045 + $0x58] sm:$0xff]
    %v4058 = vld [vmem:[%s4045 + $0x60] sm:$0xff]
    %v4059 = vld [vmem:[%s4045 + $0x68] sm:$0xff]
    %v4060 = vld [vmem:[%s4045 + $0x70] sm:$0xff]
    %v4061 = vld [vmem:[%s4045 + $0x78] sm:$0xff]
    %v4062 = vld [vmem:[%s4045 + $0x80] sm:$0xff]
    %v4063 = vld [vmem:[%s4045 + $0x88] sm:$0xff]
    %v4064 = vld [vmem:[%s4045 + $0x90] sm:$0xff]
    %v4065 = vld [vmem:[%s4045 + $0x98] sm:$0xff]
    %v4066 = vld [vmem:[%s4045 + $0xa0] sm:$0xff]
    %v4067 = vld [vmem:[%s4045 + $0xa8] sm:$0xff]
    %v4068 = vld [vmem:[%s4045 + $0xb0] sm:$0xff]
    %v4069 = vld [vmem:[%s4045 + $0xb8] sm:$0xff]
    %v4070 = vld [vmem:[%s4045 + $0xc0] sm:$0xff]
    %v4071 = vld [vmem:[%s4045 + $0xc8] sm:$0xff]
    %v4072 = vld [vmem:[%s4045 + $0xd0] sm:$0xff]
    %v4073 = vld [vmem:[%s4045 + $0xd8] sm:$0xff]
    %v4074 = vld [vmem:[%s4045 + $0xe0] sm:$0xff]
    %v4075 = vld [vmem:[%s4045 + $0xe8] sm:$0xff]
    %v4076 = vld [vmem:[%s4045 + $0xf0] sm:$0xff]
    %v4077 = vld [vmem:[%s4045 + $0xf8] sm:$0xff]
    %v4078 = vld [vmem:[%s4045 + $0x100] sm:$0xff]
    %v4079 = vld [vmem:[%s4045 + $0x108] sm:$0xff]
    %v4080 = vld [vmem:[%s4045 + $0x110] sm:$0xff]
    %v4081 = vld [vmem:[%s4045 + $0x118] sm:$0xff]
    %v4082 = vld [vmem:[%s4045 + $0x120] sm:$0xff]
    %v4083 = vld [vmem:[%s4045 + $0x128] sm:$0xff]
    %v4084 = vld [vmem:[%s4045 + $0x130] sm:$0xff]
    %v4085 = vld [vmem:[%s4045 + $0x138] sm:$0xff]
    %v4086 = vld [vmem:[%s4045 + $0x140] sm:$0xff]
    %v4087 = vld [vmem:[%s4045 + $0x148] sm:$0xff]
    %v4088 = vld [vmem:[%s4045 + $0x150] sm:$0xff]
    %v4089 = vld [vmem:[%s4045 + $0x158] sm:$0xff]
    %v4090 = vld [vmem:[%s4045 + $0x160] sm:$0xff]
    %v4091 = vld [vmem:[%s4045 + $0x168] sm:$0xff]
    %v4092 = vld [vmem:[%s4045 + $0x170] sm:$0xff]
    %v4093 = vld [vmem:[%s4045 + $0x178] sm:$0xff]
    %v4094 = vld [vmem:[%s4045 + $0x180] sm:$0xff]
    %v4095 = vld [vmem:[%s4045 + $0x188] sm:$0xff]
    %v4096 = vld [vmem:[%s4045 + $0x190] sm:$0xff]
    %v4097 = vld [vmem:[%s4045 + $0x198] sm:$0xff]
    %v4098 = vld [vmem:[%s4045 + $0x1a0] sm:$0xff]
    %v4099 = vld [vmem:[%s4045 + $0x1a8] sm:$0xff]
    %v4100 = vld [vmem:[%s4045 + $0x1b0] sm:$0xff]
    %v4101 = vld [vmem:[%s4045 + $0x1b8] sm:$0xff]
    %v4102 = vld [vmem:[%s4045 + $0x1c0] sm:$0xff]
    %v4103 = vld [vmem:[%s4045 + $0x1c8] sm:$0xff]
    %v4104 = vld [vmem:[%s4045 + $0x1d0] sm:$0xff]
    %v4105 = vld [vmem:[%s4045 + $0x1d8] sm:$0xff]
    %v4106 = vld [vmem:[%s4045 + $0x1e0] sm:$0xff]
    %v4107 = vld [vmem:[%s4045 + $0x1e8] sm:$0xff]
    %v4108 = vld [vmem:[%s4045 + $0x1f0] sm:$0xff]
    %v4109 = vld [vmem:[%s4045 + $0x1f8] sm:$0xff]
    %v4110 = vld [vmem:[%s4045 + $0x200] sm:$0xff]
    %v4111 = vld [vmem:[%s4045 + $0x208] sm:$0xff]
    %v4112 = vld [vmem:[%s4045 + $0x210] sm:$0xff]
    %v4113 = vld [vmem:[%s4045 + $0x218] sm:$0xff]
    %v4114 = vld [vmem:[%s4045 + $0x220] sm:$0xff]
    %v4115 = vld [vmem:[%s4045 + $0x228] sm:$0xff]
    %v4116 = vld [vmem:[%s4045 + $0x230] sm:$0xff]
    %v4117 = vld [vmem:[%s4045 + $0x238] sm:$0xff]
    %v4118 = vld [vmem:[%s4045 + $0x240] sm:$0xff]
    %v4119 = vld [vmem:[%s4045 + $0x248] sm:$0xff]
    %v4120 = vld [vmem:[%s4045 + $0x250] sm:$0xff]
    %v4121 = vld [vmem:[%s4045 + $0x258] sm:$0xff]
    %v4122 = vld [vmem:[%s4045 + $0x260] sm:$0xff]
    %v4123 = vld [vmem:[%s4045 + $0x268] sm:$0xff]
    %v4124 = vld [vmem:[%s4045 + $0x270] sm:$0xff]
    %v4125 = vld [vmem:[%s4045 + $0x278] sm:$0xff]
    %v4126 = vld [vmem:[%s4045 + $0x280] sm:$0xff]
    %v4127 = vld [vmem:[%s4045 + $0x288] sm:$0xff]
    %v4128 = vld [vmem:[%s4045 + $0x290] sm:$0xff]
    %v4129 = vld [vmem:[%s4045 + $0x298] sm:$0xff]
    %v4130 = vld [vmem:[%s4045 + $0x2a0] sm:$0xff]
    %v4131 = vld [vmem:[%s4045 + $0x2a8] sm:$0xff]
    %v4132 = vld [vmem:[%s4045 + $0x2b0] sm:$0xff]
    %v4133 = vld [vmem:[%s4045 + $0x2b8] sm:$0xff]
    %v4134 = vld [vmem:[%s4045 + $0x2c0] sm:$0xff]
    %v4135 = vld [vmem:[%s4045 + $0x2c8] sm:$0xff]
    %v4136 = vld [vmem:[%s4045 + $0x2d0] sm:$0xff]
    %v4137 = vld [vmem:[%s4045 + $0x2d8] sm:$0xff]
    %v4138 = vld [vmem:[%s4045 + $0x2e0] sm:$0xff]
    %v4139 = vld [vmem:[%s4045 + $0x2e8] sm:$0xff]
    %v4140 = vld [vmem:[%s4045 + $0x2f0] sm:$0xff]
    %v4141 = vld [vmem:[%s4045 + $0x2f8] sm:$0xff]
    %v4142 = vld [vmem:[%s4045 + $0x300] sm:$0xff]
    %v4143 = vld [vmem:[%s4045 + $0x308] sm:$0xff]
    %v4144 = vld [vmem:[%s4045 + $0x310] sm:$0xff]
    %v4145 = vld [vmem:[%s4045 + $0x318] sm:$0xff]
    %v4146 = vld [vmem:[%s4045 + $0x320] sm:$0xff]
    %v4147 = vld [vmem:[%s4045 + $0x328] sm:$0xff]
    %v4148 = vld [vmem:[%s4045 + $0x330] sm:$0xff]
    %v4149 = vld [vmem:[%s4045 + $0x338] sm:$0xff]
    %v4150 = vld [vmem:[%s4045 + $0x340] sm:$0xff]
    %v4151 = vld [vmem:[%s4045 + $0x348] sm:$0xff]
    %v4152 = vld [vmem:[%s4045 + $0x350] sm:$0xff]
    %v4153 = vld [vmem:[%s4045 + $0x358] sm:$0xff]
    %v4154 = vld [vmem:[%s4045 + $0x360] sm:$0xff]
    %v4155 = vld [vmem:[%s4045 + $0x368] sm:$0xff]
    %v4156 = vld [vmem:[%s4045 + $0x370] sm:$0xff]
    %v4157 = vld [vmem:[%s4045 + $0x378] sm:$0xff]
    %v4158 = vld [vmem:[%s4045 + $0x380] sm:$0xff]
    %v4159 = vld [vmem:[%s4045 + $0x388] sm:$0xff]
    %v4160 = vld [vmem:[%s4045 + $0x390] sm:$0xff]
    %v4161 = vld [vmem:[%s4045 + $0x398] sm:$0xff]
    %v4162 = vld [vmem:[%s4045 + $0x3a0] sm:$0xff]
    %v4163 = vld [vmem:[%s4045 + $0x3a8] sm:$0xff]
    %v4164 = vld [vmem:[%s4045 + $0x3b0] sm:$0xff]
    %v4165 = vld [vmem:[%s4045 + $0x3b8] sm:$0xff]
    %v4166 = vld [vmem:[%s4045 + $0x3c0] sm:$0xff]
    %v4167 = vld [vmem:[%s4045 + $0x3c8] sm:$0xff]
    %v4168 = vld [vmem:[%s4045 + $0x3d0] sm:$0xff]
    %v4169 = vld [vmem:[%s4045 + $0x3d8] sm:$0xff]
    %v4170 = vld [vmem:[%s4045 + $0x3e0] sm:$0xff]
    %v4171 = vld [vmem:[%s4045 + $0x3e8] sm:$0xff]
    %v4172 = vld [vmem:[%s4045 + $0x3f0] sm:$0xff]
    %v4173 = vld [vmem:[%s4045 + $0x3f8] sm:$0xff]
    %v4174 = vld [vmem:[%s4045 + $0x400] sm:$0xff]
    %v4175 = vld [vmem:[%s4045 + $0x408] sm:$0xff]
    %v4176 = vld [vmem:[%s4045 + $0x410] sm:$0xff]
    %v4177 = vld [vmem:[%s4045 + $0x418] sm:$0xff]
    %v4178 = vld [vmem:[%s4045 + $0x420] sm:$0xff]
    %v4179 = vld [vmem:[%s4045 + $0x428] sm:$0xff]
    %v4180 = vld [vmem:[%s4045 + $0x430] sm:$0xff]
    %v4181 = vld [vmem:[%s4045 + $0x438] sm:$0xff]
    %v4182 = vld [vmem:[%s4045 + $0x440] sm:$0xff]
    %v4183 = vld [vmem:[%s4045 + $0x448] sm:$0xff]
    %v4184 = vld [vmem:[%s4045 + $0x450] sm:$0xff]
    %v4185 = vld [vmem:[%s4045 + $0x458] sm:$0xff]
    %v4186 = vld [vmem:[%s4045 + $0x460] sm:$0xff]
    %v4187 = vld [vmem:[%s4045 + $0x468] sm:$0xff]
    %v4188 = vld [vmem:[%s4045 + $0x470] sm:$0xff]
    %v4189 = vld [vmem:[%s4045 + $0x478] sm:$0xff]
    %v4190 = vld [vmem:[%s4045 + $0x480] sm:$0xff]
    %v4191 = vld [vmem:[%s4045 + $0x488] sm:$0xff]
    %v4192 = vld [vmem:[%s4045 + $0x490] sm:$0xff]
    %v4193 = vld [vmem:[%s4045 + $0x498] sm:$0xff]
    %v4194 = vld [vmem:[%s4045 + $0x4a0] sm:$0xff]
    %v4195 = vld [vmem:[%s4045 + $0x4a8] sm:$0xff]
    %v4196 = vld [vmem:[%s4045 + $0x4b0] sm:$0xff]
    %v4197 = vld [vmem:[%s4045 + $0x4b8] sm:$0xff]
    %v4198 = vld [vmem:[%s4045 + $0x4c0] sm:$0xff]
    %v4199 = vld [vmem:[%s4045 + $0x4c8] sm:$0xff]
    %v4200 = vld [vmem:[%s4045 + $0x4d0] sm:$0xff]
    %v4201 = vld [vmem:[%s4045 + $0x4d8] sm:$0xff]
    %v4202 = vld [vmem:[%s4045 + $0x4e0] sm:$0xff]
    %v4203 = vld [vmem:[%s4045 + $0x4e8] sm:$0xff]
    %v4204 = vld [vmem:[%s4045 + $0x4f0] sm:$0xff]
    %v4205 = vld [vmem:[%s4045 + $0x4f8] sm:$0xff]
    %v4206 = vld [vmem:[%s4045 + $0x500] sm:$0xff]
    %v4207 = vld [vmem:[%s4045 + $0x508] sm:$0xff]
    %v4208 = vld [vmem:[%s4045 + $0x510] sm:$0xff]
    %v4209 = vld [vmem:[%s4045 + $0x518] sm:$0xff]
    %v4210 = vld [vmem:[%s4045 + $0x520] sm:$0xff]
    %v4211 = vld [vmem:[%s4045 + $0x528] sm:$0xff]
    %v4212 = vld [vmem:[%s4045 + $0x530] sm:$0xff]
    %v4213 = vld [vmem:[%s4045 + $0x538] sm:$0xff]
    %v4214 = vld [vmem:[%s4045 + $0x540] sm:$0xff]
    %v4215 = vld [vmem:[%s4045 + $0x548] sm:$0xff]
    %v4216 = vld [vmem:[%s4045 + $0x550] sm:$0xff]
    %v4217 = vld [vmem:[%s4045 + $0x558] sm:$0xff]
    %v4218 = vld [vmem:[%s4045 + $0x560] sm:$0xff]
    %v4219 = vld [vmem:[%s4045 + $0x568] sm:$0xff]
    %v4220 = vld [vmem:[%s4045 + $0x570] sm:$0xff]
    %v4221 = vld [vmem:[%s4045 + $0x578] sm:$0xff]
    %v4222 = vld [vmem:[%s4045 + $0x580] sm:$0xff]
    %v4223 = vld [vmem:[%s4045 + $0x588] sm:$0xff]
    %v4224 = vld [vmem:[%s4045 + $0x590] sm:$0xff]
    %v4225 = vld [vmem:[%s4045 + $0x598] sm:$0xff]
    %v4226 = vld [vmem:[%s4045 + $0x5a0] sm:$0xff]
    %v4227 = vld [vmem:[%s4045 + $0x5a8] sm:$0xff]
    %v4228 = vld [vmem:[%s4045 + $0x5b0] sm:$0xff]
    %v4229 = vld [vmem:[%s4045 + $0x5b8] sm:$0xff]
    %v4230 = vld [vmem:[%s4045 + $0x5c0] sm:$0xff]
    %v4231 = vld [vmem:[%s4045 + $0x5c8] sm:$0xff]
    %v4232 = vld [vmem:[%s4045 + $0x5d0] sm:$0xff]
    %v4233 = vld [vmem:[%s4045 + $0x5d8] sm:$0xff]
    %v4234 = vld [vmem:[%s4045 + $0x5e0] sm:$0xff]
    %v4235 = vld [vmem:[%s4045 + $0x5e8] sm:$0xff]
    %v4236 = vld [vmem:[%s4045 + $0x5f0] sm:$0xff]
    %v4237 = vld [vmem:[%s4045 + $0x5f8] sm:$0xff]
    %v4238 = vld [vmem:[%s4045 + $0x600] sm:$0xff]
    %v4239 = vld [vmem:[%s4045 + $0x608] sm:$0xff]
    %v4240 = vld [vmem:[%s4045 + $0x610] sm:$0xff]
    %v4241 = vld [vmem:[%s4045 + $0x618] sm:$0xff]
    %v4242 = vld [vmem:[%s4045 + $0x620] sm:$0xff]
    %v4243 = vld [vmem:[%s4045 + $0x628] sm:$0xff]
    %v4244 = vld [vmem:[%s4045 + $0x630] sm:$0xff]
    %v4245 = vld [vmem:[%s4045 + $0x638] sm:$0xff]
    %v4246 = vld [vmem:[%s4045 + $0x640] sm:$0xff]
    %v4247 = vld [vmem:[%s4045 + $0x648] sm:$0xff]
    %v4248 = vld [vmem:[%s4045 + $0x650] sm:$0xff]
    %v4249 = vld [vmem:[%s4045 + $0x658] sm:$0xff]
    %v4250 = vld [vmem:[%s4045 + $0x660] sm:$0xff]
    %v4251 = vld [vmem:[%s4045 + $0x668] sm:$0xff]
    %v4252 = vld [vmem:[%s4045 + $0x670] sm:$0xff]
    %v4253 = vld [vmem:[%s4045 + $0x678] sm:$0xff]
    %v4254 = vld [vmem:[%s4045 + $0x680] sm:$0xff]
    %v4255 = vld [vmem:[%s4045 + $0x688] sm:$0xff]
    %v4256 = vld [vmem:[%s4045 + $0x690] sm:$0xff]
    %v4257 = vld [vmem:[%s4045 + $0x698] sm:$0xff]
    %v4258 = vld [vmem:[%s4045 + $0x6a0] sm:$0xff]
    %v4259 = vld [vmem:[%s4045 + $0x6a8] sm:$0xff]
    %v4260 = vld [vmem:[%s4045 + $0x6b0] sm:$0xff]
    %v4261 = vld [vmem:[%s4045 + $0x6b8] sm:$0xff]
    %v4262 = vld [vmem:[%s4045 + $0x6c0] sm:$0xff]
    %v4263 = vld [vmem:[%s4045 + $0x6c8] sm:$0xff]
    %v4264 = vld [vmem:[%s4045 + $0x6d0] sm:$0xff]
    %v4265 = vld [vmem:[%s4045 + $0x6d8] sm:$0xff]
    %v4266 = vld [vmem:[%s4045 + $0x6e0] sm:$0xff]
    %v4267 = vld [vmem:[%s4045 + $0x6e8] sm:$0xff]
    %v4268 = vld [vmem:[%s4045 + $0x6f0] sm:$0xff]
    %v4269 = vld [vmem:[%s4045 + $0x6f8] sm:$0xff]
    %v4270 = vld [vmem:[%s4045 + $0x700] sm:$0xff]
    %v4271 = vld [vmem:[%s4045 + $0x708] sm:$0xff]
    %v4272 = vld [vmem:[%s4045 + $0x710] sm:$0xff]
    %v4273 = vld [vmem:[%s4045 + $0x718] sm:$0xff]
    %v4274 = vld [vmem:[%s4045 + $0x720] sm:$0xff]
    %v4275 = vld [vmem:[%s4045 + $0x728] sm:$0xff]
    %v4276 = vld [vmem:[%s4045 + $0x730] sm:$0xff]
    %v4277 = vld [vmem:[%s4045 + $0x738] sm:$0xff]
    %v4278 = vld [vmem:[%s4045 + $0x740] sm:$0xff]
    %v4279 = vld [vmem:[%s4045 + $0x748] sm:$0xff]
    %v4280 = vld [vmem:[%s4045 + $0x750] sm:$0xff]
    %v4281 = vld [vmem:[%s4045 + $0x758] sm:$0xff]
    %v4282 = vld [vmem:[%s4045 + $0x760] sm:$0xff]
    %v4283 = vld [vmem:[%s4045 + $0x768] sm:$0xff]
    %v4284 = vld [vmem:[%s4045 + $0x770] sm:$0xff]
    %v4285 = vld [vmem:[%s4045 + $0x778] sm:$0xff]
    %v4286 = vld [vmem:[%s4045 + $0x780] sm:$0xff]
    %v4287 = vld [vmem:[%s4045 + $0x788] sm:$0xff]
    %v4288 = vld [vmem:[%s4045 + $0x790] sm:$0xff]
    %v4289 = vld [vmem:[%s4045 + $0x798] sm:$0xff]
    %v4290 = vld [vmem:[%s4045 + $0x7a0] sm:$0xff]
    %v4291 = vld [vmem:[%s4045 + $0x7a8] sm:$0xff]
    %v4292 = vld [vmem:[%s4045 + $0x7b0] sm:$0xff]
    %v4293 = vld [vmem:[%s4045 + $0x7b8] sm:$0xff]
    %v4294 = vld [vmem:[%s4045 + $0x7c0] sm:$0xff]
    %v4295 = vld [vmem:[%s4045 + $0x7c8] sm:$0xff]
    %v4296 = vld [vmem:[%s4045 + $0x7d0] sm:$0xff]
    %v4297 = vld [vmem:[%s4045 + $0x7d8] sm:$0xff]
    %v4298 = vld [vmem:[%s4045 + $0x7e0] sm:$0xff]
    %v4299 = vld [vmem:[%s4045 + $0x7e8] sm:$0xff]
    %v4300 = vld [vmem:[%s4045 + $0x7f0] sm:$0xff]
    %v4301 = vld [vmem:[%s4045 + $0x7f8] sm:$0xff]
    %v4302 = vld [vmem:[%s4045 + $0x800] sm:$0xff]
    %v4303 = vld [vmem:[%s4045 + $0x808] sm:$0xff]
    %v4304 = vld [vmem:[%s4045 + $0x810] sm:$0xff]
    %v4305 = vld [vmem:[%s4045 + $0x818] sm:$0xff]
    %v4306 = vld [vmem:[%s4045 + $0x820] sm:$0xff]
    %v4307 = vld [vmem:[%s4045 + $0x828] sm:$0xff]
    %v4308 = vld [vmem:[%s4045 + $0x830] sm:$0xff]
    %v4309 = vld [vmem:[%s4045 + $0x838] sm:$0xff]
    %v4310 = vld [vmem:[%s4045 + $0x840] sm:$0xff]
    %v4311 = vld [vmem:[%s4045 + $0x848] sm:$0xff]
    %v4312 = vld [vmem:[%s4045 + $0x850] sm:$0xff]
    %v4313 = vld [vmem:[%s4045 + $0x858] sm:$0xff]
    %v4314 = vld [vmem:[%s4045 + $0x860] sm:$0xff]
    %v4315 = vld [vmem:[%s4045 + $0x868] sm:$0xff]
    %v4316 = vld [vmem:[%s4045 + $0x870] sm:$0xff]
    %v4317 = vld [vmem:[%s4045 + $0x878] sm:$0xff]
    %v4318 = vld [vmem:[%s4045 + $0x880] sm:$0xff]
    %v4319 = vld [vmem:[%s4045 + $0x888] sm:$0xff]
    %v4320 = vld [vmem:[%s4045 + $0x890] sm:$0xff]
    %v4321 = vld [vmem:[%s4045 + $0x898] sm:$0xff]
    %v4322 = vld [vmem:[%s4045 + $0x8a0] sm:$0xff]
    %v4323 = vld [vmem:[%s4045 + $0x8a8] sm:$0xff]
    %v4324 = vld [vmem:[%s4045 + $0x8b0] sm:$0xff]
    %v4325 = vld [vmem:[%s4045 + $0x8b8] sm:$0xff]
    %v4326 = vld [vmem:[%s4045 + $0x8c0] sm:$0xff]
    %v4327 = vld [vmem:[%s4045 + $0x8c8] sm:$0xff]
    %v4328 = vld [vmem:[%s4045 + $0x8d0] sm:$0xff]
    %v4329 = vld [vmem:[%s4045 + $0x8d8] sm:$0xff]
    %v4330 = vld [vmem:[%s4045 + $0x8e0] sm:$0xff]
    %v4331 = vld [vmem:[%s4045 + $0x8e8] sm:$0xff]
    %v4332 = vld [vmem:[%s4045 + $0x8f0] sm:$0xff]
    %v4333 = vld [vmem:[%s4045 + $0x8f8] sm:$0xff]
    %v4334 = vld [vmem:[%s4045 + $0x900] sm:$0xff]
    %v4335 = vld [vmem:[%s4045 + $0x908] sm:$0xff]
    %v4336 = vld [vmem:[%s4045 + $0x910] sm:$0xff]
    %v4337 = vld [vmem:[%s4045 + $0x918] sm:$0xff]
    %v4338 = vld [vmem:[%s4045 + $0x920] sm:$0xff]
    %v4339 = vld [vmem:[%s4045 + $0x928] sm:$0xff]
    %v4340 = vld [vmem:[%s4045 + $0x930] sm:$0xff]
    %v4341 = vld [vmem:[%s4045 + $0x938] sm:$0xff]
    %v4342 = vld [vmem:[%s4045 + $0x940] sm:$0xff]
    %v4343 = vld [vmem:[%s4045 + $0x948] sm:$0xff]
    %v4344 = vld [vmem:[%s4045 + $0x950] sm:$0xff]
    %v4345 = vld [vmem:[%s4045 + $0x958] sm:$0xff]
    %v4346 = vld [vmem:[%s4045 + $0x960] sm:$0xff]
    %v4347 = vld [vmem:[%s4045 + $0x968] sm:$0xff]
    %v4348 = vld [vmem:[%s4045 + $0x970] sm:$0xff]
    %v4349 = vld [vmem:[%s4045 + $0x978] sm:$0xff]
    %v4350 = vld [vmem:[%s4045 + $0x980] sm:$0xff]
    %v4351 = vld [vmem:[%s4045 + $0x988] sm:$0xff]
    %v4352 = vld [vmem:[%s4045 + $0x990] sm:$0xff]
    %v4353 = vld [vmem:[%s4045 + $0x998] sm:$0xff]
    %v4354 = vld [vmem:[%s4045 + $0x9a0] sm:$0xff]
    %v4355 = vld [vmem:[%s4045 + $0x9a8] sm:$0xff]
    %v4356 = vld [vmem:[%s4045 + $0x9b0] sm:$0xff]
    %v4357 = vld [vmem:[%s4045 + $0x9b8] sm:$0xff]
    %v4358 = vld [vmem:[%s4045 + $0x9c0] sm:$0xff]
    %v4359 = vld [vmem:[%s4045 + $0x9c8] sm:$0xff]
    %v4360 = vld [vmem:[%s4045 + $0x9d0] sm:$0xff]
    %v4361 = vld [vmem:[%s4045 + $0x9d8] sm:$0xff]
    %v4362 = vld [vmem:[%s4045 + $0x9e0] sm:$0xff]
    %v4363 = vld [vmem:[%s4045 + $0x9e8] sm:$0xff]
    %v4364 = vld [vmem:[%s4045 + $0x9f0] sm:$0xff]
    %v4365 = vld [vmem:[%s4045 + $0x9f8] sm:$0xff]
    %v4366 = vld [vmem:[%s4045 + $0xa00] sm:$0xff]
    %v4367 = vld [vmem:[%s4045 + $0xa08] sm:$0xff]
    %v4368 = vld [vmem:[%s4045 + $0xa10] sm:$0xff]
    %v4369 = vld [vmem:[%s4045 + $0xa18] sm:$0xff]
    %v4370 = vld [vmem:[%s4045 + $0xa20] sm:$0xff]
    %v4371 = vld [vmem:[%s4045 + $0xa28] sm:$0xff]
    %v4372 = vld [vmem:[%s4045 + $0xa30] sm:$0xff]
    %v4373 = vld [vmem:[%s4045 + $0xa38] sm:$0xff]
    %v4374 = vld [vmem:[%s4045 + $0xa40] sm:$0xff]
    %v4375 = vld [vmem:[%s4045 + $0xa48] sm:$0xff]
    %v4376 = vld [vmem:[%s4045 + $0xa50] sm:$0xff]
    %v4377 = vld [vmem:[%s4045 + $0xa58] sm:$0xff]
    %v4378 = vld [vmem:[%s4045 + $0xa60] sm:$0xff]
    %v4379 = vld [vmem:[%s4045 + $0xa68] sm:$0xff]
    %v4380 = vld [vmem:[%s4045 + $0xa70] sm:$0xff]
    %v4381 = vld [vmem:[%s4045 + $0xa78] sm:$0xff]
    %v4382 = vld [vmem:[%s4045 + $0xa80] sm:$0xff]
    %v4383 = vld [vmem:[%s4045 + $0xa88] sm:$0xff]
    %v4384 = vld [vmem:[%s4045 + $0xa90] sm:$0xff]
    %v4385 = vld [vmem:[%s4045 + $0xa98] sm:$0xff]
    %v4386 = vld [vmem:[%s4045 + $0xaa0] sm:$0xff]
    %v4387 = vld [vmem:[%s4045 + $0xaa8] sm:$0xff]
    %v4388 = vld [vmem:[%s4045 + $0xab0] sm:$0xff]
    %v4389 = vld [vmem:[%s4045 + $0xab8] sm:$0xff]
    %v4390 = vld [vmem:[%s4045 + $0xac0] sm:$0xff]
    %v4391 = vld [vmem:[%s4045 + $0xac8] sm:$0xff]
    %v4392 = vld [vmem:[%s4045 + $0xad0] sm:$0xff]
    %v4393 = vld [vmem:[%s4045 + $0xad8] sm:$0xff]
    %v4394 = vld [vmem:[%s4045 + $0xae0] sm:$0xff]
    %v4395 = vld [vmem:[%s4045 + $0xae8] sm:$0xff]
    %v4396 = vld [vmem:[%s4045 + $0xaf0] sm:$0xff]
    %v4397 = vld [vmem:[%s4045 + $0xaf8] sm:$0xff]
    %v4398 = vld [vmem:[%s4045 + $0xb00] sm:$0xff]
    %v4399 = vld [vmem:[%s4045 + $0xb08] sm:$0xff]
    %v4400 = vld [vmem:[%s4045 + $0xb10] sm:$0xff]
    %v4401 = vld [vmem:[%s4045 + $0xb18] sm:$0xff]
    %v4402 = vld [vmem:[%s4045 + $0xb20] sm:$0xff]
    %v4403 = vld [vmem:[%s4045 + $0xb28] sm:$0xff]
    %v4404 = vld [vmem:[%s4045 + $0xb30] sm:$0xff]
    %v4405 = vld [vmem:[%s4045 + $0xb38] sm:$0xff]
    %v4406 = vld [vmem:[%s4045 + $0xb40] sm:$0xff]
    %v4407 = vld [vmem:[%s4045 + $0xb48] sm:$0xff]
    %v4408 = vld [vmem:[%s4045 + $0xb50] sm:$0xff]
    %v4409 = vld [vmem:[%s4045 + $0xb58] sm:$0xff]
    %v4410 = vld [vmem:[%s4045 + $0xb60] sm:$0xff]
    %v4411 = vld [vmem:[%s4045 + $0xb68] sm:$0xff]
    %v4412 = vld [vmem:[%s4045 + $0xb70] sm:$0xff]
    %v4413 = vld [vmem:[%s4045 + $0xb78] sm:$0xff]
    %v4414 = vld [vmem:[%s4045 + $0xb80] sm:$0xff]
    %v4415 = vld [vmem:[%s4045 + $0xb88] sm:$0xff]
    %v4416 = vld [vmem:[%s4045 + $0xb90] sm:$0xff]
    %v4417 = vld [vmem:[%s4045 + $0xb98] sm:$0xff]
    %v4418 = vld [vmem:[%s4045 + $0xba0] sm:$0xff]
    %v4419 = vld [vmem:[%s4045 + $0xba8] sm:$0xff]
    %v4420 = vld [vmem:[%s4045 + $0xbb0] sm:$0xff]
    %v4421 = vld [vmem:[%s4045 + $0xbb8] sm:$0xff]
    %v4422 = vld [vmem:[%s4045 + $0xbc0] sm:$0xff]
    %v4423 = vld [vmem:[%s4045 + $0xbc8] sm:$0xff]
    %v4424 = vld [vmem:[%s4045 + $0xbd0] sm:$0xff]
    %v4425 = vld [vmem:[%s4045 + $0xbd8] sm:$0xff]
    %v4426 = vld [vmem:[%s4045 + $0xbe0] sm:$0xff]
    %v4427 = vld [vmem:[%s4045 + $0xbe8] sm:$0xff]
    %v4428 = vld [vmem:[%s4045 + $0xbf0] sm:$0xff]
    %v4429 = vld [vmem:[%s4045 + $0xbf8] sm:$0xff]
    %v4430 = vld [vmem:[%s4045 + $0xc00] sm:$0xff]
    %v4431 = vld [vmem:[%s4045 + $0xc08] sm:$0xff]
    %v4432 = vld [vmem:[%s4045 + $0xc10] sm:$0xff]
    %v4433 = vld [vmem:[%s4045 + $0xc18] sm:$0xff]
    %v4434 = vld [vmem:[%s4045 + $0xc20] sm:$0xff]
    %v4435 = vld [vmem:[%s4045 + $0xc28] sm:$0xff]
    %v4436 = vld [vmem:[%s4045 + $0xc30] sm:$0xff]
    %v4437 = vld [vmem:[%s4045 + $0xc38] sm:$0xff]
    %v4438 = vld [vmem:[%s4045 + $0xc40] sm:$0xff]
    %v4439 = vld [vmem:[%s4045 + $0xc48] sm:$0xff]
    %v4440 = vld [vmem:[%s4045 + $0xc50] sm:$0xff]
    %v4441 = vld [vmem:[%s4045 + $0xc58] sm:$0xff]
    %v4442 = vld [vmem:[%s4045 + $0xc60] sm:$0xff]
    %v4443 = vld [vmem:[%s4045 + $0xc68] sm:$0xff]
    %v4444 = vld [vmem:[%s4045 + $0xc70] sm:$0xff]
    %v4445 = vld [vmem:[%s4045 + $0xc78] sm:$0xff]
    %4446 = vmatprep.subr.mxu0 %v4047
    %4447 = vmatpush1.msra.mxu0 %v4046
    %4448 = vmatprep.subr.mxu0 %v4052
    %4449 = vmatpush1.msra.mxu0 %v4051
    %4450 = vmatprep.subr.mxu0 %v4057
    %4451 = vmatpush1.msra.mxu0 %v4056
    %4452 = vmatprep.subr.mxu0 %v4062
    %4453 = vmatpush1.msra.mxu0 %v4061
    %4454 = vmatprep.subr.mxu0 %v4067
    %4455 = vmatpush1.msra.mxu0 %v4066
    %4456 = vmatprep.subr.mxu0 %v4072
    %4457 = vmatpush1.msra.mxu0 %v4071
    %4458 = vmatprep.subr.mxu0 %v4077
    %4459 = vmatpush1.msra.mxu0 %v4076
    %4460 = vmatprep.subr.mxu0 %v4082
    %4461 = vmatpush1.msra.mxu0 %v4081
    %4462 = vmatprep.subr.mxu0 %v4087
    %4463 = vmatpush1.msra.mxu0 %v4086
    %4464 = vmatprep.subr.mxu0 %v4092
    %4465 = vmatpush1.msra.mxu0 %v4091
    %4466 = vmatprep.subr.mxu0 %v4097
    %4467 = vmatpush1.msra.mxu0 %v4096
    %4468 = vmatprep.subr.mxu0 %v4102
    %4469 = vmatpush1.msra.mxu0 %v4101
    %4470 = vmatprep.subr.mxu0 %v4107
    %4471 = vmatpush1.msra.mxu0 %v4106
    %4472 = vmatprep.subr.mxu0 %v4112
    %4473 = vmatpush1.msra.mxu0 %v4111
    %4474 = vmatprep.subr.mxu0 %v4117
    %4475 = vmatpush1.msra.mxu0 %v4116
    %4476 = vmatprep.subr.mxu0 %v4122
    %4477 = vmatpush1.msra.mxu0 %v4121
    %4478 = vmatprep.subr.mxu0 %v4127
    %4479 = vmatpush1.msra.mxu0 %v4126
    %4480 = vmatprep.subr.mxu0 %v4132
    %4481 = vmatpush1.msra.mxu0 %v4131
    %4482 = vmatprep.subr.mxu0 %v4137
    %4483 = vmatpush1.msra.mxu0 %v4136
    %4484 = vmatprep.subr.mxu0 %v4142
    %4485 = vmatpush1.msra.mxu0 %v4141
    %4486 = vmatprep.subr.mxu0 %v4147
    %4487 = vmatpush1.msra.mxu0 %v4146
    %4488 = vmatprep.subr.mxu0 %v4152
    %4489 = vmatpush1.msra.mxu0 %v4151
    %4490 = vmatprep.subr.mxu0 %v4157
    %4491 = vmatpush1.msra.mxu0 %v4156
    %4492 = vmatprep.subr.mxu0 %v4162
    %4493 = vmatpush1.msra.mxu0 %v4161
    %4494 = vmatprep.subr.mxu0 %v4167
    %4495 = vmatpush1.msra.mxu0 %v4166
    %4496 = vmatprep.subr.mxu0 %v4172
    %4497 = vmatpush1.msra.mxu0 %v4171
    %4498 = vmatprep.subr.mxu0 %v4177
    %4499 = vmatpush1.msra.mxu0 %v4176
    %4500 = vmatprep.subr.mxu0 %v4182
    %4501 = vmatpush1.msra.mxu0 %v4181
    %4502 = vmatprep.subr.mxu0 %v4187
    %4503 = vmatpush1.msra.mxu0 %v4186
    %4504 = vmatprep.subr.mxu0 %v4192
    %4505 = vmatpush1.msra.mxu0 %v4191
    %4506 = vmatprep.subr.mxu0 %v4197
    %4507 = vmatpush1.msra.mxu0 %v4196
    %4508 = vmatprep.subr.mxu0 %v4202
    %4509 = vmatpush1.msra.mxu0 %v4201
    %4510 = vmatprep.mubr.f32.mxu0 %v447
    %4511 = vmatmul.mubr.f32.gmra.mrb[0].mxu0 %v446
    %v4512 = vpop.f32.mrb[0].mxu0
    %v4513 = vadd.f32 0.0, %v4512
    %v4514 = vpop.f32.mrb[0].mxu0
    %v4515 = vadd.f32 0.0, %v4514
    %4516 = vmatprep.mubr.f32.mxu0 %v452
    %4517 = vmatmul.mubr.f32.gmra.mrb[0].mxu0 %v451
    %v4518 = vpop.f32.mrb[0].mxu0
    %v4519 = vadd.f32 0.0, %v4518
    %v4520 = vpop.f32.mrb[0].mxu0
    %v4521 = vadd.f32 0.0, %v4520
    %4522 = vmatprep.mubr.f32.mxu0 0.0
    %4523 = vmatmul.mubr.f32.gmra.mrb[0].mxu0 0.0
    %v4524 = vpop.f32.mrb[0].mxu0
    %v4525 = vadd.f32 0.0, %v4524
    %v4526 = vpop.f32.mrb[0].mxu0
    %v4527 = vadd.f32 0.0, %v4526
    %4528 = vmatprep.mubr.f32.mxu0 0.0
    %4529 = vmatmul.mubr.f32.gmra.mrb[0].mxu0 0.0
    %v4530 = vpop.f32.mrb[0].mxu0
    %v4531 = vadd.f32 0.0, %v4530
    %v4532 = vpop.f32.mrb[0].mxu0
    %v4533 = vadd.f32 0.0, %v4532
    %4534 = vdwg.mxu0
    %4535 = vmatprep.subr.mxu0 %v4207
    %4536 = vmatpush1.msra.mxu0 %v4206
    %4537 = vmatprep.subr.mxu0 %v4212
    %4538 = vmatpush1.msra.mxu0 %v4211
    %4539 = vmatprep.subr.mxu0 %v4217
    %4540 = vmatpush1.msra.mxu0 %v4216
    %4541 = vmatprep.subr.mxu0 %v4222
    %4542 = vmatpush1.msra.mxu0 %v4221
    %4543 = vmatprep.subr.mxu0 %v4227
    %4544 = vmatpush1.msra.mxu0 %v4226
    %4545 = vmatprep.subr.mxu0 %v4232
    %4546 = vmatpush1.msra.mxu0 %v4231
    %4547 = vmatprep.subr.mxu0 %v4237
    %4548 = vmatpush1.msra.mxu0 %v4236
    %4549 = vmatprep.subr.mxu0 %v4242
    %4550 = vmatpush1.msra.mxu0 %v4241
    %4551 = vmatprep.subr.mxu0 %v4247
    %4552 = vmatpush1.msra.mxu0 %v4246
    %4553 = vmatprep.subr.mxu0 %v4252
    %4554 = vmatpush1.msra.mxu0 %v4251
    %4555 = vmatprep.subr.mxu0 %v4257
    %4556 = vmatpush1.msra.mxu0 %v4256
    %4557 = vmatprep.subr.mxu0 %v4262
    %4558 = vmatpush1.msra.mxu0 %v4261
    %4559 = vmatprep.subr.mxu0 %v4267
    %4560 = vmatpush1.msra.mxu0 %v4266
    %4561 = vmatprep.subr.mxu0 %v4272
    %4562 = vmatpush1.msra.mxu0 %v4271
    %4563 = vmatprep.subr.mxu0 %v4277
    %4564 = vmatpush1.msra.mxu0 %v4276
    %4565 = vmatprep.subr.mxu0 %v4282
    %4566 = vmatpush1.msra.mxu0 %v4281
    %4567 = vmatprep.subr.mxu0 %v4287
    %4568 = vmatpush1.msra.mxu0 %v4286
    %4569 = vmatprep.subr.mxu0 %v4292
    %4570 = vmatpush1.msra.mxu0 %v4291
    %4571 = vmatprep.subr.mxu0 %v4297
    %4572 = vmatpush1.msra.mxu0 %v4296
    %4573 = vmatprep.subr.mxu0 %v4302
    %4574 = vmatpush1.msra.mxu0 %v4301
    %4575 = vmatprep.subr.mxu0 %v4307
    %4576 = vmatpush1.msra.mxu0 %v4306
    %4577 = vmatprep.subr.mxu0 %v4312
    %4578 = vmatpush1.msra.mxu0 %v4311
    %4579 = vmatprep.subr.mxu0 %v4317
    %4580 = vmatpush1.msra.mxu0 %v4316
    %4581 = vmatprep.subr.mxu0 %v4322
    %4582 = vmatpush1.msra.mxu0 %v4321
    %4583 = vmatprep.subr.mxu0 %v4327
    %4584 = vmatpush1.msra.mxu0 %v4326
    %4585 = vmatprep.subr.mxu0 %v4332
    %4586 = vmatpush1.msra.mxu0 %v4331
    %4587 = vmatprep.subr.mxu0 %v4337
    %4588 = vmatpush1.msra.mxu0 %v4336
    %4589 = vmatprep.subr.mxu0 %v4342
    %4590 = vmatpush1.msra.mxu0 %v4341
    %4591 = vmatprep.subr.mxu0 %v4347
    %4592 = vmatpush1.msra.mxu0 %v4346
    %4593 = vmatprep.subr.mxu0 %v4352
    %4594 = vmatpush1.msra.mxu0 %v4351
    %4595 = vmatprep.subr.mxu0 %v4357
    %4596 = vmatpush1.msra.mxu0 %v4356
    %4597 = vmatprep.subr.mxu0 %v4362
    %4598 = vmatpush1.msra.mxu0 %v4361
    %4599 = vmatprep.mubr.f32.mxu0 %v449
    %4600 = vmatmul.mubr.f32.gmra.mrb[0].mxu0 %v448
    %v4601 = vpop.f32.mrb[0].mxu0
    %v4602 = vadd.f32 %v4513, %v4601
    %v4603 = vpop.f32.mrb[0].mxu0
    %v4604 = vadd.f32 %v4515, %v4603
    %4605 = vmatprep.mubr.f32.mxu0 %v454
    %4606 = vmatmul.mubr.f32.gmra.mrb[0].mxu0 %v453
    %v4607 = vpop.f32.mrb[0].mxu0
    %v4608 = vadd.f32 %v4519, %v4607
    %v4609 = vpop.f32.mrb[0].mxu0
    %v4610 = vadd.f32 %v4521, %v4609
    %4611 = vmatprep.mubr.f32.mxu0 0.0
    %4612 = vmatmul.mubr.f32.gmra.mrb[0].mxu0 0.0
    %v4613 = vpop.f32.mrb[0].mxu0
    %v4614 = vadd.f32 %v4525, %v4613
    %v4615 = vpop.f32.mrb[0].mxu0
    %v4616 = vadd.f32 %v4527, %v4615
    %4617 = vmatprep.mubr.f32.mxu0 0.0
    %4618 = vmatmul.mubr.f32.gmra.mrb[0].mxu0 0.0
    %v4619 = vpop.f32.mrb[0].mxu0
    %v4620 = vadd.f32 %v4531, %v4619
    %v4621 = vpop.f32.mrb[0].mxu0
    %v4622 = vadd.f32 %v4533, %v4621
    %4623 = vdwg.mxu0
    %4624 = vmatprep.subr.mxu0 %v4367
    %4625 = vmatpush1.msra.mxu0 %v4366
    %4626 = vmatprep.subr.mxu0 %v4372
    %4627 = vmatpush1.msra.mxu0 %v4371
    %4628 = vmatprep.subr.mxu0 %v4377
    %4629 = vmatpush1.msra.mxu0 %v4376
    %4630 = vmatprep.subr.mxu0 %v4382
    %4631 = vmatpush1.msra.mxu0 %v4381
    %4632 = vmatprep.subr.mxu0 %v4387
    %4633 = vmatpush1.msra.mxu0 %v4386
    %4634 = vmatprep.subr.mxu0 %v4392
    %4635 = vmatpush1.msra.mxu0 %v4391
    %4636 = vmatprep.subr.mxu0 %v4397
    %4637 = vmatpush1.msra.mxu0 %v4396
    %4638 = vmatprep.subr.mxu0 %v4402
    %4639 = vmatpush1.msra.mxu0 %v4401
    %4640 = vmatprep.subr.mxu0 %v4407
    %4641 = vmatpush1.msra.mxu0 %v4406
    %4642 = vmatprep.subr.mxu0 %v4412
    %4643 = vmatpush1.msra.mxu0 %v4411
    %4644 = vmatprep.subr.mxu0 %v4417
    %4645 = vmatpush1.msra.mxu0 %v4416
    %4646 = vmatprep.subr.mxu0 %v4422
    %4647 = vmatpush1.msra.mxu0 %v4421
    %4648 = vmatprep.subr.mxu0 %v4427
    %4649 = vmatpush1.msra.mxu0 %v4426
    %4650 = vmatprep.subr.mxu0 %v4432
    %4651 = vmatpush1.msra.mxu0 %v4431
    %4652 = vmatprep.subr.mxu0 %v4437
    %4653 = vmatpush1.msra.mxu0 %v4436
    %4654 = vmatprep.subr.mxu0 %v4442
    %4655 = vmatpush1.msra.mxu0 %v4441
    %4656 = vmatprep.subr.mxu0 0.0
    %4657 = vmatpush1.msra.mxu0 0.0
    %4658 = vmatprep.subr.mxu0 0.0
    %4659 = vmatpush1.msra.mxu0 0.0
    %4660 = vmatprep.subr.mxu0 0.0
    %4661 = vmatpush1.msra.mxu0 0.0
    %4662 = vmatprep.subr.mxu0 0.0
    %4663 = vmatpush1.msra.mxu0 0.0
    %4664 = vmatprep.subr.mxu0 0.0
    %4665 = vmatpush1.msra.mxu0 0.0
    %4666 = vmatprep.subr.mxu0 0.0
    %4667 = vmatpush1.msra.mxu0 0.0
    %4668 = vmatprep.subr.mxu0 0.0
    %4669 = vmatpush1.msra.mxu0 0.0
    %4670 = vmatprep.subr.mxu0 0.0
    %4671 = vmatpush1.msra.mxu0 0.0
    %4672 = vmatprep.subr.mxu0 0.0
    %4673 = vmatpush1.msra.mxu0 0.0
    %4674 = vmatprep.subr.mxu0 0.0
    %4675 = vmatpush1.msra.mxu0 0.0
    %4676 = vmatprep.subr.mxu0 0.0
    %4677 = vmatpush1.msra.mxu0 0.0
    %4678 = vmatprep.subr.mxu0 0.0
    %4679 = vmatpush1.msra.mxu0 0.0
    %4680 = vmatprep.subr.mxu0 0.0
    %4681 = vmatpush1.msra.mxu0 0.0
    %4682 = vmatprep.subr.mxu0 0.0
    %4683 = vmatpush1.msra.mxu0 0.0
    %4684 = vmatprep.subr.mxu0 0.0
    %4685 = vmatpush1.msra.mxu0 0.0
    %4686 = vmatprep.subr.mxu0 0.0
    %4687 = vmatpush1.msra.mxu0 0.0
    %4688 = vmatprep.mubr.f32.mxu0 0.0
    %4689 = vmatmul.mubr.f32.gmra.mrb[0].mxu0 %v450
    %v4690 = vpop.f32.mrb[0].mxu0
    %v4691 = vadd.f32 %v4602, %v4690
    %v4692 = vpop.f32.mrb[0].mxu0
    %v4693 = vadd.f32 %v4604, %v4692
    %4694 = vmatprep.mubr.f32.mxu0 0.0
    %4695 = vmatmul.mubr.f32.gmra.mrb[0].mxu0 %v455
    %v4696 = vpop.f32.mrb[0].mxu0
    %v4697 = vadd.f32 %v4608, %v4696
    %v4698 = vpop.f32.mrb[0].mxu0
    %v4699 = vadd.f32 %v4610, %v4698
    %4700 = vmatprep.mubr.f32.mxu0 0.0
    %4701 = vmatmul.mubr.f32.gmra.mrb[0].mxu0 0.0
    %v4702 = vpop.f32.mrb[0].mxu0
    %v4703 = vadd.f32 %v4614, %v4702
    %v4704 = vpop.f32.mrb[0].mxu0
    %v4705 = vadd.f32 %v4616, %v4704
    %4706 = vmatprep.mubr.f32.mxu0 0.0
    %4707 = vmatmul.mubr.f32.gmra.mrb[0].mxu0 0.0
    %v4708 = vpop.f32.mrb[0].mxu0
    %v4709 = vadd.f32 %v4620, %v4708
    %v4710 = vpop.f32.mrb[0].mxu0
    %v4711 = vadd.f32 %v4622, %v4710
    %4712 = vdwg.mxu0
    %4713 = vmatprep.subr.mxu0 %v4049
    %4714 = vmatpush1.msra.mxu0 %v4048
    %4715 = vmatprep.subr.mxu0 %v4054
    %4716 = vmatpush1.msra.mxu0 %v4053
    %4717 = vmatprep.subr.mxu0 %v4059
    %4718 = vmatpush1.msra.mxu0 %v4058
    %4719 = vmatprep.subr.mxu0 %v4064
    %4720 = vmatpush1.msra.mxu0 %v4063
    %4721 = vmatprep.subr.mxu0 %v4069
    %4722 = vmatpush1.msra.mxu0 %v4068
    %4723 = vmatprep.subr.mxu0 %v4074
    %4724 = vmatpush1.msra.mxu0 %v4073
    %4725 = vmatprep.subr.mxu0 %v4079
    %4726 = vmatpush1.msra.mxu0 %v4078
    %4727 = vmatprep.subr.mxu0 %v4084
    %4728 = vmatpush1.msra.mxu0 %v4083
    %4729 = vmatprep.subr.mxu0 %v4089
    %4730 = vmatpush1.msra.mxu0 %v4088
    %4731 = vmatprep.subr.mxu0 %v4094
    %4732 = vmatpush1.msra.mxu0 %v4093
    %4733 = vmatprep.subr.mxu0 %v4099
    %4734 = vmatpush1.msra.mxu0 %v4098
    %4735 = vmatprep.subr.mxu0 %v4104
    %4736 = vmatpush1.msra.mxu0 %v4103
    %4737 = vmatprep.subr.mxu0 %v4109
    %4738 = vmatpush1.msra.mxu0 %v4108
    %4739 = vmatprep.subr.mxu0 %v4114
    %4740 = vmatpush1.msra.mxu0 %v4113
    %4741 = vmatprep.subr.mxu0 %v4119
    %4742 = vmatpush1.msra.mxu0 %v4118
    %4743 = vmatprep.subr.mxu0 %v4124
    %4744 = vmatpush1.msra.mxu0 %v4123
    %4745 = vmatprep.subr.mxu0 %v4129
    %4746 = vmatpush1.msra.mxu0 %v4128
    %4747 = vmatprep.subr.mxu0 %v4134
    %4748 = vmatpush1.msra.mxu0 %v4133
    %4749 = vmatprep.subr.mxu0 %v4139
    %4750 = vmatpush1.msra.mxu0 %v4138
    %4751 = vmatprep.subr.mxu0 %v4144
    %4752 = vmatpush1.msra.mxu0 %v4143
    %4753 = vmatprep.subr.mxu0 %v4149
    %4754 = vmatpush1.msra.mxu0 %v4148
    %4755 = vmatprep.subr.mxu0 %v4154
    %4756 = vmatpush1.msra.mxu0 %v4153
    %4757 = vmatprep.subr.mxu0 %v4159
    %4758 = vmatpush1.msra.mxu0 %v4158
    %4759 = vmatprep.subr.mxu0 %v4164
    %4760 = vmatpush1.msra.mxu0 %v4163
    %4761 = vmatprep.subr.mxu0 %v4169
    %4762 = vmatpush1.msra.mxu0 %v4168
    %4763 = vmatprep.subr.mxu0 %v4174
    %4764 = vmatpush1.msra.mxu0 %v4173
    %4765 = vmatprep.subr.mxu0 %v4179
    %4766 = vmatpush1.msra.mxu0 %v4178
    %4767 = vmatprep.subr.mxu0 %v4184
    %4768 = vmatpush1.msra.mxu0 %v4183
    %4769 = vmatprep.subr.mxu0 %v4189
    %4770 = vmatpush1.msra.mxu0 %v4188
    %4771 = vmatprep.subr.mxu0 %v4194
    %4772 = vmatpush1.msra.mxu0 %v4193
    %4773 = vmatprep.subr.mxu0 %v4199
    %4774 = vmatpush1.msra.mxu0 %v4198
    %4775 = vmatprep.subr.mxu0 %v4204
    %4776 = vmatpush1.msra.mxu0 %v4203
    %4777 = vmatprep.mubr.f32.mxu0 %v447
    %4778 = vmatmul.mubr.f32.gmra.mrb[0].mxu0 %v446
    %v4779 = vpop.f32.mrb[0].mxu0
    %v4780 = vadd.f32 0.0, %v4779
    %v4781 = vpop.f32.mrb[0].mxu0
    %v4782 = vadd.f32 0.0, %v4781
    %4783 = vmatprep.mubr.f32.mxu0 %v452
    %4784 = vmatmul.mubr.f32.gmra.mrb[0].mxu0 %v451
    %v4785 = vpop.f32.mrb[0].mxu0
    %v4786 = vadd.f32 0.0, %v4785
    %v4787 = vpop.f32.mrb[0].mxu0
    %v4788 = vadd.f32 0.0, %v4787
    %4789 = vmatprep.mubr.f32.mxu0 0.0
    %4790 = vmatmul.mubr.f32.gmra.mrb[0].mxu0 0.0
    %v4791 = vpop.f32.mrb[0].mxu0
    %v4792 = vadd.f32 0.0, %v4791
    %v4793 = vpop.f32.mrb[0].mxu0
    %v4794 = vadd.f32 0.0, %v4793
    %4795 = vmatprep.mubr.f32.mxu0 0.0
    %4796 = vmatmul.mubr.f32.gmra.mrb[0].mxu0 0.0
    %v4797 = vpop.f32.mrb[0].mxu0
    %v4798 = vadd.f32 0.0, %v4797
    %v4799 = vpop.f32.mrb[0].mxu0
    %v4800 = vadd.f32 0.0, %v4799
    %4801 = vdwg.mxu0
    %4802 = vmatprep.subr.mxu0 %v4209
    %4803 = vmatpush1.msra.mxu0 %v4208
    %4804 = vmatprep.subr.mxu0 %v4214
    %4805 = vmatpush1.msra.mxu0 %v4213
    %4806 = vmatprep.subr.mxu0 %v4219
    %4807 = vmatpush1.msra.mxu0 %v4218
    %4808 = vmatprep.subr.mxu0 %v4224
    %4809 = vmatpush1.msra.mxu0 %v4223
    %4810 = vmatprep.subr.mxu0 %v4229
    %4811 = vmatpush1.msra.mxu0 %v4228
    %4812 = vmatprep.subr.mxu0 %v4234
    %4813 = vmatpush1.msra.mxu0 %v4233
    %4814 = vmatprep.subr.mxu0 %v4239
    %4815 = vmatpush1.msra.mxu0 %v4238
    %4816 = vmatprep.subr.mxu0 %v4244
    %4817 = vmatpush1.msra.mxu0 %v4243
    %4818 = vmatprep.subr.mxu0 %v4249
    %4819 = vmatpush1.msra.mxu0 %v4248
    %4820 = vmatprep.subr.mxu0 %v4254
    %4821 = vmatpush1.msra.mxu0 %v4253
    %4822 = vmatprep.subr.mxu0 %v4259
    %4823 = vmatpush1.msra.mxu0 %v4258
    %4824 = vmatprep.subr.mxu0 %v4264
    %4825 = vmatpush1.msra.mxu0 %v4263
    %4826 = vmatprep.subr.mxu0 %v4269
    %4827 = vmatpush1.msra.mxu0 %v4268
    %4828 = vmatprep.subr.mxu0 %v4274
    %4829 = vmatpush1.msra.mxu0 %v4273
    %4830 = vmatprep.subr.mxu0 %v4279
    %4831 = vmatpush1.msra.mxu0 %v4278
    %4832 = vmatprep.subr.mxu0 %v4284
    %4833 = vmatpush1.msra.mxu0 %v4283
    %4834 = vmatprep.subr.mxu0 %v4289
    %4835 = vmatpush1.msra.mxu0 %v4288
    %4836 = vmatprep.subr.mxu0 %v4294
    %4837 = vmatpush1.msra.mxu0 %v4293
    %4838 = vmatprep.subr.mxu0 %v4299
    %4839 = vmatpush1.msra.mxu0 %v4298
    %4840 = vmatprep.subr.mxu0 %v4304
    %4841 = vmatpush1.msra.mxu0 %v4303
    %4842 = vmatprep.subr.mxu0 %v4309
    %4843 = vmatpush1.msra.mxu0 %v4308
    %4844 = vmatprep.subr.mxu0 %v4314
    %4845 = vmatpush1.msra.mxu0 %v4313
    %4846 = vmatprep.subr.mxu0 %v4319
    %4847 = vmatpush1.msra.mxu0 %v4318
    %4848 = vmatprep.subr.mxu0 %v4324
    %4849 = vmatpush1.msra.mxu0 %v4323
    %4850 = vmatprep.subr.mxu0 %v4329
    %4851 = vmatpush1.msra.mxu0 %v4328
    %4852 = vmatprep.subr.mxu0 %v4334
    %4853 = vmatpush1.msra.mxu0 %v4333
    %4854 = vmatprep.subr.mxu0 %v4339
    %4855 = vmatpush1.msra.mxu0 %v4338
    %4856 = vmatprep.subr.mxu0 %v4344
    %4857 = vmatpush1.msra.mxu0 %v4343
    %4858 = vmatprep.subr.mxu0 %v4349
    %4859 = vmatpush1.msra.mxu0 %v4348
    %4860 = vmatprep.subr.mxu0 %v4354
    %4861 = vmatpush1.msra.mxu0 %v4353
    %4862 = vmatprep.subr.mxu0 %v4359
    %4863 = vmatpush1.msra.mxu0 %v4358
    %4864 = vmatprep.subr.mxu0 %v4364
    %4865 = vmatpush1.msra.mxu0 %v4363
    %4866 = vmatprep.mubr.f32.mxu0 %v449
    %4867 = vmatmul.mubr.f32.gmra.mrb[0].mxu0 %v448
    %v4868 = vpop.f32.mrb[0].mxu0
    %v4869 = vadd.f32 %v4780, %v4868
    %v4870 = vpop.f32.mrb[0].mxu0
    %v4871 = vadd.f32 %v4782, %v4870
    %4872 = vmatprep.mubr.f32.mxu0 %v454
    %4873 = vmatmul.mubr.f32.gmra.mrb[0].mxu0 %v453
    %v4874 = vpop.f32.mrb[0].mxu0
    %v4875 = vadd.f32 %v4786, %v4874
    %v4876 = vpop.f32.mrb[0].mxu0
    %v4877 = vadd.f32 %v4788, %v4876
    %4878 = vmatprep.mubr.f32.mxu0 0.0
    %4879 = vmatmul.mubr.f32.gmra.mrb[0].mxu0 0.0
    %v4880 = vpop.f32.mrb[0].mxu0
    %v4881 = vadd.f32 %v4792, %v4880
    %v4882 = vpop.f32.mrb[0].mxu0
    %v4883 = vadd.f32 %v4794, %v4882
    %4884 = vmatprep.mubr.f32.mxu0 0.0
    %4885 = vmatmul.mubr.f32.gmra.mrb[0].mxu0 0.0
    %v4886 = vpop.f32.mrb[0].mxu0
    %v4887 = vadd.f32 %v4798, %v4886
    %v4888 = vpop.f32.mrb[0].mxu0
    %v4889 = vadd.f32 %v4800, %v4888
    %4890 = vdwg.mxu0
    %4891 = vmatprep.subr.mxu0 %v4369
    %4892 = vmatpush1.msra.mxu0 %v4368
    %4893 = vmatprep.subr.mxu0 %v4374
    %4894 = vmatpush1.msra.mxu0 %v4373
    %4895 = vmatprep.subr.mxu0 %v4379
    %4896 = vmatpush1.msra.mxu0 %v4378
    %4897 = vmatprep.subr.mxu0 %v4384
    %4898 = vmatpush1.msra.mxu0 %v4383
    %4899 = vmatprep.subr.mxu0 %v4389
    %4900 = vmatpush1.msra.mxu0 %v4388
    %4901 = vmatprep.subr.mxu0 %v4394
    %4902 = vmatpush1.msra.mxu0 %v4393
    %4903 = vmatprep.subr.mxu0 %v4399
    %4904 = vmatpush1.msra.mxu0 %v4398
    %4905 = vmatprep.subr.mxu0 %v4404
    %4906 = vmatpush1.msra.mxu0 %v4403
    %4907 = vmatprep.subr.mxu0 %v4409
    %4908 = vmatpush1.msra.mxu0 %v4408
    %4909 = vmatprep.subr.mxu0 %v4414
    %4910 = vmatpush1.msra.mxu0 %v4413
    %4911 = vmatprep.subr.mxu0 %v4419
    %4912 = vmatpush1.msra.mxu0 %v4418
    %4913 = vmatprep.subr.mxu0 %v4424
    %4914 = vmatpush1.msra.mxu0 %v4423
    %4915 = vmatprep.subr.mxu0 %v4429
    %4916 = vmatpush1.msra.mxu0 %v4428
    %4917 = vmatprep.subr.mxu0 %v4434
    %4918 = vmatpush1.msra.mxu0 %v4433
    %4919 = vmatprep.subr.mxu0 %v4439
    %4920 = vmatpush1.msra.mxu0 %v4438
    %4921 = vmatprep.subr.mxu0 %v4444
    %4922 = vmatpush1.msra.mxu0 %v4443
    %4923 = vmatprep.subr.mxu0 0.0
    %4924 = vmatpush1.msra.mxu0 0.0
    %4925 = vmatprep.subr.mxu0 0.0
    %4926 = vmatpush1.msra.mxu0 0.0
    %4927 = vmatprep.subr.mxu0 0.0
    %4928 = vmatpush1.msra.mxu0 0.0
    %4929 = vmatprep.subr.mxu0 0.0
    %4930 = vmatpush1.msra.mxu0 0.0
    %4931 = vmatprep.subr.mxu0 0.0
    %4932 = vmatpush1.msra.mxu0 0.0
    %4933 = vmatprep.subr.mxu0 0.0
    %4934 = vmatpush1.msra.mxu0 0.0
    %4935 = vmatprep.subr.mxu0 0.0
    %4936 = vmatpush1.msra.mxu0 0.0
    %4937 = vmatprep.subr.mxu0 0.0
    %4938 = vmatpush1.msra.mxu0 0.0
    %4939 = vmatprep.subr.mxu0 0.0
    %4940 = vmatpush1.msra.mxu0 0.0
    %4941 = vmatprep.subr.mxu0 0.0
    %4942 = vmatpush1.msra.mxu0 0.0
    %4943 = vmatprep.subr.mxu0 0.0
    %4944 = vmatpush1.msra.mxu0 0.0
    %4945 = vmatprep.subr.mxu0 0.0
    %4946 = vmatpush1.msra.mxu0 0.0
    %4947 = vmatprep.subr.mxu0 0.0
    %4948 = vmatpush1.msra.mxu0 0.0
    %4949 = vmatprep.subr.mxu0 0.0
    %4950 = vmatpush1.msra.mxu0 0.0
    %4951 = vmatprep.subr.mxu0 0.0
    %4952 = vmatpush1.msra.mxu0 0.0
    %4953 = vmatprep.subr.mxu0 0.0
    %4954 = vmatpush1.msra.mxu0 0.0
    %4955 = vmatprep.mubr.f32.mxu0 0.0
    %4956 = vmatmul.mubr.f32.gmra.mrb[0].mxu0 %v450
    %v4957 = vpop.f32.mrb[0].mxu0
    %v4958 = vadd.f32 %v4869, %v4957
    %v4959 = vpop.f32.mrb[0].mxu0
    %v4960 = vadd.f32 %v4871, %v4959
    %4961 = vmatprep.mubr.f32.mxu0 0.0
    %4962 = vmatmul.mubr.f32.gmra.mrb[0].mxu0 %v455
    %v4963 = vpop.f32.mrb[0].mxu0
    %v4964 = vadd.f32 %v4875, %v4963
    %v4965 = vpop.f32.mrb[0].mxu0
    %v4966 = vadd.f32 %v4877, %v4965
    %4967 = vmatprep.mubr.f32.mxu0 0.0
    %4968 = vmatmul.mubr.f32.gmra.mrb[0].mxu0 0.0
    %v4969 = vpop.f32.mrb[0].mxu0
    %v4970 = vadd.f32 %v4881, %v4969
    %v4971 = vpop.f32.mrb[0].mxu0
    %v4972 = vadd.f32 %v4883, %v4971
    %4973 = vmatprep.mubr.f32.mxu0 0.0
    %4974 = vmatmul.mubr.f32.gmra.mrb[0].mxu0 0.0
    %v4975 = vpop.f32.mrb[0].mxu0
    %v4976 = vadd.f32 %v4887, %v4975
    %v4977 = vpop.f32.mrb[0].mxu0
    %v4978 = vadd.f32 %v4889, %v4977
    %4979 = vdwg.mxu0
    %4980 = vmatprep.subr.mxu0 0.0
    %4981 = vmatpush1.msra.mxu0 %v4050
    %4982 = vmatprep.subr.mxu0 0.0
    %4983 = vmatpush1.msra.mxu0 %v4055
    %4984 = vmatprep.subr.mxu0 0.0
    %4985 = vmatpush1.msra.mxu0 %v4060
    %4986 = vmatprep.subr.mxu0 0.0
    %4987 = vmatpush1.msra.mxu0 %v4065
    %4988 = vmatprep.subr.mxu0 0.0
    %4989 = vmatpush1.msra.mxu0 %v4070
    %4990 = vmatprep.subr.mxu0 0.0
    %4991 = vmatpush1.msra.mxu0 %v4075
    %4992 = vmatprep.subr.mxu0 0.0
    %4993 = vmatpush1.msra.mxu0 %v4080
    %4994 = vmatprep.subr.mxu0 0.0
    %4995 = vmatpush1.msra.mxu0 %v4085
    %4996 = vmatprep.subr.mxu0 0.0
    %4997 = vmatpush1.msra.mxu0 %v4090
    %4998 = vmatprep.subr.mxu0 0.0
    %4999 = vmatpush1.msra.mxu0 %v4095
    %5000 = vmatprep.subr.mxu0 0.0
    %5001 = vmatpush1.msra.mxu0 %v4100
    %5002 = vmatprep.subr.mxu0 0.0
    %5003 = vmatpush1.msra.mxu0 %v4105
    %5004 = vmatprep.subr.mxu0 0.0
    %5005 = vmatpush1.msra.mxu0 %v4110
    %5006 = vmatprep.subr.mxu0 0.0
    %5007 = vmatpush1.msra.mxu0 %v4115
    %5008 = vmatprep.subr.mxu0 0.0
    %5009 = vmatpush1.msra.mxu0 %v4120
    %5010 = vmatprep.subr.mxu0 0.0
    %5011 = vmatpush1.msra.mxu0 %v4125
    %5012 = vmatprep.subr.mxu0 0.0
    %5013 = vmatpush1.msra.mxu0 %v4130
    %5014 = vmatprep.subr.mxu0 0.0
    %5015 = vmatpush1.msra.mxu0 %v4135
    %5016 = vmatprep.subr.mxu0 0.0
    %5017 = vmatpush1.msra.mxu0 %v4140
    %5018 = vmatprep.subr.mxu0 0.0
    %5019 = vmatpush1.msra.mxu0 %v4145
    %5020 = vmatprep.subr.mxu0 0.0
    %5021 = vmatpush1.msra.mxu0 %v4150
    %5022 = vmatprep.subr.mxu0 0.0
    %5023 = vmatpush1.msra.mxu0 %v4155
    %5024 = vmatprep.subr.mxu0 0.0
    %5025 = vmatpush1.msra.mxu0 %v4160
    %5026 = vmatprep.subr.mxu0 0.0
    %5027 = vmatpush1.msra.mxu0 %v4165
    %5028 = vmatprep.subr.mxu0 0.0
    %5029 = vmatpush1.msra.mxu0 %v4170
    %5030 = vmatprep.subr.mxu0 0.0
    %5031 = vmatpush1.msra.mxu0 %v4175
    %5032 = vmatprep.subr.mxu0 0.0
    %5033 = vmatpush1.msra.mxu0 %v4180
    %5034 = vmatprep.subr.mxu0 0.0
    %5035 = vmatpush1.msra.mxu0 %v4185
    %5036 = vmatprep.subr.mxu0 0.0
    %5037 = vmatpush1.msra.mxu0 %v4190
    %5038 = vmatprep.subr.mxu0 0.0
    %5039 = vmatpush1.msra.mxu0 %v4195
    %5040 = vmatprep.subr.mxu0 0.0
    %5041 = vmatpush1.msra.mxu0 %v4200
    %5042 = vmatprep.subr.mxu0 0.0
    %5043 = vmatpush1.msra.mxu0 %v4205
    %5044 = vmatprep.mubr.f32.mxu0 %v447
    %5045 = vmatmul.mubr.f32.gmra.mrb[0].mxu0 %v446
    %v5046 = vpop.f32.mrb[0].mxu0
    %v5047 = vadd.f32 0.0, %v5046
    %v5048 = vpop.f32.mrb[0].mxu0
    %5049 = vmatprep.mubr.f32.mxu0 %v452
    %5050 = vmatmul.mubr.f32.gmra.mrb[0].mxu0 %v451
    %v5051 = vpop.f32.mrb[0].mxu0
    %v5052 = vadd.f32 0.0, %v5051
    %v5053 = vpop.f32.mrb[0].mxu0
    %5054 = vmatprep.mubr.f32.mxu0 0.0
    %5055 = vmatmul.mubr.f32.gmra.mrb[0].mxu0 0.0
    %v5056 = vpop.f32.mrb[0].mxu0
    %v5057 = vadd.f32 0.0, %v5056
    %v5058 = vpop.f32.mrb[0].mxu0
    %5059 = vmatprep.mubr.f32.mxu0 0.0
    %5060 = vmatmul.mubr.f32.gmra.mrb[0].mxu0 0.0
    %v5061 = vpop.f32.mrb[0].mxu0
    %v5062 = vadd.f32 0.0, %v5061
    %v5063 = vpop.f32.mrb[0].mxu0
    %5064 = vdwg.mxu0
    %5065 = vmatprep.subr.mxu0 0.0
    %5066 = vmatpush1.msra.mxu0 %v4210
    %5067 = vmatprep.subr.mxu0 0.0
    %5068 = vmatpush1.msra.mxu0 %v4215
    %5069 = vmatprep.subr.mxu0 0.0
    %5070 = vmatpush1.msra.mxu0 %v4220
    %5071 = vmatprep.subr.mxu0 0.0
    %5072 = vmatpush1.msra.mxu0 %v4225
    %5073 = vmatprep.subr.mxu0 0.0
    %5074 = vmatpush1.msra.mxu0 %v4230
    %5075 = vmatprep.subr.mxu0 0.0
    %5076 = vmatpush1.msra.mxu0 %v4235
    %5077 = vmatprep.subr.mxu0 0.0
    %5078 = vmatpush1.msra.mxu0 %v4240
    %5079 = vmatprep.subr.mxu0 0.0
    %5080 = vmatpush1.msra.mxu0 %v4245
    %5081 = vmatprep.subr.mxu0 0.0
    %5082 = vmatpush1.msra.mxu0 %v4250
    %5083 = vmatprep.subr.mxu0 0.0
    %5084 = vmatpush1.msra.mxu0 %v4255
    %5085 = vmatprep.subr.mxu0 0.0
    %5086 = vmatpush1.msra.mxu0 %v4260
    %5087 = vmatprep.subr.mxu0 0.0
    %5088 = vmatpush1.msra.mxu0 %v4265
    %5089 = vmatprep.subr.mxu0 0.0
    %5090 = vmatpush1.msra.mxu0 %v4270
    %5091 = vmatprep.subr.mxu0 0.0
    %5092 = vmatpush1.msra.mxu0 %v4275
    %5093 = vmatprep.subr.mxu0 0.0
    %5094 = vmatpush1.msra.mxu0 %v4280
    %5095 = vmatprep.subr.mxu0 0.0
    %5096 = vmatpush1.msra.mxu0 %v4285
    %5097 = vmatprep.subr.mxu0 0.0
    %5098 = vmatpush1.msra.mxu0 %v4290
    %5099 = vmatprep.subr.mxu0 0.0
    %5100 = vmatpush1.msra.mxu0 %v4295
    %5101 = vmatprep.subr.mxu0 0.0
    %5102 = vmatpush1.msra.mxu0 %v4300
    %5103 = vmatprep.subr.mxu0 0.0
    %5104 = vmatpush1.msra.mxu0 %v4305
    %5105 = vmatprep.subr.mxu0 0.0
    %5106 = vmatpush1.msra.mxu0 %v4310
    %5107 = vmatprep.subr.mxu0 0.0
    %5108 = vmatpush1.msra.mxu0 %v4315
    %5109 = vmatprep.subr.mxu0 0.0
    %5110 = vmatpush1.msra.mxu0 %v4320
    %5111 = vmatprep.subr.mxu0 0.0
    %5112 = vmatpush1.msra.mxu0 %v4325
    %5113 = vmatprep.subr.mxu0 0.0
    %5114 = vmatpush1.msra.mxu0 %v4330
    %5115 = vmatprep.subr.mxu0 0.0
    %5116 = vmatpush1.msra.mxu0 %v4335
    %5117 = vmatprep.subr.mxu0 0.0
    %5118 = vmatpush1.msra.mxu0 %v4340
    %5119 = vmatprep.subr.mxu0 0.0
    %5120 = vmatpush1.msra.mxu0 %v4345
    %5121 = vmatprep.subr.mxu0 0.0
    %5122 = vmatpush1.msra.mxu0 %v4350
    %5123 = vmatprep.subr.mxu0 0.0
    %5124 = vmatpush1.msra.mxu0 %v4355
    %5125 = vmatprep.subr.mxu0 0.0
    %5126 = vmatpush1.msra.mxu0 %v4360
    %5127 = vmatprep.subr.mxu0 0.0
    %5128 = vmatpush1.msra.mxu0 %v4365
    %5129 = vmatprep.mubr.f32.mxu0 %v449
    %5130 = vmatmul.mubr.f32.gmra.mrb[0].mxu0 %v448
    %v5131 = vpop.f32.mrb[0].mxu0
    %v5132 = vadd.f32 %v5047, %v5131
    %v5133 = vpop.f32.mrb[0].mxu0
    %5134 = vmatprep.mubr.f32.mxu0 %v454
    %5135 = vmatmul.mubr.f32.gmra.mrb[0].mxu0 %v453
    %v5136 = vpop.f32.mrb[0].mxu0
    %v5137 = vadd.f32 %v5052, %v5136
    %v5138 = vpop.f32.mrb[0].mxu0
    %5139 = vmatprep.mubr.f32.mxu0 0.0
    %5140 = vmatmul.mubr.f32.gmra.mrb[0].mxu0 0.0
    %v5141 = vpop.f32.mrb[0].mxu0
    %v5142 = vadd.f32 %v5057, %v5141
    %v5143 = vpop.f32.mrb[0].mxu0
    %5144 = vmatprep.mubr.f32.mxu0 0.0
    %5145 = vmatmul.mubr.f32.gmra.mrb[0].mxu0 0.0
    %v5146 = vpop.f32.mrb[0].mxu0
    %v5147 = vadd.f32 %v5062, %v5146
    %v5148 = vpop.f32.mrb[0].mxu0
    %5149 = vdwg.mxu0
    %5150 = vmatprep.subr.mxu0 0.0
    %5151 = vmatpush1.msra.mxu0 %v4370
    %5152 = vmatprep.subr.mxu0 0.0
    %5153 = vmatpush1.msra.mxu0 %v4375
    %5154 = vmatprep.subr.mxu0 0.0
    %5155 = vmatpush1.msra.mxu0 %v4380
    %5156 = vmatprep.subr.mxu0 0.0
    %5157 = vmatpush1.msra.mxu0 %v4385
    %5158 = vmatprep.subr.mxu0 0.0
    %5159 = vmatpush1.msra.mxu0 %v4390
    %5160 = vmatprep.subr.mxu0 0.0
    %5161 = vmatpush1.msra.mxu0 %v4395
    %5162 = vmatprep.subr.mxu0 0.0
    %5163 = vmatpush1.msra.mxu0 %v4400
    %5164 = vmatprep.subr.mxu0 0.0
    %5165 = vmatpush1.msra.mxu0 %v4405
    %5166 = vmatprep.subr.mxu0 0.0
    %5167 = vmatpush1.msra.mxu0 %v4410
    %5168 = vmatprep.subr.mxu0 0.0
    %5169 = vmatpush1.msra.mxu0 %v4415
    %5170 = vmatprep.subr.mxu0 0.0
    %5171 = vmatpush1.msra.mxu0 %v4420
    %5172 = vmatprep.subr.mxu0 0.0
    %5173 = vmatpush1.msra.mxu0 %v4425
    %5174 = vmatprep.subr.mxu0 0.0
    %5175 = vmatpush1.msra.mxu0 %v4430
    %5176 = vmatprep.subr.mxu0 0.0
    %5177 = vmatpush1.msra.mxu0 %v4435
    %5178 = vmatprep.subr.mxu0 0.0
    %5179 = vmatpush1.msra.mxu0 %v4440
    %5180 = vmatprep.subr.mxu0 0.0
    %5181 = vmatpush1.msra.mxu0 %v4445
    %5182 = vmatprep.subr.mxu0 0.0
    %5183 = vmatpush1.msra.mxu0 0.0
    %5184 = vmatprep.subr.mxu0 0.0
    %5185 = vmatpush1.msra.mxu0 0.0
    %5186 = vmatprep.subr.mxu0 0.0
    %5187 = vmatpush1.msra.mxu0 0.0
    %5188 = vmatprep.subr.mxu0 0.0
    %5189 = vmatpush1.msra.mxu0 0.0
    %5190 = vmatprep.subr.mxu0 0.0
    %5191 = vmatpush1.msra.mxu0 0.0
    %5192 = vmatprep.subr.mxu0 0.0
    %5193 = vmatpush1.msra.mxu0 0.0
    %5194 = vmatprep.subr.mxu0 0.0
    %5195 = vmatpush1.msra.mxu0 0.0
    %5196 = vmatprep.subr.mxu0 0.0
    %5197 = vmatpush1.msra.mxu0 0.0
    %5198 = vmatprep.subr.mxu0 0.0
    %5199 = vmatpush1.msra.mxu0 0.0
    %5200 = vmatprep.subr.mxu0 0.0
    %5201 = vmatpush1.msra.mxu0 0.0
    %5202 = vmatprep.subr.mxu0 0.0
    %5203 = vmatpush1.msra.mxu0 0.0
    %5204 = vmatprep.subr.mxu0 0.0
    %5205 = vmatpush1.msra.mxu0 0.0
    %5206 = vmatprep.subr.mxu0 0.0
    %5207 = vmatpush1.msra.mxu0 0.0
    %5208 = vmatprep.subr.mxu0 0.0
    %5209 = vmatpush1.msra.mxu0 0.0
    %5210 = vmatprep.subr.mxu0 0.0
    %5211 = vmatpush1.msra.mxu0 0.0
    %5212 = vmatprep.subr.mxu0 0.0
    %5213 = vmatpush1.msra.mxu0 0.0
    %5214 = vmatprep.mubr.f32.mxu0 0.0
    %5215 = vmatmul.mubr.f32.gmra.mrb[0].mxu0 %v450
    %v5216 = vpop.f32.mrb[0].mxu0
    %v5217 = vadd.f32 %v5132, %v5216
    %v5218 = vpop.f32.mrb[0].mxu0
    %5219 = vmatprep.mubr.f32.mxu0 0.0
    %5220 = vmatmul.mubr.f32.gmra.mrb[0].mxu0 %v455
    %v5221 = vpop.f32.mrb[0].mxu0
    %v5222 = vadd.f32 %v5137, %v5221
    %v5223 = vpop.f32.mrb[0].mxu0
    %5224 = vmatprep.mubr.f32.mxu0 0.0
    %5225 = vmatmul.mubr.f32.gmra.mrb[0].mxu0 0.0
    %v5226 = vpop.f32.mrb[0].mxu0
    %v5227 = vadd.f32 %v5142, %v5226
    %v5228 = vpop.f32.mrb[0].mxu0
    %5229 = vmatprep.mubr.f32.mxu0 0.0
    %5230 = vmatmul.mubr.f32.gmra.mrb[0].mxu0 0.0
    %v5231 = vpop.f32.mrb[0].mxu0
    %v5232 = vadd.f32 %v5147, %v5231
    %v5233 = vpop.f32.mrb[0].mxu0
    %5234 = vdwg.mxu0
    %v5235 = vadd.f32 %v4025, %v4691
    %v5236 = vadd.f32 %v4026, %v4693
    %v5237 = vadd.f32 %v4027, %v4958
    %v5238 = vadd.f32 %v4028, %v4960
    %v5239 = vadd.f32 %v4029, %v5217
    %v5240 = vadd.f32 %v4030, %v4697
    %v5241 = vadd.f32 %v4031, %v4699
    %v5242 = vadd.f32 %v4032, %v4964
    %v5243 = vadd.f32 %v4033, %v4966
    %v5244 = vadd.f32 %v4034, %v5222
    %v5245 = vadd.f32 %v4035, %v4703
    %v5246 = vadd.f32 %v4036, %v4705
    %v5247 = vadd.f32 %v4037, %v4970
    %v5248 = vadd.f32 %v4038, %v4972
    %v5249 = vadd.f32 %v4039, %v5227
    %v5250 = vadd.f32 %v4040, %v4709
    %v5251 = vadd.f32 %v4041, %v4711
    %v5252 = vadd.f32 %v4042, %v4976
    %v5253 = vadd.f32 %v4043, %v4978
    %v5254 = vadd.f32 %v4044, %v5232
    %v5255 = vld [vmem:[%s4] sm:$0x1f]
    %v5257 = vlaneseq
    %v5258 = vshrl.u32 %v5257, 7
    %v5259 = vsub.s32 0, %v5258
    %v5260 = vrot.slane %v5255, %v5259
    %v5261 = vlaneseq
    %v5262 = vshrl.u32 %v5261, 7
    %v5263 = vsub.s32 1, %v5262
    %v5264 = vrot.slane %v5255, %v5263
    %v5265 = vlaneseq
    %v5266 = vshrl.u32 %v5265, 7
    %v5267 = vsub.s32 2, %v5266
    %v5268 = vrot.slane %v5255, %v5267
    %v5269 = vlaneseq
    %v5270 = vshrl.u32 %v5269, 7
    %v5271 = vsub.s32 3, %v5270
    %v5272 = vrot.slane %v5255, %v5271
    %v5273 = vlaneseq
    %v5274 = vshrl.u32 %v5273, 7
    %v5275 = vsub.s32 4, %v5274
    %v5276 = vrot.slane %v5255, %v5275
    %v5282 = vadd.f32 %v5235, %v5260
    %v5283 = vadd.f32 %v5236, %v5264
    %v5284 = vadd.f32 %v5237, %v5268
    %v5285 = vadd.f32 %v5238, %v5272
    %v5286 = vadd.f32 %v5239, %v5276
    %v5287 = vadd.f32 %v5240, %v5260
    %v5288 = vadd.f32 %v5241, %v5264
    %v5289 = vadd.f32 %v5242, %v5268
    %v5290 = vadd.f32 %v5243, %v5272
    %v5291 = vadd.f32 %v5244, %v5276
    %v5292 = vadd.f32 %v5245, %v5260
    %v5293 = vadd.f32 %v5246, %v5264
    %v5294 = vadd.f32 %v5247, %v5268
    %v5295 = vadd.f32 %v5248, %v5272
    %v5296 = vadd.f32 %v5249, %v5276
    %v5297 = vadd.f32 %v5250, %v5260
    %v5298 = vadd.f32 %v5251, %v5264
    %v5299 = vadd.f32 %v5252, %v5268
    %v5300 = vadd.f32 %v5253, %v5272
    %v5301 = vadd.f32 %v5254, %v5276
    %v5302 = vmax.f32 %v5282, 0.0
    %v5303 = vmax.f32 %v5283, 0.0
    %v5304 = vmax.f32 %v5284, 0.0
    %v5305 = vmax.f32 %v5285, 0.0
    %v5306 = vmax.f32 %v5286, 0.0
    %v5307 = vmax.f32 %v5287, 0.0
    %v5308 = vmax.f32 %v5288, 0.0
    %v5309 = vmax.f32 %v5289, 0.0
    %v5310 = vmax.f32 %v5290, 0.0
    %v5311 = vmax.f32 %v5291, 0.0
    %v5312 = vmax.f32 %v5292, 0.0
    %v5313 = vmax.f32 %v5293, 0.0
    %v5314 = vmax.f32 %v5294, 0.0
    %v5315 = vmax.f32 %v5295, 0.0
    %v5316 = vmax.f32 %v5296, 0.0
    %v5317 = vmax.f32 %v5297, 0.0
    %v5318 = vmax.f32 %v5298, 0.0
    %v5319 = vmax.f32 %v5299, 0.0
    %v5320 = vmax.f32 %v5300, 0.0
    %v5321 = vmax.f32 %v5301, 0.0
    %v5322 = vld [vmem:[#allocation5] sm:$0xff]
    %v5323 = vld [vmem:[#allocation5 + $0x8] sm:$0xff]
    %v5324 = vld [vmem:[#allocation5 + $0x10] sm:$0xff]
    %v5325 = vld [vmem:[#allocation5 + $0x18] sm:$0xff]
    %v5326 = vld [vmem:[#allocation5 + $0x20] sm:$0xff]
    %v5327 = vld [vmem:[#allocation5 + $0x28] sm:$0xff]
    %v5328 = vld [vmem:[#allocation5 + $0x30] sm:$0xff]
    %v5329 = vld [vmem:[#allocation5 + $0x38] sm:$0xff]
    %v5330 = vld [vmem:[#allocation5 + $0x40] sm:$0xff]
    %v5331 = vld [vmem:[#allocation5 + $0x48] sm:$0xff]
    %v5332 = vld [vmem:[#allocation5 + $0x50] sm:$0xff]
    %v5333 = vld [vmem:[#allocation5 + $0x58] sm:$0xff]
    %v5334 = vld [vmem:[#allocation5 + $0x60] sm:$0xff]
    %v5335 = vld [vmem:[#allocation5 + $0x68] sm:$0xff]
    %v5336 = vld [vmem:[#allocation5 + $0x70] sm:$0xff]
    %v5337 = vld [vmem:[#allocation5 + $0x78] sm:$0xff]
    %v5338 = vld [vmem:[#allocation5 + $0x80] sm:$0xff]
    %v5339 = vld [vmem:[#allocation5 + $0x88] sm:$0xff]
    %v5340 = vld [vmem:[#allocation5 + $0x90] sm:$0xff]
    %v5341 = vld [vmem:[#allocation5 + $0x98] sm:$0xff]
    %v5342 = vld [vmem:[#allocation5 + $0xa0] sm:$0xff]
    %v5343 = vld [vmem:[#allocation5 + $0xa8] sm:$0xff]
    %v5344 = vld [vmem:[#allocation5 + $0xb0] sm:$0xff]
    %v5345 = vld [vmem:[#allocation5 + $0xb8] sm:$0xff]
    %v5346 = vld [vmem:[#allocation5 + $0xc0] sm:$0xff]
    %v5347 = vld [vmem:[#allocation5 + $0xc8] sm:$0xff]
    %v5348 = vld [vmem:[#allocation5 + $0xd0] sm:$0xff]
    %v5349 = vld [vmem:[#allocation5 + $0xd8] sm:$0xff]
    %v5350 = vld [vmem:[#allocation5 + $0xe0] sm:$0xff]
    %v5351 = vld [vmem:[#allocation5 + $0xe8] sm:$0xff]
    %v5352 = vld [vmem:[#allocation5 + $0xf0] sm:$0xff]
    %v5353 = vld [vmem:[#allocation5 + $0xf8] sm:$0xff]
    %v5354 = vld [vmem:[#allocation5 + $0x100] sm:$0xff]
    %v5355 = vld [vmem:[#allocation5 + $0x108] sm:$0xff]
    %v5356 = vld [vmem:[#allocation5 + $0x110] sm:$0xff]
    %v5357 = vld [vmem:[#allocation5 + $0x118] sm:$0xff]
    %v5358 = vld [vmem:[#allocation5 + $0x120] sm:$0xff]
    %v5359 = vld [vmem:[#allocation5 + $0x128] sm:$0xff]
    %v5360 = vld [vmem:[#allocation5 + $0x130] sm:$0xff]
    %v5361 = vld [vmem:[#allocation5 + $0x138] sm:$0xff]
    %v5362 = vld [vmem:[#allocation5 + $0x140] sm:$0xff]
    %v5363 = vld [vmem:[#allocation5 + $0x148] sm:$0xff]
    %v5364 = vld [vmem:[#allocation5 + $0x150] sm:$0xff]
    %v5365 = vld [vmem:[#allocation5 + $0x158] sm:$0xff]
    %v5366 = vld [vmem:[#allocation5 + $0x160] sm:$0xff]
    %v5367 = vld [vmem:[#allocation5 + $0x168] sm:$0xff]
    %v5368 = vld [vmem:[#allocation5 + $0x170] sm:$0xff]
    %v5369 = vld [vmem:[#allocation5 + $0x178] sm:$0xff]
    %v5370 = vld [vmem:[#allocation5 + $0x180] sm:$0xff]
    %v5371 = vld [vmem:[#allocation5 + $0x188] sm:$0xff]
    %v5372 = vld [vmem:[#allocation5 + $0x190] sm:$0xff]
    %v5373 = vld [vmem:[#allocation5 + $0x198] sm:$0xff]
    %v5374 = vld [vmem:[#allocation5 + $0x1a0] sm:$0xff]
    %v5375 = vld [vmem:[#allocation5 + $0x1a8] sm:$0xff]
    %v5376 = vld [vmem:[#allocation5 + $0x1b0] sm:$0xff]
    %v5377 = vld [vmem:[#allocation5 + $0x1b8] sm:$0xff]
    %v5378 = vld [vmem:[#allocation5 + $0x1c0] sm:$0xff]
    %v5379 = vld [vmem:[#allocation5 + $0x1c8] sm:$0xff]
    %v5380 = vld [vmem:[#allocation5 + $0x1d0] sm:$0xff]
    %v5381 = vld [vmem:[#allocation5 + $0x1d8] sm:$0xff]
    %v5382 = vld [vmem:[#allocation5 + $0x1e0] sm:$0xff]
    %v5383 = vld [vmem:[#allocation5 + $0x1e8] sm:$0xff]
    %v5384 = vld [vmem:[#allocation5 + $0x1f0] sm:$0xff]
    %v5385 = vld [vmem:[#allocation5 + $0x1f8] sm:$0xff]
    %v5386 = vld [vmem:[#allocation5 + $0x200] sm:$0xff]
    %v5387 = vld [vmem:[#allocation5 + $0x208] sm:$0xff]
    %v5388 = vld [vmem:[#allocation5 + $0x210] sm:$0xff]
    %v5389 = vld [vmem:[#allocation5 + $0x218] sm:$0xff]
    %v5390 = vld [vmem:[#allocation5 + $0x220] sm:$0xff]
    %v5391 = vld [vmem:[#allocation5 + $0x228] sm:$0xff]
    %v5392 = vld [vmem:[#allocation5 + $0x230] sm:$0xff]
    %v5393 = vld [vmem:[#allocation5 + $0x238] sm:$0xff]
    %v5394 = vld [vmem:[#allocation5 + $0x240] sm:$0xff]
    %v5395 = vld [vmem:[#allocation5 + $0x248] sm:$0xff]
    %v5396 = vld [vmem:[#allocation5 + $0x250] sm:$0xff]
    %v5397 = vld [vmem:[#allocation5 + $0x258] sm:$0xff]
    %v5398 = vld [vmem:[#allocation5 + $0x260] sm:$0xff]
    %v5399 = vld [vmem:[#allocation5 + $0x268] sm:$0xff]
    %v5400 = vld [vmem:[#allocation5 + $0x270] sm:$0xff]
    %v5401 = vld [vmem:[#allocation5 + $0x278] sm:$0xff]
    %v5402 = vld [vmem:[#allocation5 + $0x280] sm:$0xff]
    %v5403 = vld [vmem:[#allocation5 + $0x288] sm:$0xff]
    %v5404 = vld [vmem:[#allocation5 + $0x290] sm:$0xff]
    %v5405 = vld [vmem:[#allocation5 + $0x298] sm:$0xff]
    %v5406 = vld [vmem:[#allocation5 + $0x2a0] sm:$0xff]
    %v5407 = vld [vmem:[#allocation5 + $0x2a8] sm:$0xff]
    %v5408 = vld [vmem:[#allocation5 + $0x2b0] sm:$0xff]
    %v5409 = vld [vmem:[#allocation5 + $0x2b8] sm:$0xff]
    %v5410 = vld [vmem:[#allocation5 + $0x2c0] sm:$0xff]
    %v5411 = vld [vmem:[#allocation5 + $0x2c8] sm:$0xff]
    %v5412 = vld [vmem:[#allocation5 + $0x2d0] sm:$0xff]
    %v5413 = vld [vmem:[#allocation5 + $0x2d8] sm:$0xff]
    %v5414 = vld [vmem:[#allocation5 + $0x2e0] sm:$0xff]
    %v5415 = vld [vmem:[#allocation5 + $0x2e8] sm:$0xff]
    %v5416 = vld [vmem:[#allocation5 + $0x2f0] sm:$0xff]
    %v5417 = vld [vmem:[#allocation5 + $0x2f8] sm:$0xff]
    %v5418 = vld [vmem:[#allocation5 + $0x300] sm:$0xff]
    %v5419 = vld [vmem:[#allocation5 + $0x308] sm:$0xff]
    %v5420 = vld [vmem:[#allocation5 + $0x310] sm:$0xff]
    %v5421 = vld [vmem:[#allocation5 + $0x318] sm:$0xff]
    %v5422 = vld [vmem:[#allocation5 + $0x320] sm:$0xff]
    %v5423 = vld [vmem:[#allocation5 + $0x328] sm:$0xff]
    %v5424 = vld [vmem:[#allocation5 + $0x330] sm:$0xff]
    %v5425 = vld [vmem:[#allocation5 + $0x338] sm:$0xff]
    %v5426 = vld [vmem:[#allocation5 + $0x340] sm:$0xff]
    %v5427 = vld [vmem:[#allocation5 + $0x348] sm:$0xff]
    %v5428 = vld [vmem:[#allocation5 + $0x350] sm:$0xff]
    %v5429 = vld [vmem:[#allocation5 + $0x358] sm:$0xff]
    %v5430 = vld [vmem:[#allocation5 + $0x360] sm:$0xff]
    %v5431 = vld [vmem:[#allocation5 + $0x368] sm:$0xff]
    %v5432 = vld [vmem:[#allocation5 + $0x370] sm:$0xff]
    %v5433 = vld [vmem:[#allocation5 + $0x378] sm:$0xff]
    %v5434 = vld [vmem:[#allocation5 + $0x380] sm:$0xff]
    %v5435 = vld [vmem:[#allocation5 + $0x388] sm:$0xff]
    %v5436 = vld [vmem:[#allocation5 + $0x390] sm:$0xff]
    %v5437 = vld [vmem:[#allocation5 + $0x398] sm:$0xff]
    %v5438 = vld [vmem:[#allocation5 + $0x3a0] sm:$0xff]
    %v5439 = vld [vmem:[#allocation5 + $0x3a8] sm:$0xff]
    %v5440 = vld [vmem:[#allocation5 + $0x3b0] sm:$0xff]
    %v5441 = vld [vmem:[#allocation5 + $0x3b8] sm:$0xff]
    %v5442 = vld [vmem:[#allocation5 + $0x3c0] sm:$0xff]
    %v5443 = vld [vmem:[#allocation5 + $0x3c8] sm:$0xff]
    %v5444 = vld [vmem:[#allocation5 + $0x3d0] sm:$0xff]
    %v5445 = vld [vmem:[#allocation5 + $0x3d8] sm:$0xff]
    %v5446 = vld [vmem:[#allocation5 + $0x3e0] sm:$0xff]
    %v5447 = vld [vmem:[#allocation5 + $0x3e8] sm:$0xff]
    %v5448 = vld [vmem:[#allocation5 + $0x3f0] sm:$0xff]
    %v5449 = vld [vmem:[#allocation5 + $0x3f8] sm:$0xff]
    %v5450 = vld [vmem:[#allocation5 + $0x400] sm:$0xff]
    %v5451 = vld [vmem:[#allocation5 + $0x408] sm:$0xff]
    %v5452 = vld [vmem:[#allocation5 + $0x410] sm:$0xff]
    %v5453 = vld [vmem:[#allocation5 + $0x418] sm:$0xff]
    %v5454 = vld [vmem:[#allocation5 + $0x420] sm:$0xff]
    %v5455 = vld [vmem:[#allocation5 + $0x428] sm:$0xff]
    %v5456 = vld [vmem:[#allocation5 + $0x430] sm:$0xff]
    %v5457 = vld [vmem:[#allocation5 + $0x438] sm:$0xff]
    %v5458 = vld [vmem:[#allocation5 + $0x440] sm:$0xff]
    %v5459 = vld [vmem:[#allocation5 + $0x448] sm:$0xff]
    %v5460 = vld [vmem:[#allocation5 + $0x450] sm:$0xff]
    %v5461 = vld [vmem:[#allocation5 + $0x458] sm:$0xff]
    %v5462 = vld [vmem:[#allocation5 + $0x460] sm:$0xff]
    %v5463 = vld [vmem:[#allocation5 + $0x468] sm:$0xff]
    %v5464 = vld [vmem:[#allocation5 + $0x470] sm:$0xff]
    %v5465 = vld [vmem:[#allocation5 + $0x478] sm:$0xff]
    %v5466 = vld [vmem:[#allocation5 + $0x480] sm:$0xff]
    %v5467 = vld [vmem:[#allocation5 + $0x488] sm:$0xff]
    %v5468 = vld [vmem:[#allocation5 + $0x490] sm:$0xff]
    %v5469 = vld [vmem:[#allocation5 + $0x498] sm:$0xff]
    %v5470 = vld [vmem:[#allocation5 + $0x4a0] sm:$0xff]
    %v5471 = vld [vmem:[#allocation5 + $0x4a8] sm:$0xff]
    %v5472 = vld [vmem:[#allocation5 + $0x4b0] sm:$0xff]
    %v5473 = vld [vmem:[#allocation5 + $0x4b8] sm:$0xff]
    %v5474 = vld [vmem:[#allocation5 + $0x4c0] sm:$0xff]
    %v5475 = vld [vmem:[#allocation5 + $0x4c8] sm:$0xff]
    %v5476 = vld [vmem:[#allocation5 + $0x4d0] sm:$0xff]
    %v5477 = vld [vmem:[#allocation5 + $0x4d8] sm:$0xff]
    %v5478 = vld [vmem:[#allocation5 + $0x4e0] sm:$0xff]
    %v5479 = vld [vmem:[#allocation5 + $0x4e8] sm:$0xff]
    %v5480 = vld [vmem:[#allocation5 + $0x4f0] sm:$0xff]
    %v5481 = vld [vmem:[#allocation5 + $0x4f8] sm:$0xff]
    %v5482 = vld [vmem:[#allocation5 + $0x500] sm:$0xff]
    %v5483 = vld [vmem:[#allocation5 + $0x508] sm:$0xff]
    %v5484 = vld [vmem:[#allocation5 + $0x510] sm:$0xff]
    %v5485 = vld [vmem:[#allocation5 + $0x518] sm:$0xff]
    %v5486 = vld [vmem:[#allocation5 + $0x520] sm:$0xff]
    %v5487 = vld [vmem:[#allocation5 + $0x528] sm:$0xff]
    %v5488 = vld [vmem:[#allocation5 + $0x530] sm:$0xff]
    %v5489 = vld [vmem:[#allocation5 + $0x538] sm:$0xff]
    %v5490 = vld [vmem:[#allocation5 + $0x540] sm:$0xff]
    %v5491 = vld [vmem:[#allocation5 + $0x548] sm:$0xff]
    %v5492 = vld [vmem:[#allocation5 + $0x550] sm:$0xff]
    %v5493 = vld [vmem:[#allocation5 + $0x558] sm:$0xff]
    %v5494 = vld [vmem:[#allocation5 + $0x560] sm:$0xff]
    %v5495 = vld [vmem:[#allocation5 + $0x568] sm:$0xff]
    %v5496 = vld [vmem:[#allocation5 + $0x570] sm:$0xff]
    %v5497 = vld [vmem:[#allocation5 + $0x578] sm:$0xff]
    %v5498 = vld [vmem:[#allocation5 + $0x580] sm:$0xff]
    %v5499 = vld [vmem:[#allocation5 + $0x588] sm:$0xff]
    %v5500 = vld [vmem:[#allocation5 + $0x590] sm:$0xff]
    %v5501 = vld [vmem:[#allocation5 + $0x598] sm:$0xff]
    %v5502 = vld [vmem:[#allocation5 + $0x5a0] sm:$0xff]
    %v5503 = vld [vmem:[#allocation5 + $0x5a8] sm:$0xff]
    %v5504 = vld [vmem:[#allocation5 + $0x5b0] sm:$0xff]
    %v5505 = vld [vmem:[#allocation5 + $0x5b8] sm:$0xff]
    %v5506 = vld [vmem:[#allocation5 + $0x5c0] sm:$0xff]
    %v5507 = vld [vmem:[#allocation5 + $0x5c8] sm:$0xff]
    %v5508 = vld [vmem:[#allocation5 + $0x5d0] sm:$0xff]
    %v5509 = vld [vmem:[#allocation5 + $0x5d8] sm:$0xff]
    %v5510 = vld [vmem:[#allocation5 + $0x5e0] sm:$0xff]
    %v5511 = vld [vmem:[#allocation5 + $0x5e8] sm:$0xff]
    %v5512 = vld [vmem:[#allocation5 + $0x5f0] sm:$0xff]
    %v5513 = vld [vmem:[#allocation5 + $0x5f8] sm:$0xff]
    %v5514 = vld [vmem:[#allocation5 + $0x600] sm:$0xff]
    %v5515 = vld [vmem:[#allocation5 + $0x608] sm:$0xff]
    %v5516 = vld [vmem:[#allocation5 + $0x610] sm:$0xff]
    %v5517 = vld [vmem:[#allocation5 + $0x618] sm:$0xff]
    %v5518 = vld [vmem:[#allocation5 + $0x620] sm:$0xff]
    %v5519 = vld [vmem:[#allocation5 + $0x628] sm:$0xff]
    %v5520 = vld [vmem:[#allocation5 + $0x630] sm:$0xff]
    %v5521 = vld [vmem:[#allocation5 + $0x638] sm:$0xff]
    %v5522 = vld [vmem:[#allocation5 + $0x640] sm:$0xff]
    %v5523 = vld [vmem:[#allocation5 + $0x648] sm:$0xff]
    %v5524 = vld [vmem:[#allocation5 + $0x650] sm:$0xff]
    %v5525 = vld [vmem:[#allocation5 + $0x658] sm:$0xff]
    %v5526 = vld [vmem:[#allocation5 + $0x660] sm:$0xff]
    %v5527 = vld [vmem:[#allocation5 + $0x668] sm:$0xff]
    %v5528 = vld [vmem:[#allocation5 + $0x670] sm:$0xff]
    %v5529 = vld [vmem:[#allocation5 + $0x678] sm:$0xff]
    %v5530 = vld [vmem:[#allocation5 + $0x680] sm:$0xff]
    %v5531 = vld [vmem:[#allocation5 + $0x688] sm:$0xff]
    %v5532 = vld [vmem:[#allocation5 + $0x690] sm:$0xff]
    %v5533 = vld [vmem:[#allocation5 + $0x698] sm:$0xff]
    %v5534 = vld [vmem:[#allocation5 + $0x6a0] sm:$0xff]
    %v5535 = vld [vmem:[#allocation5 + $0x6a8] sm:$0xff]
    %v5536 = vld [vmem:[#allocation5 + $0x6b0] sm:$0xff]
    %v5537 = vld [vmem:[#allocation5 + $0x6b8] sm:$0xff]
    %v5538 = vld [vmem:[#allocation5 + $0x6c0] sm:$0xff]
    %v5539 = vld [vmem:[#allocation5 + $0x6c8] sm:$0xff]
    %v5540 = vld [vmem:[#allocation5 + $0x6d0] sm:$0xff]
    %v5541 = vld [vmem:[#allocation5 + $0x6d8] sm:$0xff]
    %v5542 = vld [vmem:[#allocation5 + $0x6e0] sm:$0xff]
    %v5543 = vld [vmem:[#allocation5 + $0x6e8] sm:$0xff]
    %v5544 = vld [vmem:[#allocation5 + $0x6f0] sm:$0xff]
    %v5545 = vld [vmem:[#allocation5 + $0x6f8] sm:$0xff]
    %v5546 = vld [vmem:[#allocation5 + $0x700] sm:$0xff]
    %v5547 = vld [vmem:[#allocation5 + $0x708] sm:$0xff]
    %v5548 = vld [vmem:[#allocation5 + $0x710] sm:$0xff]
    %v5549 = vld [vmem:[#allocation5 + $0x718] sm:$0xff]
    %v5550 = vld [vmem:[#allocation5 + $0x720] sm:$0xff]
    %v5551 = vld [vmem:[#allocation5 + $0x728] sm:$0xff]
    %v5552 = vld [vmem:[#allocation5 + $0x730] sm:$0xff]
    %v5553 = vld [vmem:[#allocation5 + $0x738] sm:$0xff]
    %v5554 = vld [vmem:[#allocation5 + $0x740] sm:$0xff]
    %v5555 = vld [vmem:[#allocation5 + $0x748] sm:$0xff]
    %v5556 = vld [vmem:[#allocation5 + $0x750] sm:$0xff]
    %v5557 = vld [vmem:[#allocation5 + $0x758] sm:$0xff]
    %v5558 = vld [vmem:[#allocation5 + $0x760] sm:$0xff]
    %v5559 = vld [vmem:[#allocation5 + $0x768] sm:$0xff]
    %v5560 = vld [vmem:[#allocation5 + $0x770] sm:$0xff]
    %v5561 = vld [vmem:[#allocation5 + $0x778] sm:$0xff]
    %v5562 = vld [vmem:[#allocation5 + $0x780] sm:$0xff]
    %v5563 = vld [vmem:[#allocation5 + $0x788] sm:$0xff]
    %v5564 = vld [vmem:[#allocation5 + $0x790] sm:$0xff]
    %v5565 = vld [vmem:[#allocation5 + $0x798] sm:$0xff]
    %v5566 = vld [vmem:[#allocation5 + $0x7a0] sm:$0xff]
    %v5567 = vld [vmem:[#allocation5 + $0x7a8] sm:$0xff]
    %v5568 = vld [vmem:[#allocation5 + $0x7b0] sm:$0xff]
    %v5569 = vld [vmem:[#allocation5 + $0x7b8] sm:$0xff]
    %v5570 = vld [vmem:[#allocation5 + $0x7c0] sm:$0xff]
    %v5571 = vld [vmem:[#allocation5 + $0x7c8] sm:$0xff]
    %v5572 = vld [vmem:[#allocation5 + $0x7d0] sm:$0xff]
    %v5573 = vld [vmem:[#allocation5 + $0x7d8] sm:$0xff]
    %v5574 = vld [vmem:[#allocation5 + $0x7e0] sm:$0xff]
    %v5575 = vld [vmem:[#allocation5 + $0x7e8] sm:$0xff]
    %v5576 = vld [vmem:[#allocation5 + $0x7f0] sm:$0xff]
    %v5577 = vld [vmem:[#allocation5 + $0x7f8] sm:$0xff]
    %v5578 = vld [vmem:[#allocation5 + $0x800] sm:$0xff]
    %v5579 = vld [vmem:[#allocation5 + $0x808] sm:$0xff]
    %v5580 = vld [vmem:[#allocation5 + $0x810] sm:$0xff]
    %v5581 = vld [vmem:[#allocation5 + $0x818] sm:$0xff]
    %v5582 = vld [vmem:[#allocation5 + $0x820] sm:$0xff]
    %v5583 = vld [vmem:[#allocation5 + $0x828] sm:$0xff]
    %v5584 = vld [vmem:[#allocation5 + $0x830] sm:$0xff]
    %v5585 = vld [vmem:[#allocation5 + $0x838] sm:$0xff]
    %v5586 = vld [vmem:[#allocation5 + $0x840] sm:$0xff]
    %v5587 = vld [vmem:[#allocation5 + $0x848] sm:$0xff]
    %v5588 = vld [vmem:[#allocation5 + $0x850] sm:$0xff]
    %v5589 = vld [vmem:[#allocation5 + $0x858] sm:$0xff]
    %v5590 = vld [vmem:[#allocation5 + $0x860] sm:$0xff]
    %v5591 = vld [vmem:[#allocation5 + $0x868] sm:$0xff]
    %v5592 = vld [vmem:[#allocation5 + $0x870] sm:$0xff]
    %v5593 = vld [vmem:[#allocation5 + $0x878] sm:$0xff]
    %v5594 = vld [vmem:[#allocation5 + $0x880] sm:$0xff]
    %v5595 = vld [vmem:[#allocation5 + $0x888] sm:$0xff]
    %v5596 = vld [vmem:[#allocation5 + $0x890] sm:$0xff]
    %v5597 = vld [vmem:[#allocation5 + $0x898] sm:$0xff]
    %v5598 = vld [vmem:[#allocation5 + $0x8a0] sm:$0xff]
    %v5599 = vld [vmem:[#allocation5 + $0x8a8] sm:$0xff]
    %v5600 = vld [vmem:[#allocation5 + $0x8b0] sm:$0xff]
    %v5601 = vld [vmem:[#allocation5 + $0x8b8] sm:$0xff]
    %v5602 = vld [vmem:[#allocation5 + $0x8c0] sm:$0xff]
    %v5603 = vld [vmem:[#allocation5 + $0x8c8] sm:$0xff]
    %v5604 = vld [vmem:[#allocation5 + $0x8d0] sm:$0xff]
    %v5605 = vld [vmem:[#allocation5 + $0x8d8] sm:$0xff]
    %v5606 = vld [vmem:[#allocation5 + $0x8e0] sm:$0xff]
    %v5607 = vld [vmem:[#allocation5 + $0x8e8] sm:$0xff]
    %v5608 = vld [vmem:[#allocation5 + $0x8f0] sm:$0xff]
    %v5609 = vld [vmem:[#allocation5 + $0x8f8] sm:$0xff]
    %v5610 = vld [vmem:[#allocation5 + $0x900] sm:$0xff]
    %v5611 = vld [vmem:[#allocation5 + $0x908] sm:$0xff]
    %v5612 = vld [vmem:[#allocation5 + $0x910] sm:$0xff]
    %v5613 = vld [vmem:[#allocation5 + $0x918] sm:$0xff]
    %v5614 = vld [vmem:[#allocation5 + $0x920] sm:$0xff]
    %v5615 = vld [vmem:[#allocation5 + $0x928] sm:$0xff]
    %v5616 = vld [vmem:[#allocation5 + $0x930] sm:$0xff]
    %v5617 = vld [vmem:[#allocation5 + $0x938] sm:$0xff]
    %v5618 = vld [vmem:[#allocation5 + $0x940] sm:$0xff]
    %v5619 = vld [vmem:[#allocation5 + $0x948] sm:$0xff]
    %v5620 = vld [vmem:[#allocation5 + $0x950] sm:$0xff]
    %v5621 = vld [vmem:[#allocation5 + $0x958] sm:$0xff]
    %v5622 = vld [vmem:[#allocation5 + $0x960] sm:$0xff]
    %v5623 = vld [vmem:[#allocation5 + $0x968] sm:$0xff]
    %v5624 = vld [vmem:[#allocation5 + $0x970] sm:$0xff]
    %v5625 = vld [vmem:[#allocation5 + $0x978] sm:$0xff]
    %v5626 = vld [vmem:[#allocation5 + $0x980] sm:$0xff]
    %v5627 = vld [vmem:[#allocation5 + $0x988] sm:$0xff]
    %v5628 = vld [vmem:[#allocation5 + $0x990] sm:$0xff]
    %v5629 = vld [vmem:[#allocation5 + $0x998] sm:$0xff]
    %v5630 = vld [vmem:[#allocation5 + $0x9a0] sm:$0xff]
    %v5631 = vld [vmem:[#allocation5 + $0x9a8] sm:$0xff]
    %v5632 = vld [vmem:[#allocation5 + $0x9b0] sm:$0xff]
    %v5633 = vld [vmem:[#allocation5 + $0x9b8] sm:$0xff]
    %v5634 = vld [vmem:[#allocation5 + $0x9c0] sm:$0xff]
    %v5635 = vld [vmem:[#allocation5 + $0x9c8] sm:$0xff]
    %v5636 = vld [vmem:[#allocation5 + $0x9d0] sm:$0xff]
    %v5637 = vld [vmem:[#allocation5 + $0x9d8] sm:$0xff]
    %v5638 = vld [vmem:[#allocation5 + $0x9e0] sm:$0xff]
    %v5639 = vld [vmem:[#allocation5 + $0x9e8] sm:$0xff]
    %v5640 = vld [vmem:[#allocation5 + $0x9f0] sm:$0xff]
    %v5641 = vld [vmem:[#allocation5 + $0x9f8] sm:$0xff]
    %v5642 = vld [vmem:[#allocation5 + $0xa00] sm:$0xff]
    %v5643 = vld [vmem:[#allocation5 + $0xa08] sm:$0xff]
    %v5644 = vld [vmem:[#allocation5 + $0xa10] sm:$0xff]
    %v5645 = vld [vmem:[#allocation5 + $0xa18] sm:$0xff]
    %v5646 = vld [vmem:[#allocation5 + $0xa20] sm:$0xff]
    %v5647 = vld [vmem:[#allocation5 + $0xa28] sm:$0xff]
    %v5648 = vld [vmem:[#allocation5 + $0xa30] sm:$0xff]
    %v5649 = vld [vmem:[#allocation5 + $0xa38] sm:$0xff]
    %v5650 = vld [vmem:[#allocation5 + $0xa40] sm:$0xff]
    %v5651 = vld [vmem:[#allocation5 + $0xa48] sm:$0xff]
    %v5652 = vld [vmem:[#allocation5 + $0xa50] sm:$0xff]
    %v5653 = vld [vmem:[#allocation5 + $0xa58] sm:$0xff]
    %v5654 = vld [vmem:[#allocation5 + $0xa60] sm:$0xff]
    %v5655 = vld [vmem:[#allocation5 + $0xa68] sm:$0xff]
    %v5656 = vld [vmem:[#allocation5 + $0xa70] sm:$0xff]
    %v5657 = vld [vmem:[#allocation5 + $0xa78] sm:$0xff]
    %v5658 = vld [vmem:[#allocation5 + $0xa80] sm:$0xff]
    %v5659 = vld [vmem:[#allocation5 + $0xa88] sm:$0xff]
    %v5660 = vld [vmem:[#allocation5 + $0xa90] sm:$0xff]
    %v5661 = vld [vmem:[#allocation5 + $0xa98] sm:$0xff]
    %v5662 = vld [vmem:[#allocation5 + $0xaa0] sm:$0xff]
    %v5663 = vld [vmem:[#allocation5 + $0xaa8] sm:$0xff]
    %v5664 = vld [vmem:[#allocation5 + $0xab0] sm:$0xff]
    %v5665 = vld [vmem:[#allocation5 + $0xab8] sm:$0xff]
    %v5666 = vld [vmem:[#allocation5 + $0xac0] sm:$0xff]
    %v5667 = vld [vmem:[#allocation5 + $0xac8] sm:$0xff]
    %v5668 = vld [vmem:[#allocation5 + $0xad0] sm:$0xff]
    %v5669 = vld [vmem:[#allocation5 + $0xad8] sm:$0xff]
    %v5670 = vld [vmem:[#allocation5 + $0xae0] sm:$0xff]
    %v5671 = vld [vmem:[#allocation5 + $0xae8] sm:$0xff]
    %v5672 = vld [vmem:[#allocation5 + $0xaf0] sm:$0xff]
    %v5673 = vld [vmem:[#allocation5 + $0xaf8] sm:$0xff]
    %v5674 = vld [vmem:[#allocation5 + $0xb00] sm:$0xff]
    %v5675 = vld [vmem:[#allocation5 + $0xb08] sm:$0xff]
    %v5676 = vld [vmem:[#allocation5 + $0xb10] sm:$0xff]
    %v5677 = vld [vmem:[#allocation5 + $0xb18] sm:$0xff]
    %v5678 = vld [vmem:[#allocation5 + $0xb20] sm:$0xff]
    %v5679 = vld [vmem:[#allocation5 + $0xb28] sm:$0xff]
    %v5680 = vld [vmem:[#allocation5 + $0xb30] sm:$0xff]
    %v5681 = vld [vmem:[#allocation5 + $0xb38] sm:$0xff]
    %v5682 = vld [vmem:[#allocation5 + $0xb40] sm:$0xff]
    %v5683 = vld [vmem:[#allocation5 + $0xb48] sm:$0xff]
    %v5684 = vld [vmem:[#allocation5 + $0xb50] sm:$0xff]
    %v5685 = vld [vmem:[#allocation5 + $0xb58] sm:$0xff]
    %v5686 = vld [vmem:[#allocation5 + $0xb60] sm:$0xff]
    %v5687 = vld [vmem:[#allocation5 + $0xb68] sm:$0xff]
    %v5688 = vld [vmem:[#allocation5 + $0xb70] sm:$0xff]
    %v5689 = vld [vmem:[#allocation5 + $0xb78] sm:$0xff]
    %v5690 = vld [vmem:[#allocation5 + $0xb80] sm:$0xff]
    %v5691 = vld [vmem:[#allocation5 + $0xb88] sm:$0xff]
    %v5692 = vld [vmem:[#allocation5 + $0xb90] sm:$0xff]
    %v5693 = vld [vmem:[#allocation5 + $0xb98] sm:$0xff]
    %v5694 = vld [vmem:[#allocation5 + $0xba0] sm:$0xff]
    %v5695 = vld [vmem:[#allocation5 + $0xba8] sm:$0xff]
    %v5696 = vld [vmem:[#allocation5 + $0xbb0] sm:$0xff]
    %v5697 = vld [vmem:[#allocation5 + $0xbb8] sm:$0xff]
    %v5698 = vld [vmem:[#allocation5 + $0xbc0] sm:$0xff]
    %v5699 = vld [vmem:[#allocation5 + $0xbc8] sm:$0xff]
    %v5700 = vld [vmem:[#allocation5 + $0xbd0] sm:$0xff]
    %v5701 = vld [vmem:[#allocation5 + $0xbd8] sm:$0xff]
    %v5702 = vld [vmem:[#allocation5 + $0xbe0] sm:$0xff]
    %v5703 = vld [vmem:[#allocation5 + $0xbe8] sm:$0xff]
    %v5704 = vld [vmem:[#allocation5 + $0xbf0] sm:$0xff]
    %v5705 = vld [vmem:[#allocation5 + $0xbf8] sm:$0xff]
    %v5706 = vld [vmem:[#allocation5 + $0xc00] sm:$0xff]
    %v5707 = vld [vmem:[#allocation5 + $0xc08] sm:$0xff]
    %v5708 = vld [vmem:[#allocation5 + $0xc10] sm:$0xff]
    %v5709 = vld [vmem:[#allocation5 + $0xc18] sm:$0xff]
    %v5710 = vld [vmem:[#allocation5 + $0xc20] sm:$0xff]
    %v5711 = vld [vmem:[#allocation5 + $0xc28] sm:$0xff]
    %v5712 = vld [vmem:[#allocation5 + $0xc30] sm:$0xff]
    %v5713 = vld [vmem:[#allocation5 + $0xc38] sm:$0xff]
    %v5714 = vld [vmem:[#allocation5 + $0xc40] sm:$0xff]
    %v5715 = vld [vmem:[#allocation5 + $0xc48] sm:$0xff]
    %v5716 = vld [vmem:[#allocation5 + $0xc50] sm:$0xff]
    %v5717 = vld [vmem:[#allocation5 + $0xc58] sm:$0xff]
    %v5718 = vld [vmem:[#allocation5 + $0xc60] sm:$0xff]
    %v5719 = vld [vmem:[#allocation5 + $0xc68] sm:$0xff]
    %v5720 = vld [vmem:[#allocation5 + $0xc70] sm:$0xff]
    %v5721 = vld [vmem:[#allocation5 + $0xc78] sm:$0xff]
    %s5722 = scalar_lea.vmem [#allocation5], 3200
    %v5723 = vld [vmem:[%s5722] sm:$0xff]
    %v5724 = vld [vmem:[%s5722 + $0x8] sm:$0xff]
    %v5725 = vld [vmem:[%s5722 + $0x10] sm:$0xff]
    %v5726 = vld [vmem:[%s5722 + $0x18] sm:$0xff]
    %v5727 = vld [vmem:[%s5722 + $0x20] sm:$0xff]
    %v5728 = vld [vmem:[%s5722 + $0x28] sm:$0xff]
    %v5729 = vld [vmem:[%s5722 + $0x30] sm:$0xff]
    %v5730 = vld [vmem:[%s5722 + $0x38] sm:$0xff]
    %v5731 = vld [vmem:[%s5722 + $0x40] sm:$0xff]
    %v5732 = vld [vmem:[%s5722 + $0x48] sm:$0xff]
    %v5733 = vld [vmem:[%s5722 + $0x50] sm:$0xff]
    %v5734 = vld [vmem:[%s5722 + $0x58] sm:$0xff]
    %v5735 = vld [vmem:[%s5722 + $0x60] sm:$0xff]
    %v5736 = vld [vmem:[%s5722 + $0x68] sm:$0xff]
    %v5737 = vld [vmem:[%s5722 + $0x70] sm:$0xff]
    %v5738 = vld [vmem:[%s5722 + $0x78] sm:$0xff]
    %v5739 = vld [vmem:[%s5722 + $0x80] sm:$0xff]
    %v5740 = vld [vmem:[%s5722 + $0x88] sm:$0xff]
    %v5741 = vld [vmem:[%s5722 + $0x90] sm:$0xff]
    %v5742 = vld [vmem:[%s5722 + $0x98] sm:$0xff]
    %v5743 = vld [vmem:[%s5722 + $0xa0] sm:$0xff]
    %v5744 = vld [vmem:[%s5722 + $0xa8] sm:$0xff]
    %v5745 = vld [vmem:[%s5722 + $0xb0] sm:$0xff]
    %v5746 = vld [vmem:[%s5722 + $0xb8] sm:$0xff]
    %v5747 = vld [vmem:[%s5722 + $0xc0] sm:$0xff]
    %v5748 = vld [vmem:[%s5722 + $0xc8] sm:$0xff]
    %v5749 = vld [vmem:[%s5722 + $0xd0] sm:$0xff]
    %v5750 = vld [vmem:[%s5722 + $0xd8] sm:$0xff]
    %v5751 = vld [vmem:[%s5722 + $0xe0] sm:$0xff]
    %v5752 = vld [vmem:[%s5722 + $0xe8] sm:$0xff]
    %v5753 = vld [vmem:[%s5722 + $0xf0] sm:$0xff]
    %v5754 = vld [vmem:[%s5722 + $0xf8] sm:$0xff]
    %v5755 = vld [vmem:[%s5722 + $0x100] sm:$0xff]
    %v5756 = vld [vmem:[%s5722 + $0x108] sm:$0xff]
    %v5757 = vld [vmem:[%s5722 + $0x110] sm:$0xff]
    %v5758 = vld [vmem:[%s5722 + $0x118] sm:$0xff]
    %v5759 = vld [vmem:[%s5722 + $0x120] sm:$0xff]
    %v5760 = vld [vmem:[%s5722 + $0x128] sm:$0xff]
    %v5761 = vld [vmem:[%s5722 + $0x130] sm:$0xff]
    %v5762 = vld [vmem:[%s5722 + $0x138] sm:$0xff]
    %v5763 = vld [vmem:[%s5722 + $0x140] sm:$0xff]
    %v5764 = vld [vmem:[%s5722 + $0x148] sm:$0xff]
    %v5765 = vld [vmem:[%s5722 + $0x150] sm:$0xff]
    %v5766 = vld [vmem:[%s5722 + $0x158] sm:$0xff]
    %v5767 = vld [vmem:[%s5722 + $0x160] sm:$0xff]
    %v5768 = vld [vmem:[%s5722 + $0x168] sm:$0xff]
    %v5769 = vld [vmem:[%s5722 + $0x170] sm:$0xff]
    %v5770 = vld [vmem:[%s5722 + $0x178] sm:$0xff]
    %v5771 = vld [vmem:[%s5722 + $0x180] sm:$0xff]
    %v5772 = vld [vmem:[%s5722 + $0x188] sm:$0xff]
    %v5773 = vld [vmem:[%s5722 + $0x190] sm:$0xff]
    %v5774 = vld [vmem:[%s5722 + $0x198] sm:$0xff]
    %v5775 = vld [vmem:[%s5722 + $0x1a0] sm:$0xff]
    %v5776 = vld [vmem:[%s5722 + $0x1a8] sm:$0xff]
    %v5777 = vld [vmem:[%s5722 + $0x1b0] sm:$0xff]
    %v5778 = vld [vmem:[%s5722 + $0x1b8] sm:$0xff]
    %v5779 = vld [vmem:[%s5722 + $0x1c0] sm:$0xff]
    %v5780 = vld [vmem:[%s5722 + $0x1c8] sm:$0xff]
    %v5781 = vld [vmem:[%s5722 + $0x1d0] sm:$0xff]
    %v5782 = vld [vmem:[%s5722 + $0x1d8] sm:$0xff]
    %v5783 = vld [vmem:[%s5722 + $0x1e0] sm:$0xff]
    %v5784 = vld [vmem:[%s5722 + $0x1e8] sm:$0xff]
    %v5785 = vld [vmem:[%s5722 + $0x1f0] sm:$0xff]
    %v5786 = vld [vmem:[%s5722 + $0x1f8] sm:$0xff]
    %v5787 = vld [vmem:[%s5722 + $0x200] sm:$0xff]
    %v5788 = vld [vmem:[%s5722 + $0x208] sm:$0xff]
    %v5789 = vld [vmem:[%s5722 + $0x210] sm:$0xff]
    %v5790 = vld [vmem:[%s5722 + $0x218] sm:$0xff]
    %v5791 = vld [vmem:[%s5722 + $0x220] sm:$0xff]
    %v5792 = vld [vmem:[%s5722 + $0x228] sm:$0xff]
    %v5793 = vld [vmem:[%s5722 + $0x230] sm:$0xff]
    %v5794 = vld [vmem:[%s5722 + $0x238] sm:$0xff]
    %v5795 = vld [vmem:[%s5722 + $0x240] sm:$0xff]
    %v5796 = vld [vmem:[%s5722 + $0x248] sm:$0xff]
    %v5797 = vld [vmem:[%s5722 + $0x250] sm:$0xff]
    %v5798 = vld [vmem:[%s5722 + $0x258] sm:$0xff]
    %v5799 = vld [vmem:[%s5722 + $0x260] sm:$0xff]
    %v5800 = vld [vmem:[%s5722 + $0x268] sm:$0xff]
    %v5801 = vld [vmem:[%s5722 + $0x270] sm:$0xff]
    %v5802 = vld [vmem:[%s5722 + $0x278] sm:$0xff]
    %v5803 = vld [vmem:[%s5722 + $0x280] sm:$0xff]
    %v5804 = vld [vmem:[%s5722 + $0x288] sm:$0xff]
    %v5805 = vld [vmem:[%s5722 + $0x290] sm:$0xff]
    %v5806 = vld [vmem:[%s5722 + $0x298] sm:$0xff]
    %v5807 = vld [vmem:[%s5722 + $0x2a0] sm:$0xff]
    %v5808 = vld [vmem:[%s5722 + $0x2a8] sm:$0xff]
    %v5809 = vld [vmem:[%s5722 + $0x2b0] sm:$0xff]
    %v5810 = vld [vmem:[%s5722 + $0x2b8] sm:$0xff]
    %v5811 = vld [vmem:[%s5722 + $0x2c0] sm:$0xff]
    %v5812 = vld [vmem:[%s5722 + $0x2c8] sm:$0xff]
    %v5813 = vld [vmem:[%s5722 + $0x2d0] sm:$0xff]
    %v5814 = vld [vmem:[%s5722 + $0x2d8] sm:$0xff]
    %v5815 = vld [vmem:[%s5722 + $0x2e0] sm:$0xff]
    %v5816 = vld [vmem:[%s5722 + $0x2e8] sm:$0xff]
    %v5817 = vld [vmem:[%s5722 + $0x2f0] sm:$0xff]
    %v5818 = vld [vmem:[%s5722 + $0x2f8] sm:$0xff]
    %v5819 = vld [vmem:[%s5722 + $0x300] sm:$0xff]
    %v5820 = vld [vmem:[%s5722 + $0x308] sm:$0xff]
    %v5821 = vld [vmem:[%s5722 + $0x310] sm:$0xff]
    %v5822 = vld [vmem:[%s5722 + $0x318] sm:$0xff]
    %v5823 = vld [vmem:[%s5722 + $0x320] sm:$0xff]
    %v5824 = vld [vmem:[%s5722 + $0x328] sm:$0xff]
    %v5825 = vld [vmem:[%s5722 + $0x330] sm:$0xff]
    %v5826 = vld [vmem:[%s5722 + $0x338] sm:$0xff]
    %v5827 = vld [vmem:[%s5722 + $0x340] sm:$0xff]
    %v5828 = vld [vmem:[%s5722 + $0x348] sm:$0xff]
    %v5829 = vld [vmem:[%s5722 + $0x350] sm:$0xff]
    %v5830 = vld [vmem:[%s5722 + $0x358] sm:$0xff]
    %v5831 = vld [vmem:[%s5722 + $0x360] sm:$0xff]
    %v5832 = vld [vmem:[%s5722 + $0x368] sm:$0xff]
    %v5833 = vld [vmem:[%s5722 + $0x370] sm:$0xff]
    %v5834 = vld [vmem:[%s5722 + $0x378] sm:$0xff]
    %v5835 = vld [vmem:[%s5722 + $0x380] sm:$0xff]
    %v5836 = vld [vmem:[%s5722 + $0x388] sm:$0xff]
    %v5837 = vld [vmem:[%s5722 + $0x390] sm:$0xff]
    %v5838 = vld [vmem:[%s5722 + $0x398] sm:$0xff]
    %v5839 = vld [vmem:[%s5722 + $0x3a0] sm:$0xff]
    %v5840 = vld [vmem:[%s5722 + $0x3a8] sm:$0xff]
    %v5841 = vld [vmem:[%s5722 + $0x3b0] sm:$0xff]
    %v5842 = vld [vmem:[%s5722 + $0x3b8] sm:$0xff]
    %v5843 = vld [vmem:[%s5722 + $0x3c0] sm:$0xff]
    %v5844 = vld [vmem:[%s5722 + $0x3c8] sm:$0xff]
    %v5845 = vld [vmem:[%s5722 + $0x3d0] sm:$0xff]
    %v5846 = vld [vmem:[%s5722 + $0x3d8] sm:$0xff]
    %v5847 = vld [vmem:[%s5722 + $0x3e0] sm:$0xff]
    %v5848 = vld [vmem:[%s5722 + $0x3e8] sm:$0xff]
    %v5849 = vld [vmem:[%s5722 + $0x3f0] sm:$0xff]
    %v5850 = vld [vmem:[%s5722 + $0x3f8] sm:$0xff]
    %v5851 = vld [vmem:[%s5722 + $0x400] sm:$0xff]
    %v5852 = vld [vmem:[%s5722 + $0x408] sm:$0xff]
    %v5853 = vld [vmem:[%s5722 + $0x410] sm:$0xff]
    %v5854 = vld [vmem:[%s5722 + $0x418] sm:$0xff]
    %v5855 = vld [vmem:[%s5722 + $0x420] sm:$0xff]
    %v5856 = vld [vmem:[%s5722 + $0x428] sm:$0xff]
    %v5857 = vld [vmem:[%s5722 + $0x430] sm:$0xff]
    %v5858 = vld [vmem:[%s5722 + $0x438] sm:$0xff]
    %v5859 = vld [vmem:[%s5722 + $0x440] sm:$0xff]
    %v5860 = vld [vmem:[%s5722 + $0x448] sm:$0xff]
    %v5861 = vld [vmem:[%s5722 + $0x450] sm:$0xff]
    %v5862 = vld [vmem:[%s5722 + $0x458] sm:$0xff]
    %v5863 = vld [vmem:[%s5722 + $0x460] sm:$0xff]
    %v5864 = vld [vmem:[%s5722 + $0x468] sm:$0xff]
    %v5865 = vld [vmem:[%s5722 + $0x470] sm:$0xff]
    %v5866 = vld [vmem:[%s5722 + $0x478] sm:$0xff]
    %v5867 = vld [vmem:[%s5722 + $0x480] sm:$0xff]
    %v5868 = vld [vmem:[%s5722 + $0x488] sm:$0xff]
    %v5869 = vld [vmem:[%s5722 + $0x490] sm:$0xff]
    %v5870 = vld [vmem:[%s5722 + $0x498] sm:$0xff]
    %v5871 = vld [vmem:[%s5722 + $0x4a0] sm:$0xff]
    %v5872 = vld [vmem:[%s5722 + $0x4a8] sm:$0xff]
    %v5873 = vld [vmem:[%s5722 + $0x4b0] sm:$0xff]
    %v5874 = vld [vmem:[%s5722 + $0x4b8] sm:$0xff]
    %v5875 = vld [vmem:[%s5722 + $0x4c0] sm:$0xff]
    %v5876 = vld [vmem:[%s5722 + $0x4c8] sm:$0xff]
    %v5877 = vld [vmem:[%s5722 + $0x4d0] sm:$0xff]
    %v5878 = vld [vmem:[%s5722 + $0x4d8] sm:$0xff]
    %v5879 = vld [vmem:[%s5722 + $0x4e0] sm:$0xff]
    %v5880 = vld [vmem:[%s5722 + $0x4e8] sm:$0xff]
    %v5881 = vld [vmem:[%s5722 + $0x4f0] sm:$0xff]
    %v5882 = vld [vmem:[%s5722 + $0x4f8] sm:$0xff]
    %v5883 = vld [vmem:[%s5722 + $0x500] sm:$0xff]
    %v5884 = vld [vmem:[%s5722 + $0x508] sm:$0xff]
    %v5885 = vld [vmem:[%s5722 + $0x510] sm:$0xff]
    %v5886 = vld [vmem:[%s5722 + $0x518] sm:$0xff]
    %v5887 = vld [vmem:[%s5722 + $0x520] sm:$0xff]
    %v5888 = vld [vmem:[%s5722 + $0x528] sm:$0xff]
    %v5889 = vld [vmem:[%s5722 + $0x530] sm:$0xff]
    %v5890 = vld [vmem:[%s5722 + $0x538] sm:$0xff]
    %v5891 = vld [vmem:[%s5722 + $0x540] sm:$0xff]
    %v5892 = vld [vmem:[%s5722 + $0x548] sm:$0xff]
    %v5893 = vld [vmem:[%s5722 + $0x550] sm:$0xff]
    %v5894 = vld [vmem:[%s5722 + $0x558] sm:$0xff]
    %v5895 = vld [vmem:[%s5722 + $0x560] sm:$0xff]
    %v5896 = vld [vmem:[%s5722 + $0x568] sm:$0xff]
    %v5897 = vld [vmem:[%s5722 + $0x570] sm:$0xff]
    %v5898 = vld [vmem:[%s5722 + $0x578] sm:$0xff]
    %v5899 = vld [vmem:[%s5722 + $0x580] sm:$0xff]
    %v5900 = vld [vmem:[%s5722 + $0x588] sm:$0xff]
    %v5901 = vld [vmem:[%s5722 + $0x590] sm:$0xff]
    %v5902 = vld [vmem:[%s5722 + $0x598] sm:$0xff]
    %v5903 = vld [vmem:[%s5722 + $0x5a0] sm:$0xff]
    %v5904 = vld [vmem:[%s5722 + $0x5a8] sm:$0xff]
    %v5905 = vld [vmem:[%s5722 + $0x5b0] sm:$0xff]
    %v5906 = vld [vmem:[%s5722 + $0x5b8] sm:$0xff]
    %v5907 = vld [vmem:[%s5722 + $0x5c0] sm:$0xff]
    %v5908 = vld [vmem:[%s5722 + $0x5c8] sm:$0xff]
    %v5909 = vld [vmem:[%s5722 + $0x5d0] sm:$0xff]
    %v5910 = vld [vmem:[%s5722 + $0x5d8] sm:$0xff]
    %v5911 = vld [vmem:[%s5722 + $0x5e0] sm:$0xff]
    %v5912 = vld [vmem:[%s5722 + $0x5e8] sm:$0xff]
    %v5913 = vld [vmem:[%s5722 + $0x5f0] sm:$0xff]
    %v5914 = vld [vmem:[%s5722 + $0x5f8] sm:$0xff]
    %v5915 = vld [vmem:[%s5722 + $0x600] sm:$0xff]
    %v5916 = vld [vmem:[%s5722 + $0x608] sm:$0xff]
    %v5917 = vld [vmem:[%s5722 + $0x610] sm:$0xff]
    %v5918 = vld [vmem:[%s5722 + $0x618] sm:$0xff]
    %v5919 = vld [vmem:[%s5722 + $0x620] sm:$0xff]
    %v5920 = vld [vmem:[%s5722 + $0x628] sm:$0xff]
    %v5921 = vld [vmem:[%s5722 + $0x630] sm:$0xff]
    %v5922 = vld [vmem:[%s5722 + $0x638] sm:$0xff]
    %v5923 = vld [vmem:[%s5722 + $0x640] sm:$0xff]
    %v5924 = vld [vmem:[%s5722 + $0x648] sm:$0xff]
    %v5925 = vld [vmem:[%s5722 + $0x650] sm:$0xff]
    %v5926 = vld [vmem:[%s5722 + $0x658] sm:$0xff]
    %v5927 = vld [vmem:[%s5722 + $0x660] sm:$0xff]
    %v5928 = vld [vmem:[%s5722 + $0x668] sm:$0xff]
    %v5929 = vld [vmem:[%s5722 + $0x670] sm:$0xff]
    %v5930 = vld [vmem:[%s5722 + $0x678] sm:$0xff]
    %v5931 = vld [vmem:[%s5722 + $0x680] sm:$0xff]
    %v5932 = vld [vmem:[%s5722 + $0x688] sm:$0xff]
    %v5933 = vld [vmem:[%s5722 + $0x690] sm:$0xff]
    %v5934 = vld [vmem:[%s5722 + $0x698] sm:$0xff]
    %v5935 = vld [vmem:[%s5722 + $0x6a0] sm:$0xff]
    %v5936 = vld [vmem:[%s5722 + $0x6a8] sm:$0xff]
    %v5937 = vld [vmem:[%s5722 + $0x6b0] sm:$0xff]
    %v5938 = vld [vmem:[%s5722 + $0x6b8] sm:$0xff]
    %v5939 = vld [vmem:[%s5722 + $0x6c0] sm:$0xff]
    %v5940 = vld [vmem:[%s5722 + $0x6c8] sm:$0xff]
    %v5941 = vld [vmem:[%s5722 + $0x6d0] sm:$0xff]
    %v5942 = vld [vmem:[%s5722 + $0x6d8] sm:$0xff]
    %v5943 = vld [vmem:[%s5722 + $0x6e0] sm:$0xff]
    %v5944 = vld [vmem:[%s5722 + $0x6e8] sm:$0xff]
    %v5945 = vld [vmem:[%s5722 + $0x6f0] sm:$0xff]
    %v5946 = vld [vmem:[%s5722 + $0x6f8] sm:$0xff]
    %v5947 = vld [vmem:[%s5722 + $0x700] sm:$0xff]
    %v5948 = vld [vmem:[%s5722 + $0x708] sm:$0xff]
    %v5949 = vld [vmem:[%s5722 + $0x710] sm:$0xff]
    %v5950 = vld [vmem:[%s5722 + $0x718] sm:$0xff]
    %v5951 = vld [vmem:[%s5722 + $0x720] sm:$0xff]
    %v5952 = vld [vmem:[%s5722 + $0x728] sm:$0xff]
    %v5953 = vld [vmem:[%s5722 + $0x730] sm:$0xff]
    %v5954 = vld [vmem:[%s5722 + $0x738] sm:$0xff]
    %v5955 = vld [vmem:[%s5722 + $0x740] sm:$0xff]
    %v5956 = vld [vmem:[%s5722 + $0x748] sm:$0xff]
    %v5957 = vld [vmem:[%s5722 + $0x750] sm:$0xff]
    %v5958 = vld [vmem:[%s5722 + $0x758] sm:$0xff]
    %v5959 = vld [vmem:[%s5722 + $0x760] sm:$0xff]
    %v5960 = vld [vmem:[%s5722 + $0x768] sm:$0xff]
    %v5961 = vld [vmem:[%s5722 + $0x770] sm:$0xff]
    %v5962 = vld [vmem:[%s5722 + $0x778] sm:$0xff]
    %v5963 = vld [vmem:[%s5722 + $0x780] sm:$0xff]
    %v5964 = vld [vmem:[%s5722 + $0x788] sm:$0xff]
    %v5965 = vld [vmem:[%s5722 + $0x790] sm:$0xff]
    %v5966 = vld [vmem:[%s5722 + $0x798] sm:$0xff]
    %v5967 = vld [vmem:[%s5722 + $0x7a0] sm:$0xff]
    %v5968 = vld [vmem:[%s5722 + $0x7a8] sm:$0xff]
    %v5969 = vld [vmem:[%s5722 + $0x7b0] sm:$0xff]
    %v5970 = vld [vmem:[%s5722 + $0x7b8] sm:$0xff]
    %v5971 = vld [vmem:[%s5722 + $0x7c0] sm:$0xff]
    %v5972 = vld [vmem:[%s5722 + $0x7c8] sm:$0xff]
    %v5973 = vld [vmem:[%s5722 + $0x7d0] sm:$0xff]
    %v5974 = vld [vmem:[%s5722 + $0x7d8] sm:$0xff]
    %v5975 = vld [vmem:[%s5722 + $0x7e0] sm:$0xff]
    %v5976 = vld [vmem:[%s5722 + $0x7e8] sm:$0xff]
    %v5977 = vld [vmem:[%s5722 + $0x7f0] sm:$0xff]
    %v5978 = vld [vmem:[%s5722 + $0x7f8] sm:$0xff]
    %v5979 = vld [vmem:[%s5722 + $0x800] sm:$0xff]
    %v5980 = vld [vmem:[%s5722 + $0x808] sm:$0xff]
    %v5981 = vld [vmem:[%s5722 + $0x810] sm:$0xff]
    %v5982 = vld [vmem:[%s5722 + $0x818] sm:$0xff]
    %v5983 = vld [vmem:[%s5722 + $0x820] sm:$0xff]
    %v5984 = vld [vmem:[%s5722 + $0x828] sm:$0xff]
    %v5985 = vld [vmem:[%s5722 + $0x830] sm:$0xff]
    %v5986 = vld [vmem:[%s5722 + $0x838] sm:$0xff]
    %v5987 = vld [vmem:[%s5722 + $0x840] sm:$0xff]
    %v5988 = vld [vmem:[%s5722 + $0x848] sm:$0xff]
    %v5989 = vld [vmem:[%s5722 + $0x850] sm:$0xff]
    %v5990 = vld [vmem:[%s5722 + $0x858] sm:$0xff]
    %v5991 = vld [vmem:[%s5722 + $0x860] sm:$0xff]
    %v5992 = vld [vmem:[%s5722 + $0x868] sm:$0xff]
    %v5993 = vld [vmem:[%s5722 + $0x870] sm:$0xff]
    %v5994 = vld [vmem:[%s5722 + $0x878] sm:$0xff]
    %v5995 = vld [vmem:[%s5722 + $0x880] sm:$0xff]
    %v5996 = vld [vmem:[%s5722 + $0x888] sm:$0xff]
    %v5997 = vld [vmem:[%s5722 + $0x890] sm:$0xff]
    %v5998 = vld [vmem:[%s5722 + $0x898] sm:$0xff]
    %v5999 = vld [vmem:[%s5722 + $0x8a0] sm:$0xff]
    %v6000 = vld [vmem:[%s5722 + $0x8a8] sm:$0xff]
    %v6001 = vld [vmem:[%s5722 + $0x8b0] sm:$0xff]
    %v6002 = vld [vmem:[%s5722 + $0x8b8] sm:$0xff]
    %v6003 = vld [vmem:[%s5722 + $0x8c0] sm:$0xff]
    %v6004 = vld [vmem:[%s5722 + $0x8c8] sm:$0xff]
    %v6005 = vld [vmem:[%s5722 + $0x8d0] sm:$0xff]
    %v6006 = vld [vmem:[%s5722 + $0x8d8] sm:$0xff]
    %v6007 = vld [vmem:[%s5722 + $0x8e0] sm:$0xff]
    %v6008 = vld [vmem:[%s5722 + $0x8e8] sm:$0xff]
    %v6009 = vld [vmem:[%s5722 + $0x8f0] sm:$0xff]
    %v6010 = vld [vmem:[%s5722 + $0x8f8] sm:$0xff]
    %v6011 = vld [vmem:[%s5722 + $0x900] sm:$0xff]
    %v6012 = vld [vmem:[%s5722 + $0x908] sm:$0xff]
    %v6013 = vld [vmem:[%s5722 + $0x910] sm:$0xff]
    %v6014 = vld [vmem:[%s5722 + $0x918] sm:$0xff]
    %v6015 = vld [vmem:[%s5722 + $0x920] sm:$0xff]
    %v6016 = vld [vmem:[%s5722 + $0x928] sm:$0xff]
    %v6017 = vld [vmem:[%s5722 + $0x930] sm:$0xff]
    %v6018 = vld [vmem:[%s5722 + $0x938] sm:$0xff]
    %v6019 = vld [vmem:[%s5722 + $0x940] sm:$0xff]
    %v6020 = vld [vmem:[%s5722 + $0x948] sm:$0xff]
    %v6021 = vld [vmem:[%s5722 + $0x950] sm:$0xff]
    %v6022 = vld [vmem:[%s5722 + $0x958] sm:$0xff]
    %v6023 = vld [vmem:[%s5722 + $0x960] sm:$0xff]
    %v6024 = vld [vmem:[%s5722 + $0x968] sm:$0xff]
    %v6025 = vld [vmem:[%s5722 + $0x970] sm:$0xff]
    %v6026 = vld [vmem:[%s5722 + $0x978] sm:$0xff]
    %v6027 = vld [vmem:[%s5722 + $0x980] sm:$0xff]
    %v6028 = vld [vmem:[%s5722 + $0x988] sm:$0xff]
    %v6029 = vld [vmem:[%s5722 + $0x990] sm:$0xff]
    %v6030 = vld [vmem:[%s5722 + $0x998] sm:$0xff]
    %v6031 = vld [vmem:[%s5722 + $0x9a0] sm:$0xff]
    %v6032 = vld [vmem:[%s5722 + $0x9a8] sm:$0xff]
    %v6033 = vld [vmem:[%s5722 + $0x9b0] sm:$0xff]
    %v6034 = vld [vmem:[%s5722 + $0x9b8] sm:$0xff]
    %v6035 = vld [vmem:[%s5722 + $0x9c0] sm:$0xff]
    %v6036 = vld [vmem:[%s5722 + $0x9c8] sm:$0xff]
    %v6037 = vld [vmem:[%s5722 + $0x9d0] sm:$0xff]
    %v6038 = vld [vmem:[%s5722 + $0x9d8] sm:$0xff]
    %v6039 = vld [vmem:[%s5722 + $0x9e0] sm:$0xff]
    %v6040 = vld [vmem:[%s5722 + $0x9e8] sm:$0xff]
    %v6041 = vld [vmem:[%s5722 + $0x9f0] sm:$0xff]
    %v6042 = vld [vmem:[%s5722 + $0x9f8] sm:$0xff]
    %v6043 = vld [vmem:[%s5722 + $0xa00] sm:$0xff]
    %v6044 = vld [vmem:[%s5722 + $0xa08] sm:$0xff]
    %v6045 = vld [vmem:[%s5722 + $0xa10] sm:$0xff]
    %v6046 = vld [vmem:[%s5722 + $0xa18] sm:$0xff]
    %v6047 = vld [vmem:[%s5722 + $0xa20] sm:$0xff]
    %v6048 = vld [vmem:[%s5722 + $0xa28] sm:$0xff]
    %v6049 = vld [vmem:[%s5722 + $0xa30] sm:$0xff]
    %v6050 = vld [vmem:[%s5722 + $0xa38] sm:$0xff]
    %v6051 = vld [vmem:[%s5722 + $0xa40] sm:$0xff]
    %v6052 = vld [vmem:[%s5722 + $0xa48] sm:$0xff]
    %v6053 = vld [vmem:[%s5722 + $0xa50] sm:$0xff]
    %v6054 = vld [vmem:[%s5722 + $0xa58] sm:$0xff]
    %v6055 = vld [vmem:[%s5722 + $0xa60] sm:$0xff]
    %v6056 = vld [vmem:[%s5722 + $0xa68] sm:$0xff]
    %v6057 = vld [vmem:[%s5722 + $0xa70] sm:$0xff]
    %v6058 = vld [vmem:[%s5722 + $0xa78] sm:$0xff]
    %v6059 = vld [vmem:[%s5722 + $0xa80] sm:$0xff]
    %v6060 = vld [vmem:[%s5722 + $0xa88] sm:$0xff]
    %v6061 = vld [vmem:[%s5722 + $0xa90] sm:$0xff]
    %v6062 = vld [vmem:[%s5722 + $0xa98] sm:$0xff]
    %v6063 = vld [vmem:[%s5722 + $0xaa0] sm:$0xff]
    %v6064 = vld [vmem:[%s5722 + $0xaa8] sm:$0xff]
    %v6065 = vld [vmem:[%s5722 + $0xab0] sm:$0xff]
    %v6066 = vld [vmem:[%s5722 + $0xab8] sm:$0xff]
    %v6067 = vld [vmem:[%s5722 + $0xac0] sm:$0xff]
    %v6068 = vld [vmem:[%s5722 + $0xac8] sm:$0xff]
    %v6069 = vld [vmem:[%s5722 + $0xad0] sm:$0xff]
    %v6070 = vld [vmem:[%s5722 + $0xad8] sm:$0xff]
    %v6071 = vld [vmem:[%s5722 + $0xae0] sm:$0xff]
    %v6072 = vld [vmem:[%s5722 + $0xae8] sm:$0xff]
    %v6073 = vld [vmem:[%s5722 + $0xaf0] sm:$0xff]
    %v6074 = vld [vmem:[%s5722 + $0xaf8] sm:$0xff]
    %v6075 = vld [vmem:[%s5722 + $0xb00] sm:$0xff]
    %v6076 = vld [vmem:[%s5722 + $0xb08] sm:$0xff]
    %v6077 = vld [vmem:[%s5722 + $0xb10] sm:$0xff]
    %v6078 = vld [vmem:[%s5722 + $0xb18] sm:$0xff]
    %v6079 = vld [vmem:[%s5722 + $0xb20] sm:$0xff]
    %v6080 = vld [vmem:[%s5722 + $0xb28] sm:$0xff]
    %v6081 = vld [vmem:[%s5722 + $0xb30] sm:$0xff]
    %v6082 = vld [vmem:[%s5722 + $0xb38] sm:$0xff]
    %v6083 = vld [vmem:[%s5722 + $0xb40] sm:$0xff]
    %v6084 = vld [vmem:[%s5722 + $0xb48] sm:$0xff]
    %v6085 = vld [vmem:[%s5722 + $0xb50] sm:$0xff]
    %v6086 = vld [vmem:[%s5722 + $0xb58] sm:$0xff]
    %v6087 = vld [vmem:[%s5722 + $0xb60] sm:$0xff]
    %v6088 = vld [vmem:[%s5722 + $0xb68] sm:$0xff]
    %v6089 = vld [vmem:[%s5722 + $0xb70] sm:$0xff]
    %v6090 = vld [vmem:[%s5722 + $0xb78] sm:$0xff]
    %v6091 = vld [vmem:[%s5722 + $0xb80] sm:$0xff]
    %v6092 = vld [vmem:[%s5722 + $0xb88] sm:$0xff]
    %v6093 = vld [vmem:[%s5722 + $0xb90] sm:$0xff]
    %v6094 = vld [vmem:[%s5722 + $0xb98] sm:$0xff]
    %v6095 = vld [vmem:[%s5722 + $0xba0] sm:$0xff]
    %v6096 = vld [vmem:[%s5722 + $0xba8] sm:$0xff]
    %v6097 = vld [vmem:[%s5722 + $0xbb0] sm:$0xff]
    %v6098 = vld [vmem:[%s5722 + $0xbb8] sm:$0xff]
    %v6099 = vld [vmem:[%s5722 + $0xbc0] sm:$0xff]
    %v6100 = vld [vmem:[%s5722 + $0xbc8] sm:$0xff]
    %v6101 = vld [vmem:[%s5722 + $0xbd0] sm:$0xff]
    %v6102 = vld [vmem:[%s5722 + $0xbd8] sm:$0xff]
    %v6103 = vld [vmem:[%s5722 + $0xbe0] sm:$0xff]
    %v6104 = vld [vmem:[%s5722 + $0xbe8] sm:$0xff]
    %v6105 = vld [vmem:[%s5722 + $0xbf0] sm:$0xff]
    %v6106 = vld [vmem:[%s5722 + $0xbf8] sm:$0xff]
    %v6107 = vld [vmem:[%s5722 + $0xc00] sm:$0xff]
    %v6108 = vld [vmem:[%s5722 + $0xc08] sm:$0xff]
    %v6109 = vld [vmem:[%s5722 + $0xc10] sm:$0xff]
    %v6110 = vld [vmem:[%s5722 + $0xc18] sm:$0xff]
    %v6111 = vld [vmem:[%s5722 + $0xc20] sm:$0xff]
    %v6112 = vld [vmem:[%s5722 + $0xc28] sm:$0xff]
    %v6113 = vld [vmem:[%s5722 + $0xc30] sm:$0xff]
    %v6114 = vld [vmem:[%s5722 + $0xc38] sm:$0xff]
    %v6115 = vld [vmem:[%s5722 + $0xc40] sm:$0xff]
    %v6116 = vld [vmem:[%s5722 + $0xc48] sm:$0xff]
    %v6117 = vld [vmem:[%s5722 + $0xc50] sm:$0xff]
    %v6118 = vld [vmem:[%s5722 + $0xc58] sm:$0xff]
    %v6119 = vld [vmem:[%s5722 + $0xc60] sm:$0xff]
    %v6120 = vld [vmem:[%s5722 + $0xc68] sm:$0xff]
    %v6121 = vld [vmem:[%s5722 + $0xc70] sm:$0xff]
    %v6122 = vld [vmem:[%s5722 + $0xc78] sm:$0xff]
    %6123 = vmatprep.subr.mxu0 %v5724
    %6124 = vmatpush1.msra.mxu0 %v5723
    %6125 = vmatprep.subr.mxu0 %v5729
    %6126 = vmatpush1.msra.mxu0 %v5728
    %6127 = vmatprep.subr.mxu0 %v5734
    %6128 = vmatpush1.msra.mxu0 %v5733
    %6129 = vmatprep.subr.mxu0 %v5739
    %6130 = vmatpush1.msra.mxu0 %v5738
    %6131 = vmatprep.subr.mxu0 %v5744
    %6132 = vmatpush1.msra.mxu0 %v5743
    %6133 = vmatprep.subr.mxu0 %v5749
    %6134 = vmatpush1.msra.mxu0 %v5748
    %6135 = vmatprep.subr.mxu0 %v5754
    %6136 = vmatpush1.msra.mxu0 %v5753
    %6137 = vmatprep.subr.mxu0 %v5759
    %6138 = vmatpush1.msra.mxu0 %v5758
    %6139 = vmatprep.subr.mxu0 %v5764
    %6140 = vmatpush1.msra.mxu0 %v5763
    %6141 = vmatprep.subr.mxu0 %v5769
    %6142 = vmatpush1.msra.mxu0 %v5768
    %6143 = vmatprep.subr.mxu0 %v5774
    %6144 = vmatpush1.msra.mxu0 %v5773
    %6145 = vmatprep.subr.mxu0 %v5779
    %6146 = vmatpush1.msra.mxu0 %v5778
    %6147 = vmatprep.subr.mxu0 %v5784
    %6148 = vmatpush1.msra.mxu0 %v5783
    %6149 = vmatprep.subr.mxu0 %v5789
    %6150 = vmatpush1.msra.mxu0 %v5788
    %6151 = vmatprep.subr.mxu0 %v5794
    %6152 = vmatpush1.msra.mxu0 %v5793
    %6153 = vmatprep.subr.mxu0 %v5799
    %6154 = vmatpush1.msra.mxu0 %v5798
    %6155 = vmatprep.subr.mxu0 %v5804
    %6156 = vmatpush1.msra.mxu0 %v5803
    %6157 = vmatprep.subr.mxu0 %v5809
    %6158 = vmatpush1.msra.mxu0 %v5808
    %6159 = vmatprep.subr.mxu0 %v5814
    %6160 = vmatpush1.msra.mxu0 %v5813
    %6161 = vmatprep.subr.mxu0 %v5819
    %6162 = vmatpush1.msra.mxu0 %v5818
    %6163 = vmatprep.subr.mxu0 %v5824
    %6164 = vmatpush1.msra.mxu0 %v5823
    %6165 = vmatprep.subr.mxu0 %v5829
    %6166 = vmatpush1.msra.mxu0 %v5828
    %6167 = vmatprep.subr.mxu0 %v5834
    %6168 = vmatpush1.msra.mxu0 %v5833
    %6169 = vmatprep.subr.mxu0 %v5839
    %6170 = vmatpush1.msra.mxu0 %v5838
    %6171 = vmatprep.subr.mxu0 %v5844
    %6172 = vmatpush1.msra.mxu0 %v5843
    %6173 = vmatprep.subr.mxu0 %v5849
    %6174 = vmatpush1.msra.mxu0 %v5848
    %6175 = vmatprep.subr.mxu0 %v5854
    %6176 = vmatpush1.msra.mxu0 %v5853
    %6177 = vmatprep.subr.mxu0 %v5859
    %6178 = vmatpush1.msra.mxu0 %v5858
    %6179 = vmatprep.subr.mxu0 %v5864
    %6180 = vmatpush1.msra.mxu0 %v5863
    %6181 = vmatprep.subr.mxu0 %v5869
    %6182 = vmatpush1.msra.mxu0 %v5868
    %6183 = vmatprep.subr.mxu0 %v5874
    %6184 = vmatpush1.msra.mxu0 %v5873
    %6185 = vmatprep.subr.mxu0 %v5879
    %6186 = vmatpush1.msra.mxu0 %v5878
    %6187 = vmatprep.mubr.f32.mxu0 %v5308
    %6188 = vmatmul.mubr.f32.gmra.mrb[0].mxu0 %v5307
    %v6189 = vpop.f32.mrb[0].mxu0
    %v6190 = vadd.f32 0.0, %v6189
    %v6191 = vpop.f32.mrb[0].mxu0
    %v6192 = vadd.f32 0.0, %v6191
    %6193 = vmatprep.mubr.f32.mxu0 %v5313
    %6194 = vmatmul.mubr.f32.gmra.mrb[0].mxu0 %v5312
    %v6195 = vpop.f32.mrb[0].mxu0
    %v6196 = vadd.f32 0.0, %v6195
    %v6197 = vpop.f32.mrb[0].mxu0
    %v6198 = vadd.f32 0.0, %v6197
    %6199 = vmatprep.mubr.f32.mxu0 %v5318
    %6200 = vmatmul.mubr.f32.gmra.mrb[0].mxu0 %v5317
    %v6201 = vpop.f32.mrb[0].mxu0
    %v6202 = vadd.f32 0.0, %v6201
    %v6203 = vpop.f32.mrb[0].mxu0
    %v6204 = vadd.f32 0.0, %v6203
    %6205 = vmatprep.mubr.f32.mxu0 0.0
    %6206 = vmatmul.mubr.f32.gmra.mrb[0].mxu0 0.0
    %v6207 = vpop.f32.mrb[0].mxu0
    %v6208 = vadd.f32 0.0, %v6207
    %v6209 = vpop.f32.mrb[0].mxu0
    %v6210 = vadd.f32 0.0, %v6209
    %6211 = vdwg.mxu0
    %6212 = vmatprep.subr.mxu0 %v5884
    %6213 = vmatpush1.msra.mxu0 %v5883
    %6214 = vmatprep.subr.mxu0 %v5889
    %6215 = vmatpush1.msra.mxu0 %v5888
    %6216 = vmatprep.subr.mxu0 %v5894
    %6217 = vmatpush1.msra.mxu0 %v5893
    %6218 = vmatprep.subr.mxu0 %v5899
    %6219 = vmatpush1.msra.mxu0 %v5898
    %6220 = vmatprep.subr.mxu0 %v5904
    %6221 = vmatpush1.msra.mxu0 %v5903
    %6222 = vmatprep.subr.mxu0 %v5909
    %6223 = vmatpush1.msra.mxu0 %v5908
    %6224 = vmatprep.subr.mxu0 %v5914
    %6225 = vmatpush1.msra.mxu0 %v5913
    %6226 = vmatprep.subr.mxu0 %v5919
    %6227 = vmatpush1.msra.mxu0 %v5918
    %6228 = vmatprep.subr.mxu0 %v5924
    %6229 = vmatpush1.msra.mxu0 %v5923
    %6230 = vmatprep.subr.mxu0 %v5929
    %6231 = vmatpush1.msra.mxu0 %v5928
    %6232 = vmatprep.subr.mxu0 %v5934
    %6233 = vmatpush1.msra.mxu0 %v5933
    %6234 = vmatprep.subr.mxu0 %v5939
    %6235 = vmatpush1.msra.mxu0 %v5938
    %6236 = vmatprep.subr.mxu0 %v5944
    %6237 = vmatpush1.msra.mxu0 %v5943
    %6238 = vmatprep.subr.mxu0 %v5949
    %6239 = vmatpush1.msra.mxu0 %v5948
    %6240 = vmatprep.subr.mxu0 %v5954
    %6241 = vmatpush1.msra.mxu0 %v5953
    %6242 = vmatprep.subr.mxu0 %v5959
    %6243 = vmatpush1.msra.mxu0 %v5958
    %6244 = vmatprep.subr.mxu0 %v5964
    %6245 = vmatpush1.msra.mxu0 %v5963
    %6246 = vmatprep.subr.mxu0 %v5969
    %6247 = vmatpush1.msra.mxu0 %v5968
    %6248 = vmatprep.subr.mxu0 %v5974
    %6249 = vmatpush1.msra.mxu0 %v5973
    %6250 = vmatprep.subr.mxu0 %v5979
    %6251 = vmatpush1.msra.mxu0 %v5978
    %6252 = vmatprep.subr.mxu0 %v5984
    %6253 = vmatpush1.msra.mxu0 %v5983
    %6254 = vmatprep.subr.mxu0 %v5989
    %6255 = vmatpush1.msra.mxu0 %v5988
    %6256 = vmatprep.subr.mxu0 %v5994
    %6257 = vmatpush1.msra.mxu0 %v5993
    %6258 = vmatprep.subr.mxu0 %v5999
    %6259 = vmatpush1.msra.mxu0 %v5998
    %6260 = vmatprep.subr.mxu0 %v6004
    %6261 = vmatpush1.msra.mxu0 %v6003
    %6262 = vmatprep.subr.mxu0 %v6009
    %6263 = vmatpush1.msra.mxu0 %v6008
    %6264 = vmatprep.subr.mxu0 %v6014
    %6265 = vmatpush1.msra.mxu0 %v6013
    %6266 = vmatprep.subr.mxu0 %v6019
    %6267 = vmatpush1.msra.mxu0 %v6018
    %6268 = vmatprep.subr.mxu0 %v6024
    %6269 = vmatpush1.msra.mxu0 %v6023
    %6270 = vmatprep.subr.mxu0 %v6029
    %6271 = vmatpush1.msra.mxu0 %v6028
    %6272 = vmatprep.subr.mxu0 %v6034
    %6273 = vmatpush1.msra.mxu0 %v6033
    %6274 = vmatprep.subr.mxu0 %v6039
    %6275 = vmatpush1.msra.mxu0 %v6038
    %6276 = vmatprep.mubr.f32.mxu0 %v5310
    %6277 = vmatmul.mubr.f32.gmra.mrb[0].mxu0 %v5309
    %v6278 = vpop.f32.mrb[0].mxu0
    %v6279 = vadd.f32 %v6190, %v6278
    %v6280 = vpop.f32.mrb[0].mxu0
    %v6281 = vadd.f32 %v6192, %v6280
    %6282 = vmatprep.mubr.f32.mxu0 %v5315
    %6283 = vmatmul.mubr.f32.gmra.mrb[0].mxu0 %v5314
    %v6284 = vpop.f32.mrb[0].mxu0
    %v6285 = vadd.f32 %v6196, %v6284
    %v6286 = vpop.f32.mrb[0].mxu0
    %v6287 = vadd.f32 %v6198, %v6286
    %6288 = vmatprep.mubr.f32.mxu0 %v5320
    %6289 = vmatmul.mubr.f32.gmra.mrb[0].mxu0 %v5319
    %v6290 = vpop.f32.mrb[0].mxu0
    %v6291 = vadd.f32 %v6202, %v6290
    %v6292 = vpop.f32.mrb[0].mxu0
    %v6293 = vadd.f32 %v6204, %v6292
    %6294 = vmatprep.mubr.f32.mxu0 0.0
    %6295 = vmatmul.mubr.f32.gmra.mrb[0].mxu0 0.0
    %v6296 = vpop.f32.mrb[0].mxu0
    %v6297 = vadd.f32 %v6208, %v6296
    %v6298 = vpop.f32.mrb[0].mxu0
    %v6299 = vadd.f32 %v6210, %v6298
    %6300 = vdwg.mxu0
    %6301 = vmatprep.subr.mxu0 %v6044
    %6302 = vmatpush1.msra.mxu0 %v6043
    %6303 = vmatprep.subr.mxu0 %v6049
    %6304 = vmatpush1.msra.mxu0 %v6048
    %6305 = vmatprep.subr.mxu0 %v6054
    %6306 = vmatpush1.msra.mxu0 %v6053
    %6307 = vmatprep.subr.mxu0 %v6059
    %6308 = vmatpush1.msra.mxu0 %v6058
    %6309 = vmatprep.subr.mxu0 %v6064
    %6310 = vmatpush1.msra.mxu0 %v6063
    %6311 = vmatprep.subr.mxu0 %v6069
    %6312 = vmatpush1.msra.mxu0 %v6068
    %6313 = vmatprep.subr.mxu0 %v6074
    %6314 = vmatpush1.msra.mxu0 %v6073
    %6315 = vmatprep.subr.mxu0 %v6079
    %6316 = vmatpush1.msra.mxu0 %v6078
    %6317 = vmatprep.subr.mxu0 %v6084
    %6318 = vmatpush1.msra.mxu0 %v6083
    %6319 = vmatprep.subr.mxu0 %v6089
    %6320 = vmatpush1.msra.mxu0 %v6088
    %6321 = vmatprep.subr.mxu0 %v6094
    %6322 = vmatpush1.msra.mxu0 %v6093
    %6323 = vmatprep.subr.mxu0 %v6099
    %6324 = vmatpush1.msra.mxu0 %v6098
    %6325 = vmatprep.subr.mxu0 %v6104
    %6326 = vmatpush1.msra.mxu0 %v6103
    %6327 = vmatprep.subr.mxu0 %v6109
    %6328 = vmatpush1.msra.mxu0 %v6108
    %6329 = vmatprep.subr.mxu0 %v6114
    %6330 = vmatpush1.msra.mxu0 %v6113
    %6331 = vmatprep.subr.mxu0 %v6119
    %6332 = vmatpush1.msra.mxu0 %v6118
    %6333 = vmatprep.subr.mxu0 0.0
    %6334 = vmatpush1.msra.mxu0 0.0
    %6335 = vmatprep.subr.mxu0 0.0
    %6336 = vmatpush1.msra.mxu0 0.0
    %6337 = vmatprep.subr.mxu0 0.0
    %6338 = vmatpush1.msra.mxu0 0.0
    %6339 = vmatprep.subr.mxu0 0.0
    %6340 = vmatpush1.msra.mxu0 0.0
    %6341 = vmatprep.subr.mxu0 0.0
    %6342 = vmatpush1.msra.mxu0 0.0
    %6343 = vmatprep.subr.mxu0 0.0
    %6344 = vmatpush1.msra.mxu0 0.0
    %6345 = vmatprep.subr.mxu0 0.0
    %6346 = vmatpush1.msra.mxu0 0.0
    %6347 = vmatprep.subr.mxu0 0.0
    %6348 = vmatpush1.msra.mxu0 0.0
    %6349 = vmatprep.subr.mxu0 0.0
    %6350 = vmatpush1.msra.mxu0 0.0
    %6351 = vmatprep.subr.mxu0 0.0
    %6352 = vmatpush1.msra.mxu0 0.0
    %6353 = vmatprep.subr.mxu0 0.0
    %6354 = vmatpush1.msra.mxu0 0.0
    %6355 = vmatprep.subr.mxu0 0.0
    %6356 = vmatpush1.msra.mxu0 0.0
    %6357 = vmatprep.subr.mxu0 0.0
    %6358 = vmatpush1.msra.mxu0 0.0
    %6359 = vmatprep.subr.mxu0 0.0
    %6360 = vmatpush1.msra.mxu0 0.0
    %6361 = vmatprep.subr.mxu0 0.0
    %6362 = vmatpush1.msra.mxu0 0.0
    %6363 = vmatprep.subr.mxu0 0.0
    %6364 = vmatpush1.msra.mxu0 0.0
    %6365 = vmatprep.mubr.f32.mxu0 0.0
    %6366 = vmatmul.mubr.f32.gmra.mrb[0].mxu0 %v5311
    %v6367 = vpop.f32.mrb[0].mxu0
    %v6368 = vadd.f32 %v6279, %v6367
    %v6369 = vpop.f32.mrb[0].mxu0
    %v6370 = vadd.f32 %v6281, %v6369
    %6371 = vmatprep.mubr.f32.mxu0 0.0
    %6372 = vmatmul.mubr.f32.gmra.mrb[0].mxu0 %v5316
    %v6373 = vpop.f32.mrb[0].mxu0
    %v6374 = vadd.f32 %v6285, %v6373
    %v6375 = vpop.f32.mrb[0].mxu0
    %v6376 = vadd.f32 %v6287, %v6375
    %6377 = vmatprep.mubr.f32.mxu0 0.0
    %6378 = vmatmul.mubr.f32.gmra.mrb[0].mxu0 %v5321
    %v6379 = vpop.f32.mrb[0].mxu0
    %v6380 = vadd.f32 %v6291, %v6379
    %v6381 = vpop.f32.mrb[0].mxu0
    %v6382 = vadd.f32 %v6293, %v6381
    %6383 = vmatprep.mubr.f32.mxu0 0.0
    %6384 = vmatmul.mubr.f32.gmra.mrb[0].mxu0 0.0
    %v6385 = vpop.f32.mrb[0].mxu0
    %v6386 = vadd.f32 %v6297, %v6385
    %v6387 = vpop.f32.mrb[0].mxu0
    %v6388 = vadd.f32 %v6299, %v6387
    %6389 = vdwg.mxu0
    %6390 = vmatprep.subr.mxu0 %v5726
    %6391 = vmatpush1.msra.mxu0 %v5725
    %6392 = vmatprep.subr.mxu0 %v5731
    %6393 = vmatpush1.msra.mxu0 %v5730
    %6394 = vmatprep.subr.mxu0 %v5736
    %6395 = vmatpush1.msra.mxu0 %v5735
    %6396 = vmatprep.subr.mxu0 %v5741
    %6397 = vmatpush1.msra.mxu0 %v5740
    %6398 = vmatprep.subr.mxu0 %v5746
    %6399 = vmatpush1.msra.mxu0 %v5745
    %6400 = vmatprep.subr.mxu0 %v5751
    %6401 = vmatpush1.msra.mxu0 %v5750
    %6402 = vmatprep.subr.mxu0 %v5756
    %6403 = vmatpush1.msra.mxu0 %v5755
    %6404 = vmatprep.subr.mxu0 %v5761
    %6405 = vmatpush1.msra.mxu0 %v5760
    %6406 = vmatprep.subr.mxu0 %v5766
    %6407 = vmatpush1.msra.mxu0 %v5765
    %6408 = vmatprep.subr.mxu0 %v5771
    %6409 = vmatpush1.msra.mxu0 %v5770
    %6410 = vmatprep.subr.mxu0 %v5776
    %6411 = vmatpush1.msra.mxu0 %v5775
    %6412 = vmatprep.subr.mxu0 %v5781
    %6413 = vmatpush1.msra.mxu0 %v5780
    %6414 = vmatprep.subr.mxu0 %v5786
    %6415 = vmatpush1.msra.mxu0 %v5785
    %6416 = vmatprep.subr.mxu0 %v5791
    %6417 = vmatpush1.msra.mxu0 %v5790
    %6418 = vmatprep.subr.mxu0 %v5796
    %6419 = vmatpush1.msra.mxu0 %v5795
    %6420 = vmatprep.subr.mxu0 %v5801
    %6421 = vmatpush1.msra.mxu0 %v5800
    %6422 = vmatprep.subr.mxu0 %v5806
    %6423 = vmatpush1.msra.mxu0 %v5805
    %6424 = vmatprep.subr.mxu0 %v5811
    %6425 = vmatpush1.msra.mxu0 %v5810
    %6426 = vmatprep.subr.mxu0 %v5816
    %6427 = vmatpush1.msra.mxu0 %v5815
    %6428 = vmatprep.subr.mxu0 %v5821
    %6429 = vmatpush1.msra.mxu0 %v5820
    %6430 = vmatprep.subr.mxu0 %v5826
    %6431 = vmatpush1.msra.mxu0 %v5825
    %6432 = vmatprep.subr.mxu0 %v5831
    %6433 = vmatpush1.msra.mxu0 %v5830
    %6434 = vmatprep.subr.mxu0 %v5836
    %6435 = vmatpush1.msra.mxu0 %v5835
    %6436 = vmatprep.subr.mxu0 %v5841
    %6437 = vmatpush1.msra.mxu0 %v5840
    %6438 = vmatprep.subr.mxu0 %v5846
    %6439 = vmatpush1.msra.mxu0 %v5845
    %6440 = vmatprep.subr.mxu0 %v5851
    %6441 = vmatpush1.msra.mxu0 %v5850
    %6442 = vmatprep.subr.mxu0 %v5856
    %6443 = vmatpush1.msra.mxu0 %v5855
    %6444 = vmatprep.subr.mxu0 %v5861
    %6445 = vmatpush1.msra.mxu0 %v5860
    %6446 = vmatprep.subr.mxu0 %v5866
    %6447 = vmatpush1.msra.mxu0 %v5865
    %6448 = vmatprep.subr.mxu0 %v5871
    %6449 = vmatpush1.msra.mxu0 %v5870
    %6450 = vmatprep.subr.mxu0 %v5876
    %6451 = vmatpush1.msra.mxu0 %v5875
    %6452 = vmatprep.subr.mxu0 %v5881
    %6453 = vmatpush1.msra.mxu0 %v5880
    %6454 = vmatprep.mubr.f32.mxu0 %v5308
    %6455 = vmatmul.mubr.f32.gmra.mrb[0].mxu0 %v5307
    %v6456 = vpop.f32.mrb[0].mxu0
    %v6457 = vadd.f32 0.0, %v6456
    %v6458 = vpop.f32.mrb[0].mxu0
    %v6459 = vadd.f32 0.0, %v6458
    %6460 = vmatprep.mubr.f32.mxu0 %v5313
    %6461 = vmatmul.mubr.f32.gmra.mrb[0].mxu0 %v5312
    %v6462 = vpop.f32.mrb[0].mxu0
    %v6463 = vadd.f32 0.0, %v6462
    %v6464 = vpop.f32.mrb[0].mxu0
    %v6465 = vadd.f32 0.0, %v6464
    %6466 = vmatprep.mubr.f32.mxu0 %v5318
    %6467 = vmatmul.mubr.f32.gmra.mrb[0].mxu0 %v5317
    %v6468 = vpop.f32.mrb[0].mxu0
    %v6469 = vadd.f32 0.0, %v6468
    %v6470 = vpop.f32.mrb[0].mxu0
    %v6471 = vadd.f32 0.0, %v6470
    %6472 = vmatprep.mubr.f32.mxu0 0.0
    %6473 = vmatmul.mubr.f32.gmra.mrb[0].mxu0 0.0
    %v6474 = vpop.f32.mrb[0].mxu0
    %v6475 = vadd.f32 0.0, %v6474
    %v6476 = vpop.f32.mrb[0].mxu0
    %v6477 = vadd.f32 0.0, %v6476
    %6478 = vdwg.mxu0
    %6479 = vmatprep.subr.mxu0 %v5886
    %6480 = vmatpush1.msra.mxu0 %v5885
    %6481 = vmatprep.subr.mxu0 %v5891
    %6482 = vmatpush1.msra.mxu0 %v5890
    %6483 = vmatprep.subr.mxu0 %v5896
    %6484 = vmatpush1.msra.mxu0 %v5895
    %6485 = vmatprep.subr.mxu0 %v5901
    %6486 = vmatpush1.msra.mxu0 %v5900
    %6487 = vmatprep.subr.mxu0 %v5906
    %6488 = vmatpush1.msra.mxu0 %v5905
    %6489 = vmatprep.subr.mxu0 %v5911
    %6490 = vmatpush1.msra.mxu0 %v5910
    %6491 = vmatprep.subr.mxu0 %v5916
    %6492 = vmatpush1.msra.mxu0 %v5915
    %6493 = vmatprep.subr.mxu0 %v5921
    %6494 = vmatpush1.msra.mxu0 %v5920
    %6495 = vmatprep.subr.mxu0 %v5926
    %6496 = vmatpush1.msra.mxu0 %v5925
    %6497 = vmatprep.subr.mxu0 %v5931
    %6498 = vmatpush1.msra.mxu0 %v5930
    %6499 = vmatprep.subr.mxu0 %v5936
    %6500 = vmatpush1.msra.mxu0 %v5935
    %6501 = vmatprep.subr.mxu0 %v5941
    %6502 = vmatpush1.msra.mxu0 %v5940
    %6503 = vmatprep.subr.mxu0 %v5946
    %6504 = vmatpush1.msra.mxu0 %v5945
    %6505 = vmatprep.subr.mxu0 %v5951
    %6506 = vmatpush1.msra.mxu0 %v5950
    %6507 = vmatprep.subr.mxu0 %v5956
    %6508 = vmatpush1.msra.mxu0 %v5955
    %6509 = vmatprep.subr.mxu0 %v5961
    %6510 = vmatpush1.msra.mxu0 %v5960
    %6511 = vmatprep.subr.mxu0 %v5966
    %6512 = vmatpush1.msra.mxu0 %v5965
    %6513 = vmatprep.subr.mxu0 %v5971
    %6514 = vmatpush1.msra.mxu0 %v5970
    %6515 = vmatprep.subr.mxu0 %v5976
    %6516 = vmatpush1.msra.mxu0 %v5975
    %6517 = vmatprep.subr.mxu0 %v5981
    %6518 = vmatpush1.msra.mxu0 %v5980
    %6519 = vmatprep.subr.mxu0 %v5986
    %6520 = vmatpush1.msra.mxu0 %v5985
    %6521 = vmatprep.subr.mxu0 %v5991
    %6522 = vmatpush1.msra.mxu0 %v5990
    %6523 = vmatprep.subr.mxu0 %v5996
    %6524 = vmatpush1.msra.mxu0 %v5995
    %6525 = vmatprep.subr.mxu0 %v6001
    %6526 = vmatpush1.msra.mxu0 %v6000
    %6527 = vmatprep.subr.mxu0 %v6006
    %6528 = vmatpush1.msra.mxu0 %v6005
    %6529 = vmatprep.subr.mxu0 %v6011
    %6530 = vmatpush1.msra.mxu0 %v6010
    %6531 = vmatprep.subr.mxu0 %v6016
    %6532 = vmatpush1.msra.mxu0 %v6015
    %6533 = vmatprep.subr.mxu0 %v6021
    %6534 = vmatpush1.msra.mxu0 %v6020
    %6535 = vmatprep.subr.mxu0 %v6026
    %6536 = vmatpush1.msra.mxu0 %v6025
    %6537 = vmatprep.subr.mxu0 %v6031
    %6538 = vmatpush1.msra.mxu0 %v6030
    %6539 = vmatprep.subr.mxu0 %v6036
    %6540 = vmatpush1.msra.mxu0 %v6035
    %6541 = vmatprep.subr.mxu0 %v6041
    %6542 = vmatpush1.msra.mxu0 %v6040
    %6543 = vmatprep.mubr.f32.mxu0 %v5310
    %6544 = vmatmul.mubr.f32.gmra.mrb[0].mxu0 %v5309
    %v6545 = vpop.f32.mrb[0].mxu0
    %v6546 = vadd.f32 %v6457, %v6545
    %v6547 = vpop.f32.mrb[0].mxu0
    %v6548 = vadd.f32 %v6459, %v6547
    %6549 = vmatprep.mubr.f32.mxu0 %v5315
    %6550 = vmatmul.mubr.f32.gmra.mrb[0].mxu0 %v5314
    %v6551 = vpop.f32.mrb[0].mxu0
    %v6552 = vadd.f32 %v6463, %v6551
    %v6553 = vpop.f32.mrb[0].mxu0
    %v6554 = vadd.f32 %v6465, %v6553
    %6555 = vmatprep.mubr.f32.mxu0 %v5320
    %6556 = vmatmul.mubr.f32.gmra.mrb[0].mxu0 %v5319
    %v6557 = vpop.f32.mrb[0].mxu0
    %v6558 = vadd.f32 %v6469, %v6557
    %v6559 = vpop.f32.mrb[0].mxu0
    %v6560 = vadd.f32 %v6471, %v6559
    %6561 = vmatprep.mubr.f32.mxu0 0.0
    %6562 = vmatmul.mubr.f32.gmra.mrb[0].mxu0 0.0
    %v6563 = vpop.f32.mrb[0].mxu0
    %v6564 = vadd.f32 %v6475, %v6563
    %v6565 = vpop.f32.mrb[0].mxu0
    %v6566 = vadd.f32 %v6477, %v6565
    %6567 = vdwg.mxu0
    %6568 = vmatprep.subr.mxu0 %v6046
    %6569 = vmatpush1.msra.mxu0 %v6045
    %6570 = vmatprep.subr.mxu0 %v6051
    %6571 = vmatpush1.msra.mxu0 %v6050
    %6572 = vmatprep.subr.mxu0 %v6056
    %6573 = vmatpush1.msra.mxu0 %v6055
    %6574 = vmatprep.subr.mxu0 %v6061
    %6575 = vmatpush1.msra.mxu0 %v6060
    %6576 = vmatprep.subr.mxu0 %v6066
    %6577 = vmatpush1.msra.mxu0 %v6065
    %6578 = vmatprep.subr.mxu0 %v6071
    %6579 = vmatpush1.msra.mxu0 %v6070
    %6580 = vmatprep.subr.mxu0 %v6076
    %6581 = vmatpush1.msra.mxu0 %v6075
    %6582 = vmatprep.subr.mxu0 %v6081
    %6583 = vmatpush1.msra.mxu0 %v6080
    %6584 = vmatprep.subr.mxu0 %v6086
    %6585 = vmatpush1.msra.mxu0 %v6085
    %6586 = vmatprep.subr.mxu0 %v6091
    %6587 = vmatpush1.msra.mxu0 %v6090
    %6588 = vmatprep.subr.mxu0 %v6096
    %6589 = vmatpush1.msra.mxu0 %v6095
    %6590 = vmatprep.subr.mxu0 %v6101
    %6591 = vmatpush1.msra.mxu0 %v6100
    %6592 = vmatprep.subr.mxu0 %v6106
    %6593 = vmatpush1.msra.mxu0 %v6105
    %6594 = vmatprep.subr.mxu0 %v6111
    %6595 = vmatpush1.msra.mxu0 %v6110
    %6596 = vmatprep.subr.mxu0 %v6116
    %6597 = vmatpush1.msra.mxu0 %v6115
    %6598 = vmatprep.subr.mxu0 %v6121
    %6599 = vmatpush1.msra.mxu0 %v6120
    %6600 = vmatprep.subr.mxu0 0.0
    %6601 = vmatpush1.msra.mxu0 0.0
    %6602 = vmatprep.subr.mxu0 0.0
    %6603 = vmatpush1.msra.mxu0 0.0
    %6604 = vmatprep.subr.mxu0 0.0
    %6605 = vmatpush1.msra.mxu0 0.0
    %6606 = vmatprep.subr.mxu0 0.0
    %6607 = vmatpush1.msra.mxu0 0.0
    %6608 = vmatprep.subr.mxu0 0.0
    %6609 = vmatpush1.msra.mxu0 0.0
    %6610 = vmatprep.subr.mxu0 0.0
    %6611 = vmatpush1.msra.mxu0 0.0
    %6612 = vmatprep.subr.mxu0 0.0
    %6613 = vmatpush1.msra.mxu0 0.0
    %6614 = vmatprep.subr.mxu0 0.0
    %6615 = vmatpush1.msra.mxu0 0.0
    %6616 = vmatprep.subr.mxu0 0.0
    %6617 = vmatpush1.msra.mxu0 0.0
    %6618 = vmatprep.subr.mxu0 0.0
    %6619 = vmatpush1.msra.mxu0 0.0
    %6620 = vmatprep.subr.mxu0 0.0
    %6621 = vmatpush1.msra.mxu0 0.0
    %6622 = vmatprep.subr.mxu0 0.0
    %6623 = vmatpush1.msra.mxu0 0.0
    %6624 = vmatprep.subr.mxu0 0.0
    %6625 = vmatpush1.msra.mxu0 0.0
    %6626 = vmatprep.subr.mxu0 0.0
    %6627 = vmatpush1.msra.mxu0 0.0
    %6628 = vmatprep.subr.mxu0 0.0
    %6629 = vmatpush1.msra.mxu0 0.0
    %6630 = vmatprep.subr.mxu0 0.0
    %6631 = vmatpush1.msra.mxu0 0.0
    %6632 = vmatprep.mubr.f32.mxu0 0.0
    %6633 = vmatmul.mubr.f32.gmra.mrb[0].mxu0 %v5311
    %v6634 = vpop.f32.mrb[0].mxu0
    %v6635 = vadd.f32 %v6546, %v6634
    %v6636 = vpop.f32.mrb[0].mxu0
    %v6637 = vadd.f32 %v6548, %v6636
    %6638 = vmatprep.mubr.f32.mxu0 0.0
    %6639 = vmatmul.mubr.f32.gmra.mrb[0].mxu0 %v5316
    %v6640 = vpop.f32.mrb[0].mxu0
    %v6641 = vadd.f32 %v6552, %v6640
    %v6642 = vpop.f32.mrb[0].mxu0
    %v6643 = vadd.f32 %v6554, %v6642
    %6644 = vmatprep.mubr.f32.mxu0 0.0
    %6645 = vmatmul.mubr.f32.gmra.mrb[0].mxu0 %v5321
    %v6646 = vpop.f32.mrb[0].mxu0
    %v6647 = vadd.f32 %v6558, %v6646
    %v6648 = vpop.f32.mrb[0].mxu0
    %v6649 = vadd.f32 %v6560, %v6648
    %6650 = vmatprep.mubr.f32.mxu0 0.0
    %6651 = vmatmul.mubr.f32.gmra.mrb[0].mxu0 0.0
    %v6652 = vpop.f32.mrb[0].mxu0
    %v6653 = vadd.f32 %v6564, %v6652
    %v6654 = vpop.f32.mrb[0].mxu0
    %v6655 = vadd.f32 %v6566, %v6654
    %6656 = vdwg.mxu0
    %6657 = vmatprep.subr.mxu0 0.0
    %6658 = vmatpush1.msra.mxu0 %v5727
    %6659 = vmatprep.subr.mxu0 0.0
    %6660 = vmatpush1.msra.mxu0 %v5732
    %6661 = vmatprep.subr.mxu0 0.0
    %6662 = vmatpush1.msra.mxu0 %v5737
    %6663 = vmatprep.subr.mxu0 0.0
    %6664 = vmatpush1.msra.mxu0 %v5742
    %6665 = vmatprep.subr.mxu0 0.0
    %6666 = vmatpush1.msra.mxu0 %v5747
    %6667 = vmatprep.subr.mxu0 0.0
    %6668 = vmatpush1.msra.mxu0 %v5752
    %6669 = vmatprep.subr.mxu0 0.0
    %6670 = vmatpush1.msra.mxu0 %v5757
    %6671 = vmatprep.subr.mxu0 0.0
    %6672 = vmatpush1.msra.mxu0 %v5762
    %6673 = vmatprep.subr.mxu0 0.0
    %6674 = vmatpush1.msra.mxu0 %v5767
    %6675 = vmatprep.subr.mxu0 0.0
    %6676 = vmatpush1.msra.mxu0 %v5772
    %6677 = vmatprep.subr.mxu0 0.0
    %6678 = vmatpush1.msra.mxu0 %v5777
    %6679 = vmatprep.subr.mxu0 0.0
    %6680 = vmatpush1.msra.mxu0 %v5782
    %6681 = vmatprep.subr.mxu0 0.0
    %6682 = vmatpush1.msra.mxu0 %v5787
    %6683 = vmatprep.subr.mxu0 0.0
    %6684 = vmatpush1.msra.mxu0 %v5792
    %6685 = vmatprep.subr.mxu0 0.0
    %6686 = vmatpush1.msra.mxu0 %v5797
    %6687 = vmatprep.subr.mxu0 0.0
    %6688 = vmatpush1.msra.mxu0 %v5802
    %6689 = vmatprep.subr.mxu0 0.0
    %6690 = vmatpush1.msra.mxu0 %v5807
    %6691 = vmatprep.subr.mxu0 0.0
    %6692 = vmatpush1.msra.mxu0 %v5812
    %6693 = vmatprep.subr.mxu0 0.0
    %6694 = vmatpush1.msra.mxu0 %v5817
    %6695 = vmatprep.subr.mxu0 0.0
    %6696 = vmatpush1.msra.mxu0 %v5822
    %6697 = vmatprep.subr.mxu0 0.0
    %6698 = vmatpush1.msra.mxu0 %v5827
    %6699 = vmatprep.subr.mxu0 0.0
    %6700 = vmatpush1.msra.mxu0 %v5832
    %6701 = vmatprep.subr.mxu0 0.0
    %6702 = vmatpush1.msra.mxu0 %v5837
    %6703 = vmatprep.subr.mxu0 0.0
    %6704 = vmatpush1.msra.mxu0 %v5842
    %6705 = vmatprep.subr.mxu0 0.0
    %6706 = vmatpush1.msra.mxu0 %v5847
    %6707 = vmatprep.subr.mxu0 0.0
    %6708 = vmatpush1.msra.mxu0 %v5852
    %6709 = vmatprep.subr.mxu0 0.0
    %6710 = vmatpush1.msra.mxu0 %v5857
    %6711 = vmatprep.subr.mxu0 0.0
    %6712 = vmatpush1.msra.mxu0 %v5862
    %6713 = vmatprep.subr.mxu0 0.0
    %6714 = vmatpush1.msra.mxu0 %v5867
    %6715 = vmatprep.subr.mxu0 0.0
    %6716 = vmatpush1.msra.mxu0 %v5872
    %6717 = vmatprep.subr.mxu0 0.0
    %6718 = vmatpush1.msra.mxu0 %v5877
    %6719 = vmatprep.subr.mxu0 0.0
    %6720 = vmatpush1.msra.mxu0 %v5882
    %6721 = vmatprep.mubr.f32.mxu0 %v5308
    %6722 = vmatmul.mubr.f32.gmra.mrb[0].mxu0 %v5307
    %v6723 = vpop.f32.mrb[0].mxu0
    %v6724 = vadd.f32 0.0, %v6723
    %v6725 = vpop.f32.mrb[0].mxu0
    %6726 = vmatprep.mubr.f32.mxu0 %v5313
    %6727 = vmatmul.mubr.f32.gmra.mrb[0].mxu0 %v5312
    %v6728 = vpop.f32.mrb[0].mxu0
    %v6729 = vadd.f32 0.0, %v6728
    %v6730 = vpop.f32.mrb[0].mxu0
    %6731 = vmatprep.mubr.f32.mxu0 %v5318
    %6732 = vmatmul.mubr.f32.gmra.mrb[0].mxu0 %v5317
    %v6733 = vpop.f32.mrb[0].mxu0
    %v6734 = vadd.f32 0.0, %v6733
    %v6735 = vpop.f32.mrb[0].mxu0
    %6736 = vmatprep.mubr.f32.mxu0 0.0
    %6737 = vmatmul.mubr.f32.gmra.mrb[0].mxu0 0.0
    %v6738 = vpop.f32.mrb[0].mxu0
    %v6739 = vadd.f32 0.0, %v6738
    %v6740 = vpop.f32.mrb[0].mxu0
    %6741 = vdwg.mxu0
    %6742 = vmatprep.subr.mxu0 0.0
    %6743 = vmatpush1.msra.mxu0 %v5887
    %6744 = vmatprep.subr.mxu0 0.0
    %6745 = vmatpush1.msra.mxu0 %v5892
    %6746 = vmatprep.subr.mxu0 0.0
    %6747 = vmatpush1.msra.mxu0 %v5897
    %6748 = vmatprep.subr.mxu0 0.0
    %6749 = vmatpush1.msra.mxu0 %v5902
    %6750 = vmatprep.subr.mxu0 0.0
    %6751 = vmatpush1.msra.mxu0 %v5907
    %6752 = vmatprep.subr.mxu0 0.0
    %6753 = vmatpush1.msra.mxu0 %v5912
    %6754 = vmatprep.subr.mxu0 0.0
    %6755 = vmatpush1.msra.mxu0 %v5917
    %6756 = vmatprep.subr.mxu0 0.0
    %6757 = vmatpush1.msra.mxu0 %v5922
    %6758 = vmatprep.subr.mxu0 0.0
    %6759 = vmatpush1.msra.mxu0 %v5927
    %6760 = vmatprep.subr.mxu0 0.0
    %6761 = vmatpush1.msra.mxu0 %v5932
    %6762 = vmatprep.subr.mxu0 0.0
    %6763 = vmatpush1.msra.mxu0 %v5937
    %6764 = vmatprep.subr.mxu0 0.0
    %6765 = vmatpush1.msra.mxu0 %v5942
    %6766 = vmatprep.subr.mxu0 0.0
    %6767 = vmatpush1.msra.mxu0 %v5947
    %6768 = vmatprep.subr.mxu0 0.0
    %6769 = vmatpush1.msra.mxu0 %v5952
    %6770 = vmatprep.subr.mxu0 0.0
    %6771 = vmatpush1.msra.mxu0 %v5957
    %6772 = vmatprep.subr.mxu0 0.0
    %6773 = vmatpush1.msra.mxu0 %v5962
    %6774 = vmatprep.subr.mxu0 0.0
    %6775 = vmatpush1.msra.mxu0 %v5967
    %6776 = vmatprep.subr.mxu0 0.0
    %6777 = vmatpush1.msra.mxu0 %v5972
    %6778 = vmatprep.subr.mxu0 0.0
    %6779 = vmatpush1.msra.mxu0 %v5977
    %6780 = vmatprep.subr.mxu0 0.0
    %6781 = vmatpush1.msra.mxu0 %v5982
    %6782 = vmatprep.subr.mxu0 0.0
    %6783 = vmatpush1.msra.mxu0 %v5987
    %6784 = vmatprep.subr.mxu0 0.0
    %6785 = vmatpush1.msra.mxu0 %v5992
    %6786 = vmatprep.subr.mxu0 0.0
    %6787 = vmatpush1.msra.mxu0 %v5997
    %6788 = vmatprep.subr.mxu0 0.0
    %6789 = vmatpush1.msra.mxu0 %v6002
    %6790 = vmatprep.subr.mxu0 0.0
    %6791 = vmatpush1.msra.mxu0 %v6007
    %6792 = vmatprep.subr.mxu0 0.0
    %6793 = vmatpush1.msra.mxu0 %v6012
    %6794 = vmatprep.subr.mxu0 0.0
    %6795 = vmatpush1.msra.mxu0 %v6017
    %6796 = vmatprep.subr.mxu0 0.0
    %6797 = vmatpush1.msra.mxu0 %v6022
    %6798 = vmatprep.subr.mxu0 0.0
    %6799 = vmatpush1.msra.mxu0 %v6027
    %6800 = vmatprep.subr.mxu0 0.0
    %6801 = vmatpush1.msra.mxu0 %v6032
    %6802 = vmatprep.subr.mxu0 0.0
    %6803 = vmatpush1.msra.mxu0 %v6037
    %6804 = vmatprep.subr.mxu0 0.0
    %6805 = vmatpush1.msra.mxu0 %v6042
    %6806 = vmatprep.mubr.f32.mxu0 %v5310
    %6807 = vmatmul.mubr.f32.gmra.mrb[0].mxu0 %v5309
    %v6808 = vpop.f32.mrb[0].mxu0
    %v6809 = vadd.f32 %v6724, %v6808
    %v6810 = vpop.f32.mrb[0].mxu0
    %6811 = vmatprep.mubr.f32.mxu0 %v5315
    %6812 = vmatmul.mubr.f32.gmra.mrb[0].mxu0 %v5314
    %v6813 = vpop.f32.mrb[0].mxu0
    %v6814 = vadd.f32 %v6729, %v6813
    %v6815 = vpop.f32.mrb[0].mxu0
    %6816 = vmatprep.mubr.f32.mxu0 %v5320
    %6817 = vmatmul.mubr.f32.gmra.mrb[0].mxu0 %v5319
    %v6818 = vpop.f32.mrb[0].mxu0
    %v6819 = vadd.f32 %v6734, %v6818
    %v6820 = vpop.f32.mrb[0].mxu0
    %6821 = vmatprep.mubr.f32.mxu0 0.0
    %6822 = vmatmul.mubr.f32.gmra.mrb[0].mxu0 0.0
    %v6823 = vpop.f32.mrb[0].mxu0
    %v6824 = vadd.f32 %v6739, %v6823
    %v6825 = vpop.f32.mrb[0].mxu0
    %6826 = vdwg.mxu0
    %6827 = vmatprep.subr.mxu0 0.0
    %6828 = vmatpush1.msra.mxu0 %v6047
    %6829 = vmatprep.subr.mxu0 0.0
    %6830 = vmatpush1.msra.mxu0 %v6052
    %6831 = vmatprep.subr.mxu0 0.0
    %6832 = vmatpush1.msra.mxu0 %v6057
    %6833 = vmatprep.subr.mxu0 0.0
    %6834 = vmatpush1.msra.mxu0 %v6062
    %6835 = vmatprep.subr.mxu0 0.0
    %6836 = vmatpush1.msra.mxu0 %v6067
    %6837 = vmatprep.subr.mxu0 0.0
    %6838 = vmatpush1.msra.mxu0 %v6072
    %6839 = vmatprep.subr.mxu0 0.0
    %6840 = vmatpush1.msra.mxu0 %v6077
    %6841 = vmatprep.subr.mxu0 0.0
    %6842 = vmatpush1.msra.mxu0 %v6082
    %6843 = vmatprep.subr.mxu0 0.0
    %6844 = vmatpush1.msra.mxu0 %v6087
    %6845 = vmatprep.subr.mxu0 0.0
    %6846 = vmatpush1.msra.mxu0 %v6092
    %6847 = vmatprep.subr.mxu0 0.0
    %6848 = vmatpush1.msra.mxu0 %v6097
    %6849 = vmatprep.subr.mxu0 0.0
    %6850 = vmatpush1.msra.mxu0 %v6102
    %6851 = vmatprep.subr.mxu0 0.0
    %6852 = vmatpush1.msra.mxu0 %v6107
    %6853 = vmatprep.subr.mxu0 0.0
    %6854 = vmatpush1.msra.mxu0 %v6112
    %6855 = vmatprep.subr.mxu0 0.0
    %6856 = vmatpush1.msra.mxu0 %v6117
    %6857 = vmatprep.subr.mxu0 0.0
    %6858 = vmatpush1.msra.mxu0 %v6122
    %6859 = vmatprep.subr.mxu0 0.0
    %6860 = vmatpush1.msra.mxu0 0.0
    %6861 = vmatprep.subr.mxu0 0.0
    %6862 = vmatpush1.msra.mxu0 0.0
    %6863 = vmatprep.subr.mxu0 0.0
    %6864 = vmatpush1.msra.mxu0 0.0
    %6865 = vmatprep.subr.mxu0 0.0
    %6866 = vmatpush1.msra.mxu0 0.0
    %6867 = vmatprep.subr.mxu0 0.0
    %6868 = vmatpush1.msra.mxu0 0.0
    %6869 = vmatprep.subr.mxu0 0.0
    %6870 = vmatpush1.msra.mxu0 0.0
    %6871 = vmatprep.subr.mxu0 0.0
    %6872 = vmatpush1.msra.mxu0 0.0
    %6873 = vmatprep.subr.mxu0 0.0
    %6874 = vmatpush1.msra.mxu0 0.0
    %6875 = vmatprep.subr.mxu0 0.0
    %6876 = vmatpush1.msra.mxu0 0.0
    %6877 = vmatprep.subr.mxu0 0.0
    %6878 = vmatpush1.msra.mxu0 0.0
    %6879 = vmatprep.subr.mxu0 0.0
    %6880 = vmatpush1.msra.mxu0 0.0
    %6881 = vmatprep.subr.mxu0 0.0
    %6882 = vmatpush1.msra.mxu0 0.0
    %6883 = vmatprep.subr.mxu0 0.0
    %6884 = vmatpush1.msra.mxu0 0.0
    %6885 = vmatprep.subr.mxu0 0.0
    %6886 = vmatpush1.msra.mxu0 0.0
    %6887 = vmatprep.subr.mxu0 0.0
    %6888 = vmatpush1.msra.mxu0 0.0
    %6889 = vmatprep.subr.mxu0 0.0
    %6890 = vmatpush1.msra.mxu0 0.0
    %6891 = vmatprep.mubr.f32.mxu0 0.0
    %6892 = vmatmul.mubr.f32.gmra.mrb[0].mxu0 %v5311
    %v6893 = vpop.f32.mrb[0].mxu0
    %v6894 = vadd.f32 %v6809, %v6893
    %v6895 = vpop.f32.mrb[0].mxu0
    %6896 = vmatprep.mubr.f32.mxu0 0.0
    %6897 = vmatmul.mubr.f32.gmra.mrb[0].mxu0 %v5316
    %v6898 = vpop.f32.mrb[0].mxu0
    %v6899 = vadd.f32 %v6814, %v6898
    %v6900 = vpop.f32.mrb[0].mxu0
    %6901 = vmatprep.mubr.f32.mxu0 0.0
    %6902 = vmatmul.mubr.f32.gmra.mrb[0].mxu0 %v5321
    %v6903 = vpop.f32.mrb[0].mxu0
    %v6904 = vadd.f32 %v6819, %v6903
    %v6905 = vpop.f32.mrb[0].mxu0
    %6906 = vmatprep.mubr.f32.mxu0 0.0
    %6907 = vmatmul.mubr.f32.gmra.mrb[0].mxu0 0.0
    %v6908 = vpop.f32.mrb[0].mxu0
    %v6909 = vadd.f32 %v6824, %v6908
    %v6910 = vpop.f32.mrb[0].mxu0
    %6911 = vdwg.mxu0
    %6912 = vmatprep.subr.mxu0 %v5323
    %6913 = vmatpush1.msra.mxu0 %v5322
    %6914 = vmatprep.subr.mxu0 %v5328
    %6915 = vmatpush1.msra.mxu0 %v5327
    %6916 = vmatprep.subr.mxu0 %v5333
    %6917 = vmatpush1.msra.mxu0 %v5332
    %6918 = vmatprep.subr.mxu0 %v5338
    %6919 = vmatpush1.msra.mxu0 %v5337
    %6920 = vmatprep.subr.mxu0 %v5343
    %6921 = vmatpush1.msra.mxu0 %v5342
    %6922 = vmatprep.subr.mxu0 %v5348
    %6923 = vmatpush1.msra.mxu0 %v5347
    %6924 = vmatprep.subr.mxu0 %v5353
    %6925 = vmatpush1.msra.mxu0 %v5352
    %6926 = vmatprep.subr.mxu0 %v5358
    %6927 = vmatpush1.msra.mxu0 %v5357
    %6928 = vmatprep.subr.mxu0 %v5363
    %6929 = vmatpush1.msra.mxu0 %v5362
    %6930 = vmatprep.subr.mxu0 %v5368
    %6931 = vmatpush1.msra.mxu0 %v5367
    %6932 = vmatprep.subr.mxu0 %v5373
    %6933 = vmatpush1.msra.mxu0 %v5372
    %6934 = vmatprep.subr.mxu0 %v5378
    %6935 = vmatpush1.msra.mxu0 %v5377
    %6936 = vmatprep.subr.mxu0 %v5383
    %6937 = vmatpush1.msra.mxu0 %v5382
    %6938 = vmatprep.subr.mxu0 %v5388
    %6939 = vmatpush1.msra.mxu0 %v5387
    %6940 = vmatprep.subr.mxu0 %v5393
    %6941 = vmatpush1.msra.mxu0 %v5392
    %6942 = vmatprep.subr.mxu0 %v5398
    %6943 = vmatpush1.msra.mxu0 %v5397
    %6944 = vmatprep.subr.mxu0 %v5403
    %6945 = vmatpush1.msra.mxu0 %v5402
    %6946 = vmatprep.subr.mxu0 %v5408
    %6947 = vmatpush1.msra.mxu0 %v5407
    %6948 = vmatprep.subr.mxu0 %v5413
    %6949 = vmatpush1.msra.mxu0 %v5412
    %6950 = vmatprep.subr.mxu0 %v5418
    %6951 = vmatpush1.msra.mxu0 %v5417
    %6952 = vmatprep.subr.mxu0 %v5423
    %6953 = vmatpush1.msra.mxu0 %v5422
    %6954 = vmatprep.subr.mxu0 %v5428
    %6955 = vmatpush1.msra.mxu0 %v5427
    %6956 = vmatprep.subr.mxu0 %v5433
    %6957 = vmatpush1.msra.mxu0 %v5432
    %6958 = vmatprep.subr.mxu0 %v5438
    %6959 = vmatpush1.msra.mxu0 %v5437
    %6960 = vmatprep.subr.mxu0 %v5443
    %6961 = vmatpush1.msra.mxu0 %v5442
    %6962 = vmatprep.subr.mxu0 %v5448
    %6963 = vmatpush1.msra.mxu0 %v5447
    %6964 = vmatprep.subr.mxu0 %v5453
    %6965 = vmatpush1.msra.mxu0 %v5452
    %6966 = vmatprep.subr.mxu0 %v5458
    %6967 = vmatpush1.msra.mxu0 %v5457
    %6968 = vmatprep.subr.mxu0 %v5463
    %6969 = vmatpush1.msra.mxu0 %v5462
    %6970 = vmatprep.subr.mxu0 %v5468
    %6971 = vmatpush1.msra.mxu0 %v5467
    %6972 = vmatprep.subr.mxu0 %v5473
    %6973 = vmatpush1.msra.mxu0 %v5472
    %6974 = vmatprep.subr.mxu0 %v5478
    %6975 = vmatpush1.msra.mxu0 %v5477
    %6976 = vmatprep.mubr.f32.mxu0 %v5303
    %6977 = vmatmul.mubr.f32.gmra.mrb[0].mxu0 %v5302
    %v6978 = vpop.f32.mrb[0].mxu0
    %v6979 = vadd.f32 %v6368, %v6978
    %v6980 = vpop.f32.mrb[0].mxu0
    %v6981 = vadd.f32 %v6370, %v6980
    %6982 = vmatprep.mubr.f32.mxu0 %v5308
    %6983 = vmatmul.mubr.f32.gmra.mrb[0].mxu0 %v5307
    %v6984 = vpop.f32.mrb[0].mxu0
    %v6985 = vadd.f32 %v6374, %v6984
    %v6986 = vpop.f32.mrb[0].mxu0
    %v6987 = vadd.f32 %v6376, %v6986
    %6988 = vmatprep.mubr.f32.mxu0 %v5313
    %6989 = vmatmul.mubr.f32.gmra.mrb[0].mxu0 %v5312
    %v6990 = vpop.f32.mrb[0].mxu0
    %v6991 = vadd.f32 %v6380, %v6990
    %v6992 = vpop.f32.mrb[0].mxu0
    %v6993 = vadd.f32 %v6382, %v6992
    %6994 = vmatprep.mubr.f32.mxu0 %v5318
    %6995 = vmatmul.mubr.f32.gmra.mrb[0].mxu0 %v5317
    %v6996 = vpop.f32.mrb[0].mxu0
    %v6997 = vadd.f32 %v6386, %v6996
    %v6998 = vpop.f32.mrb[0].mxu0
    %v6999 = vadd.f32 %v6388, %v6998
    %7000 = vdwg.mxu0
    %7001 = vmatprep.subr.mxu0 %v5483
    %7002 = vmatpush1.msra.mxu0 %v5482
    %7003 = vmatprep.subr.mxu0 %v5488
    %7004 = vmatpush1.msra.mxu0 %v5487
    %7005 = vmatprep.subr.mxu0 %v5493
    %7006 = vmatpush1.msra.mxu0 %v5492
    %7007 = vmatprep.subr.mxu0 %v5498
    %7008 = vmatpush1.msra.mxu0 %v5497
    %7009 = vmatprep.subr.mxu0 %v5503
    %7010 = vmatpush1.msra.mxu0 %v5502
    %7011 = vmatprep.subr.mxu0 %v5508
    %7012 = vmatpush1.msra.mxu0 %v5507
    %7013 = vmatprep.subr.mxu0 %v5513
    %7014 = vmatpush1.msra.mxu0 %v5512
    %7015 = vmatprep.subr.mxu0 %v5518
    %7016 = vmatpush1.msra.mxu0 %v5517
    %7017 = vmatprep.subr.mxu0 %v5523
    %7018 = vmatpush1.msra.mxu0 %v5522
    %7019 = vmatprep.subr.mxu0 %v5528
    %7020 = vmatpush1.msra.mxu0 %v5527
    %7021 = vmatprep.subr.mxu0 %v5533
    %7022 = vmatpush1.msra.mxu0 %v5532
    %7023 = vmatprep.subr.mxu0 %v5538
    %7024 = vmatpush1.msra.mxu0 %v5537
    %7025 = vmatprep.subr.mxu0 %v5543
    %7026 = vmatpush1.msra.mxu0 %v5542
    %7027 = vmatprep.subr.mxu0 %v5548
    %7028 = vmatpush1.msra.mxu0 %v5547
    %7029 = vmatprep.subr.mxu0 %v5553
    %7030 = vmatpush1.msra.mxu0 %v5552
    %7031 = vmatprep.subr.mxu0 %v5558
    %7032 = vmatpush1.msra.mxu0 %v5557
    %7033 = vmatprep.subr.mxu0 %v5563
    %7034 = vmatpush1.msra.mxu0 %v5562
    %7035 = vmatprep.subr.mxu0 %v5568
    %7036 = vmatpush1.msra.mxu0 %v5567
    %7037 = vmatprep.subr.mxu0 %v5573
    %7038 = vmatpush1.msra.mxu0 %v5572
    %7039 = vmatprep.subr.mxu0 %v5578
    %7040 = vmatpush1.msra.mxu0 %v5577
    %7041 = vmatprep.subr.mxu0 %v5583
    %7042 = vmatpush1.msra.mxu0 %v5582
    %7043 = vmatprep.subr.mxu0 %v5588
    %7044 = vmatpush1.msra.mxu0 %v5587
    %7045 = vmatprep.subr.mxu0 %v5593
    %7046 = vmatpush1.msra.mxu0 %v5592
    %7047 = vmatprep.subr.mxu0 %v5598
    %7048 = vmatpush1.msra.mxu0 %v5597
    %7049 = vmatprep.subr.mxu0 %v5603
    %7050 = vmatpush1.msra.mxu0 %v5602
    %7051 = vmatprep.subr.mxu0 %v5608
    %7052 = vmatpush1.msra.mxu0 %v5607
    %7053 = vmatprep.subr.mxu0 %v5613
    %7054 = vmatpush1.msra.mxu0 %v5612
    %7055 = vmatprep.subr.mxu0 %v5618
    %7056 = vmatpush1.msra.mxu0 %v5617
    %7057 = vmatprep.subr.mxu0 %v5623
    %7058 = vmatpush1.msra.mxu0 %v5622
    %7059 = vmatprep.subr.mxu0 %v5628
    %7060 = vmatpush1.msra.mxu0 %v5627
    %7061 = vmatprep.subr.mxu0 %v5633
    %7062 = vmatpush1.msra.mxu0 %v5632
    %7063 = vmatprep.subr.mxu0 %v5638
    %7064 = vmatpush1.msra.mxu0 %v5637
    %7065 = vmatprep.mubr.f32.mxu0 %v5305
    %7066 = vmatmul.mubr.f32.gmra.mrb[0].mxu0 %v5304
    %v7067 = vpop.f32.mrb[0].mxu0
    %v7068 = vadd.f32 %v6979, %v7067
    %v7069 = vpop.f32.mrb[0].mxu0
    %v7070 = vadd.f32 %v6981, %v7069
    %7071 = vmatprep.mubr.f32.mxu0 %v5310
    %7072 = vmatmul.mubr.f32.gmra.mrb[0].mxu0 %v5309
    %v7073 = vpop.f32.mrb[0].mxu0
    %v7074 = vadd.f32 %v6985, %v7073
    %v7075 = vpop.f32.mrb[0].mxu0
    %v7076 = vadd.f32 %v6987, %v7075
    %7077 = vmatprep.mubr.f32.mxu0 %v5315
    %7078 = vmatmul.mubr.f32.gmra.mrb[0].mxu0 %v5314
    %v7079 = vpop.f32.mrb[0].mxu0
    %v7080 = vadd.f32 %v6991, %v7079
    %v7081 = vpop.f32.mrb[0].mxu0
    %v7082 = vadd.f32 %v6993, %v7081
    %7083 = vmatprep.mubr.f32.mxu0 %v5320
    %7084 = vmatmul.mubr.f32.gmra.mrb[0].mxu0 %v5319
    %v7085 = vpop.f32.mrb[0].mxu0
    %v7086 = vadd.f32 %v6997, %v7085
    %v7087 = vpop.f32.mrb[0].mxu0
    %v7088 = vadd.f32 %v6999, %v7087
    %7089 = vdwg.mxu0
    %7090 = vmatprep.subr.mxu0 %v5643
    %7091 = vmatpush1.msra.mxu0 %v5642
    %7092 = vmatprep.subr.mxu0 %v5648
    %7093 = vmatpush1.msra.mxu0 %v5647
    %7094 = vmatprep.subr.mxu0 %v5653
    %7095 = vmatpush1.msra.mxu0 %v5652
    %7096 = vmatprep.subr.mxu0 %v5658
    %7097 = vmatpush1.msra.mxu0 %v5657
    %7098 = vmatprep.subr.mxu0 %v5663
    %7099 = vmatpush1.msra.mxu0 %v5662
    %7100 = vmatprep.subr.mxu0 %v5668
    %7101 = vmatpush1.msra.mxu0 %v5667
    %7102 = vmatprep.subr.mxu0 %v5673
    %7103 = vmatpush1.msra.mxu0 %v5672
    %7104 = vmatprep.subr.mxu0 %v5678
    %7105 = vmatpush1.msra.mxu0 %v5677
    %7106 = vmatprep.subr.mxu0 %v5683
    %7107 = vmatpush1.msra.mxu0 %v5682
    %7108 = vmatprep.subr.mxu0 %v5688
    %7109 = vmatpush1.msra.mxu0 %v5687
    %7110 = vmatprep.subr.mxu0 %v5693
    %7111 = vmatpush1.msra.mxu0 %v5692
    %7112 = vmatprep.subr.mxu0 %v5698
    %7113 = vmatpush1.msra.mxu0 %v5697
    %7114 = vmatprep.subr.mxu0 %v5703
    %7115 = vmatpush1.msra.mxu0 %v5702
    %7116 = vmatprep.subr.mxu0 %v5708
    %7117 = vmatpush1.msra.mxu0 %v5707
    %7118 = vmatprep.subr.mxu0 %v5713
    %7119 = vmatpush1.msra.mxu0 %v5712
    %7120 = vmatprep.subr.mxu0 %v5718
    %7121 = vmatpush1.msra.mxu0 %v5717
    %7122 = vmatprep.subr.mxu0 0.0
    %7123 = vmatpush1.msra.mxu0 0.0
    %7124 = vmatprep.subr.mxu0 0.0
    %7125 = vmatpush1.msra.mxu0 0.0
    %7126 = vmatprep.subr.mxu0 0.0
    %7127 = vmatpush1.msra.mxu0 0.0
    %7128 = vmatprep.subr.mxu0 0.0
    %7129 = vmatpush1.msra.mxu0 0.0
    %7130 = vmatprep.subr.mxu0 0.0
    %7131 = vmatpush1.msra.mxu0 0.0
    %7132 = vmatprep.subr.mxu0 0.0
    %7133 = vmatpush1.msra.mxu0 0.0
    %7134 = vmatprep.subr.mxu0 0.0
    %7135 = vmatpush1.msra.mxu0 0.0
    %7136 = vmatprep.subr.mxu0 0.0
    %7137 = vmatpush1.msra.mxu0 0.0
    %7138 = vmatprep.subr.mxu0 0.0
    %7139 = vmatpush1.msra.mxu0 0.0
    %7140 = vmatprep.subr.mxu0 0.0
    %7141 = vmatpush1.msra.mxu0 0.0
    %7142 = vmatprep.subr.mxu0 0.0
    %7143 = vmatpush1.msra.mxu0 0.0
    %7144 = vmatprep.subr.mxu0 0.0
    %7145 = vmatpush1.msra.mxu0 0.0
    %7146 = vmatprep.subr.mxu0 0.0
    %7147 = vmatpush1.msra.mxu0 0.0
    %7148 = vmatprep.subr.mxu0 0.0
    %7149 = vmatpush1.msra.mxu0 0.0
    %7150 = vmatprep.subr.mxu0 0.0
    %7151 = vmatpush1.msra.mxu0 0.0
    %7152 = vmatprep.subr.mxu0 0.0
    %7153 = vmatpush1.msra.mxu0 0.0
    %7154 = vmatprep.mubr.f32.mxu0 0.0
    %7155 = vmatmul.mubr.f32.gmra.mrb[0].mxu0 %v5306
    %v7156 = vpop.f32.mrb[0].mxu0
    %v7157 = vadd.f32 %v7068, %v7156
    %v7158 = vpop.f32.mrb[0].mxu0
    %v7159 = vadd.f32 %v7070, %v7158
    %7160 = vmatprep.mubr.f32.mxu0 0.0
    %7161 = vmatmul.mubr.f32.gmra.mrb[0].mxu0 %v5311
    %v7162 = vpop.f32.mrb[0].mxu0
    %v7163 = vadd.f32 %v7074, %v7162
    %v7164 = vpop.f32.mrb[0].mxu0
    %v7165 = vadd.f32 %v7076, %v7164
    %7166 = vmatprep.mubr.f32.mxu0 0.0
    %7167 = vmatmul.mubr.f32.gmra.mrb[0].mxu0 %v5316
    %v7168 = vpop.f32.mrb[0].mxu0
    %v7169 = vadd.f32 %v7080, %v7168
    %v7170 = vpop.f32.mrb[0].mxu0
    %v7171 = vadd.f32 %v7082, %v7170
    %7172 = vmatprep.mubr.f32.mxu0 0.0
    %7173 = vmatmul.mubr.f32.gmra.mrb[0].mxu0 %v5321
    %v7174 = vpop.f32.mrb[0].mxu0
    %v7175 = vadd.f32 %v7086, %v7174
    %v7176 = vpop.f32.mrb[0].mxu0
    %v7177 = vadd.f32 %v7088, %v7176
    %7178 = vdwg.mxu0
    %7179 = vmatprep.subr.mxu0 %v5325
    %7180 = vmatpush1.msra.mxu0 %v5324
    %7181 = vmatprep.subr.mxu0 %v5330
    %7182 = vmatpush1.msra.mxu0 %v5329
    %7183 = vmatprep.subr.mxu0 %v5335
    %7184 = vmatpush1.msra.mxu0 %v5334
    %7185 = vmatprep.subr.mxu0 %v5340
    %7186 = vmatpush1.msra.mxu0 %v5339
    %7187 = vmatprep.subr.mxu0 %v5345
    %7188 = vmatpush1.msra.mxu0 %v5344
    %7189 = vmatprep.subr.mxu0 %v5350
    %7190 = vmatpush1.msra.mxu0 %v5349
    %7191 = vmatprep.subr.mxu0 %v5355
    %7192 = vmatpush1.msra.mxu0 %v5354
    %7193 = vmatprep.subr.mxu0 %v5360
    %7194 = vmatpush1.msra.mxu0 %v5359
    %7195 = vmatprep.subr.mxu0 %v5365
    %7196 = vmatpush1.msra.mxu0 %v5364
    %7197 = vmatprep.subr.mxu0 %v5370
    %7198 = vmatpush1.msra.mxu0 %v5369
    %7199 = vmatprep.subr.mxu0 %v5375
    %7200 = vmatpush1.msra.mxu0 %v5374
    %7201 = vmatprep.subr.mxu0 %v5380
    %7202 = vmatpush1.msra.mxu0 %v5379
    %7203 = vmatprep.subr.mxu0 %v5385
    %7204 = vmatpush1.msra.mxu0 %v5384
    %7205 = vmatprep.subr.mxu0 %v5390
    %7206 = vmatpush1.msra.mxu0 %v5389
    %7207 = vmatprep.subr.mxu0 %v5395
    %7208 = vmatpush1.msra.mxu0 %v5394
    %7209 = vmatprep.subr.mxu0 %v5400
    %7210 = vmatpush1.msra.mxu0 %v5399
    %7211 = vmatprep.subr.mxu0 %v5405
    %7212 = vmatpush1.msra.mxu0 %v5404
    %7213 = vmatprep.subr.mxu0 %v5410
    %7214 = vmatpush1.msra.mxu0 %v5409
    %7215 = vmatprep.subr.mxu0 %v5415
    %7216 = vmatpush1.msra.mxu0 %v5414
    %7217 = vmatprep.subr.mxu0 %v5420
    %7218 = vmatpush1.msra.mxu0 %v5419
    %7219 = vmatprep.subr.mxu0 %v5425
    %7220 = vmatpush1.msra.mxu0 %v5424
    %7221 = vmatprep.subr.mxu0 %v5430
    %7222 = vmatpush1.msra.mxu0 %v5429
    %7223 = vmatprep.subr.mxu0 %v5435
    %7224 = vmatpush1.msra.mxu0 %v5434
    %7225 = vmatprep.subr.mxu0 %v5440
    %7226 = vmatpush1.msra.mxu0 %v5439
    %7227 = vmatprep.subr.mxu0 %v5445
    %7228 = vmatpush1.msra.mxu0 %v5444
    %7229 = vmatprep.subr.mxu0 %v5450
    %7230 = vmatpush1.msra.mxu0 %v5449
    %7231 = vmatprep.subr.mxu0 %v5455
    %7232 = vmatpush1.msra.mxu0 %v5454
    %7233 = vmatprep.subr.mxu0 %v5460
    %7234 = vmatpush1.msra.mxu0 %v5459
    %7235 = vmatprep.subr.mxu0 %v5465
    %7236 = vmatpush1.msra.mxu0 %v5464
    %7237 = vmatprep.subr.mxu0 %v5470
    %7238 = vmatpush1.msra.mxu0 %v5469
    %7239 = vmatprep.subr.mxu0 %v5475
    %7240 = vmatpush1.msra.mxu0 %v5474
    %7241 = vmatprep.subr.mxu0 %v5480
    %7242 = vmatpush1.msra.mxu0 %v5479
    %7243 = vmatprep.mubr.f32.mxu0 %v5303
    %7244 = vmatmul.mubr.f32.gmra.mrb[0].mxu0 %v5302
    %v7245 = vpop.f32.mrb[0].mxu0
    %v7246 = vadd.f32 %v6635, %v7245
    %v7247 = vpop.f32.mrb[0].mxu0
    %v7248 = vadd.f32 %v6637, %v7247
    %7249 = vmatprep.mubr.f32.mxu0 %v5308
    %7250 = vmatmul.mubr.f32.gmra.mrb[0].mxu0 %v5307
    %v7251 = vpop.f32.mrb[0].mxu0
    %v7252 = vadd.f32 %v6641, %v7251
    %v7253 = vpop.f32.mrb[0].mxu0
    %v7254 = vadd.f32 %v6643, %v7253
    %7255 = vmatprep.mubr.f32.mxu0 %v5313
    %7256 = vmatmul.mubr.f32.gmra.mrb[0].mxu0 %v5312
    %v7257 = vpop.f32.mrb[0].mxu0
    %v7258 = vadd.f32 %v6647, %v7257
    %v7259 = vpop.f32.mrb[0].mxu0
    %v7260 = vadd.f32 %v6649, %v7259
    %7261 = vmatprep.mubr.f32.mxu0 %v5318
    %7262 = vmatmul.mubr.f32.gmra.mrb[0].mxu0 %v5317
    %v7263 = vpop.f32.mrb[0].mxu0
    %v7264 = vadd.f32 %v6653, %v7263
    %v7265 = vpop.f32.mrb[0].mxu0
    %v7266 = vadd.f32 %v6655, %v7265
    %7267 = vdwg.mxu0
    %7268 = vmatprep.subr.mxu0 %v5485
    %7269 = vmatpush1.msra.mxu0 %v5484
    %7270 = vmatprep.subr.mxu0 %v5490
    %7271 = vmatpush1.msra.mxu0 %v5489
    %7272 = vmatprep.subr.mxu0 %v5495
    %7273 = vmatpush1.msra.mxu0 %v5494
    %7274 = vmatprep.subr.mxu0 %v5500
    %7275 = vmatpush1.msra.mxu0 %v5499
    %7276 = vmatprep.subr.mxu0 %v5505
    %7277 = vmatpush1.msra.mxu0 %v5504
    %7278 = vmatprep.subr.mxu0 %v5510
    %7279 = vmatpush1.msra.mxu0 %v5509
    %7280 = vmatprep.subr.mxu0 %v5515
    %7281 = vmatpush1.msra.mxu0 %v5514
    %7282 = vmatprep.subr.mxu0 %v5520
    %7283 = vmatpush1.msra.mxu0 %v5519
    %7284 = vmatprep.subr.mxu0 %v5525
    %7285 = vmatpush1.msra.mxu0 %v5524
    %7286 = vmatprep.subr.mxu0 %v5530
    %7287 = vmatpush1.msra.mxu0 %v5529
    %7288 = vmatprep.subr.mxu0 %v5535
    %7289 = vmatpush1.msra.mxu0 %v5534
    %7290 = vmatprep.subr.mxu0 %v5540
    %7291 = vmatpush1.msra.mxu0 %v5539
    %7292 = vmatprep.subr.mxu0 %v5545
    %7293 = vmatpush1.msra.mxu0 %v5544
    %7294 = vmatprep.subr.mxu0 %v5550
    %7295 = vmatpush1.msra.mxu0 %v5549
    %7296 = vmatprep.subr.mxu0 %v5555
    %7297 = vmatpush1.msra.mxu0 %v5554
    %7298 = vmatprep.subr.mxu0 %v5560
    %7299 = vmatpush1.msra.mxu0 %v5559
    %7300 = vmatprep.subr.mxu0 %v5565
    %7301 = vmatpush1.msra.mxu0 %v5564
    %7302 = vmatprep.subr.mxu0 %v5570
    %7303 = vmatpush1.msra.mxu0 %v5569
    %7304 = vmatprep.subr.mxu0 %v5575
    %7305 = vmatpush1.msra.mxu0 %v5574
    %7306 = vmatprep.subr.mxu0 %v5580
    %7307 = vmatpush1.msra.mxu0 %v5579
    %7308 = vmatprep.subr.mxu0 %v5585
    %7309 = vmatpush1.msra.mxu0 %v5584
    %7310 = vmatprep.subr.mxu0 %v5590
    %7311 = vmatpush1.msra.mxu0 %v5589
    %7312 = vmatprep.subr.mxu0 %v5595
    %7313 = vmatpush1.msra.mxu0 %v5594
    %7314 = vmatprep.subr.mxu0 %v5600
    %7315 = vmatpush1.msra.mxu0 %v5599
    %7316 = vmatprep.subr.mxu0 %v5605
    %7317 = vmatpush1.msra.mxu0 %v5604
    %7318 = vmatprep.subr.mxu0 %v5610
    %7319 = vmatpush1.msra.mxu0 %v5609
    %7320 = vmatprep.subr.mxu0 %v5615
    %7321 = vmatpush1.msra.mxu0 %v5614
    %7322 = vmatprep.subr.mxu0 %v5620
    %7323 = vmatpush1.msra.mxu0 %v5619
    %7324 = vmatprep.subr.mxu0 %v5625
    %7325 = vmatpush1.msra.mxu0 %v5624
    %7326 = vmatprep.subr.mxu0 %v5630
    %7327 = vmatpush1.msra.mxu0 %v5629
    %7328 = vmatprep.subr.mxu0 %v5635
    %7329 = vmatpush1.msra.mxu0 %v5634
    %7330 = vmatprep.subr.mxu0 %v5640
    %7331 = vmatpush1.msra.mxu0 %v5639
    %7332 = vmatprep.mubr.f32.mxu0 %v5305
    %7333 = vmatmul.mubr.f32.gmra.mrb[0].mxu0 %v5304
    %v7334 = vpop.f32.mrb[0].mxu0
    %v7335 = vadd.f32 %v7246, %v7334
    %v7336 = vpop.f32.mrb[0].mxu0
    %v7337 = vadd.f32 %v7248, %v7336
    %7338 = vmatprep.mubr.f32.mxu0 %v5310
    %7339 = vmatmul.mubr.f32.gmra.mrb[0].mxu0 %v5309
    %v7340 = vpop.f32.mrb[0].mxu0
    %v7341 = vadd.f32 %v7252, %v7340
    %v7342 = vpop.f32.mrb[0].mxu0
    %v7343 = vadd.f32 %v7254, %v7342
    %7344 = vmatprep.mubr.f32.mxu0 %v5315
    %7345 = vmatmul.mubr.f32.gmra.mrb[0].mxu0 %v5314
    %v7346 = vpop.f32.mrb[0].mxu0
    %v7347 = vadd.f32 %v7258, %v7346
    %v7348 = vpop.f32.mrb[0].mxu0
    %v7349 = vadd.f32 %v7260, %v7348
    %7350 = vmatprep.mubr.f32.mxu0 %v5320
    %7351 = vmatmul.mubr.f32.gmra.mrb[0].mxu0 %v5319
    %v7352 = vpop.f32.mrb[0].mxu0
    %v7353 = vadd.f32 %v7264, %v7352
    %v7354 = vpop.f32.mrb[0].mxu0
    %v7355 = vadd.f32 %v7266, %v7354
    %7356 = vdwg.mxu0
    %7357 = vmatprep.subr.mxu0 %v5645
    %7358 = vmatpush1.msra.mxu0 %v5644
    %7359 = vmatprep.subr.mxu0 %v5650
    %7360 = vmatpush1.msra.mxu0 %v5649
    %7361 = vmatprep.subr.mxu0 %v5655
    %7362 = vmatpush1.msra.mxu0 %v5654
    %7363 = vmatprep.subr.mxu0 %v5660
    %7364 = vmatpush1.msra.mxu0 %v5659
    %7365 = vmatprep.subr.mxu0 %v5665
    %7366 = vmatpush1.msra.mxu0 %v5664
    %7367 = vmatprep.subr.mxu0 %v5670
    %7368 = vmatpush1.msra.mxu0 %v5669
    %7369 = vmatprep.subr.mxu0 %v5675
    %7370 = vmatpush1.msra.mxu0 %v5674
    %7371 = vmatprep.subr.mxu0 %v5680
    %7372 = vmatpush1.msra.mxu0 %v5679
    %7373 = vmatprep.subr.mxu0 %v5685
    %7374 = vmatpush1.msra.mxu0 %v5684
    %7375 = vmatprep.subr.mxu0 %v5690
    %7376 = vmatpush1.msra.mxu0 %v5689
    %7377 = vmatprep.subr.mxu0 %v5695
    %7378 = vmatpush1.msra.mxu0 %v5694
    %7379 = vmatprep.subr.mxu0 %v5700
    %7380 = vmatpush1.msra.mxu0 %v5699
    %7381 = vmatprep.subr.mxu0 %v5705
    %7382 = vmatpush1.msra.mxu0 %v5704
    %7383 = vmatprep.subr.mxu0 %v5710
    %7384 = vmatpush1.msra.mxu0 %v5709
    %7385 = vmatprep.subr.mxu0 %v5715
    %7386 = vmatpush1.msra.mxu0 %v5714
    %7387 = vmatprep.subr.mxu0 %v5720
    %7388 = vmatpush1.msra.mxu0 %v5719
    %7389 = vmatprep.subr.mxu0 0.0
    %7390 = vmatpush1.msra.mxu0 0.0
    %7391 = vmatprep.subr.mxu0 0.0
    %7392 = vmatpush1.msra.mxu0 0.0
    %7393 = vmatprep.subr.mxu0 0.0
    %7394 = vmatpush1.msra.mxu0 0.0
    %7395 = vmatprep.subr.mxu0 0.0
    %7396 = vmatpush1.msra.mxu0 0.0
    %7397 = vmatprep.subr.mxu0 0.0
    %7398 = vmatpush1.msra.mxu0 0.0
    %7399 = vmatprep.subr.mxu0 0.0
    %7400 = vmatpush1.msra.mxu0 0.0
    %7401 = vmatprep.subr.mxu0 0.0
    %7402 = vmatpush1.msra.mxu0 0.0
    %7403 = vmatprep.subr.mxu0 0.0
    %7404 = vmatpush1.msra.mxu0 0.0
    %7405 = vmatprep.subr.mxu0 0.0
    %7406 = vmatpush1.msra.mxu0 0.0
    %7407 = vmatprep.subr.mxu0 0.0
    %7408 = vmatpush1.msra.mxu0 0.0
    %7409 = vmatprep.subr.mxu0 0.0
    %7410 = vmatpush1.msra.mxu0 0.0
    %7411 = vmatprep.subr.mxu0 0.0
    %7412 = vmatpush1.msra.mxu0 0.0
    %7413 = vmatprep.subr.mxu0 0.0
    %7414 = vmatpush1.msra.mxu0 0.0
    %7415 = vmatprep.subr.mxu0 0.0
    %7416 = vmatpush1.msra.mxu0 0.0
    %7417 = vmatprep.subr.mxu0 0.0
    %7418 = vmatpush1.msra.mxu0 0.0
    %7419 = vmatprep.subr.mxu0 0.0
    %7420 = vmatpush1.msra.mxu0 0.0
    %7421 = vmatprep.mubr.f32.mxu0 0.0
    %7422 = vmatmul.mubr.f32.gmra.mrb[0].mxu0 %v5306
    %v7423 = vpop.f32.mrb[0].mxu0
    %v7424 = vadd.f32 %v7335, %v7423
    %v7425 = vpop.f32.mrb[0].mxu0
    %v7426 = vadd.f32 %v7337, %v7425
    %7427 = vmatprep.mubr.f32.mxu0 0.0
    %7428 = vmatmul.mubr.f32.gmra.mrb[0].mxu0 %v5311
    %v7429 = vpop.f32.mrb[0].mxu0
    %v7430 = vadd.f32 %v7341, %v7429
    %v7431 = vpop.f32.mrb[0].mxu0
    %v7432 = vadd.f32 %v7343, %v7431
    %7433 = vmatprep.mubr.f32.mxu0 0.0
    %7434 = vmatmul.mubr.f32.gmra.mrb[0].mxu0 %v5316
    %v7435 = vpop.f32.mrb[0].mxu0
    %v7436 = vadd.f32 %v7347, %v7435
    %v7437 = vpop.f32.mrb[0].mxu0
    %v7438 = vadd.f32 %v7349, %v7437
    %7439 = vmatprep.mubr.f32.mxu0 0.0
    %7440 = vmatmul.mubr.f32.gmra.mrb[0].mxu0 %v5321
    %v7441 = vpop.f32.mrb[0].mxu0
    %v7442 = vadd.f32 %v7353, %v7441
    %v7443 = vpop.f32.mrb[0].mxu0
    %v7444 = vadd.f32 %v7355, %v7443
    %7445 = vdwg.mxu0
    %7446 = vmatprep.subr.mxu0 0.0
    %7447 = vmatpush1.msra.mxu0 %v5326
    %7448 = vmatprep.subr.mxu0 0.0
    %7449 = vmatpush1.msra.mxu0 %v5331
    %7450 = vmatprep.subr.mxu0 0.0
    %7451 = vmatpush1.msra.mxu0 %v5336
    %7452 = vmatprep.subr.mxu0 0.0
    %7453 = vmatpush1.msra.mxu0 %v5341
    %7454 = vmatprep.subr.mxu0 0.0
    %7455 = vmatpush1.msra.mxu0 %v5346
    %7456 = vmatprep.subr.mxu0 0.0
    %7457 = vmatpush1.msra.mxu0 %v5351
    %7458 = vmatprep.subr.mxu0 0.0
    %7459 = vmatpush1.msra.mxu0 %v5356
    %7460 = vmatprep.subr.mxu0 0.0
    %7461 = vmatpush1.msra.mxu0 %v5361
    %7462 = vmatprep.subr.mxu0 0.0
    %7463 = vmatpush1.msra.mxu0 %v5366
    %7464 = vmatprep.subr.mxu0 0.0
    %7465 = vmatpush1.msra.mxu0 %v5371
    %7466 = vmatprep.subr.mxu0 0.0
    %7467 = vmatpush1.msra.mxu0 %v5376
    %7468 = vmatprep.subr.mxu0 0.0
    %7469 = vmatpush1.msra.mxu0 %v5381
    %7470 = vmatprep.subr.mxu0 0.0
    %7471 = vmatpush1.msra.mxu0 %v5386
    %7472 = vmatprep.subr.mxu0 0.0
    %7473 = vmatpush1.msra.mxu0 %v5391
    %7474 = vmatprep.subr.mxu0 0.0
    %7475 = vmatpush1.msra.mxu0 %v5396
    %7476 = vmatprep.subr.mxu0 0.0
    %7477 = vmatpush1.msra.mxu0 %v5401
    %7478 = vmatprep.subr.mxu0 0.0
    %7479 = vmatpush1.msra.mxu0 %v5406
    %7480 = vmatprep.subr.mxu0 0.0
    %7481 = vmatpush1.msra.mxu0 %v5411
    %7482 = vmatprep.subr.mxu0 0.0
    %7483 = vmatpush1.msra.mxu0 %v5416
    %7484 = vmatprep.subr.mxu0 0.0
    %7485 = vmatpush1.msra.mxu0 %v5421
    %7486 = vmatprep.subr.mxu0 0.0
    %7487 = vmatpush1.msra.mxu0 %v5426
    %7488 = vmatprep.subr.mxu0 0.0
    %7489 = vmatpush1.msra.mxu0 %v5431
    %7490 = vmatprep.subr.mxu0 0.0
    %7491 = vmatpush1.msra.mxu0 %v5436
    %7492 = vmatprep.subr.mxu0 0.0
    %7493 = vmatpush1.msra.mxu0 %v5441
    %7494 = vmatprep.subr.mxu0 0.0
    %7495 = vmatpush1.msra.mxu0 %v5446
    %7496 = vmatprep.subr.mxu0 0.0
    %7497 = vmatpush1.msra.mxu0 %v5451
    %7498 = vmatprep.subr.mxu0 0.0
    %7499 = vmatpush1.msra.mxu0 %v5456
    %7500 = vmatprep.subr.mxu0 0.0
    %7501 = vmatpush1.msra.mxu0 %v5461
    %7502 = vmatprep.subr.mxu0 0.0
    %7503 = vmatpush1.msra.mxu0 %v5466
    %7504 = vmatprep.subr.mxu0 0.0
    %7505 = vmatpush1.msra.mxu0 %v5471
    %7506 = vmatprep.subr.mxu0 0.0
    %7507 = vmatpush1.msra.mxu0 %v5476
    %7508 = vmatprep.subr.mxu0 0.0
    %7509 = vmatpush1.msra.mxu0 %v5481
    %7510 = vmatprep.mubr.f32.mxu0 %v5303
    %7511 = vmatmul.mubr.f32.gmra.mrb[0].mxu0 %v5302
    %v7512 = vpop.f32.mrb[0].mxu0
    %v7513 = vadd.f32 %v6894, %v7512
    %v7514 = vpop.f32.mrb[0].mxu0
    %7515 = vmatprep.mubr.f32.mxu0 %v5308
    %7516 = vmatmul.mubr.f32.gmra.mrb[0].mxu0 %v5307
    %v7517 = vpop.f32.mrb[0].mxu0
    %v7518 = vadd.f32 %v6899, %v7517
    %v7519 = vpop.f32.mrb[0].mxu0
    %7520 = vmatprep.mubr.f32.mxu0 %v5313
    %7521 = vmatmul.mubr.f32.gmra.mrb[0].mxu0 %v5312
    %v7522 = vpop.f32.mrb[0].mxu0
    %v7523 = vadd.f32 %v6904, %v7522
    %v7524 = vpop.f32.mrb[0].mxu0
    %7525 = vmatprep.mubr.f32.mxu0 %v5318
    %7526 = vmatmul.mubr.f32.gmra.mrb[0].mxu0 %v5317
    %v7527 = vpop.f32.mrb[0].mxu0
    %v7528 = vadd.f32 %v6909, %v7527
    %v7529 = vpop.f32.mrb[0].mxu0
    %7530 = vdwg.mxu0
    %7531 = vmatprep.subr.mxu0 0.0
    %7532 = vmatpush1.msra.mxu0 %v5486
    %7533 = vmatprep.subr.mxu0 0.0
    %7534 = vmatpush1.msra.mxu0 %v5491
    %7535 = vmatprep.subr.mxu0 0.0
    %7536 = vmatpush1.msra.mxu0 %v5496
    %7537 = vmatprep.subr.mxu0 0.0
    %7538 = vmatpush1.msra.mxu0 %v5501
    %7539 = vmatprep.subr.mxu0 0.0
    %7540 = vmatpush1.msra.mxu0 %v5506
    %7541 = vmatprep.subr.mxu0 0.0
    %7542 = vmatpush1.msra.mxu0 %v5511
    %7543 = vmatprep.subr.mxu0 0.0
    %7544 = vmatpush1.msra.mxu0 %v5516
    %7545 = vmatprep.subr.mxu0 0.0
    %7546 = vmatpush1.msra.mxu0 %v5521
    %7547 = vmatprep.subr.mxu0 0.0
    %7548 = vmatpush1.msra.mxu0 %v5526
    %7549 = vmatprep.subr.mxu0 0.0
    %7550 = vmatpush1.msra.mxu0 %v5531
    %7551 = vmatprep.subr.mxu0 0.0
    %7552 = vmatpush1.msra.mxu0 %v5536
    %7553 = vmatprep.subr.mxu0 0.0
    %7554 = vmatpush1.msra.mxu0 %v5541
    %7555 = vmatprep.subr.mxu0 0.0
    %7556 = vmatpush1.msra.mxu0 %v5546
    %7557 = vmatprep.subr.mxu0 0.0
    %7558 = vmatpush1.msra.mxu0 %v5551
    %7559 = vmatprep.subr.mxu0 0.0
    %7560 = vmatpush1.msra.mxu0 %v5556
    %7561 = vmatprep.subr.mxu0 0.0
    %7562 = vmatpush1.msra.mxu0 %v5561
    %7563 = vmatprep.subr.mxu0 0.0
    %7564 = vmatpush1.msra.mxu0 %v5566
    %7565 = vmatprep.subr.mxu0 0.0
    %7566 = vmatpush1.msra.mxu0 %v5571
    %7567 = vmatprep.subr.mxu0 0.0
    %7568 = vmatpush1.msra.mxu0 %v5576
    %7569 = vmatprep.subr.mxu0 0.0
    %7570 = vmatpush1.msra.mxu0 %v5581
    %7571 = vmatprep.subr.mxu0 0.0
    %7572 = vmatpush1.msra.mxu0 %v5586
    %7573 = vmatprep.subr.mxu0 0.0
    %7574 = vmatpush1.msra.mxu0 %v5591
    %7575 = vmatprep.subr.mxu0 0.0
    %7576 = vmatpush1.msra.mxu0 %v5596
    %7577 = vmatprep.subr.mxu0 0.0
    %7578 = vmatpush1.msra.mxu0 %v5601
    %7579 = vmatprep.subr.mxu0 0.0
    %7580 = vmatpush1.msra.mxu0 %v5606
    %7581 = vmatprep.subr.mxu0 0.0
    %7582 = vmatpush1.msra.mxu0 %v5611
    %7583 = vmatprep.subr.mxu0 0.0
    %7584 = vmatpush1.msra.mxu0 %v5616
    %7585 = vmatprep.subr.mxu0 0.0
    %7586 = vmatpush1.msra.mxu0 %v5621
    %7587 = vmatprep.subr.mxu0 0.0
    %7588 = vmatpush1.msra.mxu0 %v5626
    %7589 = vmatprep.subr.mxu0 0.0
    %7590 = vmatpush1.msra.mxu0 %v5631
    %7591 = vmatprep.subr.mxu0 0.0
    %7592 = vmatpush1.msra.mxu0 %v5636
    %7593 = vmatprep.subr.mxu0 0.0
    %7594 = vmatpush1.msra.mxu0 %v5641
    %7595 = vmatprep.mubr.f32.mxu0 %v5305
    %7596 = vmatmul.mubr.f32.gmra.mrb[0].mxu0 %v5304
    %v7597 = vpop.f32.mrb[0].mxu0
    %v7598 = vadd.f32 %v7513, %v7597
    %v7599 = vpop.f32.mrb[0].mxu0
    %7600 = vmatprep.mubr.f32.mxu0 %v5310
    %7601 = vmatmul.mubr.f32.gmra.mrb[0].mxu0 %v5309
    %v7602 = vpop.f32.mrb[0].mxu0
    %v7603 = vadd.f32 %v7518, %v7602
    %v7604 = vpop.f32.mrb[0].mxu0
    %7605 = vmatprep.mubr.f32.mxu0 %v5315
    %7606 = vmatmul.mubr.f32.gmra.mrb[0].mxu0 %v5314
    %v7607 = vpop.f32.mrb[0].mxu0
    %v7608 = vadd.f32 %v7523, %v7607
    %v7609 = vpop.f32.mrb[0].mxu0
    %7610 = vmatprep.mubr.f32.mxu0 %v5320
    %7611 = vmatmul.mubr.f32.gmra.mrb[0].mxu0 %v5319
    %v7612 = vpop.f32.mrb[0].mxu0
    %v7613 = vadd.f32 %v7528, %v7612
    %v7614 = vpop.f32.mrb[0].mxu0
    %7615 = vdwg.mxu0
    %7616 = vmatprep.subr.mxu0 0.0
    %7617 = vmatpush1.msra.mxu0 %v5646
    %7618 = vmatprep.subr.mxu0 0.0
    %7619 = vmatpush1.msra.mxu0 %v5651
    %7620 = vmatprep.subr.mxu0 0.0
    %7621 = vmatpush1.msra.mxu0 %v5656
    %7622 = vmatprep.subr.mxu0 0.0
    %7623 = vmatpush1.msra.mxu0 %v5661
    %7624 = vmatprep.subr.mxu0 0.0
    %7625 = vmatpush1.msra.mxu0 %v5666
    %7626 = vmatprep.subr.mxu0 0.0
    %7627 = vmatpush1.msra.mxu0 %v5671
    %7628 = vmatprep.subr.mxu0 0.0
    %7629 = vmatpush1.msra.mxu0 %v5676
    %7630 = vmatprep.subr.mxu0 0.0
    %7631 = vmatpush1.msra.mxu0 %v5681
    %7632 = vmatprep.subr.mxu0 0.0
    %7633 = vmatpush1.msra.mxu0 %v5686
    %7634 = vmatprep.subr.mxu0 0.0
    %7635 = vmatpush1.msra.mxu0 %v5691
    %7636 = vmatprep.subr.mxu0 0.0
    %7637 = vmatpush1.msra.mxu0 %v5696
    %7638 = vmatprep.subr.mxu0 0.0
    %7639 = vmatpush1.msra.mxu0 %v5701
    %7640 = vmatprep.subr.mxu0 0.0
    %7641 = vmatpush1.msra.mxu0 %v5706
    %7642 = vmatprep.subr.mxu0 0.0
    %7643 = vmatpush1.msra.mxu0 %v5711
    %7644 = vmatprep.subr.mxu0 0.0
    %7645 = vmatpush1.msra.mxu0 %v5716
    %7646 = vmatprep.subr.mxu0 0.0
    %7647 = vmatpush1.msra.mxu0 %v5721
    %7648 = vmatprep.subr.mxu0 0.0
    %7649 = vmatpush1.msra.mxu0 0.0
    %7650 = vmatprep.subr.mxu0 0.0
    %7651 = vmatpush1.msra.mxu0 0.0
    %7652 = vmatprep.subr.mxu0 0.0
    %7653 = vmatpush1.msra.mxu0 0.0
    %7654 = vmatprep.subr.mxu0 0.0
    %7655 = vmatpush1.msra.mxu0 0.0
    %7656 = vmatprep.subr.mxu0 0.0
    %7657 = vmatpush1.msra.mxu0 0.0
    %7658 = vmatprep.subr.mxu0 0.0
    %7659 = vmatpush1.msra.mxu0 0.0
    %7660 = vmatprep.subr.mxu0 0.0
    %7661 = vmatpush1.msra.mxu0 0.0
    %7662 = vmatprep.subr.mxu0 0.0
    %7663 = vmatpush1.msra.mxu0 0.0
    %7664 = vmatprep.subr.mxu0 0.0
    %7665 = vmatpush1.msra.mxu0 0.0
    %7666 = vmatprep.subr.mxu0 0.0
    %7667 = vmatpush1.msra.mxu0 0.0
    %7668 = vmatprep.subr.mxu0 0.0
    %7669 = vmatpush1.msra.mxu0 0.0
    %7670 = vmatprep.subr.mxu0 0.0
    %7671 = vmatpush1.msra.mxu0 0.0
    %7672 = vmatprep.subr.mxu0 0.0
    %7673 = vmatpush1.msra.mxu0 0.0
    %7674 = vmatprep.subr.mxu0 0.0
    %7675 = vmatpush1.msra.mxu0 0.0
    %7676 = vmatprep.subr.mxu0 0.0
    %7677 = vmatpush1.msra.mxu0 0.0
    %7678 = vmatprep.subr.mxu0 0.0
    %7679 = vmatpush1.msra.mxu0 0.0
    %7680 = vmatprep.mubr.f32.mxu0 0.0
    %7681 = vmatmul.mubr.f32.gmra.mrb[0].mxu0 %v5306
    %v7682 = vpop.f32.mrb[0].mxu0
    %v7683 = vadd.f32 %v7598, %v7682
    %v7684 = vpop.f32.mrb[0].mxu0
    %7685 = vmatprep.mubr.f32.mxu0 0.0
    %7686 = vmatmul.mubr.f32.gmra.mrb[0].mxu0 %v5311
    %v7687 = vpop.f32.mrb[0].mxu0
    %v7688 = vadd.f32 %v7603, %v7687
    %v7689 = vpop.f32.mrb[0].mxu0
    %7690 = vmatprep.mubr.f32.mxu0 0.0
    %7691 = vmatmul.mubr.f32.gmra.mrb[0].mxu0 %v5316
    %v7692 = vpop.f32.mrb[0].mxu0
    %v7693 = vadd.f32 %v7608, %v7692
    %v7694 = vpop.f32.mrb[0].mxu0
    %7695 = vmatprep.mubr.f32.mxu0 0.0
    %7696 = vmatmul.mubr.f32.gmra.mrb[0].mxu0 %v5321
    %v7697 = vpop.f32.mrb[0].mxu0
    %v7698 = vadd.f32 %v7613, %v7697
    %v7699 = vpop.f32.mrb[0].mxu0
    %7700 = vdwg.mxu0
    %v7701 = vld [vmem:[%s6] sm:$0x1f]
    %v7703 = vlaneseq
    %v7704 = vshrl.u32 %v7703, 7
    %v7705 = vsub.s32 0, %v7704
    %v7706 = vrot.slane %v7701, %v7705
    %v7707 = vlaneseq
    %v7708 = vshrl.u32 %v7707, 7
    %v7709 = vsub.s32 1, %v7708
    %v7710 = vrot.slane %v7701, %v7709
    %v7711 = vlaneseq
    %v7712 = vshrl.u32 %v7711, 7
    %v7713 = vsub.s32 2, %v7712
    %v7714 = vrot.slane %v7701, %v7713
    %v7715 = vlaneseq
    %v7716 = vshrl.u32 %v7715, 7
    %v7717 = vsub.s32 3, %v7716
    %v7718 = vrot.slane %v7701, %v7717
    %v7719 = vlaneseq
    %v7720 = vshrl.u32 %v7719, 7
    %v7721 = vsub.s32 4, %v7720
    %v7722 = vrot.slane %v7701, %v7721
    %v7728 = vadd.f32 %v7157, %v7706
    %v7729 = vadd.f32 %v7159, %v7710
    %v7730 = vadd.f32 %v7424, %v7714
    %v7731 = vadd.f32 %v7426, %v7718
    %v7732 = vadd.f32 %v7683, %v7722
    %v7733 = vadd.f32 %v7163, %v7706
    %v7734 = vadd.f32 %v7165, %v7710
    %v7735 = vadd.f32 %v7430, %v7714
    %v7736 = vadd.f32 %v7432, %v7718
    %v7737 = vadd.f32 %v7688, %v7722
    %v7738 = vadd.f32 %v7169, %v7706
    %v7739 = vadd.f32 %v7171, %v7710
    %v7740 = vadd.f32 %v7436, %v7714
    %v7741 = vadd.f32 %v7438, %v7718
    %v7742 = vadd.f32 %v7693, %v7722
    %v7743 = vadd.f32 %v7175, %v7706
    %v7744 = vadd.f32 %v7177, %v7710
    %v7745 = vadd.f32 %v7442, %v7714
    %v7746 = vadd.f32 %v7444, %v7718
    %v7747 = vadd.f32 %v7698, %v7722
    %v7748 = vmax.f32 %v7728, 0.0
    %v7749 = vmax.f32 %v7729, 0.0
    %v7750 = vmax.f32 %v7730, 0.0
    %v7751 = vmax.f32 %v7731, 0.0
    %v7752 = vmax.f32 %v7732, 0.0
    %v7753 = vmax.f32 %v7733, 0.0
    %v7754 = vmax.f32 %v7734, 0.0
    %v7755 = vmax.f32 %v7735, 0.0
    %v7756 = vmax.f32 %v7736, 0.0
    %v7757 = vmax.f32 %v7737, 0.0
    %v7758 = vmax.f32 %v7738, 0.0
    %v7759 = vmax.f32 %v7739, 0.0
    %v7760 = vmax.f32 %v7740, 0.0
    %v7761 = vmax.f32 %v7741, 0.0
    %v7762 = vmax.f32 %v7742, 0.0
    %v7763 = vmax.f32 %v7743, 0.0
    %v7764 = vmax.f32 %v7744, 0.0
    %v7765 = vmax.f32 %v7745, 0.0
    %v7766 = vmax.f32 %v7746, 0.0
    %v7767 = vmax.f32 %v7747, 0.0
    %v7768 = vadd.f32 %v7748, %v436
    %v7769 = vadd.f32 %v7749, %v437
    %v7770 = vadd.f32 %v7750, %v438
    %v7771 = vadd.f32 %v7751, %v439
    %v7772 = vadd.f32 %v7752, %v440
    %v7773 = vadd.f32 %v7753, %v441
    %v7774 = vadd.f32 %v7754, %v442
    %v7775 = vadd.f32 %v7755, %v443
    %v7776 = vadd.f32 %v7756, %v444
    %v7777 = vadd.f32 %v7757, %v445
    %v7778 = vadd.f32 %v7758, %v446
    %v7779 = vadd.f32 %v7759, %v447
    %v7780 = vadd.f32 %v7760, %v448
    %v7781 = vadd.f32 %v7761, %v449
    %v7782 = vadd.f32 %v7762, %v450
    %v7783 = vadd.f32 %v7763, %v451
    %v7784 = vadd.f32 %v7764, %v452
    %v7785 = vadd.f32 %v7765, %v453
    %v7786 = vadd.f32 %v7766, %v454
    %v7787 = vadd.f32 %v7767, %v455
    %v7788 = vadd.f32 %v7768, %v7773
    %v7789 = vadd.f32 %v7769, %v7774
    %v7790 = vadd.f32 %v7770, %v7775
    %v7791 = vadd.f32 %v7771, %v7776
    %v7792 = vadd.f32 %v7772, %v7777
    %v7793 = vadd.f32 %v7778, %v7783
    %v7794 = vadd.f32 %v7779, %v7784
    %v7795 = vadd.f32 %v7780, %v7785
    %v7796 = vadd.f32 %v7781, %v7786
    %v7797 = vadd.f32 %v7782, %v7787
    %v7798 = vld [vmem:[#allocation7] sm:$0xff]
    %v7799 = vld [vmem:[#allocation7 + $0x8] sm:$0xff]
    %v7800 = vld [vmem:[#allocation7 + $0x10] sm:$0xff]
    %v7801 = vld [vmem:[#allocation7 + $0x18] sm:$0xff]
    %v7802 = vld [vmem:[#allocation7 + $0x20] sm:$0xff]
    %v7803 = vld [vmem:[#allocation7 + $0x28] sm:$0xff]
    %v7804 = vld [vmem:[#allocation7 + $0x30] sm:$0xff]
    %v7805 = vld [vmem:[#allocation7 + $0x38] sm:$0xff]
    %v7806 = vld [vmem:[#allocation7 + $0x40] sm:$0xff]
    %v7807 = vld [vmem:[#allocation7 + $0x48] sm:$0xff]
    %v7808 = vld [vmem:[#allocation7 + $0x50] sm:$0xff]
    %v7809 = vld [vmem:[#allocation7 + $0x58] sm:$0xff]
    %v7810 = vld [vmem:[#allocation7 + $0x60] sm:$0xff]
    %v7811 = vld [vmem:[#allocation7 + $0x68] sm:$0xff]
    %v7812 = vld [vmem:[#allocation7 + $0x70] sm:$0xff]
    %v7813 = vld [vmem:[#allocation7 + $0x78] sm:$0xff]
    %v7814 = vld [vmem:[#allocation7 + $0x80] sm:$0xff]
    %v7815 = vld [vmem:[#allocation7 + $0x88] sm:$0xff]
    %v7816 = vld [vmem:[#allocation7 + $0x90] sm:$0xff]
    %v7817 = vld [vmem:[#allocation7 + $0x98] sm:$0xff]
    %v7818 = vld [vmem:[#allocation7 + $0xa0] sm:$0xff]
    %v7819 = vld [vmem:[#allocation7 + $0xa8] sm:$0xff]
    %v7820 = vld [vmem:[#allocation7 + $0xb0] sm:$0xff]
    %v7821 = vld [vmem:[#allocation7 + $0xb8] sm:$0xff]
    %v7822 = vld [vmem:[#allocation7 + $0xc0] sm:$0xff]
    %v7823 = vld [vmem:[#allocation7 + $0xc8] sm:$0xff]
    %v7824 = vld [vmem:[#allocation7 + $0xd0] sm:$0xff]
    %v7825 = vld [vmem:[#allocation7 + $0xd8] sm:$0xff]
    %v7826 = vld [vmem:[#allocation7 + $0xe0] sm:$0xff]
    %v7827 = vld [vmem:[#allocation7 + $0xe8] sm:$0xff]
    %v7828 = vld [vmem:[#allocation7 + $0xf0] sm:$0xff]
    %v7829 = vld [vmem:[#allocation7 + $0xf8] sm:$0xff]
    %v7830 = vld [vmem:[#allocation7 + $0x100] sm:$0xff]
    %v7831 = vld [vmem:[#allocation7 + $0x108] sm:$0xff]
    %v7832 = vld [vmem:[#allocation7 + $0x110] sm:$0xff]
    %v7833 = vld [vmem:[#allocation7 + $0x118] sm:$0xff]
    %v7834 = vld [vmem:[#allocation7 + $0x120] sm:$0xff]
    %v7835 = vld [vmem:[#allocation7 + $0x128] sm:$0xff]
    %v7836 = vld [vmem:[#allocation7 + $0x130] sm:$0xff]
    %v7837 = vld [vmem:[#allocation7 + $0x138] sm:$0xff]
    %v7838 = vld [vmem:[#allocation7 + $0x140] sm:$0xff]
    %v7839 = vld [vmem:[#allocation7 + $0x148] sm:$0xff]
    %v7840 = vld [vmem:[#allocation7 + $0x150] sm:$0xff]
    %v7841 = vld [vmem:[#allocation7 + $0x158] sm:$0xff]
    %v7842 = vld [vmem:[#allocation7 + $0x160] sm:$0xff]
    %v7843 = vld [vmem:[#allocation7 + $0x168] sm:$0xff]
    %v7844 = vld [vmem:[#allocation7 + $0x170] sm:$0xff]
    %v7845 = vld [vmem:[#allocation7 + $0x178] sm:$0xff]
    %v7846 = vld [vmem:[#allocation7 + $0x180] sm:$0xff]
    %v7847 = vld [vmem:[#allocation7 + $0x188] sm:$0xff]
    %v7848 = vld [vmem:[#allocation7 + $0x190] sm:$0xff]
    %v7849 = vld [vmem:[#allocation7 + $0x198] sm:$0xff]
    %v7850 = vld [vmem:[#allocation7 + $0x1a0] sm:$0xff]
    %v7851 = vld [vmem:[#allocation7 + $0x1a8] sm:$0xff]
    %v7852 = vld [vmem:[#allocation7 + $0x1b0] sm:$0xff]
    %v7853 = vld [vmem:[#allocation7 + $0x1b8] sm:$0xff]
    %v7854 = vld [vmem:[#allocation7 + $0x1c0] sm:$0xff]
    %v7855 = vld [vmem:[#allocation7 + $0x1c8] sm:$0xff]
    %v7856 = vld [vmem:[#allocation7 + $0x1d0] sm:$0xff]
    %v7857 = vld [vmem:[#allocation7 + $0x1d8] sm:$0xff]
    %v7858 = vld [vmem:[#allocation7 + $0x1e0] sm:$0xff]
    %v7859 = vld [vmem:[#allocation7 + $0x1e8] sm:$0xff]
    %v7860 = vld [vmem:[#allocation7 + $0x1f0] sm:$0xff]
    %v7861 = vld [vmem:[#allocation7 + $0x1f8] sm:$0xff]
    %v7862 = vld [vmem:[#allocation7 + $0x200] sm:$0xff]
    %v7863 = vld [vmem:[#allocation7 + $0x208] sm:$0xff]
    %v7864 = vld [vmem:[#allocation7 + $0x210] sm:$0xff]
    %v7865 = vld [vmem:[#allocation7 + $0x218] sm:$0xff]
    %v7866 = vld [vmem:[#allocation7 + $0x220] sm:$0xff]
    %v7867 = vld [vmem:[#allocation7 + $0x228] sm:$0xff]
    %v7868 = vld [vmem:[#allocation7 + $0x230] sm:$0xff]
    %v7869 = vld [vmem:[#allocation7 + $0x238] sm:$0xff]
    %v7870 = vld [vmem:[#allocation7 + $0x240] sm:$0xff]
    %v7871 = vld [vmem:[#allocation7 + $0x248] sm:$0xff]
    %v7872 = vld [vmem:[#allocation7 + $0x250] sm:$0xff]
    %v7873 = vld [vmem:[#allocation7 + $0x258] sm:$0xff]
    %v7874 = vld [vmem:[#allocation7 + $0x260] sm:$0xff]
    %v7875 = vld [vmem:[#allocation7 + $0x268] sm:$0xff]
    %v7876 = vld [vmem:[#allocation7 + $0x270] sm:$0xff]
    %v7877 = vld [vmem:[#allocation7 + $0x278] sm:$0xff]
    %v7878 = vld [vmem:[#allocation7 + $0x280] sm:$0xff]
    %v7879 = vld [vmem:[#allocation7 + $0x288] sm:$0xff]
    %v7880 = vld [vmem:[#allocation7 + $0x290] sm:$0xff]
    %v7881 = vld [vmem:[#allocation7 + $0x298] sm:$0xff]
    %v7882 = vld [vmem:[#allocation7 + $0x2a0] sm:$0xff]
    %v7883 = vld [vmem:[#allocation7 + $0x2a8] sm:$0xff]
    %v7884 = vld [vmem:[#allocation7 + $0x2b0] sm:$0xff]
    %v7885 = vld [vmem:[#allocation7 + $0x2b8] sm:$0xff]
    %v7886 = vld [vmem:[#allocation7 + $0x2c0] sm:$0xff]
    %v7887 = vld [vmem:[#allocation7 + $0x2c8] sm:$0xff]
    %v7888 = vld [vmem:[#allocation7 + $0x2d0] sm:$0xff]
    %v7889 = vld [vmem:[#allocation7 + $0x2d8] sm:$0xff]
    %v7890 = vld [vmem:[#allocation7 + $0x2e0] sm:$0xff]
    %v7891 = vld [vmem:[#allocation7 + $0x2e8] sm:$0xff]
    %v7892 = vld [vmem:[#allocation7 + $0x2f0] sm:$0xff]
    %v7893 = vld [vmem:[#allocation7 + $0x2f8] sm:$0xff]
    %v7894 = vld [vmem:[#allocation7 + $0x300] sm:$0xff]
    %v7895 = vld [vmem:[#allocation7 + $0x308] sm:$0xff]
    %v7896 = vld [vmem:[#allocation7 + $0x310] sm:$0xff]
    %v7897 = vld [vmem:[#allocation7 + $0x318] sm:$0xff]
    %v7898 = vld [vmem:[#allocation7 + $0x320] sm:$0xff]
    %v7899 = vld [vmem:[#allocation7 + $0x328] sm:$0xff]
    %v7900 = vld [vmem:[#allocation7 + $0x330] sm:$0xff]
    %v7901 = vld [vmem:[#allocation7 + $0x338] sm:$0xff]
    %v7902 = vld [vmem:[#allocation7 + $0x340] sm:$0xff]
    %v7903 = vld [vmem:[#allocation7 + $0x348] sm:$0xff]
    %v7904 = vld [vmem:[#allocation7 + $0x350] sm:$0xff]
    %v7905 = vld [vmem:[#allocation7 + $0x358] sm:$0xff]
    %v7906 = vld [vmem:[#allocation7 + $0x360] sm:$0xff]
    %v7907 = vld [vmem:[#allocation7 + $0x368] sm:$0xff]
    %v7908 = vld [vmem:[#allocation7 + $0x370] sm:$0xff]
    %v7909 = vld [vmem:[#allocation7 + $0x378] sm:$0xff]
    %v7910 = vld [vmem:[#allocation7 + $0x380] sm:$0xff]
    %v7911 = vld [vmem:[#allocation7 + $0x388] sm:$0xff]
    %v7912 = vld [vmem:[#allocation7 + $0x390] sm:$0xff]
    %v7913 = vld [vmem:[#allocation7 + $0x398] sm:$0xff]
    %v7914 = vld [vmem:[#allocation7 + $0x3a0] sm:$0xff]
    %v7915 = vld [vmem:[#allocation7 + $0x3a8] sm:$0xff]
    %v7916 = vld [vmem:[#allocation7 + $0x3b0] sm:$0xff]
    %v7917 = vld [vmem:[#allocation7 + $0x3b8] sm:$0xff]
    %v7918 = vld [vmem:[#allocation7 + $0x3c0] sm:$0xff]
    %v7919 = vld [vmem:[#allocation7 + $0x3c8] sm:$0xff]
    %v7920 = vld [vmem:[#allocation7 + $0x3d0] sm:$0xff]
    %v7921 = vld [vmem:[#allocation7 + $0x3d8] sm:$0xff]
    %v7922 = vld [vmem:[#allocation7 + $0x3e0] sm:$0xff]
    %v7923 = vld [vmem:[#allocation7 + $0x3e8] sm:$0xff]
    %v7924 = vld [vmem:[#allocation7 + $0x3f0] sm:$0xff]
    %v7925 = vld [vmem:[#allocation7 + $0x3f8] sm:$0xff]
    %v7926 = vld [vmem:[#allocation7 + $0x400] sm:$0xff]
    %v7927 = vld [vmem:[#allocation7 + $0x408] sm:$0xff]
    %v7928 = vld [vmem:[#allocation7 + $0x410] sm:$0xff]
    %v7929 = vld [vmem:[#allocation7 + $0x418] sm:$0xff]
    %v7930 = vld [vmem:[#allocation7 + $0x420] sm:$0xff]
    %v7931 = vld [vmem:[#allocation7 + $0x428] sm:$0xff]
    %v7932 = vld [vmem:[#allocation7 + $0x430] sm:$0xff]
    %v7933 = vld [vmem:[#allocation7 + $0x438] sm:$0xff]
    %v7934 = vld [vmem:[#allocation7 + $0x440] sm:$0xff]
    %v7935 = vld [vmem:[#allocation7 + $0x448] sm:$0xff]
    %v7936 = vld [vmem:[#allocation7 + $0x450] sm:$0xff]
    %v7937 = vld [vmem:[#allocation7 + $0x458] sm:$0xff]
    %v7938 = vld [vmem:[#allocation7 + $0x460] sm:$0xff]
    %v7939 = vld [vmem:[#allocation7 + $0x468] sm:$0xff]
    %v7940 = vld [vmem:[#allocation7 + $0x470] sm:$0xff]
    %v7941 = vld [vmem:[#allocation7 + $0x478] sm:$0xff]
    %v7942 = vld [vmem:[#allocation7 + $0x480] sm:$0xff]
    %v7943 = vld [vmem:[#allocation7 + $0x488] sm:$0xff]
    %v7944 = vld [vmem:[#allocation7 + $0x490] sm:$0xff]
    %v7945 = vld [vmem:[#allocation7 + $0x498] sm:$0xff]
    %v7946 = vld [vmem:[#allocation7 + $0x4a0] sm:$0xff]
    %v7947 = vld [vmem:[#allocation7 + $0x4a8] sm:$0xff]
    %v7948 = vld [vmem:[#allocation7 + $0x4b0] sm:$0xff]
    %v7949 = vld [vmem:[#allocation7 + $0x4b8] sm:$0xff]
    %v7950 = vld [vmem:[#allocation7 + $0x4c0] sm:$0xff]
    %v7951 = vld [vmem:[#allocation7 + $0x4c8] sm:$0xff]
    %v7952 = vld [vmem:[#allocation7 + $0x4d0] sm:$0xff]
    %v7953 = vld [vmem:[#allocation7 + $0x4d8] sm:$0xff]
    %v7954 = vld [vmem:[#allocation7 + $0x4e0] sm:$0xff]
    %v7955 = vld [vmem:[#allocation7 + $0x4e8] sm:$0xff]
    %v7956 = vld [vmem:[#allocation7 + $0x4f0] sm:$0xff]
    %v7957 = vld [vmem:[#allocation7 + $0x4f8] sm:$0xff]
    %v7958 = vld [vmem:[#allocation7 + $0x500] sm:$0xff]
    %v7959 = vld [vmem:[#allocation7 + $0x508] sm:$0xff]
    %v7960 = vld [vmem:[#allocation7 + $0x510] sm:$0xff]
    %v7961 = vld [vmem:[#allocation7 + $0x518] sm:$0xff]
    %v7962 = vld [vmem:[#allocation7 + $0x520] sm:$0xff]
    %v7963 = vld [vmem:[#allocation7 + $0x528] sm:$0xff]
    %v7964 = vld [vmem:[#allocation7 + $0x530] sm:$0xff]
    %v7965 = vld [vmem:[#allocation7 + $0x538] sm:$0xff]
    %v7966 = vld [vmem:[#allocation7 + $0x540] sm:$0xff]
    %v7967 = vld [vmem:[#allocation7 + $0x548] sm:$0xff]
    %v7968 = vld [vmem:[#allocation7 + $0x550] sm:$0xff]
    %v7969 = vld [vmem:[#allocation7 + $0x558] sm:$0xff]
    %v7970 = vld [vmem:[#allocation7 + $0x560] sm:$0xff]
    %v7971 = vld [vmem:[#allocation7 + $0x568] sm:$0xff]
    %v7972 = vld [vmem:[#allocation7 + $0x570] sm:$0xff]
    %v7973 = vld [vmem:[#allocation7 + $0x578] sm:$0xff]
    %v7974 = vld [vmem:[#allocation7 + $0x580] sm:$0xff]
    %v7975 = vld [vmem:[#allocation7 + $0x588] sm:$0xff]
    %v7976 = vld [vmem:[#allocation7 + $0x590] sm:$0xff]
    %v7977 = vld [vmem:[#allocation7 + $0x598] sm:$0xff]
    %v7978 = vld [vmem:[#allocation7 + $0x5a0] sm:$0xff]
    %v7979 = vld [vmem:[#allocation7 + $0x5a8] sm:$0xff]
    %v7980 = vld [vmem:[#allocation7 + $0x5b0] sm:$0xff]
    %v7981 = vld [vmem:[#allocation7 + $0x5b8] sm:$0xff]
    %v7982 = vld [vmem:[#allocation7 + $0x5c0] sm:$0xff]
    %v7983 = vld [vmem:[#allocation7 + $0x5c8] sm:$0xff]
    %v7984 = vld [vmem:[#allocation7 + $0x5d0] sm:$0xff]
    %v7985 = vld [vmem:[#allocation7 + $0x5d8] sm:$0xff]
    %v7986 = vld [vmem:[#allocation7 + $0x5e0] sm:$0xff]
    %v7987 = vld [vmem:[#allocation7 + $0x5e8] sm:$0xff]
    %v7988 = vld [vmem:[#allocation7 + $0x5f0] sm:$0xff]
    %v7989 = vld [vmem:[#allocation7 + $0x5f8] sm:$0xff]
    %v7990 = vld [vmem:[#allocation7 + $0x600] sm:$0xff]
    %v7991 = vld [vmem:[#allocation7 + $0x608] sm:$0xff]
    %v7992 = vld [vmem:[#allocation7 + $0x610] sm:$0xff]
    %v7993 = vld [vmem:[#allocation7 + $0x618] sm:$0xff]
    %v7994 = vld [vmem:[#allocation7 + $0x620] sm:$0xff]
    %v7995 = vld [vmem:[#allocation7 + $0x628] sm:$0xff]
    %v7996 = vld [vmem:[#allocation7 + $0x630] sm:$0xff]
    %v7997 = vld [vmem:[#allocation7 + $0x638] sm:$0xff]
    %v7998 = vld [vmem:[#allocation7 + $0x640] sm:$0xff]
    %v7999 = vld [vmem:[#allocation7 + $0x648] sm:$0xff]
    %v8000 = vld [vmem:[#allocation7 + $0x650] sm:$0xff]
    %v8001 = vld [vmem:[#allocation7 + $0x658] sm:$0xff]
    %v8002 = vld [vmem:[#allocation7 + $0x660] sm:$0xff]
    %v8003 = vld [vmem:[#allocation7 + $0x668] sm:$0xff]
    %v8004 = vld [vmem:[#allocation7 + $0x670] sm:$0xff]
    %v8005 = vld [vmem:[#allocation7 + $0x678] sm:$0xff]
    %v8006 = vld [vmem:[#allocation7 + $0x680] sm:$0xff]
    %v8007 = vld [vmem:[#allocation7 + $0x688] sm:$0xff]
    %v8008 = vld [vmem:[#allocation7 + $0x690] sm:$0xff]
    %v8009 = vld [vmem:[#allocation7 + $0x698] sm:$0xff]
    %v8010 = vld [vmem:[#allocation7 + $0x6a0] sm:$0xff]
    %v8011 = vld [vmem:[#allocation7 + $0x6a8] sm:$0xff]
    %v8012 = vld [vmem:[#allocation7 + $0x6b0] sm:$0xff]
    %v8013 = vld [vmem:[#allocation7 + $0x6b8] sm:$0xff]
    %v8014 = vld [vmem:[#allocation7 + $0x6c0] sm:$0xff]
    %v8015 = vld [vmem:[#allocation7 + $0x6c8] sm:$0xff]
    %v8016 = vld [vmem:[#allocation7 + $0x6d0] sm:$0xff]
    %v8017 = vld [vmem:[#allocation7 + $0x6d8] sm:$0xff]
    %v8018 = vld [vmem:[#allocation7 + $0x6e0] sm:$0xff]
    %v8019 = vld [vmem:[#allocation7 + $0x6e8] sm:$0xff]
    %v8020 = vld [vmem:[#allocation7 + $0x6f0] sm:$0xff]
    %v8021 = vld [vmem:[#allocation7 + $0x6f8] sm:$0xff]
    %v8022 = vld [vmem:[#allocation7 + $0x700] sm:$0xff]
    %v8023 = vld [vmem:[#allocation7 + $0x708] sm:$0xff]
    %v8024 = vld [vmem:[#allocation7 + $0x710] sm:$0xff]
    %v8025 = vld [vmem:[#allocation7 + $0x718] sm:$0xff]
    %v8026 = vld [vmem:[#allocation7 + $0x720] sm:$0xff]
    %v8027 = vld [vmem:[#allocation7 + $0x728] sm:$0xff]
    %v8028 = vld [vmem:[#allocation7 + $0x730] sm:$0xff]
    %v8029 = vld [vmem:[#allocation7 + $0x738] sm:$0xff]
    %v8030 = vld [vmem:[#allocation7 + $0x740] sm:$0xff]
    %v8031 = vld [vmem:[#allocation7 + $0x748] sm:$0xff]
    %v8032 = vld [vmem:[#allocation7 + $0x750] sm:$0xff]
    %v8033 = vld [vmem:[#allocation7 + $0x758] sm:$0xff]
    %v8034 = vld [vmem:[#allocation7 + $0x760] sm:$0xff]
    %v8035 = vld [vmem:[#allocation7 + $0x768] sm:$0xff]
    %v8036 = vld [vmem:[#allocation7 + $0x770] sm:$0xff]
    %v8037 = vld [vmem:[#allocation7 + $0x778] sm:$0xff]
    %8038 = vmatprep.subr.mxu0 %v7799
    %8039 = vmatpush1.msra.mxu0 %v7798
    %8040 = vmatprep.subr.mxu0 %v7802
    %8041 = vmatpush1.msra.mxu0 %v7801
    %8042 = vmatprep.subr.mxu0 %v7805
    %8043 = vmatpush1.msra.mxu0 %v7804
    %8044 = vmatprep.subr.mxu0 %v7808
    %8045 = vmatpush1.msra.mxu0 %v7807
    %8046 = vmatprep.subr.mxu0 %v7811
    %8047 = vmatpush1.msra.mxu0 %v7810
    %8048 = vmatprep.subr.mxu0 %v7814
    %8049 = vmatpush1.msra.mxu0 %v7813
    %8050 = vmatprep.subr.mxu0 %v7817
    %8051 = vmatpush1.msra.mxu0 %v7816
    %8052 = vmatprep.subr.mxu0 %v7820
    %8053 = vmatpush1.msra.mxu0 %v7819
    %8054 = vmatprep.subr.mxu0 %v7823
    %8055 = vmatpush1.msra.mxu0 %v7822
    %8056 = vmatprep.subr.mxu0 %v7826
    %8057 = vmatpush1.msra.mxu0 %v7825
    %8058 = vmatprep.subr.mxu0 %v7829
    %8059 = vmatpush1.msra.mxu0 %v7828
    %8060 = vmatprep.subr.mxu0 %v7832
    %8061 = vmatpush1.msra.mxu0 %v7831
    %8062 = vmatprep.subr.mxu0 %v7835
    %8063 = vmatpush1.msra.mxu0 %v7834
    %8064 = vmatprep.subr.mxu0 %v7838
    %8065 = vmatpush1.msra.mxu0 %v7837
    %8066 = vmatprep.subr.mxu0 %v7841
    %8067 = vmatpush1.msra.mxu0 %v7840
    %8068 = vmatprep.subr.mxu0 %v7844
    %8069 = vmatpush1.msra.mxu0 %v7843
    %8070 = vmatprep.subr.mxu0 %v7847
    %8071 = vmatpush1.msra.mxu0 %v7846
    %8072 = vmatprep.subr.mxu0 %v7850
    %8073 = vmatpush1.msra.mxu0 %v7849
    %8074 = vmatprep.subr.mxu0 %v7853
    %8075 = vmatpush1.msra.mxu0 %v7852
    %8076 = vmatprep.subr.mxu0 %v7856
    %8077 = vmatpush1.msra.mxu0 %v7855
    %8078 = vmatprep.subr.mxu0 %v7859
    %8079 = vmatpush1.msra.mxu0 %v7858
    %8080 = vmatprep.subr.mxu0 %v7862
    %8081 = vmatpush1.msra.mxu0 %v7861
    %8082 = vmatprep.subr.mxu0 %v7865
    %8083 = vmatpush1.msra.mxu0 %v7864
    %8084 = vmatprep.subr.mxu0 %v7868
    %8085 = vmatpush1.msra.mxu0 %v7867
    %8086 = vmatprep.subr.mxu0 %v7871
    %8087 = vmatpush1.msra.mxu0 %v7870
    %8088 = vmatprep.subr.mxu0 %v7874
    %8089 = vmatpush1.msra.mxu0 %v7873
    %8090 = vmatprep.subr.mxu0 %v7877
    %8091 = vmatpush1.msra.mxu0 %v7876
    %8092 = vmatprep.subr.mxu0 %v7880
    %8093 = vmatpush1.msra.mxu0 %v7879
    %8094 = vmatprep.subr.mxu0 %v7883
    %8095 = vmatpush1.msra.mxu0 %v7882
    %8096 = vmatprep.subr.mxu0 %v7886
    %8097 = vmatpush1.msra.mxu0 %v7885
    %8098 = vmatprep.subr.mxu0 %v7889
    %8099 = vmatpush1.msra.mxu0 %v7888
    %8100 = vmatprep.subr.mxu0 %v7892
    %8101 = vmatpush1.msra.mxu0 %v7891
    %8102 = vmatprep.mubr.f32.mxu0 %v7789
    %8103 = vmatmul.mubr.f32.gmra.mrb[0].mxu0 %v7788
    %v8104 = vpop.f32.mrb[0].mxu0
    %v8105 = vadd.f32 0.0, %v8104
    %v8106 = vpop.f32.mrb[0].mxu0
    %v8107 = vadd.f32 0.0, %v8106
    %8108 = vmatprep.mubr.f32.mxu0 %v7794
    %8109 = vmatmul.mubr.f32.gmra.mrb[0].mxu0 %v7793
    %v8110 = vpop.f32.mrb[0].mxu0
    %v8111 = vadd.f32 0.0, %v8110
    %v8112 = vpop.f32.mrb[0].mxu0
    %v8113 = vadd.f32 0.0, %v8112
    %8114 = vdwg.mxu0
    %8115 = vmatprep.subr.mxu0 %v7895
    %8116 = vmatpush1.msra.mxu0 %v7894
    %8117 = vmatprep.subr.mxu0 %v7898
    %8118 = vmatpush1.msra.mxu0 %v7897
    %8119 = vmatprep.subr.mxu0 %v7901
    %8120 = vmatpush1.msra.mxu0 %v7900
    %8121 = vmatprep.subr.mxu0 %v7904
    %8122 = vmatpush1.msra.mxu0 %v7903
    %8123 = vmatprep.subr.mxu0 %v7907
    %8124 = vmatpush1.msra.mxu0 %v7906
    %8125 = vmatprep.subr.mxu0 %v7910
    %8126 = vmatpush1.msra.mxu0 %v7909
    %8127 = vmatprep.subr.mxu0 %v7913
    %8128 = vmatpush1.msra.mxu0 %v7912
    %8129 = vmatprep.subr.mxu0 %v7916
    %8130 = vmatpush1.msra.mxu0 %v7915
    %8131 = vmatprep.subr.mxu0 %v7919
    %8132 = vmatpush1.msra.mxu0 %v7918
    %8133 = vmatprep.subr.mxu0 %v7922
    %8134 = vmatpush1.msra.mxu0 %v7921
    %8135 = vmatprep.subr.mxu0 %v7925
    %8136 = vmatpush1.msra.mxu0 %v7924
    %8137 = vmatprep.subr.mxu0 %v7928
    %8138 = vmatpush1.msra.mxu0 %v7927
    %8139 = vmatprep.subr.mxu0 %v7931
    %8140 = vmatpush1.msra.mxu0 %v7930
    %8141 = vmatprep.subr.mxu0 %v7934
    %8142 = vmatpush1.msra.mxu0 %v7933
    %8143 = vmatprep.subr.mxu0 %v7937
    %8144 = vmatpush1.msra.mxu0 %v7936
    %8145 = vmatprep.subr.mxu0 %v7940
    %8146 = vmatpush1.msra.mxu0 %v7939
    %8147 = vmatprep.subr.mxu0 %v7943
    %8148 = vmatpush1.msra.mxu0 %v7942
    %8149 = vmatprep.subr.mxu0 %v7946
    %8150 = vmatpush1.msra.mxu0 %v7945
    %8151 = vmatprep.subr.mxu0 %v7949
    %8152 = vmatpush1.msra.mxu0 %v7948
    %8153 = vmatprep.subr.mxu0 %v7952
    %8154 = vmatpush1.msra.mxu0 %v7951
    %8155 = vmatprep.subr.mxu0 %v7955
    %8156 = vmatpush1.msra.mxu0 %v7954
    %8157 = vmatprep.subr.mxu0 %v7958
    %8158 = vmatpush1.msra.mxu0 %v7957
    %8159 = vmatprep.subr.mxu0 %v7961
    %8160 = vmatpush1.msra.mxu0 %v7960
    %8161 = vmatprep.subr.mxu0 %v7964
    %8162 = vmatpush1.msra.mxu0 %v7963
    %8163 = vmatprep.subr.mxu0 %v7967
    %8164 = vmatpush1.msra.mxu0 %v7966
    %8165 = vmatprep.subr.mxu0 %v7970
    %8166 = vmatpush1.msra.mxu0 %v7969
    %8167 = vmatprep.subr.mxu0 %v7973
    %8168 = vmatpush1.msra.mxu0 %v7972
    %8169 = vmatprep.subr.mxu0 %v7976
    %8170 = vmatpush1.msra.mxu0 %v7975
    %8171 = vmatprep.subr.mxu0 %v7979
    %8172 = vmatpush1.msra.mxu0 %v7978
    %8173 = vmatprep.subr.mxu0 %v7982
    %8174 = vmatpush1.msra.mxu0 %v7981
    %8175 = vmatprep.subr.mxu0 %v7985
    %8176 = vmatpush1.msra.mxu0 %v7984
    %8177 = vmatprep.subr.mxu0 %v7988
    %8178 = vmatpush1.msra.mxu0 %v7987
    %8179 = vmatprep.mubr.f32.mxu0 %v7791
    %8180 = vmatmul.mubr.f32.gmra.mrb[0].mxu0 %v7790
    %v8181 = vpop.f32.mrb[0].mxu0
    %v8182 = vadd.f32 %v8105, %v8181
    %v8183 = vpop.f32.mrb[0].mxu0
    %v8184 = vadd.f32 %v8107, %v8183
    %8185 = vmatprep.mubr.f32.mxu0 %v7796
    %8186 = vmatmul.mubr.f32.gmra.mrb[0].mxu0 %v7795
    %v8187 = vpop.f32.mrb[0].mxu0
    %v8188 = vadd.f32 %v8111, %v8187
    %v8189 = vpop.f32.mrb[0].mxu0
    %v8190 = vadd.f32 %v8113, %v8189
    %8191 = vdwg.mxu0
    %8192 = vmatprep.subr.mxu0 %v7991
    %8193 = vmatpush1.msra.mxu0 %v7990
    %8194 = vmatprep.subr.mxu0 %v7994
    %8195 = vmatpush1.msra.mxu0 %v7993
    %8196 = vmatprep.subr.mxu0 %v7997
    %8197 = vmatpush1.msra.mxu0 %v7996
    %8198 = vmatprep.subr.mxu0 %v8000
    %8199 = vmatpush1.msra.mxu0 %v7999
    %8200 = vmatprep.subr.mxu0 %v8003
    %8201 = vmatpush1.msra.mxu0 %v8002
    %8202 = vmatprep.subr.mxu0 %v8006
    %8203 = vmatpush1.msra.mxu0 %v8005
    %8204 = vmatprep.subr.mxu0 %v8009
    %8205 = vmatpush1.msra.mxu0 %v8008
    %8206 = vmatprep.subr.mxu0 %v8012
    %8207 = vmatpush1.msra.mxu0 %v8011
    %8208 = vmatprep.subr.mxu0 %v8015
    %8209 = vmatpush1.msra.mxu0 %v8014
    %8210 = vmatprep.subr.mxu0 %v8018
    %8211 = vmatpush1.msra.mxu0 %v8017
    %8212 = vmatprep.subr.mxu0 %v8021
    %8213 = vmatpush1.msra.mxu0 %v8020
    %8214 = vmatprep.subr.mxu0 %v8024
    %8215 = vmatpush1.msra.mxu0 %v8023
    %8216 = vmatprep.subr.mxu0 %v8027
    %8217 = vmatpush1.msra.mxu0 %v8026
    %8218 = vmatprep.subr.mxu0 %v8030
    %8219 = vmatpush1.msra.mxu0 %v8029
    %8220 = vmatprep.subr.mxu0 %v8033
    %8221 = vmatpush1.msra.mxu0 %v8032
    %8222 = vmatprep.subr.mxu0 %v8036
    %8223 = vmatpush1.msra.mxu0 %v8035
    %8224 = vmatprep.subr.mxu0 0.0
    %8225 = vmatpush1.msra.mxu0 0.0
    %8226 = vmatprep.subr.mxu0 0.0
    %8227 = vmatpush1.msra.mxu0 0.0
    %8228 = vmatprep.subr.mxu0 0.0
    %8229 = vmatpush1.msra.mxu0 0.0
    %8230 = vmatprep.subr.mxu0 0.0
    %8231 = vmatpush1.msra.mxu0 0.0
    %8232 = vmatprep.subr.mxu0 0.0
    %8233 = vmatpush1.msra.mxu0 0.0
    %8234 = vmatprep.subr.mxu0 0.0
    %8235 = vmatpush1.msra.mxu0 0.0
    %8236 = vmatprep.subr.mxu0 0.0
    %8237 = vmatpush1.msra.mxu0 0.0
    %8238 = vmatprep.subr.mxu0 0.0
    %8239 = vmatpush1.msra.mxu0 0.0
    %8240 = vmatprep.subr.mxu0 0.0
    %8241 = vmatpush1.msra.mxu0 0.0
    %8242 = vmatprep.subr.mxu0 0.0
    %8243 = vmatpush1.msra.mxu0 0.0
    %8244 = vmatprep.subr.mxu0 0.0
    %8245 = vmatpush1.msra.mxu0 0.0
    %8246 = vmatprep.subr.mxu0 0.0
    %8247 = vmatpush1.msra.mxu0 0.0
    %8248 = vmatprep.subr.mxu0 0.0
    %8249 = vmatpush1.msra.mxu0 0.0
    %8250 = vmatprep.subr.mxu0 0.0
    %8251 = vmatpush1.msra.mxu0 0.0
    %8252 = vmatprep.subr.mxu0 0.0
    %8253 = vmatpush1.msra.mxu0 0.0
    %8254 = vmatprep.subr.mxu0 0.0
    %8255 = vmatpush1.msra.mxu0 0.0
    %8256 = vmatprep.mubr.f32.mxu0 0.0
    %8257 = vmatmul.mubr.f32.gmra.mrb[0].mxu0 %v7792
    %v8258 = vpop.f32.mrb[0].mxu0
    %v8259 = vadd.f32 %v8182, %v8258
    %v8260 = vpop.f32.mrb[0].mxu0
    %v8261 = vadd.f32 %v8184, %v8260
    %8262 = vmatprep.mubr.f32.mxu0 0.0
    %8263 = vmatmul.mubr.f32.gmra.mrb[0].mxu0 %v7797
    %v8264 = vpop.f32.mrb[0].mxu0
    %v8265 = vadd.f32 %v8188, %v8264
    %v8266 = vpop.f32.mrb[0].mxu0
    %v8267 = vadd.f32 %v8190, %v8266
    %8268 = vdwg.mxu0
    %8269 = vmatprep.subr.mxu0 0.0
    %8270 = vmatpush1.msra.mxu0 %v7800
    %8271 = vmatprep.subr.mxu0 0.0
    %8272 = vmatpush1.msra.mxu0 %v7803
    %8273 = vmatprep.subr.mxu0 0.0
    %8274 = vmatpush1.msra.mxu0 %v7806
    %8275 = vmatprep.subr.mxu0 0.0
    %8276 = vmatpush1.msra.mxu0 %v7809
    %8277 = vmatprep.subr.mxu0 0.0
    %8278 = vmatpush1.msra.mxu0 %v7812
    %8279 = vmatprep.subr.mxu0 0.0
    %8280 = vmatpush1.msra.mxu0 %v7815
    %8281 = vmatprep.subr.mxu0 0.0
    %8282 = vmatpush1.msra.mxu0 %v7818
    %8283 = vmatprep.subr.mxu0 0.0
    %8284 = vmatpush1.msra.mxu0 %v7821
    %8285 = vmatprep.subr.mxu0 0.0
    %8286 = vmatpush1.msra.mxu0 %v7824
    %8287 = vmatprep.subr.mxu0 0.0
    %8288 = vmatpush1.msra.mxu0 %v7827
    %8289 = vmatprep.subr.mxu0 0.0
    %8290 = vmatpush1.msra.mxu0 %v7830
    %8291 = vmatprep.subr.mxu0 0.0
    %8292 = vmatpush1.msra.mxu0 %v7833
    %8293 = vmatprep.subr.mxu0 0.0
    %8294 = vmatpush1.msra.mxu0 %v7836
    %8295 = vmatprep.subr.mxu0 0.0
    %8296 = vmatpush1.msra.mxu0 %v7839
    %8297 = vmatprep.subr.mxu0 0.0
    %8298 = vmatpush1.msra.mxu0 %v7842
    %8299 = vmatprep.subr.mxu0 0.0
    %8300 = vmatpush1.msra.mxu0 %v7845
    %8301 = vmatprep.subr.mxu0 0.0
    %8302 = vmatpush1.msra.mxu0 %v7848
    %8303 = vmatprep.subr.mxu0 0.0
    %8304 = vmatpush1.msra.mxu0 %v7851
    %8305 = vmatprep.subr.mxu0 0.0
    %8306 = vmatpush1.msra.mxu0 %v7854
    %8307 = vmatprep.subr.mxu0 0.0
    %8308 = vmatpush1.msra.mxu0 %v7857
    %8309 = vmatprep.subr.mxu0 0.0
    %8310 = vmatpush1.msra.mxu0 %v7860
    %8311 = vmatprep.subr.mxu0 0.0
    %8312 = vmatpush1.msra.mxu0 %v7863
    %8313 = vmatprep.subr.mxu0 0.0
    %8314 = vmatpush1.msra.mxu0 %v7866
    %8315 = vmatprep.subr.mxu0 0.0
    %8316 = vmatpush1.msra.mxu0 %v7869
    %8317 = vmatprep.subr.mxu0 0.0
    %8318 = vmatpush1.msra.mxu0 %v7872
    %8319 = vmatprep.subr.mxu0 0.0
    %8320 = vmatpush1.msra.mxu0 %v7875
    %8321 = vmatprep.subr.mxu0 0.0
    %8322 = vmatpush1.msra.mxu0 %v7878
    %8323 = vmatprep.subr.mxu0 0.0
    %8324 = vmatpush1.msra.mxu0 %v7881
    %8325 = vmatprep.subr.mxu0 0.0
    %8326 = vmatpush1.msra.mxu0 %v7884
    %8327 = vmatprep.subr.mxu0 0.0
    %8328 = vmatpush1.msra.mxu0 %v7887
    %8329 = vmatprep.subr.mxu0 0.0
    %8330 = vmatpush1.msra.mxu0 %v7890
    %8331 = vmatprep.subr.mxu0 0.0
    %8332 = vmatpush1.msra.mxu0 %v7893
    %8333 = vmatprep.mubr.f32.mxu0 %v7789
    %8334 = vmatmul.mubr.f32.gmra.mrb[0].mxu0 %v7788
    %v8335 = vpop.f32.mrb[0].mxu0
    %v8336 = vadd.f32 0.0, %v8335
    %v8337 = vpop.f32.mrb[0].mxu0
    %8338 = vmatprep.mubr.f32.mxu0 %v7794
    %8339 = vmatmul.mubr.f32.gmra.mrb[0].mxu0 %v7793
    %v8340 = vpop.f32.mrb[0].mxu0
    %v8341 = vadd.f32 0.0, %v8340
    %v8342 = vpop.f32.mrb[0].mxu0
    %8343 = vdwg.mxu0
    %8344 = vmatprep.subr.mxu0 0.0
    %8345 = vmatpush1.msra.mxu0 %v7896
    %8346 = vmatprep.subr.mxu0 0.0
    %8347 = vmatpush1.msra.mxu0 %v7899
    %8348 = vmatprep.subr.mxu0 0.0
    %8349 = vmatpush1.msra.mxu0 %v7902
    %8350 = vmatprep.subr.mxu0 0.0
    %8351 = vmatpush1.msra.mxu0 %v7905
    %8352 = vmatprep.subr.mxu0 0.0
    %8353 = vmatpush1.msra.mxu0 %v7908
    %8354 = vmatprep.subr.mxu0 0.0
    %8355 = vmatpush1.msra.mxu0 %v7911
    %8356 = vmatprep.subr.mxu0 0.0
    %8357 = vmatpush1.msra.mxu0 %v7914
    %8358 = vmatprep.subr.mxu0 0.0
    %8359 = vmatpush1.msra.mxu0 %v7917
    %8360 = vmatprep.subr.mxu0 0.0
    %8361 = vmatpush1.msra.mxu0 %v7920
    %8362 = vmatprep.subr.mxu0 0.0
    %8363 = vmatpush1.msra.mxu0 %v7923
    %8364 = vmatprep.subr.mxu0 0.0
    %8365 = vmatpush1.msra.mxu0 %v7926
    %8366 = vmatprep.subr.mxu0 0.0
    %8367 = vmatpush1.msra.mxu0 %v7929
    %8368 = vmatprep.subr.mxu0 0.0
    %8369 = vmatpush1.msra.mxu0 %v7932
    %8370 = vmatprep.subr.mxu0 0.0
    %8371 = vmatpush1.msra.mxu0 %v7935
    %8372 = vmatprep.subr.mxu0 0.0
    %8373 = vmatpush1.msra.mxu0 %v7938
    %8374 = vmatprep.subr.mxu0 0.0
    %8375 = vmatpush1.msra.mxu0 %v7941
    %8376 = vmatprep.subr.mxu0 0.0
    %8377 = vmatpush1.msra.mxu0 %v7944
    %8378 = vmatprep.subr.mxu0 0.0
    %8379 = vmatpush1.msra.mxu0 %v7947
    %8380 = vmatprep.subr.mxu0 0.0
    %8381 = vmatpush1.msra.mxu0 %v7950
    %8382 = vmatprep.subr.mxu0 0.0
    %8383 = vmatpush1.msra.mxu0 %v7953
    %8384 = vmatprep.subr.mxu0 0.0
    %8385 = vmatpush1.msra.mxu0 %v7956
    %8386 = vmatprep.subr.mxu0 0.0
    %8387 = vmatpush1.msra.mxu0 %v7959
    %8388 = vmatprep.subr.mxu0 0.0
    %8389 = vmatpush1.msra.mxu0 %v7962
    %8390 = vmatprep.subr.mxu0 0.0
    %8391 = vmatpush1.msra.mxu0 %v7965
    %8392 = vmatprep.subr.mxu0 0.0
    %8393 = vmatpush1.msra.mxu0 %v7968
    %8394 = vmatprep.subr.mxu0 0.0
    %8395 = vmatpush1.msra.mxu0 %v7971
    %8396 = vmatprep.subr.mxu0 0.0
    %8397 = vmatpush1.msra.mxu0 %v7974
    %8398 = vmatprep.subr.mxu0 0.0
    %8399 = vmatpush1.msra.mxu0 %v7977
    %8400 = vmatprep.subr.mxu0 0.0
    %8401 = vmatpush1.msra.mxu0 %v7980
    %8402 = vmatprep.subr.mxu0 0.0
    %8403 = vmatpush1.msra.mxu0 %v7983
    %8404 = vmatprep.subr.mxu0 0.0
    %8405 = vmatpush1.msra.mxu0 %v7986
    %8406 = vmatprep.subr.mxu0 0.0
    %8407 = vmatpush1.msra.mxu0 %v7989
    %8408 = vmatprep.mubr.f32.mxu0 %v7791
    %8409 = vmatmul.mubr.f32.gmra.mrb[0].mxu0 %v7790
    %v8410 = vpop.f32.mrb[0].mxu0
    %v8411 = vadd.f32 %v8336, %v8410
    %v8412 = vpop.f32.mrb[0].mxu0
    %8413 = vmatprep.mubr.f32.mxu0 %v7796
    %8414 = vmatmul.mubr.f32.gmra.mrb[0].mxu0 %v7795
    %v8415 = vpop.f32.mrb[0].mxu0
    %v8416 = vadd.f32 %v8341, %v8415
    %v8417 = vpop.f32.mrb[0].mxu0
    %8418 = vdwg.mxu0
    %8419 = vmatprep.subr.mxu0 0.0
    %8420 = vmatpush1.msra.mxu0 %v7992
    %8421 = vmatprep.subr.mxu0 0.0
    %8422 = vmatpush1.msra.mxu0 %v7995
    %8423 = vmatprep.subr.mxu0 0.0
    %8424 = vmatpush1.msra.mxu0 %v7998
    %8425 = vmatprep.subr.mxu0 0.0
    %8426 = vmatpush1.msra.mxu0 %v8001
    %8427 = vmatprep.subr.mxu0 0.0
    %8428 = vmatpush1.msra.mxu0 %v8004
    %8429 = vmatprep.subr.mxu0 0.0
    %8430 = vmatpush1.msra.mxu0 %v8007
    %8431 = vmatprep.subr.mxu0 0.0
    %8432 = vmatpush1.msra.mxu0 %v8010
    %8433 = vmatprep.subr.mxu0 0.0
    %8434 = vmatpush1.msra.mxu0 %v8013
    %8435 = vmatprep.subr.mxu0 0.0
    %8436 = vmatpush1.msra.mxu0 %v8016
    %8437 = vmatprep.subr.mxu0 0.0
    %8438 = vmatpush1.msra.mxu0 %v8019
    %8439 = vmatprep.subr.mxu0 0.0
    %8440 = vmatpush1.msra.mxu0 %v8022
    %8441 = vmatprep.subr.mxu0 0.0
    %8442 = vmatpush1.msra.mxu0 %v8025
    %8443 = vmatprep.subr.mxu0 0.0
    %8444 = vmatpush1.msra.mxu0 %v8028
    %8445 = vmatprep.subr.mxu0 0.0
    %8446 = vmatpush1.msra.mxu0 %v8031
    %8447 = vmatprep.subr.mxu0 0.0
    %8448 = vmatpush1.msra.mxu0 %v8034
    %8449 = vmatprep.subr.mxu0 0.0
    %8450 = vmatpush1.msra.mxu0 %v8037
    %8451 = vmatprep.subr.mxu0 0.0
    %8452 = vmatpush1.msra.mxu0 0.0
    %8453 = vmatprep.subr.mxu0 0.0
    %8454 = vmatpush1.msra.mxu0 0.0
    %8455 = vmatprep.subr.mxu0 0.0
    %8456 = vmatpush1.msra.mxu0 0.0
    %8457 = vmatprep.subr.mxu0 0.0
    %8458 = vmatpush1.msra.mxu0 0.0
    %8459 = vmatprep.subr.mxu0 0.0
    %8460 = vmatpush1.msra.mxu0 0.0
    %8461 = vmatprep.subr.mxu0 0.0
    %8462 = vmatpush1.msra.mxu0 0.0
    %8463 = vmatprep.subr.mxu0 0.0
    %8464 = vmatpush1.msra.mxu0 0.0
    %8465 = vmatprep.subr.mxu0 0.0
    %8466 = vmatpush1.msra.mxu0 0.0
    %8467 = vmatprep.subr.mxu0 0.0
    %8468 = vmatpush1.msra.mxu0 0.0
    %8469 = vmatprep.subr.mxu0 0.0
    %8470 = vmatpush1.msra.mxu0 0.0
    %8471 = vmatprep.subr.mxu0 0.0
    %8472 = vmatpush1.msra.mxu0 0.0
    %8473 = vmatprep.subr.mxu0 0.0
    %8474 = vmatpush1.msra.mxu0 0.0
    %8475 = vmatprep.subr.mxu0 0.0
    %8476 = vmatpush1.msra.mxu0 0.0
    %8477 = vmatprep.subr.mxu0 0.0
    %8478 = vmatpush1.msra.mxu0 0.0
    %8479 = vmatprep.subr.mxu0 0.0
    %8480 = vmatpush1.msra.mxu0 0.0
    %8481 = vmatprep.subr.mxu0 0.0
    %8482 = vmatpush1.msra.mxu0 0.0
    %8483 = vmatprep.mubr.f32.mxu0 0.0
    %8484 = vmatmul.mubr.f32.gmra.mrb[0].mxu0 %v7792
    %v8485 = vpop.f32.mrb[0].mxu0
    %v8486 = vadd.f32 %v8411, %v8485
    %v8487 = vpop.f32.mrb[0].mxu0
    %8488 = vmatprep.mubr.f32.mxu0 0.0
    %8489 = vmatmul.mubr.f32.gmra.mrb[0].mxu0 %v7797
    %v8490 = vpop.f32.mrb[0].mxu0
    %v8491 = vadd.f32 %v8416, %v8490
    %v8492 = vpop.f32.mrb[0].mxu0
    %8493 = vdwg.mxu0
    %v8494 = vld [vmem:[%s8] sm:$0xff]
    %v8495 = vld [vmem:[%s8 + $0x8] sm:$0xff]
    %v8496 = vld [vmem:[%s8 + $0x10] sm:$0xff]
    %v8497 = vld [vmem:[%s8 + $0x18] sm:$0xff]
    %v8498 = vld [vmem:[%s8 + $0x20] sm:$0xff]
    %v8499 = vld [vmem:[%s8 + $0x28] sm:$0xff]
    %v8500 = vld [vmem:[%s8 + $0x30] sm:$0xff]
    %v8501 = vld [vmem:[%s8 + $0x38] sm:$0xff]
    %v8502 = vld [vmem:[%s8 + $0x40] sm:$0xff]
    %v8503 = vld [vmem:[%s8 + $0x48] sm:$0xff]
    %v8504 = vld [vmem:[%s8 + $0x50] sm:$0xff]
    %v8505 = vld [vmem:[%s8 + $0x58] sm:$0xff]
    %v8506 = vld [vmem:[%s8 + $0x60] sm:$0xff]
    %v8507 = vld [vmem:[%s8 + $0x68] sm:$0xff]
    %v8508 = vld [vmem:[%s8 + $0x70] sm:$0xff]
    %v8509 = vld [vmem:[%s8 + $0x78] sm:$0xff]
    %v8510 = vld [vmem:[%s8 + $0x80] sm:$0xff]
    %v8511 = vld [vmem:[%s8 + $0x88] sm:$0xff]
    %v8512 = vld [vmem:[%s8 + $0x90] sm:$0xff]
    %v8513 = vld [vmem:[%s8 + $0x98] sm:$0xff]
    %v8514 = vld [vmem:[%s8 + $0xa0] sm:$0xff]
    %v8515 = vld [vmem:[%s8 + $0xa8] sm:$0xff]
    %v8516 = vld [vmem:[%s8 + $0xb0] sm:$0xff]
    %v8517 = vld [vmem:[%s8 + $0xb8] sm:$0xff]
    %v8518 = vld [vmem:[%s8 + $0xc0] sm:$0xff]
    %v8519 = vld [vmem:[%s8 + $0xc8] sm:$0xff]
    %v8520 = vld [vmem:[%s8 + $0xd0] sm:$0xff]
    %v8521 = vld [vmem:[%s8 + $0xd8] sm:$0xff]
    %v8522 = vld [vmem:[%s8 + $0xe0] sm:$0xff]
    %v8523 = vld [vmem:[%s8 + $0xe8] sm:$0xff]
    %v8524 = vld [vmem:[%s8 + $0xf0] sm:$0xff]
    %v8525 = vld [vmem:[%s8 + $0xf8] sm:$0xff]
    %v8526 = vld [vmem:[%s8 + $0x100] sm:$0xff]
    %v8527 = vld [vmem:[%s8 + $0x108] sm:$0xff]
    %v8528 = vld [vmem:[%s8 + $0x110] sm:$0xff]
    %v8529 = vld [vmem:[%s8 + $0x118] sm:$0xff]
    %v8530 = vld [vmem:[%s8 + $0x120] sm:$0xff]
    %v8531 = vld [vmem:[%s8 + $0x128] sm:$0xff]
    %v8532 = vld [vmem:[%s8 + $0x130] sm:$0xff]
    %v8533 = vld [vmem:[%s8 + $0x138] sm:$0xff]
    %v8534 = vld [vmem:[%s8 + $0x140] sm:$0xff]
    %v8535 = vld [vmem:[%s8 + $0x148] sm:$0xff]
    %v8536 = vld [vmem:[%s8 + $0x150] sm:$0xff]
    %v8537 = vld [vmem:[%s8 + $0x158] sm:$0xff]
    %v8538 = vld [vmem:[%s8 + $0x160] sm:$0xff]
    %v8539 = vld [vmem:[%s8 + $0x168] sm:$0xff]
    %v8540 = vld [vmem:[%s8 + $0x170] sm:$0xff]
    %v8541 = vld [vmem:[%s8 + $0x178] sm:$0xff]
    %v8542 = vld [vmem:[%s8 + $0x180] sm:$0xff]
    %v8543 = vld [vmem:[%s8 + $0x188] sm:$0xff]
    %v8544 = vld [vmem:[%s8 + $0x190] sm:$0xff]
    %v8545 = vld [vmem:[%s8 + $0x198] sm:$0xff]
    %v8546 = vld [vmem:[%s8 + $0x1a0] sm:$0xff]
    %v8547 = vld [vmem:[%s8 + $0x1a8] sm:$0xff]
    %v8548 = vld [vmem:[%s8 + $0x1b0] sm:$0xff]
    %v8549 = vld [vmem:[%s8 + $0x1b8] sm:$0xff]
    %v8550 = vld [vmem:[%s8 + $0x1c0] sm:$0xff]
    %v8551 = vld [vmem:[%s8 + $0x1c8] sm:$0xff]
    %v8552 = vld [vmem:[%s8 + $0x1d0] sm:$0xff]
    %v8553 = vld [vmem:[%s8 + $0x1d8] sm:$0xff]
    %v8554 = vld [vmem:[%s8 + $0x1e0] sm:$0xff]
    %v8555 = vld [vmem:[%s8 + $0x1e8] sm:$0xff]
    %v8556 = vld [vmem:[%s8 + $0x1f0] sm:$0xff]
    %v8557 = vld [vmem:[%s8 + $0x1f8] sm:$0xff]
    %v8558 = vld [vmem:[%s8 + $0x200] sm:$0xff]
    %v8559 = vld [vmem:[%s8 + $0x208] sm:$0xff]
    %v8560 = vld [vmem:[%s8 + $0x210] sm:$0xff]
    %v8561 = vld [vmem:[%s8 + $0x218] sm:$0xff]
    %v8562 = vld [vmem:[%s8 + $0x220] sm:$0xff]
    %v8563 = vld [vmem:[%s8 + $0x228] sm:$0xff]
    %v8564 = vld [vmem:[%s8 + $0x230] sm:$0xff]
    %v8565 = vld [vmem:[%s8 + $0x238] sm:$0xff]
    %v8566 = vld [vmem:[%s8 + $0x240] sm:$0xff]
    %v8567 = vld [vmem:[%s8 + $0x248] sm:$0xff]
    %v8568 = vld [vmem:[%s8 + $0x250] sm:$0xff]
    %v8569 = vld [vmem:[%s8 + $0x258] sm:$0xff]
    %v8570 = vld [vmem:[%s8 + $0x260] sm:$0xff]
    %v8571 = vld [vmem:[%s8 + $0x268] sm:$0xff]
    %v8572 = vld [vmem:[%s8 + $0x270] sm:$0xff]
    %v8573 = vld [vmem:[%s8 + $0x278] sm:$0xff]
    %v8574 = vld [vmem:[%s8 + $0x280] sm:$0xff]
    %v8575 = vld [vmem:[%s8 + $0x288] sm:$0xff]
    %v8576 = vld [vmem:[%s8 + $0x290] sm:$0xff]
    %v8577 = vld [vmem:[%s8 + $0x298] sm:$0xff]
    %v8578 = vld [vmem:[%s8 + $0x2a0] sm:$0xff]
    %v8579 = vld [vmem:[%s8 + $0x2a8] sm:$0xff]
    %v8580 = vld [vmem:[%s8 + $0x2b0] sm:$0xff]
    %v8581 = vld [vmem:[%s8 + $0x2b8] sm:$0xff]
    %v8582 = vld [vmem:[%s8 + $0x2c0] sm:$0xff]
    %v8583 = vld [vmem:[%s8 + $0x2c8] sm:$0xff]
    %v8584 = vld [vmem:[%s8 + $0x2d0] sm:$0xff]
    %v8585 = vld [vmem:[%s8 + $0x2d8] sm:$0xff]
    %v8586 = vld [vmem:[%s8 + $0x2e0] sm:$0xff]
    %v8587 = vld [vmem:[%s8 + $0x2e8] sm:$0xff]
    %v8588 = vld [vmem:[%s8 + $0x2f0] sm:$0xff]
    %v8589 = vld [vmem:[%s8 + $0x2f8] sm:$0xff]
    %v8590 = vld [vmem:[%s8 + $0x300] sm:$0xff]
    %v8591 = vld [vmem:[%s8 + $0x308] sm:$0xff]
    %v8592 = vld [vmem:[%s8 + $0x310] sm:$0xff]
    %v8593 = vld [vmem:[%s8 + $0x318] sm:$0xff]
    %v8594 = vld [vmem:[%s8 + $0x320] sm:$0xff]
    %v8595 = vld [vmem:[%s8 + $0x328] sm:$0xff]
    %v8596 = vld [vmem:[%s8 + $0x330] sm:$0xff]
    %v8597 = vld [vmem:[%s8 + $0x338] sm:$0xff]
    %v8598 = vld [vmem:[%s8 + $0x340] sm:$0xff]
    %v8599 = vld [vmem:[%s8 + $0x348] sm:$0xff]
    %v8600 = vld [vmem:[%s8 + $0x350] sm:$0xff]
    %v8601 = vld [vmem:[%s8 + $0x358] sm:$0xff]
    %v8602 = vld [vmem:[%s8 + $0x360] sm:$0xff]
    %v8603 = vld [vmem:[%s8 + $0x368] sm:$0xff]
    %v8604 = vld [vmem:[%s8 + $0x370] sm:$0xff]
    %v8605 = vld [vmem:[%s8 + $0x378] sm:$0xff]
    %v8606 = vld [vmem:[%s8 + $0x380] sm:$0xff]
    %v8607 = vld [vmem:[%s8 + $0x388] sm:$0xff]
    %v8608 = vld [vmem:[%s8 + $0x390] sm:$0xff]
    %v8609 = vld [vmem:[%s8 + $0x398] sm:$0xff]
    %v8610 = vld [vmem:[%s8 + $0x3a0] sm:$0xff]
    %v8611 = vld [vmem:[%s8 + $0x3a8] sm:$0xff]
    %v8612 = vld [vmem:[%s8 + $0x3b0] sm:$0xff]
    %v8613 = vld [vmem:[%s8 + $0x3b8] sm:$0xff]
    %s8614 = scalar_lea.vmem %s8, 960
    %v8615 = vld [vmem:[%s8614] sm:$0xff]
    %v8616 = vld [vmem:[%s8614 + $0x8] sm:$0xff]
    %v8617 = vld [vmem:[%s8614 + $0x10] sm:$0xff]
    %v8618 = vld [vmem:[%s8614 + $0x18] sm:$0xff]
    %v8619 = vld [vmem:[%s8614 + $0x20] sm:$0xff]
    %v8620 = vld [vmem:[%s8614 + $0x28] sm:$0xff]
    %v8621 = vld [vmem:[%s8614 + $0x30] sm:$0xff]
    %v8622 = vld [vmem:[%s8614 + $0x38] sm:$0xff]
    %v8623 = vld [vmem:[%s8614 + $0x40] sm:$0xff]
    %v8624 = vld [vmem:[%s8614 + $0x48] sm:$0xff]
    %v8625 = vld [vmem:[%s8614 + $0x50] sm:$0xff]
    %v8626 = vld [vmem:[%s8614 + $0x58] sm:$0xff]
    %v8627 = vld [vmem:[%s8614 + $0x60] sm:$0xff]
    %v8628 = vld [vmem:[%s8614 + $0x68] sm:$0xff]
    %v8629 = vld [vmem:[%s8614 + $0x70] sm:$0xff]
    %v8630 = vld [vmem:[%s8614 + $0x78] sm:$0xff]
    %v8631 = vld [vmem:[%s8614 + $0x80] sm:$0xff]
    %v8632 = vld [vmem:[%s8614 + $0x88] sm:$0xff]
    %v8633 = vld [vmem:[%s8614 + $0x90] sm:$0xff]
    %v8634 = vld [vmem:[%s8614 + $0x98] sm:$0xff]
    %v8635 = vld [vmem:[%s8614 + $0xa0] sm:$0xff]
    %v8636 = vld [vmem:[%s8614 + $0xa8] sm:$0xff]
    %v8637 = vld [vmem:[%s8614 + $0xb0] sm:$0xff]
    %v8638 = vld [vmem:[%s8614 + $0xb8] sm:$0xff]
    %v8639 = vld [vmem:[%s8614 + $0xc0] sm:$0xff]
    %v8640 = vld [vmem:[%s8614 + $0xc8] sm:$0xff]
    %v8641 = vld [vmem:[%s8614 + $0xd0] sm:$0xff]
    %v8642 = vld [vmem:[%s8614 + $0xd8] sm:$0xff]
    %v8643 = vld [vmem:[%s8614 + $0xe0] sm:$0xff]
    %v8644 = vld [vmem:[%s8614 + $0xe8] sm:$0xff]
    %v8645 = vld [vmem:[%s8614 + $0xf0] sm:$0xff]
    %v8646 = vld [vmem:[%s8614 + $0xf8] sm:$0xff]
    %v8647 = vld [vmem:[%s8614 + $0x100] sm:$0xff]
    %v8648 = vld [vmem:[%s8614 + $0x108] sm:$0xff]
    %v8649 = vld [vmem:[%s8614 + $0x110] sm:$0xff]
    %v8650 = vld [vmem:[%s8614 + $0x118] sm:$0xff]
    %v8651 = vld [vmem:[%s8614 + $0x120] sm:$0xff]
    %v8652 = vld [vmem:[%s8614 + $0x128] sm:$0xff]
    %v8653 = vld [vmem:[%s8614 + $0x130] sm:$0xff]
    %v8654 = vld [vmem:[%s8614 + $0x138] sm:$0xff]
    %v8655 = vld [vmem:[%s8614 + $0x140] sm:$0xff]
    %v8656 = vld [vmem:[%s8614 + $0x148] sm:$0xff]
    %v8657 = vld [vmem:[%s8614 + $0x150] sm:$0xff]
    %v8658 = vld [vmem:[%s8614 + $0x158] sm:$0xff]
    %v8659 = vld [vmem:[%s8614 + $0x160] sm:$0xff]
    %v8660 = vld [vmem:[%s8614 + $0x168] sm:$0xff]
    %v8661 = vld [vmem:[%s8614 + $0x170] sm:$0xff]
    %v8662 = vld [vmem:[%s8614 + $0x178] sm:$0xff]
    %v8663 = vld [vmem:[%s8614 + $0x180] sm:$0xff]
    %v8664 = vld [vmem:[%s8614 + $0x188] sm:$0xff]
    %v8665 = vld [vmem:[%s8614 + $0x190] sm:$0xff]
    %v8666 = vld [vmem:[%s8614 + $0x198] sm:$0xff]
    %v8667 = vld [vmem:[%s8614 + $0x1a0] sm:$0xff]
    %v8668 = vld [vmem:[%s8614 + $0x1a8] sm:$0xff]
    %v8669 = vld [vmem:[%s8614 + $0x1b0] sm:$0xff]
    %v8670 = vld [vmem:[%s8614 + $0x1b8] sm:$0xff]
    %v8671 = vld [vmem:[%s8614 + $0x1c0] sm:$0xff]
    %v8672 = vld [vmem:[%s8614 + $0x1c8] sm:$0xff]
    %v8673 = vld [vmem:[%s8614 + $0x1d0] sm:$0xff]
    %v8674 = vld [vmem:[%s8614 + $0x1d8] sm:$0xff]
    %v8675 = vld [vmem:[%s8614 + $0x1e0] sm:$0xff]
    %v8676 = vld [vmem:[%s8614 + $0x1e8] sm:$0xff]
    %v8677 = vld [vmem:[%s8614 + $0x1f0] sm:$0xff]
    %v8678 = vld [vmem:[%s8614 + $0x1f8] sm:$0xff]
    %v8679 = vld [vmem:[%s8614 + $0x200] sm:$0xff]
    %v8680 = vld [vmem:[%s8614 + $0x208] sm:$0xff]
    %v8681 = vld [vmem:[%s8614 + $0x210] sm:$0xff]
    %v8682 = vld [vmem:[%s8614 + $0x218] sm:$0xff]
    %v8683 = vld [vmem:[%s8614 + $0x220] sm:$0xff]
    %v8684 = vld [vmem:[%s8614 + $0x228] sm:$0xff]
    %v8685 = vld [vmem:[%s8614 + $0x230] sm:$0xff]
    %v8686 = vld [vmem:[%s8614 + $0x238] sm:$0xff]
    %v8687 = vld [vmem:[%s8614 + $0x240] sm:$0xff]
    %v8688 = vld [vmem:[%s8614 + $0x248] sm:$0xff]
    %v8689 = vld [vmem:[%s8614 + $0x250] sm:$0xff]
    %v8690 = vld [vmem:[%s8614 + $0x258] sm:$0xff]
    %v8691 = vld [vmem:[%s8614 + $0x260] sm:$0xff]
    %v8692 = vld [vmem:[%s8614 + $0x268] sm:$0xff]
    %v8693 = vld [vmem:[%s8614 + $0x270] sm:$0xff]
    %v8694 = vld [vmem:[%s8614 + $0x278] sm:$0xff]
    %v8695 = vld [vmem:[%s8614 + $0x280] sm:$0xff]
    %v8696 = vld [vmem:[%s8614 + $0x288] sm:$0xff]
    %v8697 = vld [vmem:[%s8614 + $0x290] sm:$0xff]
    %v8698 = vld [vmem:[%s8614 + $0x298] sm:$0xff]
    %v8699 = vld [vmem:[%s8614 + $0x2a0] sm:$0xff]
    %v8700 = vld [vmem:[%s8614 + $0x2a8] sm:$0xff]
    %v8701 = vld [vmem:[%s8614 + $0x2b0] sm:$0xff]
    %v8702 = vld [vmem:[%s8614 + $0x2b8] sm:$0xff]
    %v8703 = vld [vmem:[%s8614 + $0x2c0] sm:$0xff]
    %v8704 = vld [vmem:[%s8614 + $0x2c8] sm:$0xff]
    %v8705 = vld [vmem:[%s8614 + $0x2d0] sm:$0xff]
    %v8706 = vld [vmem:[%s8614 + $0x2d8] sm:$0xff]
    %v8707 = vld [vmem:[%s8614 + $0x2e0] sm:$0xff]
    %v8708 = vld [vmem:[%s8614 + $0x2e8] sm:$0xff]
    %v8709 = vld [vmem:[%s8614 + $0x2f0] sm:$0xff]
    %v8710 = vld [vmem:[%s8614 + $0x2f8] sm:$0xff]
    %v8711 = vld [vmem:[%s8614 + $0x300] sm:$0xff]
    %v8712 = vld [vmem:[%s8614 + $0x308] sm:$0xff]
    %v8713 = vld [vmem:[%s8614 + $0x310] sm:$0xff]
    %v8714 = vld [vmem:[%s8614 + $0x318] sm:$0xff]
    %v8715 = vld [vmem:[%s8614 + $0x320] sm:$0xff]
    %v8716 = vld [vmem:[%s8614 + $0x328] sm:$0xff]
    %v8717 = vld [vmem:[%s8614 + $0x330] sm:$0xff]
    %v8718 = vld [vmem:[%s8614 + $0x338] sm:$0xff]
    %v8719 = vld [vmem:[%s8614 + $0x340] sm:$0xff]
    %v8720 = vld [vmem:[%s8614 + $0x348] sm:$0xff]
    %v8721 = vld [vmem:[%s8614 + $0x350] sm:$0xff]
    %v8722 = vld [vmem:[%s8614 + $0x358] sm:$0xff]
    %v8723 = vld [vmem:[%s8614 + $0x360] sm:$0xff]
    %v8724 = vld [vmem:[%s8614 + $0x368] sm:$0xff]
    %v8725 = vld [vmem:[%s8614 + $0x370] sm:$0xff]
    %v8726 = vld [vmem:[%s8614 + $0x378] sm:$0xff]
    %v8727 = vld [vmem:[%s8614 + $0x380] sm:$0xff]
    %v8728 = vld [vmem:[%s8614 + $0x388] sm:$0xff]
    %v8729 = vld [vmem:[%s8614 + $0x390] sm:$0xff]
    %v8730 = vld [vmem:[%s8614 + $0x398] sm:$0xff]
    %v8731 = vld [vmem:[%s8614 + $0x3a0] sm:$0xff]
    %v8732 = vld [vmem:[%s8614 + $0x3a8] sm:$0xff]
    %v8733 = vld [vmem:[%s8614 + $0x3b0] sm:$0xff]
    %v8734 = vld [vmem:[%s8614 + $0x3b8] sm:$0xff]
    %vm8735 = vcmask 523264
    %v8737 = vsel %vm8735, %v8491, 0
    %v8740 = vsel %vm8735, 0.0, 0
    %8742 = vmatprep.subr.mxu0 %v8616
    %8743 = vmatpush1.msra.mxu0 %v8615
    %8744 = vmatprep.subr.mxu0 %v8619
    %8745 = vmatpush1.msra.mxu0 %v8618
    %8746 = vmatprep.subr.mxu0 %v8622
    %8747 = vmatpush1.msra.mxu0 %v8621
    %8748 = vmatprep.subr.mxu0 %v8625
    %8749 = vmatpush1.msra.mxu0 %v8624
    %8750 = vmatprep.subr.mxu0 %v8628
    %8751 = vmatpush1.msra.mxu0 %v8627
    %8752 = vmatprep.subr.mxu0 %v8631
    %8753 = vmatpush1.msra.mxu0 %v8630
    %8754 = vmatprep.subr.mxu0 %v8634
    %8755 = vmatpush1.msra.mxu0 %v8633
    %8756 = vmatprep.subr.mxu0 %v8637
    %8757 = vmatpush1.msra.mxu0 %v8636
    %8758 = vmatprep.subr.mxu0 %v8640
    %8759 = vmatpush1.msra.mxu0 %v8639
    %8760 = vmatprep.subr.mxu0 %v8643
    %8761 = vmatpush1.msra.mxu0 %v8642
    %8762 = vmatprep.subr.mxu0 %v8646
    %8763 = vmatpush1.msra.mxu0 %v8645
    %8764 = vmatprep.subr.mxu0 %v8649
    %8765 = vmatpush1.msra.mxu0 %v8648
    %8766 = vmatprep.subr.mxu0 %v8652
    %8767 = vmatpush1.msra.mxu0 %v8651
    %8768 = vmatprep.subr.mxu0 %v8655
    %8769 = vmatpush1.msra.mxu0 %v8654
    %8770 = vmatprep.subr.mxu0 %v8658
    %8771 = vmatpush1.msra.mxu0 %v8657
    %8772 = vmatprep.subr.mxu0 %v8661
    %8773 = vmatpush1.msra.mxu0 %v8660
    %8774 = vmatprep.subr.mxu0 %v8664
    %8775 = vmatpush1.msra.mxu0 %v8663
    %8776 = vmatprep.subr.mxu0 %v8667
    %8777 = vmatpush1.msra.mxu0 %v8666
    %8778 = vmatprep.subr.mxu0 %v8670
    %8779 = vmatpush1.msra.mxu0 %v8669
    %8780 = vmatprep.subr.mxu0 %v8673
    %8781 = vmatpush1.msra.mxu0 %v8672
    %8782 = vmatprep.subr.mxu0 %v8676
    %8783 = vmatpush1.msra.mxu0 %v8675
    %8784 = vmatprep.subr.mxu0 %v8679
    %8785 = vmatpush1.msra.mxu0 %v8678
    %8786 = vmatprep.subr.mxu0 %v8682
    %8787 = vmatpush1.msra.mxu0 %v8681
    %8788 = vmatprep.subr.mxu0 %v8685
    %8789 = vmatpush1.msra.mxu0 %v8684
    %8790 = vmatprep.subr.mxu0 %v8688
    %8791 = vmatpush1.msra.mxu0 %v8687
    %8792 = vmatprep.subr.mxu0 %v8691
    %8793 = vmatpush1.msra.mxu0 %v8690
    %8794 = vmatprep.subr.mxu0 %v8694
    %8795 = vmatpush1.msra.mxu0 %v8693
    %8796 = vmatprep.subr.mxu0 %v8697
    %8797 = vmatpush1.msra.mxu0 %v8696
    %8798 = vmatprep.subr.mxu0 %v8700
    %8799 = vmatpush1.msra.mxu0 %v8699
    %8800 = vmatprep.subr.mxu0 %v8703
    %8801 = vmatpush1.msra.mxu0 %v8702
    %8802 = vmatprep.subr.mxu0 %v8706
    %8803 = vmatpush1.msra.mxu0 %v8705
    %8804 = vmatprep.subr.mxu0 %v8709
    %8805 = vmatpush1.msra.mxu0 %v8708
    %8806 = vmatprep.mubr.f32.mxu0 %v8267
    %8807 = vmatmul.mubr.f32.gmra.mrb[0].mxu0 %v8265
    %v8808 = vpop.f32.mrb[0].mxu0
    %v8809 = vadd.f32 0.0, %v8808
    %v8810 = vpop.f32.mrb[0].mxu0
    %v8811 = vadd.f32 0.0, %v8810
    %8812 = vmatprep.mubr.f32.mxu0 0.0
    %8813 = vmatmul.mubr.f32.gmra.mrb[0].mxu0 0.0
    %v8814 = vpop.f32.mrb[0].mxu0
    %v8815 = vadd.f32 0.0, %v8814
    %v8816 = vpop.f32.mrb[0].mxu0
    %v8817 = vadd.f32 0.0, %v8816
    %8818 = vdwg.mxu0
    %8819 = vmatprep.subr.mxu0 %v8712
    %8820 = vmatpush1.msra.mxu0 %v8711
    %8821 = vmatprep.subr.mxu0 %v8715
    %8822 = vmatpush1.msra.mxu0 %v8714
    %8823 = vmatprep.subr.mxu0 %v8718
    %8824 = vmatpush1.msra.mxu0 %v8717
    %8825 = vmatprep.subr.mxu0 %v8721
    %8826 = vmatpush1.msra.mxu0 %v8720
    %8827 = vmatprep.subr.mxu0 %v8724
    %8828 = vmatpush1.msra.mxu0 %v8723
    %8829 = vmatprep.subr.mxu0 %v8727
    %8830 = vmatpush1.msra.mxu0 %v8726
    %8831 = vmatprep.subr.mxu0 %v8730
    %8832 = vmatpush1.msra.mxu0 %v8729
    %8833 = vmatprep.subr.mxu0 %v8733
    %8834 = vmatpush1.msra.mxu0 %v8732
    %8835 = vmatprep.subr.mxu0 0.0
    %8836 = vmatpush1.msra.mxu0 0.0
    %8837 = vmatprep.subr.mxu0 0.0
    %8838 = vmatpush1.msra.mxu0 0.0
    %8839 = vmatprep.subr.mxu0 0.0
    %8840 = vmatpush1.msra.mxu0 0.0
    %8841 = vmatprep.subr.mxu0 0.0
    %8842 = vmatpush1.msra.mxu0 0.0
    %8843 = vmatprep.subr.mxu0 0.0
    %8844 = vmatpush1.msra.mxu0 0.0
    %8845 = vmatprep.subr.mxu0 0.0
    %8846 = vmatpush1.msra.mxu0 0.0
    %8847 = vmatprep.subr.mxu0 0.0
    %8848 = vmatpush1.msra.mxu0 0.0
    %8849 = vmatprep.subr.mxu0 0.0
    %8850 = vmatpush1.msra.mxu0 0.0
    %8851 = vmatprep.subr.mxu0 0.0
    %8852 = vmatpush1.msra.mxu0 0.0
    %8853 = vmatprep.subr.mxu0 0.0
    %8854 = vmatpush1.msra.mxu0 0.0
    %8855 = vmatprep.subr.mxu0 0.0
    %8856 = vmatpush1.msra.mxu0 0.0
    %8857 = vmatprep.subr.mxu0 0.0
    %8858 = vmatpush1.msra.mxu0 0.0
    %8859 = vmatprep.subr.mxu0 0.0
    %8860 = vmatpush1.msra.mxu0 0.0
    %8861 = vmatprep.subr.mxu0 0.0
    %8862 = vmatpush1.msra.mxu0 0.0
    %8863 = vmatprep.subr.mxu0 0.0
    %8864 = vmatpush1.msra.mxu0 0.0
    %8865 = vmatprep.subr.mxu0 0.0
    %8866 = vmatpush1.msra.mxu0 0.0
    %8867 = vmatprep.subr.mxu0 0.0
    %8868 = vmatpush1.msra.mxu0 0.0
    %8869 = vmatprep.subr.mxu0 0.0
    %8870 = vmatpush1.msra.mxu0 0.0
    %8871 = vmatprep.subr.mxu0 0.0
    %8872 = vmatpush1.msra.mxu0 0.0
    %8873 = vmatprep.subr.mxu0 0.0
    %8874 = vmatpush1.msra.mxu0 0.0
    %8875 = vmatprep.subr.mxu0 0.0
    %8876 = vmatpush1.msra.mxu0 0.0
    %8877 = vmatprep.subr.mxu0 0.0
    %8878 = vmatpush1.msra.mxu0 0.0
    %8879 = vmatprep.subr.mxu0 0.0
    %8880 = vmatpush1.msra.mxu0 0.0
    %8881 = vmatprep.subr.mxu0 0.0
    %8882 = vmatpush1.msra.mxu0 0.0
    %8883 = vmatprep.mubr.f32.mxu0 0.0
    %8884 = vmatmul.mubr.f32.gmra.mrb[0].mxu0 %v8737
    %v8885 = vpop.f32.mrb[0].mxu0
    %v8886 = vadd.f32 %v8809, %v8885
    %v8887 = vpop.f32.mrb[0].mxu0
    %v8888 = vadd.f32 %v8811, %v8887
    %8889 = vmatprep.mubr.f32.mxu0 0.0
    %8890 = vmatmul.mubr.f32.gmra.mrb[0].mxu0 %v8740
    %v8891 = vpop.f32.mrb[0].mxu0
    %v8892 = vadd.f32 %v8815, %v8891
    %v8893 = vpop.f32.mrb[0].mxu0
    %v8894 = vadd.f32 %v8817, %v8893
    %8895 = vdwg.mxu0
    %8896 = vmatprep.subr.mxu0 0.0
    %8897 = vmatpush1.msra.mxu0 %v8617
    %8898 = vmatprep.subr.mxu0 0.0
    %8899 = vmatpush1.msra.mxu0 %v8620
    %8900 = vmatprep.subr.mxu0 0.0
    %8901 = vmatpush1.msra.mxu0 %v8623
    %8902 = vmatprep.subr.mxu0 0.0
    %8903 = vmatpush1.msra.mxu0 %v8626
    %8904 = vmatprep.subr.mxu0 0.0
    %8905 = vmatpush1.msra.mxu0 %v8629
    %8906 = vmatprep.subr.mxu0 0.0
    %8907 = vmatpush1.msra.mxu0 %v8632
    %8908 = vmatprep.subr.mxu0 0.0
    %8909 = vmatpush1.msra.mxu0 %v8635
    %8910 = vmatprep.subr.mxu0 0.0
    %8911 = vmatpush1.msra.mxu0 %v8638
    %8912 = vmatprep.subr.mxu0 0.0
    %8913 = vmatpush1.msra.mxu0 %v8641
    %8914 = vmatprep.subr.mxu0 0.0
    %8915 = vmatpush1.msra.mxu0 %v8644
    %8916 = vmatprep.subr.mxu0 0.0
    %8917 = vmatpush1.msra.mxu0 %v8647
    %8918 = vmatprep.subr.mxu0 0.0
    %8919 = vmatpush1.msra.mxu0 %v8650
    %8920 = vmatprep.subr.mxu0 0.0
    %8921 = vmatpush1.msra.mxu0 %v8653
    %8922 = vmatprep.subr.mxu0 0.0
    %8923 = vmatpush1.msra.mxu0 %v8656
    %8924 = vmatprep.subr.mxu0 0.0
    %8925 = vmatpush1.msra.mxu0 %v8659
    %8926 = vmatprep.subr.mxu0 0.0
    %8927 = vmatpush1.msra.mxu0 %v8662
    %8928 = vmatprep.subr.mxu0 0.0
    %8929 = vmatpush1.msra.mxu0 %v8665
    %8930 = vmatprep.subr.mxu0 0.0
    %8931 = vmatpush1.msra.mxu0 %v8668
    %8932 = vmatprep.subr.mxu0 0.0
    %8933 = vmatpush1.msra.mxu0 %v8671
    %8934 = vmatprep.subr.mxu0 0.0
    %8935 = vmatpush1.msra.mxu0 %v8674
    %8936 = vmatprep.subr.mxu0 0.0
    %8937 = vmatpush1.msra.mxu0 %v8677
    %8938 = vmatprep.subr.mxu0 0.0
    %8939 = vmatpush1.msra.mxu0 %v8680
    %8940 = vmatprep.subr.mxu0 0.0
    %8941 = vmatpush1.msra.mxu0 %v8683
    %8942 = vmatprep.subr.mxu0 0.0
    %8943 = vmatpush1.msra.mxu0 %v8686
    %8944 = vmatprep.subr.mxu0 0.0
    %8945 = vmatpush1.msra.mxu0 %v8689
    %8946 = vmatprep.subr.mxu0 0.0
    %8947 = vmatpush1.msra.mxu0 %v8692
    %8948 = vmatprep.subr.mxu0 0.0
    %8949 = vmatpush1.msra.mxu0 %v8695
    %8950 = vmatprep.subr.mxu0 0.0
    %8951 = vmatpush1.msra.mxu0 %v8698
    %8952 = vmatprep.subr.mxu0 0.0
    %8953 = vmatpush1.msra.mxu0 %v8701
    %8954 = vmatprep.subr.mxu0 0.0
    %8955 = vmatpush1.msra.mxu0 %v8704
    %8956 = vmatprep.subr.mxu0 0.0
    %8957 = vmatpush1.msra.mxu0 %v8707
    %8958 = vmatprep.subr.mxu0 0.0
    %8959 = vmatpush1.msra.mxu0 %v8710
    %8960 = vmatprep.mubr.f32.mxu0 %v8267
    %8961 = vmatmul.mubr.f32.gmra.mrb[0].mxu0 %v8265
    %v8962 = vpop.f32.mrb[0].mxu0
    %v8963 = vadd.f32 0.0, %v8962
    %v8964 = vpop.f32.mrb[0].mxu0
    %8965 = vmatprep.mubr.f32.mxu0 0.0
    %8966 = vmatmul.mubr.f32.gmra.mrb[0].mxu0 0.0
    %v8967 = vpop.f32.mrb[0].mxu0
    %v8968 = vadd.f32 0.0, %v8967
    %v8969 = vpop.f32.mrb[0].mxu0
    %8970 = vdwg.mxu0
    %8971 = vmatprep.subr.mxu0 0.0
    %8972 = vmatpush1.msra.mxu0 %v8713
    %8973 = vmatprep.subr.mxu0 0.0
    %8974 = vmatpush1.msra.mxu0 %v8716
    %8975 = vmatprep.subr.mxu0 0.0
    %8976 = vmatpush1.msra.mxu0 %v8719
    %8977 = vmatprep.subr.mxu0 0.0
    %8978 = vmatpush1.msra.mxu0 %v8722
    %8979 = vmatprep.subr.mxu0 0.0
    %8980 = vmatpush1.msra.mxu0 %v8725
    %8981 = vmatprep.subr.mxu0 0.0
    %8982 = vmatpush1.msra.mxu0 %v8728
    %8983 = vmatprep.subr.mxu0 0.0
    %8984 = vmatpush1.msra.mxu0 %v8731
    %8985 = vmatprep.subr.mxu0 0.0
    %8986 = vmatpush1.msra.mxu0 %v8734
    %8987 = vmatprep.subr.mxu0 0.0
    %8988 = vmatpush1.msra.mxu0 0.0
    %8989 = vmatprep.subr.mxu0 0.0
    %8990 = vmatpush1.msra.mxu0 0.0
    %8991 = vmatprep.subr.mxu0 0.0
    %8992 = vmatpush1.msra.mxu0 0.0
    %8993 = vmatprep.subr.mxu0 0.0
    %8994 = vmatpush1.msra.mxu0 0.0
    %8995 = vmatprep.subr.mxu0 0.0
    %8996 = vmatpush1.msra.mxu0 0.0
    %8997 = vmatprep.subr.mxu0 0.0
    %8998 = vmatpush1.msra.mxu0 0.0
    %8999 = vmatprep.subr.mxu0 0.0
    %9000 = vmatpush1.msra.mxu0 0.0
    %9001 = vmatprep.subr.mxu0 0.0
    %9002 = vmatpush1.msra.mxu0 0.0
    %9003 = vmatprep.subr.mxu0 0.0
    %9004 = vmatpush1.msra.mxu0 0.0
    %9005 = vmatprep.subr.mxu0 0.0
    %9006 = vmatpush1.msra.mxu0 0.0
    %9007 = vmatprep.subr.mxu0 0.0
    %9008 = vmatpush1.msra.mxu0 0.0
    %9009 = vmatprep.subr.mxu0 0.0
    %9010 = vmatpush1.msra.mxu0 0.0
    %9011 = vmatprep.subr.mxu0 0.0
    %9012 = vmatpush1.msra.mxu0 0.0
    %9013 = vmatprep.subr.mxu0 0.0
    %9014 = vmatpush1.msra.mxu0 0.0
    %9015 = vmatprep.subr.mxu0 0.0
    %9016 = vmatpush1.msra.mxu0 0.0
    %9017 = vmatprep.subr.mxu0 0.0
    %9018 = vmatpush1.msra.mxu0 0.0
    %9019 = vmatprep.subr.mxu0 0.0
    %9020 = vmatpush1.msra.mxu0 0.0
    %9021 = vmatprep.subr.mxu0 0.0
    %9022 = vmatpush1.msra.mxu0 0.0
    %9023 = vmatprep.subr.mxu0 0.0
    %9024 = vmatpush1.msra.mxu0 0.0
    %9025 = vmatprep.subr.mxu0 0.0
    %9026 = vmatpush1.msra.mxu0 0.0
    %9027 = vmatprep.subr.mxu0 0.0
    %9028 = vmatpush1.msra.mxu0 0.0
    %9029 = vmatprep.subr.mxu0 0.0
    %9030 = vmatpush1.msra.mxu0 0.0
    %9031 = vmatprep.subr.mxu0 0.0
    %9032 = vmatpush1.msra.mxu0 0.0
    %9033 = vmatprep.subr.mxu0 0.0
    %9034 = vmatpush1.msra.mxu0 0.0
    %9035 = vmatprep.mubr.f32.mxu0 0.0
    %9036 = vmatmul.mubr.f32.gmra.mrb[0].mxu0 %v8737
    %v9037 = vpop.f32.mrb[0].mxu0
    %v9038 = vadd.f32 %v8963, %v9037
    %v9039 = vpop.f32.mrb[0].mxu0
    %9040 = vmatprep.mubr.f32.mxu0 0.0
    %9041 = vmatmul.mubr.f32.gmra.mrb[0].mxu0 %v8740
    %v9042 = vpop.f32.mrb[0].mxu0
    %v9043 = vadd.f32 %v8968, %v9042
    %v9044 = vpop.f32.mrb[0].mxu0
    %9045 = vdwg.mxu0
    %v9047 = vsel %vm8735, %v8486, 0
    %9049 = vmatprep.subr.mxu0 %v8495
    %9050 = vmatpush1.msra.mxu0 %v8494
    %9051 = vmatprep.subr.mxu0 %v8498
    %9052 = vmatpush1.msra.mxu0 %v8497
    %9053 = vmatprep.subr.mxu0 %v8501
    %9054 = vmatpush1.msra.mxu0 %v8500
    %9055 = vmatprep.subr.mxu0 %v8504
    %9056 = vmatpush1.msra.mxu0 %v8503
    %9057 = vmatprep.subr.mxu0 %v8507
    %9058 = vmatpush1.msra.mxu0 %v8506
    %9059 = vmatprep.subr.mxu0 %v8510
    %9060 = vmatpush1.msra.mxu0 %v8509
    %9061 = vmatprep.subr.mxu0 %v8513
    %9062 = vmatpush1.msra.mxu0 %v8512
    %9063 = vmatprep.subr.mxu0 %v8516
    %9064 = vmatpush1.msra.mxu0 %v8515
    %9065 = vmatprep.subr.mxu0 %v8519
    %9066 = vmatpush1.msra.mxu0 %v8518
    %9067 = vmatprep.subr.mxu0 %v8522
    %9068 = vmatpush1.msra.mxu0 %v8521
    %9069 = vmatprep.subr.mxu0 %v8525
    %9070 = vmatpush1.msra.mxu0 %v8524
    %9071 = vmatprep.subr.mxu0 %v8528
    %9072 = vmatpush1.msra.mxu0 %v8527
    %9073 = vmatprep.subr.mxu0 %v8531
    %9074 = vmatpush1.msra.mxu0 %v8530
    %9075 = vmatprep.subr.mxu0 %v8534
    %9076 = vmatpush1.msra.mxu0 %v8533
    %9077 = vmatprep.subr.mxu0 %v8537
    %9078 = vmatpush1.msra.mxu0 %v8536
    %9079 = vmatprep.subr.mxu0 %v8540
    %9080 = vmatpush1.msra.mxu0 %v8539
    %9081 = vmatprep.subr.mxu0 %v8543
    %9082 = vmatpush1.msra.mxu0 %v8542
    %9083 = vmatprep.subr.mxu0 %v8546
    %9084 = vmatpush1.msra.mxu0 %v8545
    %9085 = vmatprep.subr.mxu0 %v8549
    %9086 = vmatpush1.msra.mxu0 %v8548
    %9087 = vmatprep.subr.mxu0 %v8552
    %9088 = vmatpush1.msra.mxu0 %v8551
    %9089 = vmatprep.subr.mxu0 %v8555
    %9090 = vmatpush1.msra.mxu0 %v8554
    %9091 = vmatprep.subr.mxu0 %v8558
    %9092 = vmatpush1.msra.mxu0 %v8557
    %9093 = vmatprep.subr.mxu0 %v8561
    %9094 = vmatpush1.msra.mxu0 %v8560
    %9095 = vmatprep.subr.mxu0 %v8564
    %9096 = vmatpush1.msra.mxu0 %v8563
    %9097 = vmatprep.subr.mxu0 %v8567
    %9098 = vmatpush1.msra.mxu0 %v8566
    %9099 = vmatprep.subr.mxu0 %v8570
    %9100 = vmatpush1.msra.mxu0 %v8569
    %9101 = vmatprep.subr.mxu0 %v8573
    %9102 = vmatpush1.msra.mxu0 %v8572
    %9103 = vmatprep.subr.mxu0 %v8576
    %9104 = vmatpush1.msra.mxu0 %v8575
    %9105 = vmatprep.subr.mxu0 %v8579
    %9106 = vmatpush1.msra.mxu0 %v8578
    %9107 = vmatprep.subr.mxu0 %v8582
    %9108 = vmatpush1.msra.mxu0 %v8581
    %9109 = vmatprep.subr.mxu0 %v8585
    %9110 = vmatpush1.msra.mxu0 %v8584
    %9111 = vmatprep.subr.mxu0 %v8588
    %9112 = vmatpush1.msra.mxu0 %v8587
    %9113 = vmatprep.mubr.f32.mxu0 %v8261
    %9114 = vmatmul.mubr.f32.gmra.mrb[0].mxu0 %v8259
    %v9115 = vpop.f32.mrb[0].mxu0
    %v9116 = vadd.f32 %v8886, %v9115
    %v9117 = vpop.f32.mrb[0].mxu0
    %v9118 = vadd.f32 %v8888, %v9117
    %9119 = vmatprep.mubr.f32.mxu0 %v8267
    %9120 = vmatmul.mubr.f32.gmra.mrb[0].mxu0 %v8265
    %v9121 = vpop.f32.mrb[0].mxu0
    %v9122 = vadd.f32 %v8892, %v9121
    %v9123 = vpop.f32.mrb[0].mxu0
    %v9124 = vadd.f32 %v8894, %v9123
    %9125 = vdwg.mxu0
    %9126 = vmatprep.subr.mxu0 %v8591
    %9127 = vmatpush1.msra.mxu0 %v8590
    %9128 = vmatprep.subr.mxu0 %v8594
    %9129 = vmatpush1.msra.mxu0 %v8593
    %9130 = vmatprep.subr.mxu0 %v8597
    %9131 = vmatpush1.msra.mxu0 %v8596
    %9132 = vmatprep.subr.mxu0 %v8600
    %9133 = vmatpush1.msra.mxu0 %v8599
    %9134 = vmatprep.subr.mxu0 %v8603
    %9135 = vmatpush1.msra.mxu0 %v8602
    %9136 = vmatprep.subr.mxu0 %v8606
    %9137 = vmatpush1.msra.mxu0 %v8605
    %9138 = vmatprep.subr.mxu0 %v8609
    %9139 = vmatpush1.msra.mxu0 %v8608
    %9140 = vmatprep.subr.mxu0 %v8612
    %9141 = vmatpush1.msra.mxu0 %v8611
    %9142 = vmatprep.subr.mxu0 0.0
    %9143 = vmatpush1.msra.mxu0 0.0
    %9144 = vmatprep.subr.mxu0 0.0
    %9145 = vmatpush1.msra.mxu0 0.0
    %9146 = vmatprep.subr.mxu0 0.0
    %9147 = vmatpush1.msra.mxu0 0.0
    %9148 = vmatprep.subr.mxu0 0.0
    %9149 = vmatpush1.msra.mxu0 0.0
    %9150 = vmatprep.subr.mxu0 0.0
    %9151 = vmatpush1.msra.mxu0 0.0
    %9152 = vmatprep.subr.mxu0 0.0
    %9153 = vmatpush1.msra.mxu0 0.0
    %9154 = vmatprep.subr.mxu0 0.0
    %9155 = vmatpush1.msra.mxu0 0.0
    %9156 = vmatprep.subr.mxu0 0.0
    %9157 = vmatpush1.msra.mxu0 0.0
    %9158 = vmatprep.subr.mxu0 0.0
    %9159 = vmatpush1.msra.mxu0 0.0
    %9160 = vmatprep.subr.mxu0 0.0
    %9161 = vmatpush1.msra.mxu0 0.0
    %9162 = vmatprep.subr.mxu0 0.0
    %9163 = vmatpush1.msra.mxu0 0.0
    %9164 = vmatprep.subr.mxu0 0.0
    %9165 = vmatpush1.msra.mxu0 0.0
    %9166 = vmatprep.subr.mxu0 0.0
    %9167 = vmatpush1.msra.mxu0 0.0
    %9168 = vmatprep.subr.mxu0 0.0
    %9169 = vmatpush1.msra.mxu0 0.0
    %9170 = vmatprep.subr.mxu0 0.0
    %9171 = vmatpush1.msra.mxu0 0.0
    %9172 = vmatprep.subr.mxu0 0.0
    %9173 = vmatpush1.msra.mxu0 0.0
    %9174 = vmatprep.subr.mxu0 0.0
    %9175 = vmatpush1.msra.mxu0 0.0
    %9176 = vmatprep.subr.mxu0 0.0
    %9177 = vmatpush1.msra.mxu0 0.0
    %9178 = vmatprep.subr.mxu0 0.0
    %9179 = vmatpush1.msra.mxu0 0.0
    %9180 = vmatprep.subr.mxu0 0.0
    %9181 = vmatpush1.msra.mxu0 0.0
    %9182 = vmatprep.subr.mxu0 0.0
    %9183 = vmatpush1.msra.mxu0 0.0
    %9184 = vmatprep.subr.mxu0 0.0
    %9185 = vmatpush1.msra.mxu0 0.0
    %9186 = vmatprep.subr.mxu0 0.0
    %9187 = vmatpush1.msra.mxu0 0.0
    %9188 = vmatprep.subr.mxu0 0.0
    %9189 = vmatpush1.msra.mxu0 0.0
    %9190 = vmatprep.mubr.f32.mxu0 0.0
    %9191 = vmatmul.mubr.f32.gmra.mrb[0].mxu0 %v9047
    %v9192 = vpop.f32.mrb[0].mxu0
    %v9193 = vadd.f32 %v9116, %v9192
    %v9194 = vpop.f32.mrb[0].mxu0
    %v9195 = vadd.f32 %v9118, %v9194
    %9196 = vmatprep.mubr.f32.mxu0 0.0
    %9197 = vmatmul.mubr.f32.gmra.mrb[0].mxu0 %v8737
    %v9198 = vpop.f32.mrb[0].mxu0
    %v9199 = vadd.f32 %v9122, %v9198
    %v9200 = vpop.f32.mrb[0].mxu0
    %v9201 = vadd.f32 %v9124, %v9200
    %9202 = vdwg.mxu0
    %9203 = vmatprep.subr.mxu0 0.0
    %9204 = vmatpush1.msra.mxu0 %v8496
    %9205 = vmatprep.subr.mxu0 0.0
    %9206 = vmatpush1.msra.mxu0 %v8499
    %9207 = vmatprep.subr.mxu0 0.0
    %9208 = vmatpush1.msra.mxu0 %v8502
    %9209 = vmatprep.subr.mxu0 0.0
    %9210 = vmatpush1.msra.mxu0 %v8505
    %9211 = vmatprep.subr.mxu0 0.0
    %9212 = vmatpush1.msra.mxu0 %v8508
    %9213 = vmatprep.subr.mxu0 0.0
    %9214 = vmatpush1.msra.mxu0 %v8511
    %9215 = vmatprep.subr.mxu0 0.0
    %9216 = vmatpush1.msra.mxu0 %v8514
    %9217 = vmatprep.subr.mxu0 0.0
    %9218 = vmatpush1.msra.mxu0 %v8517
    %9219 = vmatprep.subr.mxu0 0.0
    %9220 = vmatpush1.msra.mxu0 %v8520
    %9221 = vmatprep.subr.mxu0 0.0
    %9222 = vmatpush1.msra.mxu0 %v8523
    %9223 = vmatprep.subr.mxu0 0.0
    %9224 = vmatpush1.msra.mxu0 %v8526
    %9225 = vmatprep.subr.mxu0 0.0
    %9226 = vmatpush1.msra.mxu0 %v8529
    %9227 = vmatprep.subr.mxu0 0.0
    %9228 = vmatpush1.msra.mxu0 %v8532
    %9229 = vmatprep.subr.mxu0 0.0
    %9230 = vmatpush1.msra.mxu0 %v8535
    %9231 = vmatprep.subr.mxu0 0.0
    %9232 = vmatpush1.msra.mxu0 %v8538
    %9233 = vmatprep.subr.mxu0 0.0
    %9234 = vmatpush1.msra.mxu0 %v8541
    %9235 = vmatprep.subr.mxu0 0.0
    %9236 = vmatpush1.msra.mxu0 %v8544
    %9237 = vmatprep.subr.mxu0 0.0
    %9238 = vmatpush1.msra.mxu0 %v8547
    %9239 = vmatprep.subr.mxu0 0.0
    %9240 = vmatpush1.msra.mxu0 %v8550
    %9241 = vmatprep.subr.mxu0 0.0
    %9242 = vmatpush1.msra.mxu0 %v8553
    %9243 = vmatprep.subr.mxu0 0.0
    %9244 = vmatpush1.msra.mxu0 %v8556
    %9245 = vmatprep.subr.mxu0 0.0
    %9246 = vmatpush1.msra.mxu0 %v8559
    %9247 = vmatprep.subr.mxu0 0.0
    %9248 = vmatpush1.msra.mxu0 %v8562
    %9249 = vmatprep.subr.mxu0 0.0
    %9250 = vmatpush1.msra.mxu0 %v8565
    %9251 = vmatprep.subr.mxu0 0.0
    %9252 = vmatpush1.msra.mxu0 %v8568
    %9253 = vmatprep.subr.mxu0 0.0
    %9254 = vmatpush1.msra.mxu0 %v8571
    %9255 = vmatprep.subr.mxu0 0.0
    %9256 = vmatpush1.msra.mxu0 %v8574
    %9257 = vmatprep.subr.mxu0 0.0
    %9258 = vmatpush1.msra.mxu0 %v8577
    %9259 = vmatprep.subr.mxu0 0.0
    %9260 = vmatpush1.msra.mxu0 %v8580
    %9261 = vmatprep.subr.mxu0 0.0
    %9262 = vmatpush1.msra.mxu0 %v8583
    %9263 = vmatprep.subr.mxu0 0.0
    %9264 = vmatpush1.msra.mxu0 %v8586
    %9265 = vmatprep.subr.mxu0 0.0
    %9266 = vmatpush1.msra.mxu0 %v8589
    %9267 = vmatprep.mubr.f32.mxu0 %v8261
    %9268 = vmatmul.mubr.f32.gmra.mrb[0].mxu0 %v8259
    %v9269 = vpop.f32.mrb[0].mxu0
    %v9270 = vadd.f32 %v9038, %v9269
    %v9271 = vpop.f32.mrb[0].mxu0
    %9272 = vmatprep.mubr.f32.mxu0 %v8267
    %9273 = vmatmul.mubr.f32.gmra.mrb[0].mxu0 %v8265
    %v9274 = vpop.f32.mrb[0].mxu0
    %v9275 = vadd.f32 %v9043, %v9274
    %v9276 = vpop.f32.mrb[0].mxu0
    %9277 = vdwg.mxu0
    %9278 = vmatprep.subr.mxu0 0.0
    %9279 = vmatpush1.msra.mxu0 %v8592
    %9280 = vmatprep.subr.mxu0 0.0
    %9281 = vmatpush1.msra.mxu0 %v8595
    %9282 = vmatprep.subr.mxu0 0.0
    %9283 = vmatpush1.msra.mxu0 %v8598
    %9284 = vmatprep.subr.mxu0 0.0
    %9285 = vmatpush1.msra.mxu0 %v8601
    %9286 = vmatprep.subr.mxu0 0.0
    %9287 = vmatpush1.msra.mxu0 %v8604
    %9288 = vmatprep.subr.mxu0 0.0
    %9289 = vmatpush1.msra.mxu0 %v8607
    %9290 = vmatprep.subr.mxu0 0.0
    %9291 = vmatpush1.msra.mxu0 %v8610
    %9292 = vmatprep.subr.mxu0 0.0
    %9293 = vmatpush1.msra.mxu0 %v8613
    %9294 = vmatprep.subr.mxu0 0.0
    %9295 = vmatpush1.msra.mxu0 0.0
    %9296 = vmatprep.subr.mxu0 0.0
    %9297 = vmatpush1.msra.mxu0 0.0
    %9298 = vmatprep.subr.mxu0 0.0
    %9299 = vmatpush1.msra.mxu0 0.0
    %9300 = vmatprep.subr.mxu0 0.0
    %9301 = vmatpush1.msra.mxu0 0.0
    %9302 = vmatprep.subr.mxu0 0.0
    %9303 = vmatpush1.msra.mxu0 0.0
    %9304 = vmatprep.subr.mxu0 0.0
    %9305 = vmatpush1.msra.mxu0 0.0
    %9306 = vmatprep.subr.mxu0 0.0
    %9307 = vmatpush1.msra.mxu0 0.0
    %9308 = vmatprep.subr.mxu0 0.0
    %9309 = vmatpush1.msra.mxu0 0.0
    %9310 = vmatprep.subr.mxu0 0.0
    %9311 = vmatpush1.msra.mxu0 0.0
    %9312 = vmatprep.subr.mxu0 0.0
    %9313 = vmatpush1.msra.mxu0 0.0
    %9314 = vmatprep.subr.mxu0 0.0
    %9315 = vmatpush1.msra.mxu0 0.0
    %9316 = vmatprep.subr.mxu0 0.0
    %9317 = vmatpush1.msra.mxu0 0.0
    %9318 = vmatprep.subr.mxu0 0.0
    %9319 = vmatpush1.msra.mxu0 0.0
    %9320 = vmatprep.subr.mxu0 0.0
    %9321 = vmatpush1.msra.mxu0 0.0
    %9322 = vmatprep.subr.mxu0 0.0
    %9323 = vmatpush1.msra.mxu0 0.0
    %9324 = vmatprep.subr.mxu0 0.0
    %9325 = vmatpush1.msra.mxu0 0.0
    %9326 = vmatprep.subr.mxu0 0.0
    %9327 = vmatpush1.msra.mxu0 0.0
    %9328 = vmatprep.subr.mxu0 0.0
    %9329 = vmatpush1.msra.mxu0 0.0
    %9330 = vmatprep.subr.mxu0 0.0
    %9331 = vmatpush1.msra.mxu0 0.0
    %9332 = vmatprep.subr.mxu0 0.0
    %9333 = vmatpush1.msra.mxu0 0.0
    %9334 = vmatprep.subr.mxu0 0.0
    %9335 = vmatpush1.msra.mxu0 0.0
    %9336 = vmatprep.subr.mxu0 0.0
    %9337 = vmatpush1.msra.mxu0 0.0
    %9338 = vmatprep.subr.mxu0 0.0
    %9339 = vmatpush1.msra.mxu0 0.0
    %9340 = vmatprep.subr.mxu0 0.0
    %9341 = vmatpush1.msra.mxu0 0.0
    %9342 = vmatprep.mubr.f32.mxu0 0.0
    %9343 = vmatmul.mubr.f32.gmra.mrb[0].mxu0 %v9047
    %v9344 = vpop.f32.mrb[0].mxu0
    %v9345 = vadd.f32 %v9270, %v9344
    %v9346 = vpop.f32.mrb[0].mxu0
    %9347 = vmatprep.mubr.f32.mxu0 0.0
    %9348 = vmatmul.mubr.f32.gmra.mrb[0].mxu0 %v8737
    %v9349 = vpop.f32.mrb[0].mxu0
    %v9350 = vadd.f32 %v9275, %v9349
    %v9351 = vpop.f32.mrb[0].mxu0
    %9352 = vdwg.mxu0
    %v9353 = vld [vmem:[%s9] sm:$0x7]
    %v9355 = vlaneseq
    %v9356 = vshrl.u32 %v9355, 7
    %v9357 = vsub.s32 0, %v9356
    %v9358 = vrot.slane %v9353, %v9357
    %v9359 = vlaneseq
    %v9360 = vshrl.u32 %v9359, 7
    %v9361 = vsub.s32 1, %v9360
    %v9362 = vrot.slane %v9353, %v9361
    %v9363 = vlaneseq
    %v9364 = vshrl.u32 %v9363, 7
    %v9365 = vsub.s32 2, %v9364
    %v9366 = vrot.slane %v9353, %v9365
    %v9370 = vadd.f32 %v9193, %v9358
    %v9371 = vadd.f32 %v9195, %v9362
    %v9372 = vadd.f32 %v9345, %v9366
    %v9373 = vadd.f32 %v9199, %v9358
    %v9374 = vadd.f32 %v9201, %v9362
    %v9375 = vadd.f32 %v9350, %v9366
    %v9376 = vmax.f32 %v9370, 0.0
    %v9377 = vmax.f32 %v9371, 0.0
    %v9378 = vmax.f32 %v9372, 0.0
    %v9379 = vmax.f32 %v9373, 0.0
    %v9380 = vmax.f32 %v9374, 0.0
    %v9381 = vmax.f32 %v9375, 0.0
    %v9382 = vld [vmem:[%s10] sm:$0xff]
    %v9383 = vld [vmem:[%s10 + $0x8] sm:$0xff]
    %v9384 = vld [vmem:[%s10 + $0x10] sm:$0xff]
    %v9385 = vld [vmem:[%s10 + $0x18] sm:$0xff]
    %v9386 = vld [vmem:[%s10 + $0x20] sm:$0xff]
    %v9387 = vld [vmem:[%s10 + $0x28] sm:$0xff]
    %v9388 = vld [vmem:[%s10 + $0x30] sm:$0xff]
    %v9389 = vld [vmem:[%s10 + $0x38] sm:$0xff]
    %v9390 = vld [vmem:[%s10 + $0x40] sm:$0xff]
    %v9391 = vld [vmem:[%s10 + $0x48] sm:$0xff]
    %v9392 = vld [vmem:[%s10 + $0x50] sm:$0xff]
    %v9393 = vld [vmem:[%s10 + $0x58] sm:$0xff]
    %v9394 = vld [vmem:[%s10 + $0x60] sm:$0xff]
    %v9395 = vld [vmem:[%s10 + $0x68] sm:$0xff]
    %v9396 = vld [vmem:[%s10 + $0x70] sm:$0xff]
    %v9397 = vld [vmem:[%s10 + $0x78] sm:$0xff]
    %v9398 = vld [vmem:[%s10 + $0x80] sm:$0xff]
    %v9399 = vld [vmem:[%s10 + $0x88] sm:$0xff]
    %v9400 = vld [vmem:[%s10 + $0x90] sm:$0xff]
    %v9401 = vld [vmem:[%s10 + $0x98] sm:$0xff]
    %v9402 = vld [vmem:[%s10 + $0xa0] sm:$0xff]
    %v9403 = vld [vmem:[%s10 + $0xa8] sm:$0xff]
    %v9404 = vld [vmem:[%s10 + $0xb0] sm:$0xff]
    %v9405 = vld [vmem:[%s10 + $0xb8] sm:$0xff]
    %v9406 = vld [vmem:[%s10 + $0xc0] sm:$0xff]
    %v9407 = vld [vmem:[%s10 + $0xc8] sm:$0xff]
    %v9408 = vld [vmem:[%s10 + $0xd0] sm:$0xff]
    %v9409 = vld [vmem:[%s10 + $0xd8] sm:$0xff]
    %v9410 = vld [vmem:[%s10 + $0xe0] sm:$0xff]
    %v9411 = vld [vmem:[%s10 + $0xe8] sm:$0xff]
    %v9412 = vld [vmem:[%s10 + $0xf0] sm:$0xff]
    %v9413 = vld [vmem:[%s10 + $0xf8] sm:$0xff]
    %v9414 = vld [vmem:[%s10 + $0x100] sm:$0xff]
    %v9415 = vld [vmem:[%s10 + $0x108] sm:$0xff]
    %v9416 = vld [vmem:[%s10 + $0x110] sm:$0xff]
    %v9417 = vld [vmem:[%s10 + $0x118] sm:$0xff]
    %v9418 = vld [vmem:[%s10 + $0x120] sm:$0xff]
    %v9419 = vld [vmem:[%s10 + $0x128] sm:$0xff]
    %v9420 = vld [vmem:[%s10 + $0x130] sm:$0xff]
    %v9421 = vld [vmem:[%s10 + $0x138] sm:$0xff]
    %v9422 = vld [vmem:[%s10 + $0x140] sm:$0xff]
    %v9423 = vld [vmem:[%s10 + $0x148] sm:$0xff]
    %v9424 = vld [vmem:[%s10 + $0x150] sm:$0xff]
    %v9425 = vld [vmem:[%s10 + $0x158] sm:$0xff]
    %v9426 = vld [vmem:[%s10 + $0x160] sm:$0xff]
    %v9427 = vld [vmem:[%s10 + $0x168] sm:$0xff]
    %v9428 = vld [vmem:[%s10 + $0x170] sm:$0xff]
    %v9429 = vld [vmem:[%s10 + $0x178] sm:$0xff]
    %v9430 = vld [vmem:[%s10 + $0x180] sm:$0xff]
    %v9431 = vld [vmem:[%s10 + $0x188] sm:$0xff]
    %v9432 = vld [vmem:[%s10 + $0x190] sm:$0xff]
    %v9433 = vld [vmem:[%s10 + $0x198] sm:$0xff]
    %v9434 = vld [vmem:[%s10 + $0x1a0] sm:$0xff]
    %v9435 = vld [vmem:[%s10 + $0x1a8] sm:$0xff]
    %v9436 = vld [vmem:[%s10 + $0x1b0] sm:$0xff]
    %v9437 = vld [vmem:[%s10 + $0x1b8] sm:$0xff]
    %v9438 = vld [vmem:[%s10 + $0x1c0] sm:$0xff]
    %v9439 = vld [vmem:[%s10 + $0x1c8] sm:$0xff]
    %v9440 = vld [vmem:[%s10 + $0x1d0] sm:$0xff]
    %v9441 = vld [vmem:[%s10 + $0x1d8] sm:$0xff]
    %v9442 = vld [vmem:[%s10 + $0x1e0] sm:$0xff]
    %v9443 = vld [vmem:[%s10 + $0x1e8] sm:$0xff]
    %v9444 = vld [vmem:[%s10 + $0x1f0] sm:$0xff]
    %v9445 = vld [vmem:[%s10 + $0x1f8] sm:$0xff]
    %v9446 = vld [vmem:[%s10 + $0x200] sm:$0xff]
    %v9447 = vld [vmem:[%s10 + $0x208] sm:$0xff]
    %v9448 = vld [vmem:[%s10 + $0x210] sm:$0xff]
    %v9449 = vld [vmem:[%s10 + $0x218] sm:$0xff]
    %v9450 = vld [vmem:[%s10 + $0x220] sm:$0xff]
    %v9451 = vld [vmem:[%s10 + $0x228] sm:$0xff]
    %v9452 = vld [vmem:[%s10 + $0x230] sm:$0xff]
    %v9453 = vld [vmem:[%s10 + $0x238] sm:$0xff]
    %v9454 = vld [vmem:[%s10 + $0x240] sm:$0xff]
    %v9455 = vld [vmem:[%s10 + $0x248] sm:$0xff]
    %v9456 = vld [vmem:[%s10 + $0x250] sm:$0xff]
    %v9457 = vld [vmem:[%s10 + $0x258] sm:$0xff]
    %v9458 = vld [vmem:[%s10 + $0x260] sm:$0xff]
    %v9459 = vld [vmem:[%s10 + $0x268] sm:$0xff]
    %v9460 = vld [vmem:[%s10 + $0x270] sm:$0xff]
    %v9461 = vld [vmem:[%s10 + $0x278] sm:$0xff]
    %v9462 = vld [vmem:[%s10 + $0x280] sm:$0xff]
    %v9463 = vld [vmem:[%s10 + $0x288] sm:$0xff]
    %v9464 = vld [vmem:[%s10 + $0x290] sm:$0xff]
    %v9465 = vld [vmem:[%s10 + $0x298] sm:$0xff]
    %v9466 = vld [vmem:[%s10 + $0x2a0] sm:$0xff]
    %v9467 = vld [vmem:[%s10 + $0x2a8] sm:$0xff]
    %v9468 = vld [vmem:[%s10 + $0x2b0] sm:$0xff]
    %v9469 = vld [vmem:[%s10 + $0x2b8] sm:$0xff]
    %v9470 = vld [vmem:[%s10 + $0x2c0] sm:$0xff]
    %v9471 = vld [vmem:[%s10 + $0x2c8] sm:$0xff]
    %v9472 = vld [vmem:[%s10 + $0x2d0] sm:$0xff]
    %v9473 = vld [vmem:[%s10 + $0x2d8] sm:$0xff]
    %v9474 = vld [vmem:[%s10 + $0x2e0] sm:$0xff]
    %v9475 = vld [vmem:[%s10 + $0x2e8] sm:$0xff]
    %v9476 = vld [vmem:[%s10 + $0x2f0] sm:$0xff]
    %v9477 = vld [vmem:[%s10 + $0x2f8] sm:$0xff]
    %v9478 = vld [vmem:[%s10 + $0x300] sm:$0xff]
    %v9479 = vld [vmem:[%s10 + $0x308] sm:$0xff]
    %v9480 = vld [vmem:[%s10 + $0x310] sm:$0xff]
    %v9481 = vld [vmem:[%s10 + $0x318] sm:$0xff]
    %v9482 = vld [vmem:[%s10 + $0x320] sm:$0xff]
    %v9483 = vld [vmem:[%s10 + $0x328] sm:$0xff]
    %v9484 = vld [vmem:[%s10 + $0x330] sm:$0xff]
    %v9485 = vld [vmem:[%s10 + $0x338] sm:$0xff]
    %v9486 = vld [vmem:[%s10 + $0x340] sm:$0xff]
    %v9487 = vld [vmem:[%s10 + $0x348] sm:$0xff]
    %v9488 = vld [vmem:[%s10 + $0x350] sm:$0xff]
    %v9489 = vld [vmem:[%s10 + $0x358] sm:$0xff]
    %v9490 = vld [vmem:[%s10 + $0x360] sm:$0xff]
    %v9491 = vld [vmem:[%s10 + $0x368] sm:$0xff]
    %v9492 = vld [vmem:[%s10 + $0x370] sm:$0xff]
    %v9493 = vld [vmem:[%s10 + $0x378] sm:$0xff]
    %v9494 = vld [vmem:[%s10 + $0x380] sm:$0xff]
    %v9495 = vld [vmem:[%s10 + $0x388] sm:$0xff]
    %v9496 = vld [vmem:[%s10 + $0x390] sm:$0xff]
    %v9497 = vld [vmem:[%s10 + $0x398] sm:$0xff]
    %v9498 = vld [vmem:[%s10 + $0x3a0] sm:$0xff]
    %v9499 = vld [vmem:[%s10 + $0x3a8] sm:$0xff]
    %v9500 = vld [vmem:[%s10 + $0x3b0] sm:$0xff]
    %v9501 = vld [vmem:[%s10 + $0x3b8] sm:$0xff]
    %v9502 = vld [vmem:[%s11] sm:$0x7]
    %v9504 = vlaneseq
    %v9505 = vshrl.u32 %v9504, 7
    %v9506 = vsub.s32 0, %v9505
    %v9507 = vrot.slane %v9502, %v9506
    %v9508 = vlaneseq
    %v9509 = vshrl.u32 %v9508, 7
    %v9510 = vsub.s32 1, %v9509
    %v9511 = vrot.slane %v9502, %v9510
    %v9512 = vlaneseq
    %v9513 = vshrl.u32 %v9512, 7
    %v9514 = vsub.s32 2, %v9513
    %v9515 = vrot.slane %v9502, %v9514
    %v9520 = vsel %vm8735, %v9378, 0
    %v9523 = vsel %vm8735, %v9381, 0
    %9525 = vmatprep.subr.mxu0 %v9383
    %9526 = vmatpush1.msra.mxu0 %v9382
    %9527 = vmatprep.subr.mxu0 %v9386
    %9528 = vmatpush1.msra.mxu0 %v9385
    %9529 = vmatprep.subr.mxu0 %v9389
    %9530 = vmatpush1.msra.mxu0 %v9388
    %9531 = vmatprep.subr.mxu0 %v9392
    %9532 = vmatpush1.msra.mxu0 %v9391
    %9533 = vmatprep.subr.mxu0 %v9395
    %9534 = vmatpush1.msra.mxu0 %v9394
    %9535 = vmatprep.subr.mxu0 %v9398
    %9536 = vmatpush1.msra.mxu0 %v9397
    %9537 = vmatprep.subr.mxu0 %v9401
    %9538 = vmatpush1.msra.mxu0 %v9400
    %9539 = vmatprep.subr.mxu0 %v9404
    %9540 = vmatpush1.msra.mxu0 %v9403
    %9541 = vmatprep.subr.mxu0 %v9407
    %9542 = vmatpush1.msra.mxu0 %v9406
    %9543 = vmatprep.subr.mxu0 %v9410
    %9544 = vmatpush1.msra.mxu0 %v9409
    %9545 = vmatprep.subr.mxu0 %v9413
    %9546 = vmatpush1.msra.mxu0 %v9412
    %9547 = vmatprep.subr.mxu0 %v9416
    %9548 = vmatpush1.msra.mxu0 %v9415
    %9549 = vmatprep.subr.mxu0 %v9419
    %9550 = vmatpush1.msra.mxu0 %v9418
    %9551 = vmatprep.subr.mxu0 %v9422
    %9552 = vmatpush1.msra.mxu0 %v9421
    %9553 = vmatprep.subr.mxu0 %v9425
    %9554 = vmatpush1.msra.mxu0 %v9424
    %9555 = vmatprep.subr.mxu0 %v9428
    %9556 = vmatpush1.msra.mxu0 %v9427
    %9557 = vmatprep.subr.mxu0 %v9431
    %9558 = vmatpush1.msra.mxu0 %v9430
    %9559 = vmatprep.subr.mxu0 %v9434
    %9560 = vmatpush1.msra.mxu0 %v9433
    %9561 = vmatprep.subr.mxu0 %v9437
    %9562 = vmatpush1.msra.mxu0 %v9436
    %9563 = vmatprep.subr.mxu0 %v9440
    %9564 = vmatpush1.msra.mxu0 %v9439
    %9565 = vmatprep.subr.mxu0 %v9443
    %9566 = vmatpush1.msra.mxu0 %v9442
    %9567 = vmatprep.subr.mxu0 %v9446
    %9568 = vmatpush1.msra.mxu0 %v9445
    %9569 = vmatprep.subr.mxu0 %v9449
    %9570 = vmatpush1.msra.mxu0 %v9448
    %9571 = vmatprep.subr.mxu0 %v9452
    %9572 = vmatpush1.msra.mxu0 %v9451
    %9573 = vmatprep.subr.mxu0 %v9455
    %9574 = vmatpush1.msra.mxu0 %v9454
    %9575 = vmatprep.subr.mxu0 %v9458
    %9576 = vmatpush1.msra.mxu0 %v9457
    %9577 = vmatprep.subr.mxu0 %v9461
    %9578 = vmatpush1.msra.mxu0 %v9460
    %9579 = vmatprep.subr.mxu0 %v9464
    %9580 = vmatpush1.msra.mxu0 %v9463
    %9581 = vmatprep.subr.mxu0 %v9467
    %9582 = vmatpush1.msra.mxu0 %v9466
    %9583 = vmatprep.subr.mxu0 %v9470
    %9584 = vmatpush1.msra.mxu0 %v9469
    %9585 = vmatprep.subr.mxu0 %v9473
    %9586 = vmatpush1.msra.mxu0 %v9472
    %9587 = vmatprep.subr.mxu0 %v9476
    %9588 = vmatpush1.msra.mxu0 %v9475
    %9589 = vmatprep.mubr.f32.mxu0 %v9377
    %9590 = vmatmul.mubr.f32.gmra.mrb[0].mxu0 %v9376
    %v9591 = vpop.f32.mrb[0].mxu0
    %v9592 = vadd.f32 %v9507, %v9591
    %v9593 = vpop.f32.mrb[0].mxu0
    %v9594 = vadd.f32 %v9511, %v9593
    %9595 = vmatprep.mubr.f32.mxu0 %v9380
    %9596 = vmatmul.mubr.f32.gmra.mrb[0].mxu0 %v9379
    %v9597 = vpop.f32.mrb[0].mxu0
    %v9598 = vadd.f32 %v9507, %v9597
    %v9599 = vpop.f32.mrb[0].mxu0
    %v9600 = vadd.f32 %v9511, %v9599
    %9601 = vdwg.mxu0
    %9602 = vmatprep.subr.mxu0 %v9479
    %9603 = vmatpush1.msra.mxu0 %v9478
    %9604 = vmatprep.subr.mxu0 %v9482
    %9605 = vmatpush1.msra.mxu0 %v9481
    %9606 = vmatprep.subr.mxu0 %v9485
    %9607 = vmatpush1.msra.mxu0 %v9484
    %9608 = vmatprep.subr.mxu0 %v9488
    %9609 = vmatpush1.msra.mxu0 %v9487
    %9610 = vmatprep.subr.mxu0 %v9491
    %9611 = vmatpush1.msra.mxu0 %v9490
    %9612 = vmatprep.subr.mxu0 %v9494
    %9613 = vmatpush1.msra.mxu0 %v9493
    %9614 = vmatprep.subr.mxu0 %v9497
    %9615 = vmatpush1.msra.mxu0 %v9496
    %9616 = vmatprep.subr.mxu0 %v9500
    %9617 = vmatpush1.msra.mxu0 %v9499
    %9618 = vmatprep.subr.mxu0 0.0
    %9619 = vmatpush1.msra.mxu0 0.0
    %9620 = vmatprep.subr.mxu0 0.0
    %9621 = vmatpush1.msra.mxu0 0.0
    %9622 = vmatprep.subr.mxu0 0.0
    %9623 = vmatpush1.msra.mxu0 0.0
    %9624 = vmatprep.subr.mxu0 0.0
    %9625 = vmatpush1.msra.mxu0 0.0
    %9626 = vmatprep.subr.mxu0 0.0
    %9627 = vmatpush1.msra.mxu0 0.0
    %9628 = vmatprep.subr.mxu0 0.0
    %9629 = vmatpush1.msra.mxu0 0.0
    %9630 = vmatprep.subr.mxu0 0.0
    %9631 = vmatpush1.msra.mxu0 0.0
    %9632 = vmatprep.subr.mxu0 0.0
    %9633 = vmatpush1.msra.mxu0 0.0
    %9634 = vmatprep.subr.mxu0 0.0
    %9635 = vmatpush1.msra.mxu0 0.0
    %9636 = vmatprep.subr.mxu0 0.0
    %9637 = vmatpush1.msra.mxu0 0.0
    %9638 = vmatprep.subr.mxu0 0.0
    %9639 = vmatpush1.msra.mxu0 0.0
    %9640 = vmatprep.subr.mxu0 0.0
    %9641 = vmatpush1.msra.mxu0 0.0
    %9642 = vmatprep.subr.mxu0 0.0
    %9643 = vmatpush1.msra.mxu0 0.0
    %9644 = vmatprep.subr.mxu0 0.0
    %9645 = vmatpush1.msra.mxu0 0.0
    %9646 = vmatprep.subr.mxu0 0.0
    %9647 = vmatpush1.msra.mxu0 0.0
    %9648 = vmatprep.subr.mxu0 0.0
    %9649 = vmatpush1.msra.mxu0 0.0
    %9650 = vmatprep.subr.mxu0 0.0
    %9651 = vmatpush1.msra.mxu0 0.0
    %9652 = vmatprep.subr.mxu0 0.0
    %9653 = vmatpush1.msra.mxu0 0.0
    %9654 = vmatprep.subr.mxu0 0.0
    %9655 = vmatpush1.msra.mxu0 0.0
    %9656 = vmatprep.subr.mxu0 0.0
    %9657 = vmatpush1.msra.mxu0 0.0
    %9658 = vmatprep.subr.mxu0 0.0
    %9659 = vmatpush1.msra.mxu0 0.0
    %9660 = vmatprep.subr.mxu0 0.0
    %9661 = vmatpush1.msra.mxu0 0.0
    %9662 = vmatprep.subr.mxu0 0.0
    %9663 = vmatpush1.msra.mxu0 0.0
    %9664 = vmatprep.subr.mxu0 0.0
    %9665 = vmatpush1.msra.mxu0 0.0
    %9666 = vmatprep.mubr.f32.mxu0 0.0
    %9667 = vmatmul.mubr.f32.gmra.mrb[0].mxu0 %v9520
    %v9668 = vpop.f32.mrb[0].mxu0
    %v9669 = vadd.f32 %v9592, %v9668
    %v9670 = vpop.f32.mrb[0].mxu0
    %v9671 = vadd.f32 %v9594, %v9670
    %9672 = vmatprep.mubr.f32.mxu0 0.0
    %9673 = vmatmul.mubr.f32.gmra.mrb[0].mxu0 %v9523
    %v9674 = vpop.f32.mrb[0].mxu0
    %v9675 = vadd.f32 %v9598, %v9674
    %v9676 = vpop.f32.mrb[0].mxu0
    %v9677 = vadd.f32 %v9600, %v9676
    %9678 = vdwg.mxu0
    %9679 = vmatprep.subr.mxu0 0.0
    %9680 = vmatpush1.msra.mxu0 %v9384
    %9681 = vmatprep.subr.mxu0 0.0
    %9682 = vmatpush1.msra.mxu0 %v9387
    %9683 = vmatprep.subr.mxu0 0.0
    %9684 = vmatpush1.msra.mxu0 %v9390
    %9685 = vmatprep.subr.mxu0 0.0
    %9686 = vmatpush1.msra.mxu0 %v9393
    %9687 = vmatprep.subr.mxu0 0.0
    %9688 = vmatpush1.msra.mxu0 %v9396
    %9689 = vmatprep.subr.mxu0 0.0
    %9690 = vmatpush1.msra.mxu0 %v9399
    %9691 = vmatprep.subr.mxu0 0.0
    %9692 = vmatpush1.msra.mxu0 %v9402
    %9693 = vmatprep.subr.mxu0 0.0
    %9694 = vmatpush1.msra.mxu0 %v9405
    %9695 = vmatprep.subr.mxu0 0.0
    %9696 = vmatpush1.msra.mxu0 %v9408
    %9697 = vmatprep.subr.mxu0 0.0
    %9698 = vmatpush1.msra.mxu0 %v9411
    %9699 = vmatprep.subr.mxu0 0.0
    %9700 = vmatpush1.msra.mxu0 %v9414
    %9701 = vmatprep.subr.mxu0 0.0
    %9702 = vmatpush1.msra.mxu0 %v9417
    %9703 = vmatprep.subr.mxu0 0.0
    %9704 = vmatpush1.msra.mxu0 %v9420
    %9705 = vmatprep.subr.mxu0 0.0
    %9706 = vmatpush1.msra.mxu0 %v9423
    %9707 = vmatprep.subr.mxu0 0.0
    %9708 = vmatpush1.msra.mxu0 %v9426
    %9709 = vmatprep.subr.mxu0 0.0
    %9710 = vmatpush1.msra.mxu0 %v9429
    %9711 = vmatprep.subr.mxu0 0.0
    %9712 = vmatpush1.msra.mxu0 %v9432
    %9713 = vmatprep.subr.mxu0 0.0
    %9714 = vmatpush1.msra.mxu0 %v9435
    %9715 = vmatprep.subr.mxu0 0.0
    %9716 = vmatpush1.msra.mxu0 %v9438
    %9717 = vmatprep.subr.mxu0 0.0
    %9718 = vmatpush1.msra.mxu0 %v9441
    %9719 = vmatprep.subr.mxu0 0.0
    %9720 = vmatpush1.msra.mxu0 %v9444
    %9721 = vmatprep.subr.mxu0 0.0
    %9722 = vmatpush1.msra.mxu0 %v9447
    %9723 = vmatprep.subr.mxu0 0.0
    %9724 = vmatpush1.msra.mxu0 %v9450
    %9725 = vmatprep.subr.mxu0 0.0
    %9726 = vmatpush1.msra.mxu0 %v9453
    %9727 = vmatprep.subr.mxu0 0.0
    %9728 = vmatpush1.msra.mxu0 %v9456
    %9729 = vmatprep.subr.mxu0 0.0
    %9730 = vmatpush1.msra.mxu0 %v9459
    %9731 = vmatprep.subr.mxu0 0.0
    %9732 = vmatpush1.msra.mxu0 %v9462
    %9733 = vmatprep.subr.mxu0 0.0
    %9734 = vmatpush1.msra.mxu0 %v9465
    %9735 = vmatprep.subr.mxu0 0.0
    %9736 = vmatpush1.msra.mxu0 %v9468
    %9737 = vmatprep.subr.mxu0 0.0
    %9738 = vmatpush1.msra.mxu0 %v9471
    %9739 = vmatprep.subr.mxu0 0.0
    %9740 = vmatpush1.msra.mxu0 %v9474
    %9741 = vmatprep.subr.mxu0 0.0
    %9742 = vmatpush1.msra.mxu0 %v9477
    %9743 = vmatprep.mubr.f32.mxu0 %v9377
    %9744 = vmatmul.mubr.f32.gmra.mrb[0].mxu0 %v9376
    %v9745 = vpop.f32.mrb[0].mxu0
    %v9746 = vadd.f32 %v9515, %v9745
    %v9747 = vpop.f32.mrb[0].mxu0
    %9748 = vmatprep.mubr.f32.mxu0 %v9380
    %9749 = vmatmul.mubr.f32.gmra.mrb[0].mxu0 %v9379
    %v9750 = vpop.f32.mrb[0].mxu0
    %v9751 = vadd.f32 %v9515, %v9750
    %v9752 = vpop.f32.mrb[0].mxu0
    %9753 = vdwg.mxu0
    %9754 = vmatprep.subr.mxu0 0.0
    %9755 = vmatpush1.msra.mxu0 %v9480
    %9756 = vmatprep.subr.mxu0 0.0
    %9757 = vmatpush1.msra.mxu0 %v9483
    %9758 = vmatprep.subr.mxu0 0.0
    %9759 = vmatpush1.msra.mxu0 %v9486
    %9760 = vmatprep.subr.mxu0 0.0
    %9761 = vmatpush1.msra.mxu0 %v9489
    %9762 = vmatprep.subr.mxu0 0.0
    %9763 = vmatpush1.msra.mxu0 %v9492
    %9764 = vmatprep.subr.mxu0 0.0
    %9765 = vmatpush1.msra.mxu0 %v9495
    %9766 = vmatprep.subr.mxu0 0.0
    %9767 = vmatpush1.msra.mxu0 %v9498
    %9768 = vmatprep.subr.mxu0 0.0
    %9769 = vmatpush1.msra.mxu0 %v9501
    %9770 = vmatprep.subr.mxu0 0.0
    %9771 = vmatpush1.msra.mxu0 0.0
    %9772 = vmatprep.subr.mxu0 0.0
    %9773 = vmatpush1.msra.mxu0 0.0
    %9774 = vmatprep.subr.mxu0 0.0
    %9775 = vmatpush1.msra.mxu0 0.0
    %9776 = vmatprep.subr.mxu0 0.0
    %9777 = vmatpush1.msra.mxu0 0.0
    %9778 = vmatprep.subr.mxu0 0.0
    %9779 = vmatpush1.msra.mxu0 0.0
    %9780 = vmatprep.subr.mxu0 0.0
    %9781 = vmatpush1.msra.mxu0 0.0
    %9782 = vmatprep.subr.mxu0 0.0
    %9783 = vmatpush1.msra.mxu0 0.0
    %9784 = vmatprep.subr.mxu0 0.0
    %9785 = vmatpush1.msra.mxu0 0.0
    %9786 = vmatprep.subr.mxu0 0.0
    %9787 = vmatpush1.msra.mxu0 0.0
    %9788 = vmatprep.subr.mxu0 0.0
    %9789 = vmatpush1.msra.mxu0 0.0
    %9790 = vmatprep.subr.mxu0 0.0
    %9791 = vmatpush1.msra.mxu0 0.0
    %9792 = vmatprep.subr.mxu0 0.0
    %9793 = vmatpush1.msra.mxu0 0.0
    %9794 = vmatprep.subr.mxu0 0.0
    %9795 = vmatpush1.msra.mxu0 0.0
    %9796 = vmatprep.subr.mxu0 0.0
    %9797 = vmatpush1.msra.mxu0 0.0
    %9798 = vmatprep.subr.mxu0 0.0
    %9799 = vmatpush1.msra.mxu0 0.0
    %9800 = vmatprep.subr.mxu0 0.0
    %9801 = vmatpush1.msra.mxu0 0.0
    %9802 = vmatprep.subr.mxu0 0.0
    %9803 = vmatpush1.msra.mxu0 0.0
    %9804 = vmatprep.subr.mxu0 0.0
    %9805 = vmatpush1.msra.mxu0 0.0
    %9806 = vmatprep.subr.mxu0 0.0
    %9807 = vmatpush1.msra.mxu0 0.0
    %9808 = vmatprep.subr.mxu0 0.0
    %9809 = vmatpush1.msra.mxu0 0.0
    %9810 = vmatprep.subr.mxu0 0.0
    %9811 = vmatpush1.msra.mxu0 0.0
    %9812 = vmatprep.subr.mxu0 0.0
    %9813 = vmatpush1.msra.mxu0 0.0
    %9814 = vmatprep.subr.mxu0 0.0
    %9815 = vmatpush1.msra.mxu0 0.0
    %9816 = vmatprep.subr.mxu0 0.0
    %9817 = vmatpush1.msra.mxu0 0.0
    %9818 = vmatprep.mubr.f32.mxu0 0.0
    %9819 = vmatmul.mubr.f32.gmra.mrb[0].mxu0 %v9520
    %v9820 = vpop.f32.mrb[0].mxu0
    %v9821 = vadd.f32 %v9746, %v9820
    %v9822 = vpop.f32.mrb[0].mxu0
    %9823 = vmatprep.mubr.f32.mxu0 0.0
    %9824 = vmatmul.mubr.f32.gmra.mrb[0].mxu0 %v9523
    %v9825 = vpop.f32.mrb[0].mxu0
    %v9826 = vadd.f32 %v9751, %v9825
    %v9827 = vpop.f32.mrb[0].mxu0
    %9828 = vdwg.mxu0
    %v9829 = vmax.f32 %v9669, 0.0
    %v9830 = vmax.f32 %v9671, 0.0
    %v9831 = vmax.f32 %v9821, 0.0
    %v9832 = vmax.f32 %v9675, 0.0
    %v9833 = vmax.f32 %v9677, 0.0
    %v9834 = vmax.f32 %v9826, 0.0
    %v9835 = vadd.f32 %v9829, %v8259
    %v9836 = vadd.f32 %v9830, %v8261
    %v9837 = vadd.f32 %v9831, %v8486
    %v9838 = vadd.f32 %v9832, %v8265
    %v9839 = vadd.f32 %v9833, %v8267
    %v9840 = vadd.f32 %v9834, %v8491
    %v9841 = vadd.f32 %v9835, %v9838
    %v9842 = vadd.f32 %v9836, %v9839
    %v9843 = vsel %vm8735, %v9837, 0.0
    %v9844 = vsel %vm8735, %v9840, 0.0
    %v9845 = vadd.f32 %v9843, %v9844
    %v9846 = vld [vmem:[#allocation8] sm:$0xff]
    %v9847 = vld [vmem:[#allocation8 + $0x8] sm:$0xff]
    %v9848 = vld [vmem:[#allocation8 + $0x10] sm:$0xff]
    %v9849 = vld [vmem:[#allocation8 + $0x18] sm:$0xff]
    %v9850 = vld [vmem:[#allocation8 + $0x20] sm:$0xff]
    %v9851 = vld [vmem:[#allocation8 + $0x28] sm:$0xff]
    %v9852 = vld [vmem:[#allocation8 + $0x30] sm:$0xff]
    %v9853 = vld [vmem:[#allocation8 + $0x38] sm:$0xff]
    %v9854 = vld [vmem:[#allocation8 + $0x40] sm:$0xff]
    %v9855 = vld [vmem:[#allocation8 + $0x48] sm:$0xff]
    %v9856 = vld [vmem:[#allocation8 + $0x50] sm:$0xff]
    %v9857 = vld [vmem:[#allocation8 + $0x58] sm:$0xff]
    %v9858 = vld [vmem:[#allocation8 + $0x60] sm:$0xff]
    %v9859 = vld [vmem:[#allocation8 + $0x68] sm:$0xff]
    %v9860 = vld [vmem:[#allocation8 + $0x70] sm:$0xff]
    %v9861 = vld [vmem:[#allocation8 + $0x78] sm:$0xff]
    %v9862 = vld [vmem:[#allocation8 + $0x80] sm:$0xff]
    %v9863 = vld [vmem:[#allocation8 + $0x88] sm:$0xff]
    %v9864 = vld [vmem:[#allocation8 + $0x90] sm:$0xff]
    %v9865 = vld [vmem:[#allocation8 + $0x98] sm:$0xff]
    %v9866 = vld [vmem:[#allocation8 + $0xa0] sm:$0xff]
    %v9867 = vld [vmem:[#allocation8 + $0xa8] sm:$0xff]
    %v9868 = vld [vmem:[#allocation8 + $0xb0] sm:$0xff]
    %v9869 = vld [vmem:[#allocation8 + $0xb8] sm:$0xff]
    %v9870 = vld [vmem:[#allocation8 + $0xc0] sm:$0xff]
    %v9871 = vld [vmem:[#allocation8 + $0xc8] sm:$0xff]
    %v9872 = vld [vmem:[#allocation8 + $0xd0] sm:$0xff]
    %v9873 = vld [vmem:[#allocation8 + $0xd8] sm:$0xff]
    %v9874 = vld [vmem:[#allocation8 + $0xe0] sm:$0xff]
    %v9875 = vld [vmem:[#allocation8 + $0xe8] sm:$0xff]
    %v9876 = vld [vmem:[#allocation8 + $0xf0] sm:$0xff]
    %v9877 = vld [vmem:[#allocation8 + $0xf8] sm:$0xff]
    %v9878 = vld [vmem:[#allocation8 + $0x100] sm:$0xff]
    %v9879 = vld [vmem:[#allocation8 + $0x108] sm:$0xff]
    %v9880 = vld [vmem:[#allocation8 + $0x110] sm:$0xff]
    %v9881 = vld [vmem:[#allocation8 + $0x118] sm:$0xff]
    %v9882 = vld [vmem:[#allocation8 + $0x120] sm:$0xff]
    %v9883 = vld [vmem:[#allocation8 + $0x128] sm:$0xff]
    %v9884 = vld [vmem:[#allocation8 + $0x130] sm:$0xff]
    %v9885 = vld [vmem:[#allocation8 + $0x138] sm:$0xff]
    %v9886 = vld [vmem:[#allocation2] sm:$0x1]
    %v9888 = vlaneseq
    %v9889 = vshrl.u32 %v9888, 7
    %v9890 = vsub.s32 0, %v9889
    %v9891 = vrot.slane %v9886, %v9890
    %v9894 = vsel %vm8735, %v9845, 0
    %9896 = vmatprep.subr.mxu0 0.0
    %9897 = vmatpush1.msra.mxu0 %v9846
    %9898 = vmatprep.subr.mxu0 0.0
    %9899 = vmatpush1.msra.mxu0 %v9847
    %9900 = vmatprep.subr.mxu0 0.0
    %9901 = vmatpush1.msra.mxu0 %v9848
    %9902 = vmatprep.subr.mxu0 0.0
    %9903 = vmatpush1.msra.mxu0 %v9849
    %9904 = vmatprep.subr.mxu0 0.0
    %9905 = vmatpush1.msra.mxu0 %v9850
    %9906 = vmatprep.subr.mxu0 0.0
    %9907 = vmatpush1.msra.mxu0 %v9851
    %9908 = vmatprep.subr.mxu0 0.0
    %9909 = vmatpush1.msra.mxu0 %v9852
    %9910 = vmatprep.subr.mxu0 0.0
    %9911 = vmatpush1.msra.mxu0 %v9853
    %9912 = vmatprep.subr.mxu0 0.0
    %9913 = vmatpush1.msra.mxu0 %v9854
    %9914 = vmatprep.subr.mxu0 0.0
    %9915 = vmatpush1.msra.mxu0 %v9855
    %9916 = vmatprep.subr.mxu0 0.0
    %9917 = vmatpush1.msra.mxu0 %v9856
    %9918 = vmatprep.subr.mxu0 0.0
    %9919 = vmatpush1.msra.mxu0 %v9857
    %9920 = vmatprep.subr.mxu0 0.0
    %9921 = vmatpush1.msra.mxu0 %v9858
    %9922 = vmatprep.subr.mxu0 0.0
    %9923 = vmatpush1.msra.mxu0 %v9859
    %9924 = vmatprep.subr.mxu0 0.0
    %9925 = vmatpush1.msra.mxu0 %v9860
    %9926 = vmatprep.subr.mxu0 0.0
    %9927 = vmatpush1.msra.mxu0 %v9861
    %9928 = vmatprep.subr.mxu0 0.0
    %9929 = vmatpush1.msra.mxu0 %v9862
    %9930 = vmatprep.subr.mxu0 0.0
    %9931 = vmatpush1.msra.mxu0 %v9863
    %9932 = vmatprep.subr.mxu0 0.0
    %9933 = vmatpush1.msra.mxu0 %v9864
    %9934 = vmatprep.subr.mxu0 0.0
    %9935 = vmatpush1.msra.mxu0 %v9865
    %9936 = vmatprep.subr.mxu0 0.0
    %9937 = vmatpush1.msra.mxu0 %v9866
    %9938 = vmatprep.subr.mxu0 0.0
    %9939 = vmatpush1.msra.mxu0 %v9867
    %9940 = vmatprep.subr.mxu0 0.0
    %9941 = vmatpush1.msra.mxu0 %v9868
    %9942 = vmatprep.subr.mxu0 0.0
    %9943 = vmatpush1.msra.mxu0 %v9869
    %9944 = vmatprep.subr.mxu0 0.0
    %9945 = vmatpush1.msra.mxu0 %v9870
    %9946 = vmatprep.subr.mxu0 0.0
    %9947 = vmatpush1.msra.mxu0 %v9871
    %9948 = vmatprep.subr.mxu0 0.0
    %9949 = vmatpush1.msra.mxu0 %v9872
    %9950 = vmatprep.subr.mxu0 0.0
    %9951 = vmatpush1.msra.mxu0 %v9873
    %9952 = vmatprep.subr.mxu0 0.0
    %9953 = vmatpush1.msra.mxu0 %v9874
    %9954 = vmatprep.subr.mxu0 0.0
    %9955 = vmatpush1.msra.mxu0 %v9875
    %9956 = vmatprep.subr.mxu0 0.0
    %9957 = vmatpush1.msra.mxu0 %v9876
    %9958 = vmatprep.subr.mxu0 0.0
    %9959 = vmatpush1.msra.mxu0 %v9877
    %9960 = vmatprep.mubr.f32.mxu0 %v9842
    %9961 = vmatmul.mubr.f32.gmra.mrb[0].mxu0 %v9841
    %v9962 = vpop.f32.mrb[0].mxu0
    %v9963 = vadd.f32 %v9891, %v9962
    %v9964 = vpop.f32.mrb[0].mxu0
    %9965 = vdwg.mxu0
    %9966 = vmatprep.subr.mxu0 0.0
    %9967 = vmatpush1.msra.mxu0 %v9878
    %9968 = vmatprep.subr.mxu0 0.0
    %9969 = vmatpush1.msra.mxu0 %v9879
    %9970 = vmatprep.subr.mxu0 0.0
    %9971 = vmatpush1.msra.mxu0 %v9880
    %9972 = vmatprep.subr.mxu0 0.0
    %9973 = vmatpush1.msra.mxu0 %v9881
    %9974 = vmatprep.subr.mxu0 0.0
    %9975 = vmatpush1.msra.mxu0 %v9882
    %9976 = vmatprep.subr.mxu0 0.0
    %9977 = vmatpush1.msra.mxu0 %v9883
    %9978 = vmatprep.subr.mxu0 0.0
    %9979 = vmatpush1.msra.mxu0 %v9884
    %9980 = vmatprep.subr.mxu0 0.0
    %9981 = vmatpush1.msra.mxu0 %v9885
    %9982 = vmatprep.subr.mxu0 0.0
    %9983 = vmatpush1.msra.mxu0 0.0
    %9984 = vmatprep.subr.mxu0 0.0
    %9985 = vmatpush1.msra.mxu0 0.0
    %9986 = vmatprep.subr.mxu0 0.0
    %9987 = vmatpush1.msra.mxu0 0.0
    %9988 = vmatprep.subr.mxu0 0.0
    %9989 = vmatpush1.msra.mxu0 0.0
    %9990 = vmatprep.subr.mxu0 0.0
    %9991 = vmatpush1.msra.mxu0 0.0
    %9992 = vmatprep.subr.mxu0 0.0
    %9993 = vmatpush1.msra.mxu0 0.0
    %9994 = vmatprep.subr.mxu0 0.0
    %9995 = vmatpush1.msra.mxu0 0.0
    %9996 = vmatprep.subr.mxu0 0.0
    %9997 = vmatpush1.msra.mxu0 0.0
    %9998 = vmatprep.subr.mxu0 0.0
    %9999 = vmatpush1.msra.mxu0 0.0
    %10000 = vmatprep.subr.mxu0 0.0
    %10001 = vmatpush1.msra.mxu0 0.0
    %10002 = vmatprep.subr.mxu0 0.0
    %10003 = vmatpush1.msra.mxu0 0.0
    %10004 = vmatprep.subr.mxu0 0.0
    %10005 = vmatpush1.msra.mxu0 0.0
    %10006 = vmatprep.subr.mxu0 0.0
    %10007 = vmatpush1.msra.mxu0 0.0
    %10008 = vmatprep.subr.mxu0 0.0
    %10009 = vmatpush1.msra.mxu0 0.0
    %10010 = vmatprep.subr.mxu0 0.0
    %10011 = vmatpush1.msra.mxu0 0.0
    %10012 = vmatprep.subr.mxu0 0.0
    %10013 = vmatpush1.msra.mxu0 0.0
    %10014 = vmatprep.subr.mxu0 0.0
    %10015 = vmatpush1.msra.mxu0 0.0
    %10016 = vmatprep.subr.mxu0 0.0
    %10017 = vmatpush1.msra.mxu0 0.0
    %10018 = vmatprep.subr.mxu0 0.0
    %10019 = vmatpush1.msra.mxu0 0.0
    %10020 = vmatprep.subr.mxu0 0.0
    %10021 = vmatpush1.msra.mxu0 0.0
    %10022 = vmatprep.subr.mxu0 0.0
    %10023 = vmatpush1.msra.mxu0 0.0
    %10024 = vmatprep.subr.mxu0 0.0
    %10025 = vmatpush1.msra.mxu0 0.0
    %10026 = vmatprep.subr.mxu0 0.0
    %10027 = vmatpush1.msra.mxu0 0.0
    %10028 = vmatprep.subr.mxu0 0.0
    %10029 = vmatpush1.msra.mxu0 0.0
    %10030 = vmatprep.mubr.f32.mxu0 0.0
    %10031 = vmatmul.mubr.f32.gmra.mrb[0].mxu0 %v9894
    %v10032 = vpop.f32.mrb[0].mxu0
    %v10033 = vadd.f32 %v9963, %v10032
    %v10034 = vpop.f32.mrb[0].mxu0
    %10035 = vdwg.mxu0
    %v10036 = vlaneseq
    %v10037 = vshrl.u32 %v10036, 7
    %v10038 = vlaneseq
    %v10039 = vand.u32 %v10038, 127
    %vm10040 = vcmp.eq.s32.totalorder %v10037, %v10039
    %v10041 = vsel %vm10040, 1, 0
    %v10042 = vcvt.s32.f32 %v10041
    %10044 = vset.pattern.permute.xlu0 0
    %10045 = vperm.xlu0 %10044, %v10033
    %v10046 = vpop.permute.xlu0 %10045
    %v10048 = vmul.f32 %v10046, %v10042
    %vm10049 = vcmask 64512
    %v10050 = vsel %vm10049, %v10048, 0.0
    %v10051 = vrot.slane %v10050, 4
    %v10052 = vadd.f32 %v10050, %v10051
    %v10053 = vrot.slane %v10052, 2
    %v10054 = vadd.f32 %v10052, %v10053
    %v10055 = vrot.slane %v10054, 1
    %v10056 = vadd.f32 %v10054, %v10055
    %vm10057 = vcmask 57344
    %10058 = vst.msk [vmem:[%s14] sm:$0x1] %vm10057, %v10056
    // Predicated region
    $region74: #{resnet2_forward.1} parent=1 // pred_check
      _
    $region75: #{resnet2_forward.1} parent=1 // pred_check_branch
      %10060 = sbr.rel (0) target = $region77
    $region76: #{resnet2_forward.1} parent=1 // pred_region
      _
    $region77: #{resnet2_forward.1} parent=1 // pred_fallthru
      _
    // Predicated region
    $region78: #{resnet2_forward.1} parent=1 // pred_check
      _
    $region79: #{resnet2_forward.1} parent=1 // pred_check_branch
      %10062 = sbr.rel (0) target = $region81
    $region80: #{resnet2_forward.1} parent=1 // pred_region
      _
    $region81: #{resnet2_forward.1} parent=1 // pred_fallthru
      _
    %10063 = vsyncpa [#allocation4], 1
    %10064 = vsyncpa [#allocation6], 1
    %10065 = vsyncpa [#allocation9], 1

</llo_original>
